<compile_context>
chip_gen: v5e
topology: v5e:2x2
jax: 0.10.0
libtpu: 0.0.40
codegen_flags: <defaults>
</compile_context>

<pallas_src>
import functools

import jax
import jax.numpy as jnp
from jax.experimental import pallas as pl
from jax.experimental.pallas import tpu as pltpu


def pack_int4_kmajor(w_int4):
    """Pack (N, K) int4 values (int32 in [-8, 7]) -> (K//8, N) uint32, K-major.

    Nibble j (bits [4j, 4j+3]) of packed[i, n] is W[n, j*(K//8) + i], i.e. row
    j*Kp + i of W.T.  unpack(pack(w)) == w, so end-to-end math matches the
    reference; the pre-transposed layout makes the kernel's dot a NN matmul.
    """
    N, K = w_int4.shape
    assert K % 8 == 0
    Kp = K // 8
    wt = w_int4.T  # (K, N)
    packed = jnp.zeros((Kp, N), dtype=jnp.uint32)
    for j in range(8):
        plane = (wt[j * Kp:(j + 1) * Kp, :] & 0xF).astype(jnp.uint32)
        packed = packed | (plane << (4 * j))
    return packed


def _tpu_generation():
    """Best-effort TPU generation from device_kind; None if unknown."""
    try:
        kind = jax.devices()[0].device_kind.lower()
    except Exception:
        return None
    for tok, gen in (("v7", 7), ("7x", 7), ("v6", 6), ("v5", 5),
                     ("v4", 4), ("v3", 3), ("v2", 2)):
        if tok in kind:
            return gen
    return None


def _vmem_capacity_bytes(gen):
    try:
        return int(pltpu.get_tpu_info().vmem_capacity_bytes)
    except Exception:
        # Fallbacks: v7x has 64 MiB per TensorCore, earlier gens 128 MiB.
        return (64 << 20) if gen == 7 else (128 << 20)


def _down_proj_kernel(group_size, use_bf16_dequant, interleave,
                      x_ref, xs_ref, wp_ref, ws_ref, res_ref, b_ref, o_ref,
                      wdeq_ref, acc_ref):
    # x_ref   : (tm, K)        float8_e4m3fn (bf16 on v5e)
    # xs_ref  : (tm, 1)        bf16   (per-token activation scale)
    # wp_ref  : (K//8, tn)     uint32 (packed int4 W.T, K-major planes)
    # ws_ref  : (K//gs, tn)    bf16   (group scales, exact upcast of fp8)
    # res_ref : (tm, tn)       bf16
    # b_ref   : (1, tn)        bf16
    # o_ref   : (tm, tn)       bf16
    # wdeq_ref: (K, tn)        bf16 VMEM scratch (dequantized W.T tile)
    # acc_ref : (tm, tn)       f32  VMEM scratch (matmul accumulator)
    Kp, tn = wp_ref.shape
    gpp = Kp // group_size  # quant groups per nibble plane
    dq_dtype = jnp.bfloat16 if use_bf16_dequant else jnp.float32
    first = pl.program_id(1) == 0

    # Dequantize the weight tile once per N tile; reuse for every M tile.
    # On the first M step, interleave plane-wise MXU dots with the (VALU-bound)
    # dequant so the matmul hides under it (MXU / VALU use different VLIW slots).
    @pl.when(first)
    def _dequant_first():
        wp_i32 = pltpu.bitcast(wp_ref[...], jnp.int32)        # (Kp, tn)
        ws = ws_ref[...].astype(dq_dtype)                      # (K/gs, tn), tiny
        if interleave:
            acc_ref[...] = jnp.zeros_like(acc_ref)
        for j in range(8):                                     # static unroll
            # Sign-extend nibble j: shift-left so bit 4j+3 is the MSB, then
            # arithmetic shift right (2 VALU ops, no compare/select).
            sgn = (wp_i32 << (28 - 4 * j)) >> 28               # int32 in [-8, 7]
            wj = sgn.astype(dq_dtype).reshape(gpp, group_size, tn)
            wj = wj * ws[j * gpp:(j + 1) * gpp, :].reshape(gpp, 1, tn)
            plane = wj.reshape(Kp, tn).astype(jnp.bfloat16)    # exact
            wdeq_ref[j * Kp:(j + 1) * Kp, :] = plane
            if interleave:
                xj = x_ref[:, pl.ds(j * Kp, Kp)].astype(jnp.bfloat16)
                acc_ref[...] += jnp.dot(xj, plane,
                                        preferred_element_type=jnp.float32)

    if interleave:
        @pl.when(pl.program_id(1) > 0)
        def _dot_rest():
            # Single full-depth NN matmul on the MXU, f32 accumulation.
            x = x_ref[...].astype(jnp.bfloat16)
            acc_ref[...] = jnp.dot(x, wdeq_ref[...],
                                   preferred_element_type=jnp.float32)
    else:
        x = x_ref[...].astype(jnp.bfloat16)
        acc_ref[...] = jnp.dot(x, wdeq_ref[...],
                               preferred_element_type=jnp.float32)

    # Epilogue (VPU, free filler under the MXU-bound steady state).  NOTE: do
    # not pre-scale x with xs (that would be tm*K multiplies instead of tm*tn).
    y = (acc_ref[...] * xs_ref[...].astype(jnp.float32)
         + res_ref[...].astype(jnp.float32)
         + b_ref[...].astype(jnp.float32))
    o_ref[...] = y.astype(jnp.bfloat16)


def down_proj(x_fp8, x_scale_bf16, w_packed_kmajor, w_scale_t_bf16, residual,
              bias_bf16, group_size, *, tm=256, tn=None):
    M, K = x_fp8.shape
    Kp, N = w_packed_kmajor.shape
    assert K == Kp * 8
    assert Kp % group_size == 0, "quant group must fit inside a nibble plane"
    n_groups = K // group_size
    assert w_scale_t_bf16.shape == (n_groups, N)
    assert residual.shape == (M, N)

    gen = _tpu_generation()
    vmem_cap = _vmem_capacity_bytes(gen)

    # ---- generation-aware tile selection -------------------------------------
    if tn is None:
        # v6e: tn=512 moves the kernel from x-DMA-bound to MXU-bound.
        tn = 512 if (gen == 6 and N % 512 == 0) else 256
    tn = min(tn, N)
    # v7x: make sure the parallel N axis has >=2 tiles so both TCs get work.
    if gen == 7 and (N // tn) < 2 and N >= 2 * 128 and N % 128 == 0:
        tn = 128
    assert N % tn == 0 and tn % 128 == 0

    # v5e has no fp8 hardware: feed bf16 activations (cheap wrapper cast) and
    # keep the dequant arithmetic in f32 (no bf16 VALU).  v6e/v7x keep fp8
    # activations (half the x DMA) and do the dequant in bf16 (bit-exact).
    x_in = x_fp8
    use_bf16_dequant = True
    if gen is not None and gen <= 5:
        x_in = x_fp8.astype(jnp.bfloat16)
        use_bf16_dequant = False
    x_itemsize = jnp.dtype(x_in.dtype).itemsize
    m_align = 32 if x_itemsize == 1 else 16

    tm = min(tm, M)
    assert M % tm == 0 and tm % m_align == 0, (
        f"M tile {tm} must divide M={M} and be a multiple of {m_align}")

    if bias_bf16 is None:
        bias_bf16 = jnp.zeros((1, N), jnp.bfloat16)
    bias_bf16 = jnp.asarray(bias_bf16).reshape(1, N).astype(jnp.bfloat16)

    # Plane-interleaved dot needs 128-aligned lane slices of x.
    interleave = (Kp % 128 == 0)
    # v7x (64 MiB VMEM): weights/scales only change once per N tile, so single-
    # buffer them and spend the VMEM on the dequant scratch instead.
    single_buffer_weights = (gen == 7)

    kernel = functools.partial(_down_proj_kernel, group_size,
                               use_bf16_dequant, interleave)

    if single_buffer_weights:
        wp_spec = pl.BlockSpec((Kp, tn), lambda j, i: (0, j),
                               pipeline_mode=pl.Buffered(1))
        ws_spec = pl.BlockSpec((n_groups, tn), lambda j, i: (0, j),
                               pipeline_mode=pl.Buffered(1))
        w_bufs = 1
    else:
        wp_spec = pl.BlockSpec((Kp, tn), lambda j, i: (0, j))
        ws_spec = pl.BlockSpec((n_groups, tn), lambda j, i: (0, j))
        w_bufs = 2

    # VMEM budget: actual buffer counts (double-buffered streaming operands,
    # w_bufs for the weight/scale specs) plus scratch; capped by chip capacity.
    est = (2 * (tm * K * x_itemsize        # x
                + tm * 2                   # x scale
                + tm * tn * 2              # residual
                + tn * 2                   # bias
                + tm * tn * 2)             # output
           + w_bufs * (Kp * tn * 4 + n_groups * tn * 2)
           + K * tn * 2                    # dequantized-weight scratch
           + tm * tn * 4)                  # f32 accumulator scratch
    vmem_limit = int(min(max(est + est // 4 + (2 << 20), 16 << 20),
                         0.8 * vmem_cap))

    return pl.pallas_call(
        kernel,
        out_shape=jax.ShapeDtypeStruct((M, N), jnp.bfloat16),
        grid_spec=pltpu.PrefetchScalarGridSpec(
            num_scalar_prefetch=0,
            # N outer (parallel, megacore-shardable), M inner (weight reuse).
            grid=(N // tn, M // tm),
            in_specs=[
                pl.BlockSpec((tm, K), lambda j, i: (i, 0)),          # x
                pl.BlockSpec((tm, 1), lambda j, i: (i, 0)),          # x scale
                wp_spec,                                             # packed W.T
                ws_spec,                                             # W scales
                pl.BlockSpec((tm, tn), lambda j, i: (i, j)),         # residual
                pl.BlockSpec((1, tn), lambda j, i: (0, j)),          # bias
            ],
            out_specs=pl.BlockSpec((tm, tn), lambda j, i: (i, j)),
            scratch_shapes=[pltpu.VMEM((K, tn), jnp.bfloat16),
                            pltpu.VMEM((tm, tn), jnp.float32)],
        ),
        compiler_params=pltpu.CompilerParams(
            dimension_semantics=("parallel", "arbitrary"),
            vmem_limit_bytes=vmem_limit),
    )(x_in, x_scale_bf16, w_packed_kmajor, w_scale_t_bf16, residual, bias_bf16)


if __name__ == "__main__":
    # Small down_proj shapes: M tokens, K = intermediate size, N = hidden size.
    M, K, N = 64, 1024, 256
    group_size = 128

    key = jax.random.PRNGKey(0)
    k_x, k_xs, k_w, k_ws, k_r, k_b = jax.random.split(key, 6)

    # fp8-quantized activations with per-token bf16 scale.
    x_fp8 = jax.random.normal(k_x, (M, K), jnp.float32).astype(jnp.float8_e4m3fn)
    x_scale = jax.random.uniform(k_xs, (M, 1), jnp.float32, 0.5, 1.5).astype(jnp.bfloat16)

    # int4 weight [N, K] with fp8 group scales [N, K // group_size].
    w_int4 = jax.random.randint(k_w, (N, K), -8, 8, jnp.int32)
    w_scale_fp8 = jax.random.uniform(
        k_ws, (N, K // group_size), jnp.float32, 0.005, 0.02).astype(jnp.float8_e4m3fn)
    # Kernel-side layouts: K-major packed nibbles, transposed bf16 scales
    # (fp8 -> bf16 is exact, halves the scale DMA vs f32).
    w_packed = pack_int4_kmajor(w_int4)
    w_scale_t_bf16 = w_scale_fp8.astype(jnp.bfloat16).T          # (K//gs, N)

    residual = jax.random.normal(k_r, (M, N), jnp.float32).astype(jnp.bfloat16)
    bias = jax.random.normal(k_b, (1, N), jnp.float32).astype(jnp.bfloat16)

    out = down_proj(x_fp8, x_scale, w_packed, w_scale_t_bf16, residual, bias,
                    group_size)
    out = jax.block_until_ready(out)

    # Plain-JAX reference of DownProjFunction.forward.
    w_scale_f32 = w_scale_fp8.astype(jnp.float32)
    deq_w = w_int4.astype(jnp.float32) * jnp.repeat(w_scale_f32, group_size, axis=1)
    ref = (x_fp8.astype(jnp.float32) @ deq_w.T) * x_scale.astype(jnp.float32)
    ref = (ref + residual.astype(jnp.float32) + bias.astype(jnp.float32)).astype(jnp.bfloat16)

    assert out.shape == (M, N) and out.dtype == jnp.bfloat16
    max_err = float(jnp.max(jnp.abs(out.astype(jnp.float32) - ref.astype(jnp.float32))))
    assert max_err < 0.5, f"max abs err too large: {max_err}"
    print("KERNEL_OK")
</pallas_src>

<mosaic_0001>
module attributes {stable_mosaic.version = 11 : i64} {
  func.func @_down_proj_kernel(%arg0: i32, %arg1: i32, %arg2: memref<64x1024xf8E4M3FN, #tpu.memory_space<vmem>>, %arg3: memref<64x1xbf16, #tpu.memory_space<vmem>>, %arg4: memref<128x256xi32, #tpu.memory_space<vmem>>, %arg5: memref<8x256xbf16, #tpu.memory_space<vmem>>, %arg6: memref<64x256xbf16, #tpu.memory_space<vmem>>, %arg7: memref<1x256xbf16, #tpu.memory_space<vmem>>, %arg8: memref<64x256xbf16, #tpu.memory_space<vmem>>, %arg9: memref<1024x256xbf16, #tpu.memory_space<vmem>>, %arg10: memref<64x256xf32, #tpu.memory_space<vmem>>) attributes {dimension_semantics = [#tpu.dimension_semantics<parallel>, #tpu.dimension_semantics<arbitrary>], iteration_bounds = array<i64: 1, 1>, scalar_prefetch = 0 : i64, scratch_operands = 2 : i64, tpu.core_type = #tpu.core_type<tc>, window_params = [{transform_indices = @transform_0, window_bounds = array<i64: 64, 1024>}, {transform_indices = @transform_1, window_bounds = array<i64: 64, 1>}, {transform_indices = @transform_2, window_bounds = array<i64: 128, 256>}, {transform_indices = @transform_3, window_bounds = array<i64: 8, 256>}, {transform_indices = @transform_4, window_bounds = array<i64: 64, 256>}, {transform_indices = @transform_5, window_bounds = array<i64: 1, 256>}, {transform_indices = @transform_6, window_bounds = array<i64: 64, 256>}]} {
    %c0_i32 = arith.constant 0 : i32
    %0 = arith.cmpi eq, %arg1, %c0_i32 : i32
    %1 = arith.extui %0 : i1 to i32
    %c0_i32_0 = arith.constant 0 : i32
    %2 = arith.cmpi ne, %1, %c0_i32_0 : i32
    scf.if %2 {
      %c0_12 = arith.constant 0 : index
      %c0_13 = arith.constant 0 : index
      %20 = vector.load %arg4[%c0_12, %c0_13] : memref<128x256xi32, #tpu.memory_space<vmem>>, vector<128x256xi32>
      %21 = tpu.bitcast %20 : vector<128x256xi32> -> vector<128x256xi32>
      %c0_14 = arith.constant 0 : index
      %c0_15 = arith.constant 0 : index
      %22 = vector.load %arg5[%c0_14, %c0_15] : memref<8x256xbf16, #tpu.memory_space<vmem>>, vector<8x256xbf16>
      %cst = arith.constant 0.000000e+00 : f32
      %23 = vector.broadcast %cst : f32 to vector<64x256xf32>
      %c0_16 = arith.constant 0 : index
      %c0_17 = arith.constant 0 : index
      %24 = vector.load %arg10[%c0_16, %c0_17] : memref<64x256xf32, #tpu.memory_space<vmem>>, vector<64x256xf32>
      tpu.vector_store %arg10[%c0_16, %c0_17], %23 {strides = array<i32>} : memref<64x256xf32, #tpu.memory_space<vmem>>, vector<64x256xf32>,
      %c28_i32 = arith.constant 28 : i32
      %25 = vector.broadcast %c28_i32 : i32 to vector<128x256xi32>
      %26 = arith.shli %21, %25 : vector<128x256xi32>
      %c28_i32_18 = arith.constant 28 : i32
      %27 = vector.broadcast %c28_i32_18 : i32 to vector<128x256xi32>
      %28 = arith.shrsi %26, %27 : vector<128x256xi32>
      %29 = arith.sitofp %28 : vector<128x256xi32> to vector<128x256xbf16>
      %30 = vector.shape_cast %29 : vector<128x256xbf16> to vector<1x128x256xbf16>
      %31 = vector.extract_strided_slice %22 {offsets = [0, 0], sizes = [1, 256], strides = [1, 1]} : vector<8x256xbf16> to vector<1x256xbf16>
      %32 = vector.shape_cast %31 : vector<1x256xbf16> to vector<1x1x256xbf16>
      %33 = vector.broadcast %32 : vector<1x1x256xbf16> to vector<1x128x256xbf16>
      %34 = arith.mulf %30, %33 : vector<1x128x256xbf16>
      %35 = vector.shape_cast %34 : vector<1x128x256xbf16> to vector<128x256xbf16>
      %c0_19 = arith.constant 0 : index
      %c0_20 = arith.constant 0 : index
      %36 = vector.load %arg9[%c0_19, %c0_20] : memref<1024x256xbf16, #tpu.memory_space<vmem>>, vector<128x256xbf16>
      tpu.vector_store %arg9[%c0_19, %c0_20], %35 {strides = array<i32>} : memref<1024x256xbf16, #tpu.memory_space<vmem>>, vector<128x256xbf16>,
      %c0_21 = arith.constant 0 : index
      %c0_22 = arith.constant 0 : index
      %37 = vector.load %arg2[%c0_21, %c0_22] : memref<64x1024xf8E4M3FN, #tpu.memory_space<vmem>>, vector<64x128xf8E4M3FN>
      %38 = arith.extf %37 : vector<64x128xf8E4M3FN> to vector<64x128xbf16>
      %c0_23 = arith.constant 0 : index
      %c0_24 = arith.constant 0 : index
      %39 = vector.load %arg10[%c0_23, %c0_24] : memref<64x256xf32, #tpu.memory_space<vmem>>, vector<64x256xf32>
      %cst_25 = arith.constant dense<0.000000e+00> : vector<64x256xf32>
      %40 = tpu.matmul %38, %35, %cst_25 {dimension_numbers = #tpu.dot_dimension_numbers<[1], [0], [0], [1], [0, 0, 1, 1], [], []>} : vector<64x128xbf16>, vector<128x256xbf16>, vector<64x256xf32> -> vector<64x256xf32>
      %41 = arith.addf %39, %40 : vector<64x256xf32>
      %c0_26 = arith.constant 0 : index
      %c0_27 = arith.constant 0 : index
      %42 = vector.load %arg10[%c0_26, %c0_27] : memref<64x256xf32, #tpu.memory_space<vmem>>, vector<64x256xf32>
      tpu.vector_store %arg10[%c0_26, %c0_27], %41 {strides = array<i32>} : memref<64x256xf32, #tpu.memory_space<vmem>>, vector<64x256xf32>,
      %c24_i32 = arith.constant 24 : i32
      %43 = vector.broadcast %c24_i32 : i32 to vector<128x256xi32>
      %44 = arith.shli %21, %43 : vector<128x256xi32>
      %c28_i32_28 = arith.constant 28 : i32
      %45 = vector.broadcast %c28_i32_28 : i32 to vector<128x256xi32>
      %46 = arith.shrsi %44, %45 : vector<128x256xi32>
      %47 = arith.sitofp %46 : vector<128x256xi32> to vector<128x256xbf16>
      %48 = vector.shape_cast %47 : vector<128x256xbf16> to vector<1x128x256xbf16>
      %49 = vector.extract_strided_slice %22 {offsets = [1, 0], sizes = [1, 256], strides = [1, 1]} : vector<8x256xbf16> to vector<1x256xbf16>
      %50 = vector.shape_cast %49 : vector<1x256xbf16> to vector<1x1x256xbf16>
      %51 = vector.broadcast %50 : vector<1x1x256xbf16> to vector<1x128x256xbf16>
      %52 = arith.mulf %48, %51 : vector<1x128x256xbf16>
      %53 = vector.shape_cast %52 : vector<1x128x256xbf16> to vector<128x256xbf16>
      %c128 = arith.constant 128 : index
      %c0_29 = arith.constant 0 : index
      %54 = vector.load %arg9[%c128, %c0_29] : memref<1024x256xbf16, #tpu.memory_space<vmem>>, vector<128x256xbf16>
      tpu.vector_store %arg9[%c128, %c0_29], %53 {strides = array<i32>} : memref<1024x256xbf16, #tpu.memory_space<vmem>>, vector<128x256xbf16>,
      %c0_30 = arith.constant 0 : index
      %c128_31 = arith.constant 128 : index
      %55 = vector.load %arg2[%c0_30, %c128_31] : memref<64x1024xf8E4M3FN, #tpu.memory_space<vmem>>, vector<64x128xf8E4M3FN>
      %56 = arith.extf %55 : vector<64x128xf8E4M3FN> to vector<64x128xbf16>
      %c0_32 = arith.constant 0 : index
      %c0_33 = arith.constant 0 : index
      %57 = vector.load %arg10[%c0_32, %c0_33] : memref<64x256xf32, #tpu.memory_space<vmem>>, vector<64x256xf32>
      %cst_34 = arith.constant dense<0.000000e+00> : vector<64x256xf32>
      %58 = tpu.matmul %56, %53, %cst_34 {dimension_numbers = #tpu.dot_dimension_numbers<[1], [0], [0], [1], [0, 0, 1, 1], [], []>} : vector<64x128xbf16>, vector<128x256xbf16>, vector<64x256xf32> -> vector<64x256xf32>
      %59 = arith.addf %57, %58 : vector<64x256xf32>
      %c0_35 = arith.constant 0 : index
      %c0_36 = arith.constant 0 : index
      %60 = vector.load %arg10[%c0_35, %c0_36] : memref<64x256xf32, #tpu.memory_space<vmem>>, vector<64x256xf32>
      tpu.vector_store %arg10[%c0_35, %c0_36], %59 {strides = array<i32>} : memref<64x256xf32, #tpu.memory_space<vmem>>, vector<64x256xf32>,
      %c20_i32 = arith.constant 20 : i32
      %61 = vector.broadcast %c20_i32 : i32 to vector<128x256xi32>
      %62 = arith.shli %21, %61 : vector<128x256xi32>
      %c28_i32_37 = arith.constant 28 : i32
      %63 = vector.broadcast %c28_i32_37 : i32 to vector<128x256xi32>
      %64 = arith.shrsi %62, %63 : vector<128x256xi32>
      %65 = arith.sitofp %64 : vector<128x256xi32> to vector<128x256xbf16>
      %66 = vector.shape_cast %65 : vector<128x256xbf16> to vector<1x128x256xbf16>
      %67 = vector.extract_strided_slice %22 {offsets = [2, 0], sizes = [1, 256], strides = [1, 1]} : vector<8x256xbf16> to vector<1x256xbf16>
      %68 = vector.shape_cast %67 : vector<1x256xbf16> to vector<1x1x256xbf16>
      %69 = vector.broadcast %68 : vector<1x1x256xbf16> to vector<1x128x256xbf16>
      %70 = arith.mulf %66, %69 : vector<1x128x256xbf16>
      %71 = vector.shape_cast %70 : vector<1x128x256xbf16> to vector<128x256xbf16>
      %c256 = arith.constant 256 : index
      %c0_38 = arith.constant 0 : index
      %72 = vector.load %arg9[%c256, %c0_38] : memref<1024x256xbf16, #tpu.memory_space<vmem>>, vector<128x256xbf16>
      tpu.vector_store %arg9[%c256, %c0_38], %71 {strides = array<i32>} : memref<1024x256xbf16, #tpu.memory_space<vmem>>, vector<128x256xbf16>,
      %c0_39 = arith.constant 0 : index
      %c256_40 = arith.constant 256 : index
      %73 = vector.load %arg2[%c0_39, %c256_40] : memref<64x1024xf8E4M3FN, #tpu.memory_space<vmem>>, vector<64x128xf8E4M3FN>
      %74 = arith.extf %73 : vector<64x128xf8E4M3FN> to vector<64x128xbf16>
      %c0_41 = arith.constant 0 : index
      %c0_42 = arith.constant 0 : index
      %75 = vector.load %arg10[%c0_41, %c0_42] : memref<64x256xf32, #tpu.memory_space<vmem>>, vector<64x256xf32>
      %cst_43 = arith.constant dense<0.000000e+00> : vector<64x256xf32>
      %76 = tpu.matmul %74, %71, %cst_43 {dimension_numbers = #tpu.dot_dimension_numbers<[1], [0], [0], [1], [0, 0, 1, 1], [], []>} : vector<64x128xbf16>, vector<128x256xbf16>, vector<64x256xf32> -> vector<64x256xf32>
      %77 = arith.addf %75, %76 : vector<64x256xf32>
      %c0_44 = arith.constant 0 : index
      %c0_45 = arith.constant 0 : index
      %78 = vector.load %arg10[%c0_44, %c0_45] : memref<64x256xf32, #tpu.memory_space<vmem>>, vector<64x256xf32>
      tpu.vector_store %arg10[%c0_44, %c0_45], %77 {strides = array<i32>} : memref<64x256xf32, #tpu.memory_space<vmem>>, vector<64x256xf32>,
      %c16_i32 = arith.constant 16 : i32
      %79 = vector.broadcast %c16_i32 : i32 to vector<128x256xi32>
      %80 = arith.shli %21, %79 : vector<128x256xi32>
      %c28_i32_46 = arith.constant 28 : i32
      %81 = vector.broadcast %c28_i32_46 : i32 to vector<128x256xi32>
      %82 = arith.shrsi %80, %81 : vector<128x256xi32>
      %83 = arith.sitofp %82 : vector<128x256xi32> to vector<128x256xbf16>
      %84 = vector.shape_cast %83 : vector<128x256xbf16> to vector<1x128x256xbf16>
      %85 = vector.extract_strided_slice %22 {offsets = [3, 0], sizes = [1, 256], strides = [1, 1]} : vector<8x256xbf16> to vector<1x256xbf16>
      %86 = vector.shape_cast %85 : vector<1x256xbf16> to vector<1x1x256xbf16>
      %87 = vector.broadcast %86 : vector<1x1x256xbf16> to vector<1x128x256xbf16>
      %88 = arith.mulf %84, %87 : vector<1x128x256xbf16>
      %89 = vector.shape_cast %88 : vector<1x128x256xbf16> to vector<128x256xbf16>
      %c384 = arith.constant 384 : index
      %c0_47 = arith.constant 0 : index
      %90 = vector.load %arg9[%c384, %c0_47] : memref<1024x256xbf16, #tpu.memory_space<vmem>>, vector<128x256xbf16>
      tpu.vector_store %arg9[%c384, %c0_47], %89 {strides = array<i32>} : memref<1024x256xbf16, #tpu.memory_space<vmem>>, vector<128x256xbf16>,
      %c0_48 = arith.constant 0 : index
      %c384_49 = arith.constant 384 : index
      %91 = vector.load %arg2[%c0_48, %c384_49] : memref<64x1024xf8E4M3FN, #tpu.memory_space<vmem>>, vector<64x128xf8E4M3FN>
      %92 = arith.extf %91 : vector<64x128xf8E4M3FN> to vector<64x128xbf16>
      %c0_50 = arith.constant 0 : index
      %c0_51 = arith.constant 0 : index
      %93 = vector.load %arg10[%c0_50, %c0_51] : memref<64x256xf32, #tpu.memory_space<vmem>>, vector<64x256xf32>
      %cst_52 = arith.constant dense<0.000000e+00> : vector<64x256xf32>
      %94 = tpu.matmul %92, %89, %cst_52 {dimension_numbers = #tpu.dot_dimension_numbers<[1], [0], [0], [1], [0, 0, 1, 1], [], []>} : vector<64x128xbf16>, vector<128x256xbf16>, vector<64x256xf32> -> vector<64x256xf32>
      %95 = arith.addf %93, %94 : vector<64x256xf32>
      %c0_53 = arith.constant 0 : index
      %c0_54 = arith.constant 0 : index
      %96 = vector.load %arg10[%c0_53, %c0_54] : memref<64x256xf32, #tpu.memory_space<vmem>>, vector<64x256xf32>
      tpu.vector_store %arg10[%c0_53, %c0_54], %95 {strides = array<i32>} : memref<64x256xf32, #tpu.memory_space<vmem>>, vector<64x256xf32>,
      %c12_i32 = arith.constant 12 : i32
      %97 = vector.broadcast %c12_i32 : i32 to vector<128x256xi32>
      %98 = arith.shli %21, %97 : vector<128x256xi32>
      %c28_i32_55 = arith.constant 28 : i32
      %99 = vector.broadcast %c28_i32_55 : i32 to vector<128x256xi32>
      %100 = arith.shrsi %98, %99 : vector<128x256xi32>
      %101 = arith.sitofp %100 : vector<128x256xi32> to vector<128x256xbf16>
      %102 = vector.shape_cast %101 : vector<128x256xbf16> to vector<1x128x256xbf16>
      %103 = vector.extract_strided_slice %22 {offsets = [4, 0], sizes = [1, 256], strides = [1, 1]} : vector<8x256xbf16> to vector<1x256xbf16>
      %104 = vector.shape_cast %103 : vector<1x256xbf16> to vector<1x1x256xbf16>
      %105 = vector.broadcast %104 : vector<1x1x256xbf16> to vector<1x128x256xbf16>
      %106 = arith.mulf %102, %105 : vector<1x128x256xbf16>
      %107 = vector.shape_cast %106 : vector<1x128x256xbf16> to vector<128x256xbf16>
      %c512 = arith.constant 512 : index
      %c0_56 = arith.constant 0 : index
      %108 = vector.load %arg9[%c512, %c0_56] : memref<1024x256xbf16, #tpu.memory_space<vmem>>, vector<128x256xbf16>
      tpu.vector_store %arg9[%c512, %c0_56], %107 {strides = array<i32>} : memref<1024x256xbf16, #tpu.memory_space<vmem>>, vector<128x256xbf16>,
      %c0_57 = arith.constant 0 : index
      %c512_58 = arith.constant 512 : index
      %109 = vector.load %arg2[%c0_57, %c512_58] : memref<64x1024xf8E4M3FN, #tpu.memory_space<vmem>>, vector<64x128xf8E4M3FN>
      %110 = arith.extf %109 : vector<64x128xf8E4M3FN> to vector<64x128xbf16>
      %c0_59 = arith.constant 0 : index
      %c0_60 = arith.constant 0 : index
      %111 = vector.load %arg10[%c0_59, %c0_60] : memref<64x256xf32, #tpu.memory_space<vmem>>, vector<64x256xf32>
      %cst_61 = arith.constant dense<0.000000e+00> : vector<64x256xf32>
      %112 = tpu.matmul %110, %107, %cst_61 {dimension_numbers = #tpu.dot_dimension_numbers<[1], [0], [0], [1], [0, 0, 1, 1], [], []>} : vector<64x128xbf16>, vector<128x256xbf16>, vector<64x256xf32> -> vector<64x256xf32>
      %113 = arith.addf %111, %112 : vector<64x256xf32>
      %c0_62 = arith.constant 0 : index
      %c0_63 = arith.constant 0 : index
      %114 = vector.load %arg10[%c0_62, %c0_63] : memref<64x256xf32, #tpu.memory_space<vmem>>, vector<64x256xf32>
      tpu.vector_store %arg10[%c0_62, %c0_63], %113 {strides = array<i32>} : memref<64x256xf32, #tpu.memory_space<vmem>>, vector<64x256xf32>,
      %c8_i32 = arith.constant 8 : i32
      %115 = vector.broadcast %c8_i32 : i32 to vector<128x256xi32>
      %116 = arith.shli %21, %115 : vector<128x256xi32>
      %c28_i32_64 = arith.constant 28 : i32
      %117 = vector.broadcast %c28_i32_64 : i32 to vector<128x256xi32>
      %118 = arith.shrsi %116, %117 : vector<128x256xi32>
      %119 = arith.sitofp %118 : vector<128x256xi32> to vector<128x256xbf16>
      %120 = vector.shape_cast %119 : vector<128x256xbf16> to vector<1x128x256xbf16>
      %121 = vector.extract_strided_slice %22 {offsets = [5, 0], sizes = [1, 256], strides = [1, 1]} : vector<8x256xbf16> to vector<1x256xbf16>
      %122 = vector.shape_cast %121 : vector<1x256xbf16> to vector<1x1x256xbf16>
      %123 = vector.broadcast %122 : vector<1x1x256xbf16> to vector<1x128x256xbf16>
      %124 = arith.mulf %120, %123 : vector<1x128x256xbf16>
      %125 = vector.shape_cast %124 : vector<1x128x256xbf16> to vector<128x256xbf16>
      %c640 = arith.constant 640 : index
      %c0_65 = arith.constant 0 : index
      %126 = vector.load %arg9[%c640, %c0_65] : memref<1024x256xbf16, #tpu.memory_space<vmem>>, vector<128x256xbf16>
      tpu.vector_store %arg9[%c640, %c0_65], %125 {strides = array<i32>} : memref<1024x256xbf16, #tpu.memory_space<vmem>>, vector<128x256xbf16>,
      %c0_66 = arith.constant 0 : index
      %c640_67 = arith.constant 640 : index
      %127 = vector.load %arg2[%c0_66, %c640_67] : memref<64x1024xf8E4M3FN, #tpu.memory_space<vmem>>, vector<64x128xf8E4M3FN>
      %128 = arith.extf %127 : vector<64x128xf8E4M3FN> to vector<64x128xbf16>
      %c0_68 = arith.constant 0 : index
      %c0_69 = arith.constant 0 : index
      %129 = vector.load %arg10[%c0_68, %c0_69] : memref<64x256xf32, #tpu.memory_space<vmem>>, vector<64x256xf32>
      %cst_70 = arith.constant dense<0.000000e+00> : vector<64x256xf32>
      %130 = tpu.matmul %128, %125, %cst_70 {dimension_numbers = #tpu.dot_dimension_numbers<[1], [0], [0], [1], [0, 0, 1, 1], [], []>} : vector<64x128xbf16>, vector<128x256xbf16>, vector<64x256xf32> -> vector<64x256xf32>
      %131 = arith.addf %129, %130 : vector<64x256xf32>
      %c0_71 = arith.constant 0 : index
      %c0_72 = arith.constant 0 : index
      %132 = vector.load %arg10[%c0_71, %c0_72] : memref<64x256xf32, #tpu.memory_space<vmem>>, vector<64x256xf32>
      tpu.vector_store %arg10[%c0_71, %c0_72], %131 {strides = array<i32>} : memref<64x256xf32, #tpu.memory_space<vmem>>, vector<64x256xf32>,
      %c4_i32 = arith.constant 4 : i32
      %133 = vector.broadcast %c4_i32 : i32 to vector<128x256xi32>
      %134 = arith.shli %21, %133 : vector<128x256xi32>
      %c28_i32_73 = arith.constant 28 : i32
      %135 = vector.broadcast %c28_i32_73 : i32 to vector<128x256xi32>
      %136 = arith.shrsi %134, %135 : vector<128x256xi32>
      %137 = arith.sitofp %136 : vector<128x256xi32> to vector<128x256xbf16>
      %138 = vector.shape_cast %137 : vector<128x256xbf16> to vector<1x128x256xbf16>
      %139 = vector.extract_strided_slice %22 {offsets = [6, 0], sizes = [1, 256], strides = [1, 1]} : vector<8x256xbf16> to vector<1x256xbf16>
      %140 = vector.shape_cast %139 : vector<1x256xbf16> to vector<1x1x256xbf16>
      %141 = vector.broadcast %140 : vector<1x1x256xbf16> to vector<1x128x256xbf16>
      %142 = arith.mulf %138, %141 : vector<1x128x256xbf16>
      %143 = vector.shape_cast %142 : vector<1x128x256xbf16> to vector<128x256xbf16>
      %c768 = arith.constant 768 : index
      %c0_74 = arith.constant 0 : index
      %144 = vector.load %arg9[%c768, %c0_74] : memref<1024x256xbf16, #tpu.memory_space<vmem>>, vector<128x256xbf16>
      tpu.vector_store %arg9[%c768, %c0_74], %143 {strides = array<i32>} : memref<1024x256xbf16, #tpu.memory_space<vmem>>, vector<128x256xbf16>,
      %c0_75 = arith.constant 0 : index
      %c768_76 = arith.constant 768 : index
      %145 = vector.load %arg2[%c0_75, %c768_76] : memref<64x1024xf8E4M3FN, #tpu.memory_space<vmem>>, vector<64x128xf8E4M3FN>
      %146 = arith.extf %145 : vector<64x128xf8E4M3FN> to vector<64x128xbf16>
      %c0_77 = arith.constant 0 : index
      %c0_78 = arith.constant 0 : index
      %147 = vector.load %arg10[%c0_77, %c0_78] : memref<64x256xf32, #tpu.memory_space<vmem>>, vector<64x256xf32>
      %cst_79 = arith.constant dense<0.000000e+00> : vector<64x256xf32>
      %148 = tpu.matmul %146, %143, %cst_79 {dimension_numbers = #tpu.dot_dimension_numbers<[1], [0], [0], [1], [0, 0, 1, 1], [], []>} : vector<64x128xbf16>, vector<128x256xbf16>, vector<64x256xf32> -> vector<64x256xf32>
      %149 = arith.addf %147, %148 : vector<64x256xf32>
      %c0_80 = arith.constant 0 : index
      %c0_81 = arith.constant 0 : index
      %150 = vector.load %arg10[%c0_80, %c0_81] : memref<64x256xf32, #tpu.memory_space<vmem>>, vector<64x256xf32>
      tpu.vector_store %arg10[%c0_80, %c0_81], %149 {strides = array<i32>} : memref<64x256xf32, #tpu.memory_space<vmem>>, vector<64x256xf32>,
      %c0_i32_82 = arith.constant 0 : i32
      %151 = vector.broadcast %c0_i32_82 : i32 to vector<128x256xi32>
      %152 = arith.shli %21, %151 : vector<128x256xi32>
      %c28_i32_83 = arith.constant 28 : i32
      %153 = vector.broadcast %c28_i32_83 : i32 to vector<128x256xi32>
      %154 = arith.shrsi %152, %153 : vector<128x256xi32>
      %155 = arith.sitofp %154 : vector<128x256xi32> to vector<128x256xbf16>
      %156 = vector.shape_cast %155 : vector<128x256xbf16> to vector<1x128x256xbf16>
      %157 = vector.extract_strided_slice %22 {offsets = [7, 0], sizes = [1, 256], strides = [1, 1]} : vector<8x256xbf16> to vector<1x256xbf16>
      %158 = vector.shape_cast %157 : vector<1x256xbf16> to vector<1x1x256xbf16>
      %159 = vector.broadcast %158 : vector<1x1x256xbf16> to vector<1x128x256xbf16>
      %160 = arith.mulf %156, %159 : vector<1x128x256xbf16>
      %161 = vector.shape_cast %160 : vector<1x128x256xbf16> to vector<128x256xbf16>
      %c896 = arith.constant 896 : index
      %c0_84 = arith.constant 0 : index
      %162 = vector.load %arg9[%c896, %c0_84] : memref<1024x256xbf16, #tpu.memory_space<vmem>>, vector<128x256xbf16>
      tpu.vector_store %arg9[%c896, %c0_84], %161 {strides = array<i32>} : memref<1024x256xbf16, #tpu.memory_space<vmem>>, vector<128x256xbf16>,
      %c0_85 = arith.constant 0 : index
      %c896_86 = arith.constant 896 : index
      %163 = vector.load %arg2[%c0_85, %c896_86] : memref<64x1024xf8E4M3FN, #tpu.memory_space<vmem>>, vector<64x128xf8E4M3FN>
      %164 = arith.extf %163 : vector<64x128xf8E4M3FN> to vector<64x128xbf16>
      %c0_87 = arith.constant 0 : index
      %c0_88 = arith.constant 0 : index
      %165 = vector.load %arg10[%c0_87, %c0_88] : memref<64x256xf32, #tpu.memory_space<vmem>>, vector<64x256xf32>
      %cst_89 = arith.constant dense<0.000000e+00> : vector<64x256xf32>
      %166 = tpu.matmul %164, %161, %cst_89 {dimension_numbers = #tpu.dot_dimension_numbers<[1], [0], [0], [1], [0, 0, 1, 1], [], []>} : vector<64x128xbf16>, vector<128x256xbf16>, vector<64x256xf32> -> vector<64x256xf32>
      %167 = arith.addf %165, %166 : vector<64x256xf32>
      %c0_90 = arith.constant 0 : index
      %c0_91 = arith.constant 0 : index
      %168 = vector.load %arg10[%c0_90, %c0_91] : memref<64x256xf32, #tpu.memory_space<vmem>>, vector<64x256xf32>
      tpu.vector_store %arg10[%c0_90, %c0_91], %167 {strides = array<i32>} : memref<64x256xf32, #tpu.memory_space<vmem>>, vector<64x256xf32>,
    } else {
    }
    %c0_i32_1 = arith.constant 0 : i32
    %3 = arith.cmpi sgt, %arg1, %c0_i32_1 : i32
    %4 = arith.extui %3 : i1 to i32
    %c0_i32_2 = arith.constant 0 : i32
    %5 = arith.cmpi ne, %4, %c0_i32_2 : i32
    scf.if %5 {
      %c0_12 = arith.constant 0 : index
      %c0_13 = arith.constant 0 : index
      %20 = vector.load %arg2[%c0_12, %c0_13] : memref<64x1024xf8E4M3FN, #tpu.memory_space<vmem>>, vector<64x1024xf8E4M3FN>
      %21 = arith.extf %20 : vector<64x1024xf8E4M3FN> to vector<64x1024xbf16>
      %c0_14 = arith.constant 0 : index
      %c0_15 = arith.constant 0 : index
      %22 = vector.load %arg9[%c0_14, %c0_15] : memref<1024x256xbf16, #tpu.memory_space<vmem>>, vector<1024x256xbf16>
      %cst = arith.constant dense<0.000000e+00> : vector<64x256xf32>
      %23 = tpu.matmul %21, %22, %cst {dimension_numbers = #tpu.dot_dimension_numbers<[1], [0], [0], [1], [0, 0, 1, 1], [], []>} : vector<64x1024xbf16>, vector<1024x256xbf16>, vector<64x256xf32> -> vector<64x256xf32>
      %c0_16 = arith.constant 0 : index
      %c0_17 = arith.constant 0 : index
      %24 = vector.load %arg10[%c0_16, %c0_17] : memref<64x256xf32, #tpu.memory_space<vmem>>, vector<64x256xf32>
      tpu.vector_store %arg10[%c0_16, %c0_17], %23 {strides = array<i32>} : memref<64x256xf32, #tpu.memory_space<vmem>>, vector<64x256xf32>,
    } else {
    }
    %c0 = arith.constant 0 : index
    %c0_3 = arith.constant 0 : index
    %6 = vector.load %arg10[%c0, %c0_3] : memref<64x256xf32, #tpu.memory_space<vmem>>, vector<64x256xf32>
    %c0_4 = arith.constant 0 : index
    %c0_5 = arith.constant 0 : index
    %7 = vector.load %arg3[%c0_4, %c0_5] : memref<64x1xbf16, #tpu.memory_space<vmem>>, vector<64x1xbf16>
    %8 = arith.extf %7 : vector<64x1xbf16> to vector<64x1xf32>
    %9 = vector.broadcast %8 : vector<64x1xf32> to vector<64x256xf32>
    %10 = arith.mulf %6, %9 : vector<64x256xf32>
    %c0_6 = arith.constant 0 : index
    %c0_7 = arith.constant 0 : index
    %11 = vector.load %arg6[%c0_6, %c0_7] : memref<64x256xbf16, #tpu.memory_space<vmem>>, vector<64x256xbf16>
    %12 = arith.extf %11 : vector<64x256xbf16> to vector<64x256xf32>
    %13 = arith.addf %10, %12 : vector<64x256xf32>
    %c0_8 = arith.constant 0 : index
    %c0_9 = arith.constant 0 : index
    %14 = vector.load %arg7[%c0_8, %c0_9] : memref<1x256xbf16, #tpu.memory_space<vmem>>, vector<1x256xbf16>
    %15 = arith.extf %14 : vector<1x256xbf16> to vector<1x256xf32>
    %16 = vector.broadcast %15 : vector<1x256xf32> to vector<64x256xf32>
    %17 = arith.addf %13, %16 : vector<64x256xf32>
    %18 = arith.truncf %17 : vector<64x256xf32> to vector<64x256xbf16>
    %c0_10 = arith.constant 0 : index
    %c0_11 = arith.constant 0 : index
    %19 = vector.load %arg8[%c0_10, %c0_11] : memref<64x256xbf16, #tpu.memory_space<vmem>>, vector<64x256xbf16>
    tpu.vector_store %arg8[%c0_10, %c0_11], %18 {strides = array<i32>} : memref<64x256xbf16, #tpu.memory_space<vmem>>, vector<64x256xbf16>,
    return
  }
  func.func @transform_0(%arg0: i32, %arg1: i32) -> (i32, i32) {
    %c0_i32 = arith.constant 0 : i32
    %c0_i32_0 = arith.constant 0 : i32
    return %arg1, %c0_i32 : i32, i32
  }
  func.func @transform_1(%arg0: i32, %arg1: i32) -> (i32, i32) {
    %c0_i32 = arith.constant 0 : i32
    %c0_i32_0 = arith.constant 0 : i32
    return %arg1, %c0_i32 : i32, i32
  }
  func.func @transform_2(%arg0: i32, %arg1: i32) -> (i32, i32) {
    %c0_i32 = arith.constant 0 : i32
    %c0_i32_0 = arith.constant 0 : i32
    return %c0_i32, %arg0 : i32, i32
  }
  func.func @transform_3(%arg0: i32, %arg1: i32) -> (i32, i32) {
    %c0_i32 = arith.constant 0 : i32
    %c0_i32_0 = arith.constant 0 : i32
    return %c0_i32, %arg0 : i32, i32
  }
  func.func @transform_4(%arg0: i32, %arg1: i32) -> (i32, i32) {
    %c0_i32 = arith.constant 0 : i32
    return %arg1, %arg0 : i32, i32
  }
  func.func @transform_5(%arg0: i32, %arg1: i32) -> (i32, i32) {
    %c0_i32 = arith.constant 0 : i32
    %c0_i32_0 = arith.constant 0 : i32
    return %c0_i32, %arg0 : i32, i32
  }
  func.func @transform_6(%arg0: i32, %arg1: i32) -> (i32, i32) {
    %c0_i32 = arith.constant 0 : i32
    return %arg1, %arg0 : i32, i32
  }
}

</mosaic_0001>

<llo_original>
// kernel: tpu_custom_call.1
$region0: #{tpu_custom_call.1}
  #allocation0 [shape = 'u32[]', space=smem, size = 0x4, offset = 0x4, fixed_abs, tag = 'smem constant byte address 0x4 - core index']
  #allocation1 [shape = 'u32[72,128]{1,0:T(1,128)}', space=vmem, size = 0x9000, scoped, tag = 'internal scratch']
  #allocation2 [shape = 'bf16[1024,256]{1,0:T(8,128)(2,1)}', space=vmem, size = 0x80000, scoped, tag = 'scratch operand']
  #allocation3 [shape = 'f32[64,256]{1,0:T(8,128)}', space=vmem, size = 0x10000, scoped, tag = 'scratch operand']
  %s0 = inlined_call_operand.hbm [shape: f8e4m3fn[64,1024], index: 0, kind: input, shape index: {}]
  %s1 = inlined_call_operand.vmem [shape: bf16[64,1], index: 1, kind: input, shape index: {}]
  %s2 = inlined_call_operand.hbm [shape: u32[128,256], index: 2, kind: input, shape index: {}]
  %s3 = inlined_call_operand.vmem [shape: bf16[8,256], index: 3, kind: input, shape index: {}]
  %s4 = inlined_call_operand.hbm [shape: bf16[64,256], index: 4, kind: input, shape index: {}]
  %s5 = inlined_call_operand.vmem [shape: bf16[1,256], index: 5, kind: input, shape index: {}]
  %s6 = inlined_call_operand.hbm [shape: bf16[64,256], index: 6, kind: output, shape index: {}]
  %s7 = sld [smem:[#allocation0]]
  $region182: #{tpu_custom_call.1} parent=0
    _
  %s9 = ssub.s32 1, %s7
  %s10 = scalar_select 0, %s9, %s7
  $region1: #{tpu_custom_call.1} parent=0
    #allocation4 [shape = 'u8[65536]{0}', space=vmem, size = 0x10000, scoped, tag = 'input window, operand 0, single buffered']
    #allocation5 [shape = 's32[1]{0}', space=sflag, size = 0x4, scoped, tag = 'scoped memory for tpu_custom_call.1']
    #allocation6 [shape = 's32[1]{0}', space=sflag, size = 0x4, scoped, tag = 'scoped memory for tpu_custom_call.1']
    #allocation7 [shape = 'u8[131072]{0}', space=vmem, size = 0x20000, scoped, tag = 'input window, operand 2, single buffered']
    #allocation8 [shape = 's32[1]{0}', space=sflag, size = 0x4, scoped, tag = 'scoped memory for tpu_custom_call.1']
    #allocation9 [shape = 'u8[32768]{0}', space=vmem, size = 0x8000, scoped, tag = 'input window, operand 4, single buffered']
    #allocation10 [shape = 'u8[32768]{0}', space=vmem, size = 0x8000, scoped, tag = 'output window, operand 0, single buffered']
    %11 = vsyncpa [#allocation5], 0
    %12 = vsyncpa [#allocation8], 0
    %13 = vsyncpa [#allocation6], 0
    // Predicated region
    $region2: #{tpu_custom_call.1} parent=1 // pred_check
      _
    $region3: #{tpu_custom_call.1} parent=1 // pred_check_branch
      %15 = sbr.rel (0) target = $region5
    $region4: #{tpu_custom_call.1} parent=1 // pred_region
      %17 = vsyncadd [#allocation5], 0
      %s18 = sshll.u32 %s0, 4
      %s19 = int_to_ptr.hbm [resolvable:$true] %s18
      %s20 = sshll.u32 [#allocation4], 4
      %s21 = int_to_ptr.vmem [resolvable:$true] %s20
      %26 = dma.hbm_to_vmem [thread:$0]  %s19, 2048, %s21, [#allocation5], 1024, 1024, 64
    $region5: #{tpu_custom_call.1} parent=1 // pred_fallthru
      _
    // Predicated region
    $region6: #{tpu_custom_call.1} parent=1 // pred_check
      _
    $region7: #{tpu_custom_call.1} parent=1 // pred_check_branch
      %28 = sbr.rel (0) target = $region9
    $region8: #{tpu_custom_call.1} parent=1 // pred_region
      _
    $region9: #{tpu_custom_call.1} parent=1 // pred_fallthru
      _
    // Predicated region
    $region10: #{tpu_custom_call.1} parent=1 // pred_check
      _
    $region11: #{tpu_custom_call.1} parent=1 // pred_check_branch
      %30 = sbr.rel (0) target = $region13
    $region12: #{tpu_custom_call.1} parent=1 // pred_region
      %32 = vsyncadd [#allocation8], 0
      %s33 = sshll.u32 %s2, 4
      %s34 = int_to_ptr.hbm [resolvable:$true] %s33
      %s35 = sshll.u32 [#allocation7], 4
      %s36 = int_to_ptr.vmem [resolvable:$true] %s35
      %41 = dma.hbm_to_vmem [thread:$0]  %s34, 4096, %s36, [#allocation8], 256, 256, 16
    $region13: #{tpu_custom_call.1} parent=1 // pred_fallthru
      _
    // Predicated region
    $region14: #{tpu_custom_call.1} parent=1 // pred_check
      _
    $region15: #{tpu_custom_call.1} parent=1 // pred_check_branch
      %43 = sbr.rel (0) target = $region17
    $region16: #{tpu_custom_call.1} parent=1 // pred_region
      _
    $region17: #{tpu_custom_call.1} parent=1 // pred_fallthru
      _
    // Predicated region
    $region18: #{tpu_custom_call.1} parent=1 // pred_check
      _
    $region19: #{tpu_custom_call.1} parent=1 // pred_check_branch
      %45 = sbr.rel (0) target = $region21
    $region20: #{tpu_custom_call.1} parent=1 // pred_region
      %47 = vsyncadd [#allocation8], 0
      %s48 = sshll.u32 %s4, 4
      %s49 = int_to_ptr.hbm [resolvable:$true] %s48
      %s50 = sshll.u32 [#allocation9], 4
      %s51 = int_to_ptr.vmem [resolvable:$true] %s50
      %56 = dma.hbm_to_vmem [thread:$0]  %s49, 1024, %s51, [#allocation8], 128, 128, 8
    $region21: #{tpu_custom_call.1} parent=1 // pred_fallthru
      _
    // Predicated region
    $region22: #{tpu_custom_call.1} parent=1 // pred_check
      _
    $region23: #{tpu_custom_call.1} parent=1 // pred_check_branch
      %58 = sbr.rel (0) target = $region25
    $region24: #{tpu_custom_call.1} parent=1 // pred_region
      _
    $region25: #{tpu_custom_call.1} parent=1 // pred_fallthru
      _
    // Predicated region
    $region26: #{tpu_custom_call.1} parent=1 // pred_check
      _
    $region27: #{tpu_custom_call.1} parent=1 // pred_check_branch
      %60 = sbr.rel (0) target = $region29
    $region28: #{tpu_custom_call.1} parent=1 // pred_region
      %62 = dma.done [#allocation5], 2048
    $region29: #{tpu_custom_call.1} parent=1 // pred_fallthru
      _
    // Predicated region
    $region30: #{tpu_custom_call.1} parent=1 // pred_check
      _
    $region31: #{tpu_custom_call.1} parent=1 // pred_check_branch
      %64 = sbr.rel (0) target = $region33
    $region32: #{tpu_custom_call.1} parent=1 // pred_region
      %66 = dma.done [#allocation8], 4096
    $region33: #{tpu_custom_call.1} parent=1 // pred_fallthru
      _
    // Predicated region
    $region34: #{tpu_custom_call.1} parent=1 // pred_check
      _
    $region35: #{tpu_custom_call.1} parent=1 // pred_check_branch
      %68 = sbr.rel (0) target = $region37
    $region36: #{tpu_custom_call.1} parent=1 // pred_region
      %70 = dma.done [#allocation8], 1024
    $region37: #{tpu_custom_call.1} parent=1 // pred_fallthru
      _
    %p71 = scmp.eq.s32.totalorder 0, 0
    // Predicated region
    $region38: #{tpu_custom_call.1} parent=1 // pred_check
      %p72 = pneg %p71
    $region39: #{tpu_custom_call.1} parent=1 // pred_check_branch
      %74 = sbr.rel (%p72) target = $region41
    $region40: #{tpu_custom_call.1} parent=1 // pred_region
      %v75 = vld [vmem:[#allocation7] sm:$0xff]
      %v76 = vld [vmem:[#allocation7 + $0x8] sm:$0xff]
      %v77 = vld [vmem:[#allocation7 + $0x10] sm:$0xff]
      %v78 = vld [vmem:[#allocation7 + $0x18] sm:$0xff]
      %v79 = vld [vmem:[#allocation7 + $0x20] sm:$0xff]
      %v80 = vld [vmem:[#allocation7 + $0x28] sm:$0xff]
      %v81 = vld [vmem:[#allocation7 + $0x30] sm:$0xff]
      %v82 = vld [vmem:[#allocation7 + $0x38] sm:$0xff]
      %v83 = vld [vmem:[#allocation7 + $0x40] sm:$0xff]
      %v84 = vld [vmem:[#allocation7 + $0x48] sm:$0xff]
      %v85 = vld [vmem:[#allocation7 + $0x50] sm:$0xff]
      %v86 = vld [vmem:[#allocation7 + $0x58] sm:$0xff]
      %v87 = vld [vmem:[#allocation7 + $0x60] sm:$0xff]
      %v88 = vld [vmem:[#allocation7 + $0x68] sm:$0xff]
      %v89 = vld [vmem:[#allocation7 + $0x70] sm:$0xff]
      %v90 = vld [vmem:[#allocation7 + $0x78] sm:$0xff]
      %v91 = vld [vmem:[#allocation7 + $0x80] sm:$0xff]
      %v92 = vld [vmem:[#allocation7 + $0x88] sm:$0xff]
      %v93 = vld [vmem:[#allocation7 + $0x90] sm:$0xff]
      %v94 = vld [vmem:[#allocation7 + $0x98] sm:$0xff]
      %v95 = vld [vmem:[#allocation7 + $0xa0] sm:$0xff]
      %v96 = vld [vmem:[#allocation7 + $0xa8] sm:$0xff]
      %v97 = vld [vmem:[#allocation7 + $0xb0] sm:$0xff]
      %v98 = vld [vmem:[#allocation7 + $0xb8] sm:$0xff]
      %v99 = vld [vmem:[#allocation7 + $0xc0] sm:$0xff]
      %v100 = vld [vmem:[#allocation7 + $0xc8] sm:$0xff]
      %v101 = vld [vmem:[#allocation7 + $0xd0] sm:$0xff]
      %v102 = vld [vmem:[#allocation7 + $0xd8] sm:$0xff]
      %v103 = vld [vmem:[#allocation7 + $0xe0] sm:$0xff]
      %v104 = vld [vmem:[#allocation7 + $0xe8] sm:$0xff]
      %v105 = vld [vmem:[#allocation7 + $0xf0] sm:$0xff]
      %v106 = vld [vmem:[#allocation7 + $0xf8] sm:$0xff]
      %v107 = vld [vmem:[%s3] sm:$0xff]
      %108 = vst [vmem:[#allocation3] sm:$0xff] 0.0
      %109 = vst [vmem:[#allocation3 + $0x8] sm:$0xff] 0.0
      %110 = vst [vmem:[#allocation3 + $0x10] sm:$0xff] 0.0
      %111 = vst [vmem:[#allocation3 + $0x18] sm:$0xff] 0.0
      %112 = vst [vmem:[#allocation3 + $0x20] sm:$0xff] 0.0
      %113 = vst [vmem:[#allocation3 + $0x28] sm:$0xff] 0.0
      %114 = vst [vmem:[#allocation3 + $0x30] sm:$0xff] 0.0
      %115 = vst [vmem:[#allocation3 + $0x38] sm:$0xff] 0.0
      %116 = vst [vmem:[#allocation3 + $0x40] sm:$0xff] 0.0
      %117 = vst [vmem:[#allocation3 + $0x48] sm:$0xff] 0.0
      %118 = vst [vmem:[#allocation3 + $0x50] sm:$0xff] 0.0
      %119 = vst [vmem:[#allocation3 + $0x58] sm:$0xff] 0.0
      %120 = vst [vmem:[#allocation3 + $0x60] sm:$0xff] 0.0
      %121 = vst [vmem:[#allocation3 + $0x68] sm:$0xff] 0.0
      %122 = vst [vmem:[#allocation3 + $0x70] sm:$0xff] 0.0
      %123 = vst [vmem:[#allocation3 + $0x78] sm:$0xff] 0.0
      %v124 = vshll.u32 %v75, 28
      %v125 = vshll.u32 %v76, 28
      %v126 = vshll.u32 %v77, 28
      %v127 = vshll.u32 %v78, 28
      %v128 = vshll.u32 %v79, 28
      %v129 = vshll.u32 %v80, 28
      %v130 = vshll.u32 %v81, 28
      %v131 = vshll.u32 %v82, 28
      %v132 = vshll.u32 %v83, 28
      %v133 = vshll.u32 %v84, 28
      %v134 = vshll.u32 %v85, 28
      %v135 = vshll.u32 %v86, 28
      %v136 = vshll.u32 %v87, 28
      %v137 = vshll.u32 %v88, 28
      %v138 = vshll.u32 %v89, 28
      %v139 = vshll.u32 %v90, 28
      %v140 = vshll.u32 %v91, 28
      %v141 = vshll.u32 %v92, 28
      %v142 = vshll.u32 %v93, 28
      %v143 = vshll.u32 %v94, 28
      %v144 = vshll.u32 %v95, 28
      %v145 = vshll.u32 %v96, 28
      %v146 = vshll.u32 %v97, 28
      %v147 = vshll.u32 %v98, 28
      %v148 = vshll.u32 %v99, 28
      %v149 = vshll.u32 %v100, 28
      %v150 = vshll.u32 %v101, 28
      %v151 = vshll.u32 %v102, 28
      %v152 = vshll.u32 %v103, 28
      %v153 = vshll.u32 %v104, 28
      %v154 = vshll.u32 %v105, 28
      %v155 = vshll.u32 %v106, 28
      %v156 = vshra.s32 %v124, 28
      %v157 = vshra.s32 %v125, 28
      %v158 = vshra.s32 %v126, 28
      %v159 = vshra.s32 %v127, 28
      %v160 = vshra.s32 %v128, 28
      %v161 = vshra.s32 %v129, 28
      %v162 = vshra.s32 %v130, 28
      %v163 = vshra.s32 %v131, 28
      %v164 = vshra.s32 %v132, 28
      %v165 = vshra.s32 %v133, 28
      %v166 = vshra.s32 %v134, 28
      %v167 = vshra.s32 %v135, 28
      %v168 = vshra.s32 %v136, 28
      %v169 = vshra.s32 %v137, 28
      %v170 = vshra.s32 %v138, 28
      %v171 = vshra.s32 %v139, 28
      %v172 = vshra.s32 %v140, 28
      %v173 = vshra.s32 %v141, 28
      %v174 = vshra.s32 %v142, 28
      %v175 = vshra.s32 %v143, 28
      %v176 = vshra.s32 %v144, 28
      %v177 = vshra.s32 %v145, 28
      %v178 = vshra.s32 %v146, 28
      %v179 = vshra.s32 %v147, 28
      %v180 = vshra.s32 %v148, 28
      %v181 = vshra.s32 %v149, 28
      %v182 = vshra.s32 %v150, 28
      %v183 = vshra.s32 %v151, 28
      %v184 = vshra.s32 %v152, 28
      %v185 = vshra.s32 %v153, 28
      %v186 = vshra.s32 %v154, 28
      %v187 = vshra.s32 %v155, 28
      %v188 = vcvt.s32.f32 %v156
      %v189 = vcvt.s32.f32 %v157
      %v190 = vcvt.s32.f32 %v158
      %v191 = vcvt.s32.f32 %v159
      %v192 = vcvt.s32.f32 %v160
      %v193 = vcvt.s32.f32 %v161
      %v194 = vcvt.s32.f32 %v162
      %v195 = vcvt.s32.f32 %v163
      %v196 = vcvt.s32.f32 %v164
      %v197 = vcvt.s32.f32 %v165
      %v198 = vcvt.s32.f32 %v166
      %v199 = vcvt.s32.f32 %v167
      %v200 = vcvt.s32.f32 %v168
      %v201 = vcvt.s32.f32 %v169
      %v202 = vcvt.s32.f32 %v170
      %v203 = vcvt.s32.f32 %v171
      %v204 = vcvt.s32.f32 %v172
      %v205 = vcvt.s32.f32 %v173
      %v206 = vcvt.s32.f32 %v174
      %v207 = vcvt.s32.f32 %v175
      %v208 = vcvt.s32.f32 %v176
      %v209 = vcvt.s32.f32 %v177
      %v210 = vcvt.s32.f32 %v178
      %v211 = vcvt.s32.f32 %v179
      %v212 = vcvt.s32.f32 %v180
      %v213 = vcvt.s32.f32 %v181
      %v214 = vcvt.s32.f32 %v182
      %v215 = vcvt.s32.f32 %v183
      %v216 = vcvt.s32.f32 %v184
      %v217 = vcvt.s32.f32 %v185
      %v218 = vcvt.s32.f32 %v186
      %v219 = vcvt.s32.f32 %v187
      %v220 = vpack.c.bf16 %v189, %v188
      %v221 = vpack.c.bf16 %v191, %v190
      %v222 = vpack.c.bf16 %v193, %v192
      %v223 = vpack.c.bf16 %v195, %v194
      %v224 = vpack.c.bf16 %v197, %v196
      %v225 = vpack.c.bf16 %v199, %v198
      %v226 = vpack.c.bf16 %v201, %v200
      %v227 = vpack.c.bf16 %v203, %v202
      %v228 = vpack.c.bf16 %v205, %v204
      %v229 = vpack.c.bf16 %v207, %v206
      %v230 = vpack.c.bf16 %v209, %v208
      %v231 = vpack.c.bf16 %v211, %v210
      %v232 = vpack.c.bf16 %v213, %v212
      %v233 = vpack.c.bf16 %v215, %v214
      %v234 = vpack.c.bf16 %v217, %v216
      %v235 = vpack.c.bf16 %v219, %v218
      %v237 = vunpack.c.l.b16 %v107
      %v238 = vunpack.c.h.b16 %v107
      %v239 = vpack.c.b16 %v237, %v237
      %v240 = vpack.c.b16 %v238, %v238
      %v242 = vpack.i.b16 %v239, %v239
      %v244 = vperm.slane %v242, 0
      %v246 = vpack.i.b16 %v240, %v240
      %v248 = vperm.slane %v246, 0
      %v249 = vunpack.c.l.bf16 %v220
      %v250 = vunpack.c.h.bf16 %v220
      %v251 = vunpack.c.l.bf16 %v221
      %v252 = vunpack.c.h.bf16 %v221
      %v253 = vunpack.c.l.bf16 %v222
      %v254 = vunpack.c.h.bf16 %v222
      %v255 = vunpack.c.l.bf16 %v223
      %v256 = vunpack.c.h.bf16 %v223
      %v257 = vunpack.c.l.bf16 %v224
      %v258 = vunpack.c.h.bf16 %v224
      %v259 = vunpack.c.l.bf16 %v225
      %v260 = vunpack.c.h.bf16 %v225
      %v261 = vunpack.c.l.bf16 %v226
      %v262 = vunpack.c.h.bf16 %v226
      %v263 = vunpack.c.l.bf16 %v227
      %v264 = vunpack.c.h.bf16 %v227
      %v265 = vunpack.c.l.bf16 %v228
      %v266 = vunpack.c.h.bf16 %v228
      %v267 = vunpack.c.l.bf16 %v229
      %v268 = vunpack.c.h.bf16 %v229
      %v269 = vunpack.c.l.bf16 %v230
      %v270 = vunpack.c.h.bf16 %v230
      %v271 = vunpack.c.l.bf16 %v231
      %v272 = vunpack.c.h.bf16 %v231
      %v273 = vunpack.c.l.bf16 %v232
      %v274 = vunpack.c.h.bf16 %v232
      %v275 = vunpack.c.l.bf16 %v233
      %v276 = vunpack.c.h.bf16 %v233
      %v277 = vunpack.c.l.bf16 %v234
      %v278 = vunpack.c.h.bf16 %v234
      %v279 = vunpack.c.l.bf16 %v235
      %v280 = vunpack.c.h.bf16 %v235
      %v281 = vunpack.c.l.bf16 %v244
      %v282 = vunpack.c.l.bf16 %v248
      %v283 = vmul.f32 %v249, %v281
      %v284 = vmul.f32 %v250, %v282
      %v285 = vmul.f32 %v251, %v281
      %v286 = vmul.f32 %v252, %v282
      %v287 = vmul.f32 %v253, %v281
      %v288 = vmul.f32 %v254, %v282
      %v289 = vmul.f32 %v255, %v281
      %v290 = vmul.f32 %v256, %v282
      %v291 = vmul.f32 %v257, %v281
      %v292 = vmul.f32 %v258, %v282
      %v293 = vmul.f32 %v259, %v281
      %v294 = vmul.f32 %v260, %v282
      %v295 = vmul.f32 %v261, %v281
      %v296 = vmul.f32 %v262, %v282
      %v297 = vmul.f32 %v263, %v281
      %v298 = vmul.f32 %v264, %v282
      %v299 = vmul.f32 %v265, %v281
      %v300 = vmul.f32 %v266, %v282
      %v301 = vmul.f32 %v267, %v281
      %v302 = vmul.f32 %v268, %v282
      %v303 = vmul.f32 %v269, %v281
      %v304 = vmul.f32 %v270, %v282
      %v305 = vmul.f32 %v271, %v281
      %v306 = vmul.f32 %v272, %v282
      %v307 = vmul.f32 %v273, %v281
      %v308 = vmul.f32 %v274, %v282
      %v309 = vmul.f32 %v275, %v281
      %v310 = vmul.f32 %v276, %v282
      %v311 = vmul.f32 %v277, %v281
      %v312 = vmul.f32 %v278, %v282
      %v313 = vmul.f32 %v279, %v281
      %v314 = vmul.f32 %v280, %v282
      %v315 = vpack.c.bf16 %v284, %v283
      %v316 = vpack.c.bf16 %v286, %v285
      %v317 = vpack.c.bf16 %v288, %v287
      %v318 = vpack.c.bf16 %v290, %v289
      %v319 = vpack.c.bf16 %v292, %v291
      %v320 = vpack.c.bf16 %v294, %v293
      %v321 = vpack.c.bf16 %v296, %v295
      %v322 = vpack.c.bf16 %v298, %v297
      %v323 = vpack.c.bf16 %v300, %v299
      %v324 = vpack.c.bf16 %v302, %v301
      %v325 = vpack.c.bf16 %v304, %v303
      %v326 = vpack.c.bf16 %v306, %v305
      %v327 = vpack.c.bf16 %v308, %v307
      %v328 = vpack.c.bf16 %v310, %v309
      %v329 = vpack.c.bf16 %v312, %v311
      %v330 = vpack.c.bf16 %v314, %v313
      %331 = vst [vmem:[#allocation2] sm:$0xff] %v315
      %332 = vst [vmem:[#allocation2 + $0x8] sm:$0xff] %v316
      %333 = vst [vmem:[#allocation2 + $0x10] sm:$0xff] %v317
      %334 = vst [vmem:[#allocation2 + $0x18] sm:$0xff] %v318
      %335 = vst [vmem:[#allocation2 + $0x20] sm:$0xff] %v319
      %336 = vst [vmem:[#allocation2 + $0x28] sm:$0xff] %v320
      %337 = vst [vmem:[#allocation2 + $0x30] sm:$0xff] %v321
      %338 = vst [vmem:[#allocation2 + $0x38] sm:$0xff] %v322
      %339 = vst [vmem:[#allocation2 + $0x40] sm:$0xff] %v323
      %340 = vst [vmem:[#allocation2 + $0x48] sm:$0xff] %v324
      %341 = vst [vmem:[#allocation2 + $0x50] sm:$0xff] %v325
      %342 = vst [vmem:[#allocation2 + $0x58] sm:$0xff] %v326
      %343 = vst [vmem:[#allocation2 + $0x60] sm:$0xff] %v327
      %344 = vst [vmem:[#allocation2 + $0x68] sm:$0xff] %v328
      %345 = vst [vmem:[#allocation2 + $0x70] sm:$0xff] %v329
      %346 = vst [vmem:[#allocation2 + $0x78] sm:$0xff] %v330
      %v347 = vld [vmem:[#allocation4] sm:$0xff]
      %v348 = vld [vmem:[#allocation4 + $0x40] sm:$0xff]
      $region42: #{tpu_custom_call.1} parent=40
        #allocation11 [shape = 'u8[4096]{0}', space=vmem, size = 0x1000, scoped, tag = 'scoped memory for tpu_custom_call.1']
        %349 = vst [vmem:[#allocation11] sm:$0xff] %v347
        %v350 = vld [vmem:[#allocation11] sm:$0x3]
        %v351 = vunpack.c.0.f8e4m3b11 %v350
        %v352 = vunpack.c.1.f8e4m3b11 %v350
        %v353 = vunpack.c.2.f8e4m3b11 %v350
        %v354 = vunpack.c.3.f8e4m3b11 %v350
        %v355 = vand.u32 2147483647, %v351
        %vm356 = vcmp.gt.f32.partialorder %v355, 29.0
        %vm357 = vcmp.ne.f32.partialorder %v351, %v351
        %v358 = vmul.f32 %v351, 16.0
        %v359 = vsel %vm357, -0.0, %v358
        %v360 = vsel %vm356, nan, %v359
        %v361 = vand.u32 2147483647, %v352
        %vm362 = vcmp.gt.f32.partialorder %v361, 29.0
        %vm363 = vcmp.ne.f32.partialorder %v352, %v352
        %v364 = vmul.f32 %v352, 16.0
        %v365 = vsel %vm363, -0.0, %v364
        %v366 = vsel %vm362, nan, %v365
        %v367 = vand.u32 2147483647, %v353
        %vm368 = vcmp.gt.f32.partialorder %v367, 29.0
        %vm369 = vcmp.ne.f32.partialorder %v353, %v353
        %v370 = vmul.f32 %v353, 16.0
        %v371 = vsel %vm369, -0.0, %v370
        %v372 = vsel %vm368, nan, %v371
        %v373 = vand.u32 2147483647, %v354
        %vm374 = vcmp.gt.f32.partialorder %v373, 29.0
        %vm375 = vcmp.ne.f32.partialorder %v354, %v354
        %v376 = vmul.f32 %v354, 16.0
        %v377 = vsel %vm375, -0.0, %v376
        %v378 = vsel %vm374, nan, %v377
      $region43: #{tpu_custom_call.1} parent=40
        #allocation12 [shape = 'u8[4096]{0}', space=vmem, size = 0x1000, scoped, tag = 'scoped memory for tpu_custom_call.1']
        %379 = vst [vmem:[#allocation12] sm:$0xff] %v347
        %s380 = scalar_lea.vmem [#allocation12], 2
        %v381 = vld [vmem:[%s380] sm:$0x3]
        %v382 = vunpack.c.0.f8e4m3b11 %v381
        %v383 = vunpack.c.1.f8e4m3b11 %v381
        %v384 = vunpack.c.2.f8e4m3b11 %v381
        %v385 = vunpack.c.3.f8e4m3b11 %v381
        %v386 = vand.u32 2147483647, %v382
        %vm387 = vcmp.gt.f32.partialorder %v386, 29.0
        %vm388 = vcmp.ne.f32.partialorder %v382, %v382
        %v389 = vmul.f32 %v382, 16.0
        %v390 = vsel %vm388, -0.0, %v389
        %v391 = vsel %vm387, nan, %v390
        %v392 = vand.u32 2147483647, %v383
        %vm393 = vcmp.gt.f32.partialorder %v392, 29.0
        %vm394 = vcmp.ne.f32.partialorder %v383, %v383
        %v395 = vmul.f32 %v383, 16.0
        %v396 = vsel %vm394, -0.0, %v395
        %v397 = vsel %vm393, nan, %v396
        %v398 = vand.u32 2147483647, %v384
        %vm399 = vcmp.gt.f32.partialorder %v398, 29.0
        %vm400 = vcmp.ne.f32.partialorder %v384, %v384
        %v401 = vmul.f32 %v384, 16.0
        %v402 = vsel %vm400, -0.0, %v401
        %v403 = vsel %vm399, nan, %v402
        %v404 = vand.u32 2147483647, %v385
        %vm405 = vcmp.gt.f32.partialorder %v404, 29.0
        %vm406 = vcmp.ne.f32.partialorder %v385, %v385
        %v407 = vmul.f32 %v385, 16.0
        %v408 = vsel %vm406, -0.0, %v407
        %v409 = vsel %vm405, nan, %v408
      $region44: #{tpu_custom_call.1} parent=40
        #allocation13 [shape = 'u8[4096]{0}', space=vmem, size = 0x1000, scoped, tag = 'scoped memory for tpu_custom_call.1']
        %410 = vst [vmem:[#allocation13] sm:$0xff] %v347
        %s411 = scalar_lea.vmem [#allocation13], 4
        %v412 = vld [vmem:[%s411] sm:$0x3]
        %v413 = vunpack.c.0.f8e4m3b11 %v412
        %v414 = vunpack.c.1.f8e4m3b11 %v412
        %v415 = vunpack.c.2.f8e4m3b11 %v412
        %v416 = vunpack.c.3.f8e4m3b11 %v412
        %v417 = vand.u32 2147483647, %v413
        %vm418 = vcmp.gt.f32.partialorder %v417, 29.0
        %vm419 = vcmp.ne.f32.partialorder %v413, %v413
        %v420 = vmul.f32 %v413, 16.0
        %v421 = vsel %vm419, -0.0, %v420
        %v422 = vsel %vm418, nan, %v421
        %v423 = vand.u32 2147483647, %v414
        %vm424 = vcmp.gt.f32.partialorder %v423, 29.0
        %vm425 = vcmp.ne.f32.partialorder %v414, %v414
        %v426 = vmul.f32 %v414, 16.0
        %v427 = vsel %vm425, -0.0, %v426
        %v428 = vsel %vm424, nan, %v427
        %v429 = vand.u32 2147483647, %v415
        %vm430 = vcmp.gt.f32.partialorder %v429, 29.0
        %vm431 = vcmp.ne.f32.partialorder %v415, %v415
        %v432 = vmul.f32 %v415, 16.0
        %v433 = vsel %vm431, -0.0, %v432
        %v434 = vsel %vm430, nan, %v433
        %v435 = vand.u32 2147483647, %v416
        %vm436 = vcmp.gt.f32.partialorder %v435, 29.0
        %vm437 = vcmp.ne.f32.partialorder %v416, %v416
        %v438 = vmul.f32 %v416, 16.0
        %v439 = vsel %vm437, -0.0, %v438
        %v440 = vsel %vm436, nan, %v439
      $region45: #{tpu_custom_call.1} parent=40
        #allocation14 [shape = 'u8[4096]{0}', space=vmem, size = 0x1000, scoped, tag = 'scoped memory for tpu_custom_call.1']
        %441 = vst [vmem:[#allocation14] sm:$0xff] %v347
        %s442 = scalar_lea.vmem [#allocation14], 6
        %v443 = vld [vmem:[%s442] sm:$0x3]
        %v444 = vunpack.c.0.f8e4m3b11 %v443
        %v445 = vunpack.c.1.f8e4m3b11 %v443
        %v446 = vunpack.c.2.f8e4m3b11 %v443
        %v447 = vunpack.c.3.f8e4m3b11 %v443
        %v448 = vand.u32 2147483647, %v444
        %vm449 = vcmp.gt.f32.partialorder %v448, 29.0
        %vm450 = vcmp.ne.f32.partialorder %v444, %v444
        %v451 = vmul.f32 %v444, 16.0
        %v452 = vsel %vm450, -0.0, %v451
        %v453 = vsel %vm449, nan, %v452
        %v454 = vand.u32 2147483647, %v445
        %vm455 = vcmp.gt.f32.partialorder %v454, 29.0
        %vm456 = vcmp.ne.f32.partialorder %v445, %v445
        %v457 = vmul.f32 %v445, 16.0
        %v458 = vsel %vm456, -0.0, %v457
        %v459 = vsel %vm455, nan, %v458
        %v460 = vand.u32 2147483647, %v446
        %vm461 = vcmp.gt.f32.partialorder %v460, 29.0
        %vm462 = vcmp.ne.f32.partialorder %v446, %v446
        %v463 = vmul.f32 %v446, 16.0
        %v464 = vsel %vm462, -0.0, %v463
        %v465 = vsel %vm461, nan, %v464
        %v466 = vand.u32 2147483647, %v447
        %vm467 = vcmp.gt.f32.partialorder %v466, 29.0
        %vm468 = vcmp.ne.f32.partialorder %v447, %v447
        %v469 = vmul.f32 %v447, 16.0
        %v470 = vsel %vm468, -0.0, %v469
        %v471 = vsel %vm467, nan, %v470
      $region46: #{tpu_custom_call.1} parent=40
        #allocation15 [shape = 'u8[4096]{0}', space=vmem, size = 0x1000, scoped, tag = 'scoped memory for tpu_custom_call.1']
        %472 = vst [vmem:[#allocation15] sm:$0xff] %v348
        %v473 = vld [vmem:[#allocation15] sm:$0x3]
        %v474 = vunpack.c.0.f8e4m3b11 %v473
        %v475 = vunpack.c.1.f8e4m3b11 %v473
        %v476 = vunpack.c.2.f8e4m3b11 %v473
        %v477 = vunpack.c.3.f8e4m3b11 %v473
        %v478 = vand.u32 2147483647, %v474
        %vm479 = vcmp.gt.f32.partialorder %v478, 29.0
        %vm480 = vcmp.ne.f32.partialorder %v474, %v474
        %v481 = vmul.f32 %v474, 16.0
        %v482 = vsel %vm480, -0.0, %v481
        %v483 = vsel %vm479, nan, %v482
        %v484 = vand.u32 2147483647, %v475
        %vm485 = vcmp.gt.f32.partialorder %v484, 29.0
        %vm486 = vcmp.ne.f32.partialorder %v475, %v475
        %v487 = vmul.f32 %v475, 16.0
        %v488 = vsel %vm486, -0.0, %v487
        %v489 = vsel %vm485, nan, %v488
        %v490 = vand.u32 2147483647, %v476
        %vm491 = vcmp.gt.f32.partialorder %v490, 29.0
        %vm492 = vcmp.ne.f32.partialorder %v476, %v476
        %v493 = vmul.f32 %v476, 16.0
        %v494 = vsel %vm492, -0.0, %v493
        %v495 = vsel %vm491, nan, %v494
        %v496 = vand.u32 2147483647, %v477
        %vm497 = vcmp.gt.f32.partialorder %v496, 29.0
        %vm498 = vcmp.ne.f32.partialorder %v477, %v477
        %v499 = vmul.f32 %v477, 16.0
        %v500 = vsel %vm498, -0.0, %v499
        %v501 = vsel %vm497, nan, %v500
      $region47: #{tpu_custom_call.1} parent=40
        #allocation16 [shape = 'u8[4096]{0}', space=vmem, size = 0x1000, scoped, tag = 'scoped memory for tpu_custom_call.1']
        %502 = vst [vmem:[#allocation16] sm:$0xff] %v348
        %s503 = scalar_lea.vmem [#allocation16], 2
        %v504 = vld [vmem:[%s503] sm:$0x3]
        %v505 = vunpack.c.0.f8e4m3b11 %v504
        %v506 = vunpack.c.1.f8e4m3b11 %v504
        %v507 = vunpack.c.2.f8e4m3b11 %v504
        %v508 = vunpack.c.3.f8e4m3b11 %v504
        %v509 = vand.u32 2147483647, %v505
        %vm510 = vcmp.gt.f32.partialorder %v509, 29.0
        %vm511 = vcmp.ne.f32.partialorder %v505, %v505
        %v512 = vmul.f32 %v505, 16.0
        %v513 = vsel %vm511, -0.0, %v512
        %v514 = vsel %vm510, nan, %v513
        %v515 = vand.u32 2147483647, %v506
        %vm516 = vcmp.gt.f32.partialorder %v515, 29.0
        %vm517 = vcmp.ne.f32.partialorder %v506, %v506
        %v518 = vmul.f32 %v506, 16.0
        %v519 = vsel %vm517, -0.0, %v518
        %v520 = vsel %vm516, nan, %v519
        %v521 = vand.u32 2147483647, %v507
        %vm522 = vcmp.gt.f32.partialorder %v521, 29.0
        %vm523 = vcmp.ne.f32.partialorder %v507, %v507
        %v524 = vmul.f32 %v507, 16.0
        %v525 = vsel %vm523, -0.0, %v524
        %v526 = vsel %vm522, nan, %v525
        %v527 = vand.u32 2147483647, %v508
        %vm528 = vcmp.gt.f32.partialorder %v527, 29.0
        %vm529 = vcmp.ne.f32.partialorder %v508, %v508
        %v530 = vmul.f32 %v508, 16.0
        %v531 = vsel %vm529, -0.0, %v530
        %v532 = vsel %vm528, nan, %v531
      $region48: #{tpu_custom_call.1} parent=40
        #allocation17 [shape = 'u8[4096]{0}', space=vmem, size = 0x1000, scoped, tag = 'scoped memory for tpu_custom_call.1']
        %533 = vst [vmem:[#allocation17] sm:$0xff] %v348
        %s534 = scalar_lea.vmem [#allocation17], 4
        %v535 = vld [vmem:[%s534] sm:$0x3]
        %v536 = vunpack.c.0.f8e4m3b11 %v535
        %v537 = vunpack.c.1.f8e4m3b11 %v535
        %v538 = vunpack.c.2.f8e4m3b11 %v535
        %v539 = vunpack.c.3.f8e4m3b11 %v535
        %v540 = vand.u32 2147483647, %v536
        %vm541 = vcmp.gt.f32.partialorder %v540, 29.0
        %vm542 = vcmp.ne.f32.partialorder %v536, %v536
        %v543 = vmul.f32 %v536, 16.0
        %v544 = vsel %vm542, -0.0, %v543
        %v545 = vsel %vm541, nan, %v544
        %v546 = vand.u32 2147483647, %v537
        %vm547 = vcmp.gt.f32.partialorder %v546, 29.0
        %vm548 = vcmp.ne.f32.partialorder %v537, %v537
        %v549 = vmul.f32 %v537, 16.0
        %v550 = vsel %vm548, -0.0, %v549
        %v551 = vsel %vm547, nan, %v550
        %v552 = vand.u32 2147483647, %v538
        %vm553 = vcmp.gt.f32.partialorder %v552, 29.0
        %vm554 = vcmp.ne.f32.partialorder %v538, %v538
        %v555 = vmul.f32 %v538, 16.0
        %v556 = vsel %vm554, -0.0, %v555
        %v557 = vsel %vm553, nan, %v556
        %v558 = vand.u32 2147483647, %v539
        %vm559 = vcmp.gt.f32.partialorder %v558, 29.0
        %vm560 = vcmp.ne.f32.partialorder %v539, %v539
        %v561 = vmul.f32 %v539, 16.0
        %v562 = vsel %vm560, -0.0, %v561
        %v563 = vsel %vm559, nan, %v562
      $region49: #{tpu_custom_call.1} parent=40
        #allocation18 [shape = 'u8[4096]{0}', space=vmem, size = 0x1000, scoped, tag = 'scoped memory for tpu_custom_call.1']
        %564 = vst [vmem:[#allocation18] sm:$0xff] %v348
        %s565 = scalar_lea.vmem [#allocation18], 6
        %v566 = vld [vmem:[%s565] sm:$0x3]
        %v567 = vunpack.c.0.f8e4m3b11 %v566
        %v568 = vunpack.c.1.f8e4m3b11 %v566
        %v569 = vunpack.c.2.f8e4m3b11 %v566
        %v570 = vunpack.c.3.f8e4m3b11 %v566
        %v571 = vand.u32 2147483647, %v567
        %vm572 = vcmp.gt.f32.partialorder %v571, 29.0
        %vm573 = vcmp.ne.f32.partialorder %v567, %v567
        %v574 = vmul.f32 %v567, 16.0
        %v575 = vsel %vm573, -0.0, %v574
        %v576 = vsel %vm572, nan, %v575
        %v577 = vand.u32 2147483647, %v568
        %vm578 = vcmp.gt.f32.partialorder %v577, 29.0
        %vm579 = vcmp.ne.f32.partialorder %v568, %v568
        %v580 = vmul.f32 %v568, 16.0
        %v581 = vsel %vm579, -0.0, %v580
        %v582 = vsel %vm578, nan, %v581
        %v583 = vand.u32 2147483647, %v569
        %vm584 = vcmp.gt.f32.partialorder %v583, 29.0
        %vm585 = vcmp.ne.f32.partialorder %v569, %v569
        %v586 = vmul.f32 %v569, 16.0
        %v587 = vsel %vm585, -0.0, %v586
        %v588 = vsel %vm584, nan, %v587
        %v589 = vand.u32 2147483647, %v570
        %vm590 = vcmp.gt.f32.partialorder %v589, 29.0
        %vm591 = vcmp.ne.f32.partialorder %v570, %v570
        %v592 = vmul.f32 %v570, 16.0
        %v593 = vsel %vm591, -0.0, %v592
        %v594 = vsel %vm590, nan, %v593
      %v595 = vpack.c.bf16 %v391, %v360
      %v596 = vpack.c.bf16 %v453, %v422
      %v597 = vpack.c.bf16 %v514, %v483
      %v598 = vpack.c.bf16 %v576, %v545
      %v599 = vld [vmem:[#allocation3] sm:$0xff]
      %v600 = vld [vmem:[#allocation3 + $0x8] sm:$0xff]
      %v601 = vld [vmem:[#allocation3 + $0x10] sm:$0xff]
      %v602 = vld [vmem:[#allocation3 + $0x18] sm:$0xff]
      %v603 = vld [vmem:[#allocation3 + $0x20] sm:$0xff]
      %v604 = vld [vmem:[#allocation3 + $0x28] sm:$0xff]
      %v605 = vld [vmem:[#allocation3 + $0x30] sm:$0xff]
      %v606 = vld [vmem:[#allocation3 + $0x38] sm:$0xff]
      %v607 = vld [vmem:[#allocation3 + $0x40] sm:$0xff]
      %v608 = vld [vmem:[#allocation3 + $0x48] sm:$0xff]
      %v609 = vld [vmem:[#allocation3 + $0x50] sm:$0xff]
      %v610 = vld [vmem:[#allocation3 + $0x58] sm:$0xff]
      %v611 = vld [vmem:[#allocation3 + $0x60] sm:$0xff]
      %v612 = vld [vmem:[#allocation3 + $0x68] sm:$0xff]
      %v613 = vld [vmem:[#allocation3 + $0x70] sm:$0xff]
      %v614 = vld [vmem:[#allocation3 + $0x78] sm:$0xff]
      %v631 = vunpack.c.l.b16 %v315
      %v632 = vunpack.c.h.b16 %v315
      %v633 = vunpack.c.l.b16 %v316
      %v634 = vunpack.c.h.b16 %v316
      %v635 = vunpack.c.l.b16 %v317
      %v636 = vunpack.c.h.b16 %v317
      %v637 = vunpack.c.l.b16 %v318
      %v638 = vunpack.c.h.b16 %v318
      %v639 = vunpack.c.l.b16 %v319
      %v640 = vunpack.c.h.b16 %v319
      %v641 = vunpack.c.l.b16 %v320
      %v642 = vunpack.c.h.b16 %v320
      %v643 = vunpack.c.l.b16 %v321
      %v644 = vunpack.c.h.b16 %v321
      %v645 = vunpack.c.l.b16 %v322
      %v646 = vunpack.c.h.b16 %v322
      %v647 = vunpack.c.l.b16 %v323
      %v648 = vunpack.c.h.b16 %v323
      %v649 = vunpack.c.l.b16 %v324
      %v650 = vunpack.c.h.b16 %v324
      %v651 = vunpack.c.l.b16 %v325
      %v652 = vunpack.c.h.b16 %v325
      %v653 = vunpack.c.l.b16 %v326
      %v654 = vunpack.c.h.b16 %v326
      %v655 = vunpack.c.l.b16 %v327
      %v656 = vunpack.c.h.b16 %v327
      %v657 = vunpack.c.l.b16 %v328
      %v658 = vunpack.c.h.b16 %v328
      %v659 = vunpack.c.l.b16 %v329
      %v660 = vunpack.c.h.b16 %v329
      %v661 = vunpack.c.l.b16 %v330
      %v662 = vunpack.c.h.b16 %v330
      %v663 = vpack.c.b16 %v633, %v631
      %v664 = vpack.c.b16 %v634, %v632
      %v665 = vpack.c.b16 %v637, %v635
      %v666 = vpack.c.b16 %v638, %v636
      %v667 = vpack.c.b16 %v641, %v639
      %v668 = vpack.c.b16 %v642, %v640
      %v669 = vpack.c.b16 %v645, %v643
      %v670 = vpack.c.b16 %v646, %v644
      %v671 = vpack.c.b16 %v649, %v647
      %v672 = vpack.c.b16 %v650, %v648
      %v673 = vpack.c.b16 %v653, %v651
      %v674 = vpack.c.b16 %v654, %v652
      %v675 = vpack.c.b16 %v657, %v655
      %v676 = vpack.c.b16 %v658, %v656
      %v677 = vpack.c.b16 %v661, %v659
      %v678 = vpack.c.b16 %v662, %v660
      %695 = vmatpush.bf16.msra.mxu0 %v677
      %696 = vmatpush.bf16.msra.mxu0 %v675
      %697 = vmatpush.bf16.msra.mxu0 %v673
      %698 = vmatpush.bf16.msra.mxu0 %v671
      %699 = vmatpush.bf16.msra.mxu0 %v669
      %700 = vmatpush.bf16.msra.mxu0 %v667
      %701 = vmatpush.bf16.msra.mxu0 %v665
      %702 = vmatpush.bf16.msra.mxu0 %v663
      %703 = vmatmul.bf16.gmra.mxu0 %v595
      %v704 = vpop.f32.mrf.mxu0
      %v705 = vadd.f32 0.0, %v704
      %v706 = vpop.f32.mrf.mxu0
      %v707 = vadd.f32 0.0, %v706
      %708 = vmatmul.bf16.gmra.mxu0 %v596
      %v709 = vpop.f32.mrf.mxu0
      %v710 = vadd.f32 0.0, %v709
      %v711 = vpop.f32.mrf.mxu0
      %v712 = vadd.f32 0.0, %v711
      %713 = vmatmul.bf16.gmra.mxu0 %v597
      %v714 = vpop.f32.mrf.mxu0
      %v715 = vadd.f32 0.0, %v714
      %v716 = vpop.f32.mrf.mxu0
      %v717 = vadd.f32 0.0, %v716
      %718 = vmatmul.bf16.gmra.mxu0 %v598
      %v719 = vpop.f32.mrf.mxu0
      %v720 = vadd.f32 0.0, %v719
      %v721 = vpop.f32.mrf.mxu0
      %v722 = vadd.f32 0.0, %v721
      %723 = vdwg.mxu0
      %724 = vmatpush.bf16.msra.mxu0 %v678
      %725 = vmatpush.bf16.msra.mxu0 %v676
      %726 = vmatpush.bf16.msra.mxu0 %v674
      %727 = vmatpush.bf16.msra.mxu0 %v672
      %728 = vmatpush.bf16.msra.mxu0 %v670
      %729 = vmatpush.bf16.msra.mxu0 %v668
      %730 = vmatpush.bf16.msra.mxu0 %v666
      %731 = vmatpush.bf16.msra.mxu0 %v664
      %732 = vmatmul.bf16.gmra.mxu0 %v595
      %v733 = vpop.f32.mrf.mxu0
      %v734 = vadd.f32 0.0, %v733
      %v735 = vpop.f32.mrf.mxu0
      %v736 = vadd.f32 0.0, %v735
      %737 = vmatmul.bf16.gmra.mxu0 %v596
      %v738 = vpop.f32.mrf.mxu0
      %v739 = vadd.f32 0.0, %v738
      %v740 = vpop.f32.mrf.mxu0
      %v741 = vadd.f32 0.0, %v740
      %742 = vmatmul.bf16.gmra.mxu0 %v597
      %v743 = vpop.f32.mrf.mxu0
      %v744 = vadd.f32 0.0, %v743
      %v745 = vpop.f32.mrf.mxu0
      %v746 = vadd.f32 0.0, %v745
      %747 = vmatmul.bf16.gmra.mxu0 %v598
      %v748 = vpop.f32.mrf.mxu0
      %v749 = vadd.f32 0.0, %v748
      %v750 = vpop.f32.mrf.mxu0
      %v751 = vadd.f32 0.0, %v750
      %752 = vdwg.mxu0
      %v753 = vadd.f32 %v599, %v705
      %v754 = vadd.f32 %v600, %v734
      %v755 = vadd.f32 %v601, %v707
      %v756 = vadd.f32 %v602, %v736
      %v757 = vadd.f32 %v603, %v710
      %v758 = vadd.f32 %v604, %v739
      %v759 = vadd.f32 %v605, %v712
      %v760 = vadd.f32 %v606, %v741
      %v761 = vadd.f32 %v607, %v715
      %v762 = vadd.f32 %v608, %v744
      %v763 = vadd.f32 %v609, %v717
      %v764 = vadd.f32 %v610, %v746
      %v765 = vadd.f32 %v611, %v720
      %v766 = vadd.f32 %v612, %v749
      %v767 = vadd.f32 %v613, %v722
      %v768 = vadd.f32 %v614, %v751
      %769 = vst [vmem:[#allocation3] sm:$0xff] %v753
      %770 = vst [vmem:[#allocation3 + $0x8] sm:$0xff] %v754
      %771 = vst [vmem:[#allocation3 + $0x10] sm:$0xff] %v755
      %772 = vst [vmem:[#allocation3 + $0x18] sm:$0xff] %v756
      %773 = vst [vmem:[#allocation3 + $0x20] sm:$0xff] %v757
      %774 = vst [vmem:[#allocation3 + $0x28] sm:$0xff] %v758
      %775 = vst [vmem:[#allocation3 + $0x30] sm:$0xff] %v759
      %776 = vst [vmem:[#allocation3 + $0x38] sm:$0xff] %v760
      %777 = vst [vmem:[#allocation3 + $0x40] sm:$0xff] %v761
      %778 = vst [vmem:[#allocation3 + $0x48] sm:$0xff] %v762
      %779 = vst [vmem:[#allocation3 + $0x50] sm:$0xff] %v763
      %780 = vst [vmem:[#allocation3 + $0x58] sm:$0xff] %v764
      %781 = vst [vmem:[#allocation3 + $0x60] sm:$0xff] %v765
      %782 = vst [vmem:[#allocation3 + $0x68] sm:$0xff] %v766
      %783 = vst [vmem:[#allocation3 + $0x70] sm:$0xff] %v767
      %784 = vst [vmem:[#allocation3 + $0x78] sm:$0xff] %v768
      %v785 = vshll.u32 %v75, 24
      %v786 = vshll.u32 %v76, 24
      %v787 = vshll.u32 %v77, 24
      %v788 = vshll.u32 %v78, 24
      %v789 = vshll.u32 %v79, 24
      %v790 = vshll.u32 %v80, 24
      %v791 = vshll.u32 %v81, 24
      %v792 = vshll.u32 %v82, 24
      %v793 = vshll.u32 %v83, 24
      %v794 = vshll.u32 %v84, 24
      %v795 = vshll.u32 %v85, 24
      %v796 = vshll.u32 %v86, 24
      %v797 = vshll.u32 %v87, 24
      %v798 = vshll.u32 %v88, 24
      %v799 = vshll.u32 %v89, 24
      %v800 = vshll.u32 %v90, 24
      %v801 = vshll.u32 %v91, 24
      %v802 = vshll.u32 %v92, 24
      %v803 = vshll.u32 %v93, 24
      %v804 = vshll.u32 %v94, 24
      %v805 = vshll.u32 %v95, 24
      %v806 = vshll.u32 %v96, 24
      %v807 = vshll.u32 %v97, 24
      %v808 = vshll.u32 %v98, 24
      %v809 = vshll.u32 %v99, 24
      %v810 = vshll.u32 %v100, 24
      %v811 = vshll.u32 %v101, 24
      %v812 = vshll.u32 %v102, 24
      %v813 = vshll.u32 %v103, 24
      %v814 = vshll.u32 %v104, 24
      %v815 = vshll.u32 %v105, 24
      %v816 = vshll.u32 %v106, 24
      %v817 = vshra.s32 %v785, 28
      %v818 = vshra.s32 %v786, 28
      %v819 = vshra.s32 %v787, 28
      %v820 = vshra.s32 %v788, 28
      %v821 = vshra.s32 %v789, 28
      %v822 = vshra.s32 %v790, 28
      %v823 = vshra.s32 %v791, 28
      %v824 = vshra.s32 %v792, 28
      %v825 = vshra.s32 %v793, 28
      %v826 = vshra.s32 %v794, 28
      %v827 = vshra.s32 %v795, 28
      %v828 = vshra.s32 %v796, 28
      %v829 = vshra.s32 %v797, 28
      %v830 = vshra.s32 %v798, 28
      %v831 = vshra.s32 %v799, 28
      %v832 = vshra.s32 %v800, 28
      %v833 = vshra.s32 %v801, 28
      %v834 = vshra.s32 %v802, 28
      %v835 = vshra.s32 %v803, 28
      %v836 = vshra.s32 %v804, 28
      %v837 = vshra.s32 %v805, 28
      %v838 = vshra.s32 %v806, 28
      %v839 = vshra.s32 %v807, 28
      %v840 = vshra.s32 %v808, 28
      %v841 = vshra.s32 %v809, 28
      %v842 = vshra.s32 %v810, 28
      %v843 = vshra.s32 %v811, 28
      %v844 = vshra.s32 %v812, 28
      %v845 = vshra.s32 %v813, 28
      %v846 = vshra.s32 %v814, 28
      %v847 = vshra.s32 %v815, 28
      %v848 = vshra.s32 %v816, 28
      %v849 = vcvt.s32.f32 %v817
      %v850 = vcvt.s32.f32 %v818
      %v851 = vcvt.s32.f32 %v819
      %v852 = vcvt.s32.f32 %v820
      %v853 = vcvt.s32.f32 %v821
      %v854 = vcvt.s32.f32 %v822
      %v855 = vcvt.s32.f32 %v823
      %v856 = vcvt.s32.f32 %v824
      %v857 = vcvt.s32.f32 %v825
      %v858 = vcvt.s32.f32 %v826
      %v859 = vcvt.s32.f32 %v827
      %v860 = vcvt.s32.f32 %v828
      %v861 = vcvt.s32.f32 %v829
      %v862 = vcvt.s32.f32 %v830
      %v863 = vcvt.s32.f32 %v831
      %v864 = vcvt.s32.f32 %v832
      %v865 = vcvt.s32.f32 %v833
      %v866 = vcvt.s32.f32 %v834
      %v867 = vcvt.s32.f32 %v835
      %v868 = vcvt.s32.f32 %v836
      %v869 = vcvt.s32.f32 %v837
      %v870 = vcvt.s32.f32 %v838
      %v871 = vcvt.s32.f32 %v839
      %v872 = vcvt.s32.f32 %v840
      %v873 = vcvt.s32.f32 %v841
      %v874 = vcvt.s32.f32 %v842
      %v875 = vcvt.s32.f32 %v843
      %v876 = vcvt.s32.f32 %v844
      %v877 = vcvt.s32.f32 %v845
      %v878 = vcvt.s32.f32 %v846
      %v879 = vcvt.s32.f32 %v847
      %v880 = vcvt.s32.f32 %v848
      %v881 = vpack.c.bf16 %v850, %v849
      %v882 = vpack.c.bf16 %v852, %v851
      %v883 = vpack.c.bf16 %v854, %v853
      %v884 = vpack.c.bf16 %v856, %v855
      %v885 = vpack.c.bf16 %v858, %v857
      %v886 = vpack.c.bf16 %v860, %v859
      %v887 = vpack.c.bf16 %v862, %v861
      %v888 = vpack.c.bf16 %v864, %v863
      %v889 = vpack.c.bf16 %v866, %v865
      %v890 = vpack.c.bf16 %v868, %v867
      %v891 = vpack.c.bf16 %v870, %v869
      %v892 = vpack.c.bf16 %v872, %v871
      %v893 = vpack.c.bf16 %v874, %v873
      %v894 = vpack.c.bf16 %v876, %v875
      %v895 = vpack.c.bf16 %v878, %v877
      %v896 = vpack.c.bf16 %v880, %v879
      %v897 = vshrl.u32 %v239, 16
      %v898 = vpack.i.b16 %v897, %v897
      %v900 = vperm.slane %v898, 0
      %v901 = vshrl.u32 %v240, 16
      %v902 = vpack.i.b16 %v901, %v901
      %v904 = vperm.slane %v902, 0
      %v905 = vunpack.c.l.bf16 %v881
      %v906 = vunpack.c.h.bf16 %v881
      %v907 = vunpack.c.l.bf16 %v882
      %v908 = vunpack.c.h.bf16 %v882
      %v909 = vunpack.c.l.bf16 %v883
      %v910 = vunpack.c.h.bf16 %v883
      %v911 = vunpack.c.l.bf16 %v884
      %v912 = vunpack.c.h.bf16 %v884
      %v913 = vunpack.c.l.bf16 %v885
      %v914 = vunpack.c.h.bf16 %v885
      %v915 = vunpack.c.l.bf16 %v886
      %v916 = vunpack.c.h.bf16 %v886
      %v917 = vunpack.c.l.bf16 %v887
      %v918 = vunpack.c.h.bf16 %v887
      %v919 = vunpack.c.l.bf16 %v888
      %v920 = vunpack.c.h.bf16 %v888
      %v921 = vunpack.c.l.bf16 %v889
      %v922 = vunpack.c.h.bf16 %v889
      %v923 = vunpack.c.l.bf16 %v890
      %v924 = vunpack.c.h.bf16 %v890
      %v925 = vunpack.c.l.bf16 %v891
      %v926 = vunpack.c.h.bf16 %v891
      %v927 = vunpack.c.l.bf16 %v892
      %v928 = vunpack.c.h.bf16 %v892
      %v929 = vunpack.c.l.bf16 %v893
      %v930 = vunpack.c.h.bf16 %v893
      %v931 = vunpack.c.l.bf16 %v894
      %v932 = vunpack.c.h.bf16 %v894
      %v933 = vunpack.c.l.bf16 %v895
      %v934 = vunpack.c.h.bf16 %v895
      %v935 = vunpack.c.l.bf16 %v896
      %v936 = vunpack.c.h.bf16 %v896
      %v937 = vunpack.c.l.bf16 %v900
      %v938 = vunpack.c.l.bf16 %v904
      %v939 = vmul.f32 %v905, %v937
      %v940 = vmul.f32 %v906, %v938
      %v941 = vmul.f32 %v907, %v937
      %v942 = vmul.f32 %v908, %v938
      %v943 = vmul.f32 %v909, %v937
      %v944 = vmul.f32 %v910, %v938
      %v945 = vmul.f32 %v911, %v937
      %v946 = vmul.f32 %v912, %v938
      %v947 = vmul.f32 %v913, %v937
      %v948 = vmul.f32 %v914, %v938
      %v949 = vmul.f32 %v915, %v937
      %v950 = vmul.f32 %v916, %v938
      %v951 = vmul.f32 %v917, %v937
      %v952 = vmul.f32 %v918, %v938
      %v953 = vmul.f32 %v919, %v937
      %v954 = vmul.f32 %v920, %v938
      %v955 = vmul.f32 %v921, %v937
      %v956 = vmul.f32 %v922, %v938
      %v957 = vmul.f32 %v923, %v937
      %v958 = vmul.f32 %v924, %v938
      %v959 = vmul.f32 %v925, %v937
      %v960 = vmul.f32 %v926, %v938
      %v961 = vmul.f32 %v927, %v937
      %v962 = vmul.f32 %v928, %v938
      %v963 = vmul.f32 %v929, %v937
      %v964 = vmul.f32 %v930, %v938
      %v965 = vmul.f32 %v931, %v937
      %v966 = vmul.f32 %v932, %v938
      %v967 = vmul.f32 %v933, %v937
      %v968 = vmul.f32 %v934, %v938
      %v969 = vmul.f32 %v935, %v937
      %v970 = vmul.f32 %v936, %v938
      %v971 = vpack.c.bf16 %v940, %v939
      %v972 = vpack.c.bf16 %v942, %v941
      %v973 = vpack.c.bf16 %v944, %v943
      %v974 = vpack.c.bf16 %v946, %v945
      %v975 = vpack.c.bf16 %v948, %v947
      %v976 = vpack.c.bf16 %v950, %v949
      %v977 = vpack.c.bf16 %v952, %v951
      %v978 = vpack.c.bf16 %v954, %v953
      %v979 = vpack.c.bf16 %v956, %v955
      %v980 = vpack.c.bf16 %v958, %v957
      %v981 = vpack.c.bf16 %v960, %v959
      %v982 = vpack.c.bf16 %v962, %v961
      %v983 = vpack.c.bf16 %v964, %v963
      %v984 = vpack.c.bf16 %v966, %v965
      %v985 = vpack.c.bf16 %v968, %v967
      %v986 = vpack.c.bf16 %v970, %v969
      %987 = vst [vmem:[#allocation2 + $0x80] sm:$0xff] %v971
      %988 = vst [vmem:[#allocation2 + $0x88] sm:$0xff] %v972
      %989 = vst [vmem:[#allocation2 + $0x90] sm:$0xff] %v973
      %990 = vst [vmem:[#allocation2 + $0x98] sm:$0xff] %v974
      %991 = vst [vmem:[#allocation2 + $0xa0] sm:$0xff] %v975
      %992 = vst [vmem:[#allocation2 + $0xa8] sm:$0xff] %v976
      %993 = vst [vmem:[#allocation2 + $0xb0] sm:$0xff] %v977
      %994 = vst [vmem:[#allocation2 + $0xb8] sm:$0xff] %v978
      %995 = vst [vmem:[#allocation2 + $0xc0] sm:$0xff] %v979
      %996 = vst [vmem:[#allocation2 + $0xc8] sm:$0xff] %v980
      %997 = vst [vmem:[#allocation2 + $0xd0] sm:$0xff] %v981
      %998 = vst [vmem:[#allocation2 + $0xd8] sm:$0xff] %v982
      %999 = vst [vmem:[#allocation2 + $0xe0] sm:$0xff] %v983
      %1000 = vst [vmem:[#allocation2 + $0xe8] sm:$0xff] %v984
      %1001 = vst [vmem:[#allocation2 + $0xf0] sm:$0xff] %v985
      %1002 = vst [vmem:[#allocation2 + $0xf8] sm:$0xff] %v986
      %v1003 = vld [vmem:[#allocation4 + $0x8] sm:$0xff]
      %v1004 = vld [vmem:[#allocation4 + $0x48] sm:$0xff]
      $region50: #{tpu_custom_call.1} parent=40
        #allocation19 [shape = 'u8[4096]{0}', space=vmem, size = 0x1000, scoped, tag = 'scoped memory for tpu_custom_call.1']
        %1005 = vst [vmem:[#allocation19] sm:$0xff] %v1003
        %v1006 = vld [vmem:[#allocation19] sm:$0x3]
        %v1007 = vunpack.c.0.f8e4m3b11 %v1006
        %v1008 = vunpack.c.1.f8e4m3b11 %v1006
        %v1009 = vunpack.c.2.f8e4m3b11 %v1006
        %v1010 = vunpack.c.3.f8e4m3b11 %v1006
        %v1011 = vand.u32 2147483647, %v1007
        %vm1012 = vcmp.gt.f32.partialorder %v1011, 29.0
        %vm1013 = vcmp.ne.f32.partialorder %v1007, %v1007
        %v1014 = vmul.f32 %v1007, 16.0
        %v1015 = vsel %vm1013, -0.0, %v1014
        %v1016 = vsel %vm1012, nan, %v1015
        %v1017 = vand.u32 2147483647, %v1008
        %vm1018 = vcmp.gt.f32.partialorder %v1017, 29.0
        %vm1019 = vcmp.ne.f32.partialorder %v1008, %v1008
        %v1020 = vmul.f32 %v1008, 16.0
        %v1021 = vsel %vm1019, -0.0, %v1020
        %v1022 = vsel %vm1018, nan, %v1021
        %v1023 = vand.u32 2147483647, %v1009
        %vm1024 = vcmp.gt.f32.partialorder %v1023, 29.0
        %vm1025 = vcmp.ne.f32.partialorder %v1009, %v1009
        %v1026 = vmul.f32 %v1009, 16.0
        %v1027 = vsel %vm1025, -0.0, %v1026
        %v1028 = vsel %vm1024, nan, %v1027
        %v1029 = vand.u32 2147483647, %v1010
        %vm1030 = vcmp.gt.f32.partialorder %v1029, 29.0
        %vm1031 = vcmp.ne.f32.partialorder %v1010, %v1010
        %v1032 = vmul.f32 %v1010, 16.0
        %v1033 = vsel %vm1031, -0.0, %v1032
        %v1034 = vsel %vm1030, nan, %v1033
      $region51: #{tpu_custom_call.1} parent=40
        #allocation20 [shape = 'u8[4096]{0}', space=vmem, size = 0x1000, scoped, tag = 'scoped memory for tpu_custom_call.1']
        %1035 = vst [vmem:[#allocation20] sm:$0xff] %v1003
        %s1036 = scalar_lea.vmem [#allocation20], 2
        %v1037 = vld [vmem:[%s1036] sm:$0x3]
        %v1038 = vunpack.c.0.f8e4m3b11 %v1037
        %v1039 = vunpack.c.1.f8e4m3b11 %v1037
        %v1040 = vunpack.c.2.f8e4m3b11 %v1037
        %v1041 = vunpack.c.3.f8e4m3b11 %v1037
        %v1042 = vand.u32 2147483647, %v1038
        %vm1043 = vcmp.gt.f32.partialorder %v1042, 29.0
        %vm1044 = vcmp.ne.f32.partialorder %v1038, %v1038
        %v1045 = vmul.f32 %v1038, 16.0
        %v1046 = vsel %vm1044, -0.0, %v1045
        %v1047 = vsel %vm1043, nan, %v1046
        %v1048 = vand.u32 2147483647, %v1039
        %vm1049 = vcmp.gt.f32.partialorder %v1048, 29.0
        %vm1050 = vcmp.ne.f32.partialorder %v1039, %v1039
        %v1051 = vmul.f32 %v1039, 16.0
        %v1052 = vsel %vm1050, -0.0, %v1051
        %v1053 = vsel %vm1049, nan, %v1052
        %v1054 = vand.u32 2147483647, %v1040
        %vm1055 = vcmp.gt.f32.partialorder %v1054, 29.0
        %vm1056 = vcmp.ne.f32.partialorder %v1040, %v1040
        %v1057 = vmul.f32 %v1040, 16.0
        %v1058 = vsel %vm1056, -0.0, %v1057
        %v1059 = vsel %vm1055, nan, %v1058
        %v1060 = vand.u32 2147483647, %v1041
        %vm1061 = vcmp.gt.f32.partialorder %v1060, 29.0
        %vm1062 = vcmp.ne.f32.partialorder %v1041, %v1041
        %v1063 = vmul.f32 %v1041, 16.0
        %v1064 = vsel %vm1062, -0.0, %v1063
        %v1065 = vsel %vm1061, nan, %v1064
      $region52: #{tpu_custom_call.1} parent=40
        #allocation21 [shape = 'u8[4096]{0}', space=vmem, size = 0x1000, scoped, tag = 'scoped memory for tpu_custom_call.1']
        %1066 = vst [vmem:[#allocation21] sm:$0xff] %v1003
        %s1067 = scalar_lea.vmem [#allocation21], 4
        %v1068 = vld [vmem:[%s1067] sm:$0x3]
        %v1069 = vunpack.c.0.f8e4m3b11 %v1068
        %v1070 = vunpack.c.1.f8e4m3b11 %v1068
        %v1071 = vunpack.c.2.f8e4m3b11 %v1068
        %v1072 = vunpack.c.3.f8e4m3b11 %v1068
        %v1073 = vand.u32 2147483647, %v1069
        %vm1074 = vcmp.gt.f32.partialorder %v1073, 29.0
        %vm1075 = vcmp.ne.f32.partialorder %v1069, %v1069
        %v1076 = vmul.f32 %v1069, 16.0
        %v1077 = vsel %vm1075, -0.0, %v1076
        %v1078 = vsel %vm1074, nan, %v1077
        %v1079 = vand.u32 2147483647, %v1070
        %vm1080 = vcmp.gt.f32.partialorder %v1079, 29.0
        %vm1081 = vcmp.ne.f32.partialorder %v1070, %v1070
        %v1082 = vmul.f32 %v1070, 16.0
        %v1083 = vsel %vm1081, -0.0, %v1082
        %v1084 = vsel %vm1080, nan, %v1083
        %v1085 = vand.u32 2147483647, %v1071
        %vm1086 = vcmp.gt.f32.partialorder %v1085, 29.0
        %vm1087 = vcmp.ne.f32.partialorder %v1071, %v1071
        %v1088 = vmul.f32 %v1071, 16.0
        %v1089 = vsel %vm1087, -0.0, %v1088
        %v1090 = vsel %vm1086, nan, %v1089
        %v1091 = vand.u32 2147483647, %v1072
        %vm1092 = vcmp.gt.f32.partialorder %v1091, 29.0
        %vm1093 = vcmp.ne.f32.partialorder %v1072, %v1072
        %v1094 = vmul.f32 %v1072, 16.0
        %v1095 = vsel %vm1093, -0.0, %v1094
        %v1096 = vsel %vm1092, nan, %v1095
      $region53: #{tpu_custom_call.1} parent=40
        #allocation22 [shape = 'u8[4096]{0}', space=vmem, size = 0x1000, scoped, tag = 'scoped memory for tpu_custom_call.1']
        %1097 = vst [vmem:[#allocation22] sm:$0xff] %v1003
        %s1098 = scalar_lea.vmem [#allocation22], 6
        %v1099 = vld [vmem:[%s1098] sm:$0x3]
        %v1100 = vunpack.c.0.f8e4m3b11 %v1099
        %v1101 = vunpack.c.1.f8e4m3b11 %v1099
        %v1102 = vunpack.c.2.f8e4m3b11 %v1099
        %v1103 = vunpack.c.3.f8e4m3b11 %v1099
        %v1104 = vand.u32 2147483647, %v1100
        %vm1105 = vcmp.gt.f32.partialorder %v1104, 29.0
        %vm1106 = vcmp.ne.f32.partialorder %v1100, %v1100
        %v1107 = vmul.f32 %v1100, 16.0
        %v1108 = vsel %vm1106, -0.0, %v1107
        %v1109 = vsel %vm1105, nan, %v1108
        %v1110 = vand.u32 2147483647, %v1101
        %vm1111 = vcmp.gt.f32.partialorder %v1110, 29.0
        %vm1112 = vcmp.ne.f32.partialorder %v1101, %v1101
        %v1113 = vmul.f32 %v1101, 16.0
        %v1114 = vsel %vm1112, -0.0, %v1113
        %v1115 = vsel %vm1111, nan, %v1114
        %v1116 = vand.u32 2147483647, %v1102
        %vm1117 = vcmp.gt.f32.partialorder %v1116, 29.0
        %vm1118 = vcmp.ne.f32.partialorder %v1102, %v1102
        %v1119 = vmul.f32 %v1102, 16.0
        %v1120 = vsel %vm1118, -0.0, %v1119
        %v1121 = vsel %vm1117, nan, %v1120
        %v1122 = vand.u32 2147483647, %v1103
        %vm1123 = vcmp.gt.f32.partialorder %v1122, 29.0
        %vm1124 = vcmp.ne.f32.partialorder %v1103, %v1103
        %v1125 = vmul.f32 %v1103, 16.0
        %v1126 = vsel %vm1124, -0.0, %v1125
        %v1127 = vsel %vm1123, nan, %v1126
      $region54: #{tpu_custom_call.1} parent=40
        #allocation23 [shape = 'u8[4096]{0}', space=vmem, size = 0x1000, scoped, tag = 'scoped memory for tpu_custom_call.1']
        %1128 = vst [vmem:[#allocation23] sm:$0xff] %v1004
        %v1129 = vld [vmem:[#allocation23] sm:$0x3]
        %v1130 = vunpack.c.0.f8e4m3b11 %v1129
        %v1131 = vunpack.c.1.f8e4m3b11 %v1129
        %v1132 = vunpack.c.2.f8e4m3b11 %v1129
        %v1133 = vunpack.c.3.f8e4m3b11 %v1129
        %v1134 = vand.u32 2147483647, %v1130
        %vm1135 = vcmp.gt.f32.partialorder %v1134, 29.0
        %vm1136 = vcmp.ne.f32.partialorder %v1130, %v1130
        %v1137 = vmul.f32 %v1130, 16.0
        %v1138 = vsel %vm1136, -0.0, %v1137
        %v1139 = vsel %vm1135, nan, %v1138
        %v1140 = vand.u32 2147483647, %v1131
        %vm1141 = vcmp.gt.f32.partialorder %v1140, 29.0
        %vm1142 = vcmp.ne.f32.partialorder %v1131, %v1131
        %v1143 = vmul.f32 %v1131, 16.0
        %v1144 = vsel %vm1142, -0.0, %v1143
        %v1145 = vsel %vm1141, nan, %v1144
        %v1146 = vand.u32 2147483647, %v1132
        %vm1147 = vcmp.gt.f32.partialorder %v1146, 29.0
        %vm1148 = vcmp.ne.f32.partialorder %v1132, %v1132
        %v1149 = vmul.f32 %v1132, 16.0
        %v1150 = vsel %vm1148, -0.0, %v1149
        %v1151 = vsel %vm1147, nan, %v1150
        %v1152 = vand.u32 2147483647, %v1133
        %vm1153 = vcmp.gt.f32.partialorder %v1152, 29.0
        %vm1154 = vcmp.ne.f32.partialorder %v1133, %v1133
        %v1155 = vmul.f32 %v1133, 16.0
        %v1156 = vsel %vm1154, -0.0, %v1155
        %v1157 = vsel %vm1153, nan, %v1156
      $region55: #{tpu_custom_call.1} parent=40
        #allocation24 [shape = 'u8[4096]{0}', space=vmem, size = 0x1000, scoped, tag = 'scoped memory for tpu_custom_call.1']
        %1158 = vst [vmem:[#allocation24] sm:$0xff] %v1004
        %s1159 = scalar_lea.vmem [#allocation24], 2
        %v1160 = vld [vmem:[%s1159] sm:$0x3]
        %v1161 = vunpack.c.0.f8e4m3b11 %v1160
        %v1162 = vunpack.c.1.f8e4m3b11 %v1160
        %v1163 = vunpack.c.2.f8e4m3b11 %v1160
        %v1164 = vunpack.c.3.f8e4m3b11 %v1160
        %v1165 = vand.u32 2147483647, %v1161
        %vm1166 = vcmp.gt.f32.partialorder %v1165, 29.0
        %vm1167 = vcmp.ne.f32.partialorder %v1161, %v1161
        %v1168 = vmul.f32 %v1161, 16.0
        %v1169 = vsel %vm1167, -0.0, %v1168
        %v1170 = vsel %vm1166, nan, %v1169
        %v1171 = vand.u32 2147483647, %v1162
        %vm1172 = vcmp.gt.f32.partialorder %v1171, 29.0
        %vm1173 = vcmp.ne.f32.partialorder %v1162, %v1162
        %v1174 = vmul.f32 %v1162, 16.0
        %v1175 = vsel %vm1173, -0.0, %v1174
        %v1176 = vsel %vm1172, nan, %v1175
        %v1177 = vand.u32 2147483647, %v1163
        %vm1178 = vcmp.gt.f32.partialorder %v1177, 29.0
        %vm1179 = vcmp.ne.f32.partialorder %v1163, %v1163
        %v1180 = vmul.f32 %v1163, 16.0
        %v1181 = vsel %vm1179, -0.0, %v1180
        %v1182 = vsel %vm1178, nan, %v1181
        %v1183 = vand.u32 2147483647, %v1164
        %vm1184 = vcmp.gt.f32.partialorder %v1183, 29.0
        %vm1185 = vcmp.ne.f32.partialorder %v1164, %v1164
        %v1186 = vmul.f32 %v1164, 16.0
        %v1187 = vsel %vm1185, -0.0, %v1186
        %v1188 = vsel %vm1184, nan, %v1187
      $region56: #{tpu_custom_call.1} parent=40
        #allocation25 [shape = 'u8[4096]{0}', space=vmem, size = 0x1000, scoped, tag = 'scoped memory for tpu_custom_call.1']
        %1189 = vst [vmem:[#allocation25] sm:$0xff] %v1004
        %s1190 = scalar_lea.vmem [#allocation25], 4
        %v1191 = vld [vmem:[%s1190] sm:$0x3]
        %v1192 = vunpack.c.0.f8e4m3b11 %v1191
        %v1193 = vunpack.c.1.f8e4m3b11 %v1191
        %v1194 = vunpack.c.2.f8e4m3b11 %v1191
        %v1195 = vunpack.c.3.f8e4m3b11 %v1191
        %v1196 = vand.u32 2147483647, %v1192
        %vm1197 = vcmp.gt.f32.partialorder %v1196, 29.0
        %vm1198 = vcmp.ne.f32.partialorder %v1192, %v1192
        %v1199 = vmul.f32 %v1192, 16.0
        %v1200 = vsel %vm1198, -0.0, %v1199
        %v1201 = vsel %vm1197, nan, %v1200
        %v1202 = vand.u32 2147483647, %v1193
        %vm1203 = vcmp.gt.f32.partialorder %v1202, 29.0
        %vm1204 = vcmp.ne.f32.partialorder %v1193, %v1193
        %v1205 = vmul.f32 %v1193, 16.0
        %v1206 = vsel %vm1204, -0.0, %v1205
        %v1207 = vsel %vm1203, nan, %v1206
        %v1208 = vand.u32 2147483647, %v1194
        %vm1209 = vcmp.gt.f32.partialorder %v1208, 29.0
        %vm1210 = vcmp.ne.f32.partialorder %v1194, %v1194
        %v1211 = vmul.f32 %v1194, 16.0
        %v1212 = vsel %vm1210, -0.0, %v1211
        %v1213 = vsel %vm1209, nan, %v1212
        %v1214 = vand.u32 2147483647, %v1195
        %vm1215 = vcmp.gt.f32.partialorder %v1214, 29.0
        %vm1216 = vcmp.ne.f32.partialorder %v1195, %v1195
        %v1217 = vmul.f32 %v1195, 16.0
        %v1218 = vsel %vm1216, -0.0, %v1217
        %v1219 = vsel %vm1215, nan, %v1218
      $region57: #{tpu_custom_call.1} parent=40
        #allocation26 [shape = 'u8[4096]{0}', space=vmem, size = 0x1000, scoped, tag = 'scoped memory for tpu_custom_call.1']
        %1220 = vst [vmem:[#allocation26] sm:$0xff] %v1004
        %s1221 = scalar_lea.vmem [#allocation26], 6
        %v1222 = vld [vmem:[%s1221] sm:$0x3]
        %v1223 = vunpack.c.0.f8e4m3b11 %v1222
        %v1224 = vunpack.c.1.f8e4m3b11 %v1222
        %v1225 = vunpack.c.2.f8e4m3b11 %v1222
        %v1226 = vunpack.c.3.f8e4m3b11 %v1222
        %v1227 = vand.u32 2147483647, %v1223
        %vm1228 = vcmp.gt.f32.partialorder %v1227, 29.0
        %vm1229 = vcmp.ne.f32.partialorder %v1223, %v1223
        %v1230 = vmul.f32 %v1223, 16.0
        %v1231 = vsel %vm1229, -0.0, %v1230
        %v1232 = vsel %vm1228, nan, %v1231
        %v1233 = vand.u32 2147483647, %v1224
        %vm1234 = vcmp.gt.f32.partialorder %v1233, 29.0
        %vm1235 = vcmp.ne.f32.partialorder %v1224, %v1224
        %v1236 = vmul.f32 %v1224, 16.0
        %v1237 = vsel %vm1235, -0.0, %v1236
        %v1238 = vsel %vm1234, nan, %v1237
        %v1239 = vand.u32 2147483647, %v1225
        %vm1240 = vcmp.gt.f32.partialorder %v1239, 29.0
        %vm1241 = vcmp.ne.f32.partialorder %v1225, %v1225
        %v1242 = vmul.f32 %v1225, 16.0
        %v1243 = vsel %vm1241, -0.0, %v1242
        %v1244 = vsel %vm1240, nan, %v1243
        %v1245 = vand.u32 2147483647, %v1226
        %vm1246 = vcmp.gt.f32.partialorder %v1245, 29.0
        %vm1247 = vcmp.ne.f32.partialorder %v1226, %v1226
        %v1248 = vmul.f32 %v1226, 16.0
        %v1249 = vsel %vm1247, -0.0, %v1248
        %v1250 = vsel %vm1246, nan, %v1249
      %v1251 = vpack.c.bf16 %v1047, %v1016
      %v1252 = vpack.c.bf16 %v1109, %v1078
      %v1253 = vpack.c.bf16 %v1170, %v1139
      %v1254 = vpack.c.bf16 %v1232, %v1201
      %v1255 = vld [vmem:[#allocation3] sm:$0xff]
      %v1256 = vld [vmem:[#allocation3 + $0x8] sm:$0xff]
      %v1257 = vld [vmem:[#allocation3 + $0x10] sm:$0xff]
      %v1258 = vld [vmem:[#allocation3 + $0x18] sm:$0xff]
      %v1259 = vld [vmem:[#allocation3 + $0x20] sm:$0xff]
      %v1260 = vld [vmem:[#allocation3 + $0x28] sm:$0xff]
      %v1261 = vld [vmem:[#allocation3 + $0x30] sm:$0xff]
      %v1262 = vld [vmem:[#allocation3 + $0x38] sm:$0xff]
      %v1263 = vld [vmem:[#allocation3 + $0x40] sm:$0xff]
      %v1264 = vld [vmem:[#allocation3 + $0x48] sm:$0xff]
      %v1265 = vld [vmem:[#allocation3 + $0x50] sm:$0xff]
      %v1266 = vld [vmem:[#allocation3 + $0x58] sm:$0xff]
      %v1267 = vld [vmem:[#allocation3 + $0x60] sm:$0xff]
      %v1268 = vld [vmem:[#allocation3 + $0x68] sm:$0xff]
      %v1269 = vld [vmem:[#allocation3 + $0x70] sm:$0xff]
      %v1270 = vld [vmem:[#allocation3 + $0x78] sm:$0xff]
      %v1287 = vunpack.c.l.b16 %v971
      %v1288 = vunpack.c.h.b16 %v971
      %v1289 = vunpack.c.l.b16 %v972
      %v1290 = vunpack.c.h.b16 %v972
      %v1291 = vunpack.c.l.b16 %v973
      %v1292 = vunpack.c.h.b16 %v973
      %v1293 = vunpack.c.l.b16 %v974
      %v1294 = vunpack.c.h.b16 %v974
      %v1295 = vunpack.c.l.b16 %v975
      %v1296 = vunpack.c.h.b16 %v975
      %v1297 = vunpack.c.l.b16 %v976
      %v1298 = vunpack.c.h.b16 %v976
      %v1299 = vunpack.c.l.b16 %v977
      %v1300 = vunpack.c.h.b16 %v977
      %v1301 = vunpack.c.l.b16 %v978
      %v1302 = vunpack.c.h.b16 %v978
      %v1303 = vunpack.c.l.b16 %v979
      %v1304 = vunpack.c.h.b16 %v979
      %v1305 = vunpack.c.l.b16 %v980
      %v1306 = vunpack.c.h.b16 %v980
      %v1307 = vunpack.c.l.b16 %v981
      %v1308 = vunpack.c.h.b16 %v981
      %v1309 = vunpack.c.l.b16 %v982
      %v1310 = vunpack.c.h.b16 %v982
      %v1311 = vunpack.c.l.b16 %v983
      %v1312 = vunpack.c.h.b16 %v983
      %v1313 = vunpack.c.l.b16 %v984
      %v1314 = vunpack.c.h.b16 %v984
      %v1315 = vunpack.c.l.b16 %v985
      %v1316 = vunpack.c.h.b16 %v985
      %v1317 = vunpack.c.l.b16 %v986
      %v1318 = vunpack.c.h.b16 %v986
      %v1319 = vpack.c.b16 %v1289, %v1287
      %v1320 = vpack.c.b16 %v1290, %v1288
      %v1321 = vpack.c.b16 %v1293, %v1291
      %v1322 = vpack.c.b16 %v1294, %v1292
      %v1323 = vpack.c.b16 %v1297, %v1295
      %v1324 = vpack.c.b16 %v1298, %v1296
      %v1325 = vpack.c.b16 %v1301, %v1299
      %v1326 = vpack.c.b16 %v1302, %v1300
      %v1327 = vpack.c.b16 %v1305, %v1303
      %v1328 = vpack.c.b16 %v1306, %v1304
      %v1329 = vpack.c.b16 %v1309, %v1307
      %v1330 = vpack.c.b16 %v1310, %v1308
      %v1331 = vpack.c.b16 %v1313, %v1311
      %v1332 = vpack.c.b16 %v1314, %v1312
      %v1333 = vpack.c.b16 %v1317, %v1315
      %v1334 = vpack.c.b16 %v1318, %v1316
      %1351 = vmatpush.bf16.msra.mxu0 %v1333
      %1352 = vmatpush.bf16.msra.mxu0 %v1331
      %1353 = vmatpush.bf16.msra.mxu0 %v1329
      %1354 = vmatpush.bf16.msra.mxu0 %v1327
      %1355 = vmatpush.bf16.msra.mxu0 %v1325
      %1356 = vmatpush.bf16.msra.mxu0 %v1323
      %1357 = vmatpush.bf16.msra.mxu0 %v1321
      %1358 = vmatpush.bf16.msra.mxu0 %v1319
      %1359 = vmatmul.bf16.gmra.mxu0 %v1251
      %v1360 = vpop.f32.mrf.mxu0
      %v1361 = vadd.f32 0.0, %v1360
      %v1362 = vpop.f32.mrf.mxu0
      %v1363 = vadd.f32 0.0, %v1362
      %1364 = vmatmul.bf16.gmra.mxu0 %v1252
      %v1365 = vpop.f32.mrf.mxu0
      %v1366 = vadd.f32 0.0, %v1365
      %v1367 = vpop.f32.mrf.mxu0
      %v1368 = vadd.f32 0.0, %v1367
      %1369 = vmatmul.bf16.gmra.mxu0 %v1253
      %v1370 = vpop.f32.mrf.mxu0
      %v1371 = vadd.f32 0.0, %v1370
      %v1372 = vpop.f32.mrf.mxu0
      %v1373 = vadd.f32 0.0, %v1372
      %1374 = vmatmul.bf16.gmra.mxu0 %v1254
      %v1375 = vpop.f32.mrf.mxu0
      %v1376 = vadd.f32 0.0, %v1375
      %v1377 = vpop.f32.mrf.mxu0
      %v1378 = vadd.f32 0.0, %v1377
      %1379 = vdwg.mxu0
      %1380 = vmatpush.bf16.msra.mxu0 %v1334
      %1381 = vmatpush.bf16.msra.mxu0 %v1332
      %1382 = vmatpush.bf16.msra.mxu0 %v1330
      %1383 = vmatpush.bf16.msra.mxu0 %v1328
      %1384 = vmatpush.bf16.msra.mxu0 %v1326
      %1385 = vmatpush.bf16.msra.mxu0 %v1324
      %1386 = vmatpush.bf16.msra.mxu0 %v1322
      %1387 = vmatpush.bf16.msra.mxu0 %v1320
      %1388 = vmatmul.bf16.gmra.mxu0 %v1251
      %v1389 = vpop.f32.mrf.mxu0
      %v1390 = vadd.f32 0.0, %v1389
      %v1391 = vpop.f32.mrf.mxu0
      %v1392 = vadd.f32 0.0, %v1391
      %1393 = vmatmul.bf16.gmra.mxu0 %v1252
      %v1394 = vpop.f32.mrf.mxu0
      %v1395 = vadd.f32 0.0, %v1394
      %v1396 = vpop.f32.mrf.mxu0
      %v1397 = vadd.f32 0.0, %v1396
      %1398 = vmatmul.bf16.gmra.mxu0 %v1253
      %v1399 = vpop.f32.mrf.mxu0
      %v1400 = vadd.f32 0.0, %v1399
      %v1401 = vpop.f32.mrf.mxu0
      %v1402 = vadd.f32 0.0, %v1401
      %1403 = vmatmul.bf16.gmra.mxu0 %v1254
      %v1404 = vpop.f32.mrf.mxu0
      %v1405 = vadd.f32 0.0, %v1404
      %v1406 = vpop.f32.mrf.mxu0
      %v1407 = vadd.f32 0.0, %v1406
      %1408 = vdwg.mxu0
      %v1409 = vadd.f32 %v1255, %v1361
      %v1410 = vadd.f32 %v1256, %v1390
      %v1411 = vadd.f32 %v1257, %v1363
      %v1412 = vadd.f32 %v1258, %v1392
      %v1413 = vadd.f32 %v1259, %v1366
      %v1414 = vadd.f32 %v1260, %v1395
      %v1415 = vadd.f32 %v1261, %v1368
      %v1416 = vadd.f32 %v1262, %v1397
      %v1417 = vadd.f32 %v1263, %v1371
      %v1418 = vadd.f32 %v1264, %v1400
      %v1419 = vadd.f32 %v1265, %v1373
      %v1420 = vadd.f32 %v1266, %v1402
      %v1421 = vadd.f32 %v1267, %v1376
      %v1422 = vadd.f32 %v1268, %v1405
      %v1423 = vadd.f32 %v1269, %v1378
      %v1424 = vadd.f32 %v1270, %v1407
      %1425 = vst [vmem:[#allocation3] sm:$0xff] %v1409
      %1426 = vst [vmem:[#allocation3 + $0x8] sm:$0xff] %v1410
      %1427 = vst [vmem:[#allocation3 + $0x10] sm:$0xff] %v1411
      %1428 = vst [vmem:[#allocation3 + $0x18] sm:$0xff] %v1412
      %1429 = vst [vmem:[#allocation3 + $0x20] sm:$0xff] %v1413
      %1430 = vst [vmem:[#allocation3 + $0x28] sm:$0xff] %v1414
      %1431 = vst [vmem:[#allocation3 + $0x30] sm:$0xff] %v1415
      %1432 = vst [vmem:[#allocation3 + $0x38] sm:$0xff] %v1416
      %1433 = vst [vmem:[#allocation3 + $0x40] sm:$0xff] %v1417
      %1434 = vst [vmem:[#allocation3 + $0x48] sm:$0xff] %v1418
      %1435 = vst [vmem:[#allocation3 + $0x50] sm:$0xff] %v1419
      %1436 = vst [vmem:[#allocation3 + $0x58] sm:$0xff] %v1420
      %1437 = vst [vmem:[#allocation3 + $0x60] sm:$0xff] %v1421
      %1438 = vst [vmem:[#allocation3 + $0x68] sm:$0xff] %v1422
      %1439 = vst [vmem:[#allocation3 + $0x70] sm:$0xff] %v1423
      %1440 = vst [vmem:[#allocation3 + $0x78] sm:$0xff] %v1424
      %v1441 = vshll.u32 %v75, 20
      %v1442 = vshll.u32 %v76, 20
      %v1443 = vshll.u32 %v77, 20
      %v1444 = vshll.u32 %v78, 20
      %v1445 = vshll.u32 %v79, 20
      %v1446 = vshll.u32 %v80, 20
      %v1447 = vshll.u32 %v81, 20
      %v1448 = vshll.u32 %v82, 20
      %v1449 = vshll.u32 %v83, 20
      %v1450 = vshll.u32 %v84, 20
      %v1451 = vshll.u32 %v85, 20
      %v1452 = vshll.u32 %v86, 20
      %v1453 = vshll.u32 %v87, 20
      %v1454 = vshll.u32 %v88, 20
      %v1455 = vshll.u32 %v89, 20
      %v1456 = vshll.u32 %v90, 20
      %v1457 = vshll.u32 %v91, 20
      %v1458 = vshll.u32 %v92, 20
      %v1459 = vshll.u32 %v93, 20
      %v1460 = vshll.u32 %v94, 20
      %v1461 = vshll.u32 %v95, 20
      %v1462 = vshll.u32 %v96, 20
      %v1463 = vshll.u32 %v97, 20
      %v1464 = vshll.u32 %v98, 20
      %v1465 = vshll.u32 %v99, 20
      %v1466 = vshll.u32 %v100, 20
      %v1467 = vshll.u32 %v101, 20
      %v1468 = vshll.u32 %v102, 20
      %v1469 = vshll.u32 %v103, 20
      %v1470 = vshll.u32 %v104, 20
      %v1471 = vshll.u32 %v105, 20
      %v1472 = vshll.u32 %v106, 20
      %v1473 = vshra.s32 %v1441, 28
      %v1474 = vshra.s32 %v1442, 28
      %v1475 = vshra.s32 %v1443, 28
      %v1476 = vshra.s32 %v1444, 28
      %v1477 = vshra.s32 %v1445, 28
      %v1478 = vshra.s32 %v1446, 28
      %v1479 = vshra.s32 %v1447, 28
      %v1480 = vshra.s32 %v1448, 28
      %v1481 = vshra.s32 %v1449, 28
      %v1482 = vshra.s32 %v1450, 28
      %v1483 = vshra.s32 %v1451, 28
      %v1484 = vshra.s32 %v1452, 28
      %v1485 = vshra.s32 %v1453, 28
      %v1486 = vshra.s32 %v1454, 28
      %v1487 = vshra.s32 %v1455, 28
      %v1488 = vshra.s32 %v1456, 28
      %v1489 = vshra.s32 %v1457, 28
      %v1490 = vshra.s32 %v1458, 28
      %v1491 = vshra.s32 %v1459, 28
      %v1492 = vshra.s32 %v1460, 28
      %v1493 = vshra.s32 %v1461, 28
      %v1494 = vshra.s32 %v1462, 28
      %v1495 = vshra.s32 %v1463, 28
      %v1496 = vshra.s32 %v1464, 28
      %v1497 = vshra.s32 %v1465, 28
      %v1498 = vshra.s32 %v1466, 28
      %v1499 = vshra.s32 %v1467, 28
      %v1500 = vshra.s32 %v1468, 28
      %v1501 = vshra.s32 %v1469, 28
      %v1502 = vshra.s32 %v1470, 28
      %v1503 = vshra.s32 %v1471, 28
      %v1504 = vshra.s32 %v1472, 28
      %v1505 = vcvt.s32.f32 %v1473
      %v1506 = vcvt.s32.f32 %v1474
      %v1507 = vcvt.s32.f32 %v1475
      %v1508 = vcvt.s32.f32 %v1476
      %v1509 = vcvt.s32.f32 %v1477
      %v1510 = vcvt.s32.f32 %v1478
      %v1511 = vcvt.s32.f32 %v1479
      %v1512 = vcvt.s32.f32 %v1480
      %v1513 = vcvt.s32.f32 %v1481
      %v1514 = vcvt.s32.f32 %v1482
      %v1515 = vcvt.s32.f32 %v1483
      %v1516 = vcvt.s32.f32 %v1484
      %v1517 = vcvt.s32.f32 %v1485
      %v1518 = vcvt.s32.f32 %v1486
      %v1519 = vcvt.s32.f32 %v1487
      %v1520 = vcvt.s32.f32 %v1488
      %v1521 = vcvt.s32.f32 %v1489
      %v1522 = vcvt.s32.f32 %v1490
      %v1523 = vcvt.s32.f32 %v1491
      %v1524 = vcvt.s32.f32 %v1492
      %v1525 = vcvt.s32.f32 %v1493
      %v1526 = vcvt.s32.f32 %v1494
      %v1527 = vcvt.s32.f32 %v1495
      %v1528 = vcvt.s32.f32 %v1496
      %v1529 = vcvt.s32.f32 %v1497
      %v1530 = vcvt.s32.f32 %v1498
      %v1531 = vcvt.s32.f32 %v1499
      %v1532 = vcvt.s32.f32 %v1500
      %v1533 = vcvt.s32.f32 %v1501
      %v1534 = vcvt.s32.f32 %v1502
      %v1535 = vcvt.s32.f32 %v1503
      %v1536 = vcvt.s32.f32 %v1504
      %v1537 = vpack.c.bf16 %v1506, %v1505
      %v1538 = vpack.c.bf16 %v1508, %v1507
      %v1539 = vpack.c.bf16 %v1510, %v1509
      %v1540 = vpack.c.bf16 %v1512, %v1511
      %v1541 = vpack.c.bf16 %v1514, %v1513
      %v1542 = vpack.c.bf16 %v1516, %v1515
      %v1543 = vpack.c.bf16 %v1518, %v1517
      %v1544 = vpack.c.bf16 %v1520, %v1519
      %v1545 = vpack.c.bf16 %v1522, %v1521
      %v1546 = vpack.c.bf16 %v1524, %v1523
      %v1547 = vpack.c.bf16 %v1526, %v1525
      %v1548 = vpack.c.bf16 %v1528, %v1527
      %v1549 = vpack.c.bf16 %v1530, %v1529
      %v1550 = vpack.c.bf16 %v1532, %v1531
      %v1551 = vpack.c.bf16 %v1534, %v1533
      %v1552 = vpack.c.bf16 %v1536, %v1535
      %v1553 = vperm.slane %v242, 1
      %v1554 = vperm.slane %v246, 1
      %v1555 = vunpack.c.l.bf16 %v1537
      %v1556 = vunpack.c.h.bf16 %v1537
      %v1557 = vunpack.c.l.bf16 %v1538
      %v1558 = vunpack.c.h.bf16 %v1538
      %v1559 = vunpack.c.l.bf16 %v1539
      %v1560 = vunpack.c.h.bf16 %v1539
      %v1561 = vunpack.c.l.bf16 %v1540
      %v1562 = vunpack.c.h.bf16 %v1540
      %v1563 = vunpack.c.l.bf16 %v1541
      %v1564 = vunpack.c.h.bf16 %v1541
      %v1565 = vunpack.c.l.bf16 %v1542
      %v1566 = vunpack.c.h.bf16 %v1542
      %v1567 = vunpack.c.l.bf16 %v1543
      %v1568 = vunpack.c.h.bf16 %v1543
      %v1569 = vunpack.c.l.bf16 %v1544
      %v1570 = vunpack.c.h.bf16 %v1544
      %v1571 = vunpack.c.l.bf16 %v1545
      %v1572 = vunpack.c.h.bf16 %v1545
      %v1573 = vunpack.c.l.bf16 %v1546
      %v1574 = vunpack.c.h.bf16 %v1546
      %v1575 = vunpack.c.l.bf16 %v1547
      %v1576 = vunpack.c.h.bf16 %v1547
      %v1577 = vunpack.c.l.bf16 %v1548
      %v1578 = vunpack.c.h.bf16 %v1548
      %v1579 = vunpack.c.l.bf16 %v1549
      %v1580 = vunpack.c.h.bf16 %v1549
      %v1581 = vunpack.c.l.bf16 %v1550
      %v1582 = vunpack.c.h.bf16 %v1550
      %v1583 = vunpack.c.l.bf16 %v1551
      %v1584 = vunpack.c.h.bf16 %v1551
      %v1585 = vunpack.c.l.bf16 %v1552
      %v1586 = vunpack.c.h.bf16 %v1552
      %v1587 = vunpack.c.l.bf16 %v1553
      %v1588 = vunpack.c.l.bf16 %v1554
      %v1589 = vmul.f32 %v1555, %v1587
      %v1590 = vmul.f32 %v1556, %v1588
      %v1591 = vmul.f32 %v1557, %v1587
      %v1592 = vmul.f32 %v1558, %v1588
      %v1593 = vmul.f32 %v1559, %v1587
      %v1594 = vmul.f32 %v1560, %v1588
      %v1595 = vmul.f32 %v1561, %v1587
      %v1596 = vmul.f32 %v1562, %v1588
      %v1597 = vmul.f32 %v1563, %v1587
      %v1598 = vmul.f32 %v1564, %v1588
      %v1599 = vmul.f32 %v1565, %v1587
      %v1600 = vmul.f32 %v1566, %v1588
      %v1601 = vmul.f32 %v1567, %v1587
      %v1602 = vmul.f32 %v1568, %v1588
      %v1603 = vmul.f32 %v1569, %v1587
      %v1604 = vmul.f32 %v1570, %v1588
      %v1605 = vmul.f32 %v1571, %v1587
      %v1606 = vmul.f32 %v1572, %v1588
      %v1607 = vmul.f32 %v1573, %v1587
      %v1608 = vmul.f32 %v1574, %v1588
      %v1609 = vmul.f32 %v1575, %v1587
      %v1610 = vmul.f32 %v1576, %v1588
      %v1611 = vmul.f32 %v1577, %v1587
      %v1612 = vmul.f32 %v1578, %v1588
      %v1613 = vmul.f32 %v1579, %v1587
      %v1614 = vmul.f32 %v1580, %v1588
      %v1615 = vmul.f32 %v1581, %v1587
      %v1616 = vmul.f32 %v1582, %v1588
      %v1617 = vmul.f32 %v1583, %v1587
      %v1618 = vmul.f32 %v1584, %v1588
      %v1619 = vmul.f32 %v1585, %v1587
      %v1620 = vmul.f32 %v1586, %v1588
      %v1621 = vpack.c.bf16 %v1590, %v1589
      %v1622 = vpack.c.bf16 %v1592, %v1591
      %v1623 = vpack.c.bf16 %v1594, %v1593
      %v1624 = vpack.c.bf16 %v1596, %v1595
      %v1625 = vpack.c.bf16 %v1598, %v1597
      %v1626 = vpack.c.bf16 %v1600, %v1599
      %v1627 = vpack.c.bf16 %v1602, %v1601
      %v1628 = vpack.c.bf16 %v1604, %v1603
      %v1629 = vpack.c.bf16 %v1606, %v1605
      %v1630 = vpack.c.bf16 %v1608, %v1607
      %v1631 = vpack.c.bf16 %v1610, %v1609
      %v1632 = vpack.c.bf16 %v1612, %v1611
      %v1633 = vpack.c.bf16 %v1614, %v1613
      %v1634 = vpack.c.bf16 %v1616, %v1615
      %v1635 = vpack.c.bf16 %v1618, %v1617
      %v1636 = vpack.c.bf16 %v1620, %v1619
      %1637 = vst [vmem:[#allocation2 + $0x100] sm:$0xff] %v1621
      %1638 = vst [vmem:[#allocation2 + $0x108] sm:$0xff] %v1622
      %1639 = vst [vmem:[#allocation2 + $0x110] sm:$0xff] %v1623
      %1640 = vst [vmem:[#allocation2 + $0x118] sm:$0xff] %v1624
      %1641 = vst [vmem:[#allocation2 + $0x120] sm:$0xff] %v1625
      %1642 = vst [vmem:[#allocation2 + $0x128] sm:$0xff] %v1626
      %1643 = vst [vmem:[#allocation2 + $0x130] sm:$0xff] %v1627
      %1644 = vst [vmem:[#allocation2 + $0x138] sm:$0xff] %v1628
      %1645 = vst [vmem:[#allocation2 + $0x140] sm:$0xff] %v1629
      %1646 = vst [vmem:[#allocation2 + $0x148] sm:$0xff] %v1630
      %1647 = vst [vmem:[#allocation2 + $0x150] sm:$0xff] %v1631
      %1648 = vst [vmem:[#allocation2 + $0x158] sm:$0xff] %v1632
      %1649 = vst [vmem:[#allocation2 + $0x160] sm:$0xff] %v1633
      %1650 = vst [vmem:[#allocation2 + $0x168] sm:$0xff] %v1634
      %1651 = vst [vmem:[#allocation2 + $0x170] sm:$0xff] %v1635
      %1652 = vst [vmem:[#allocation2 + $0x178] sm:$0xff] %v1636
      %v1653 = vld [vmem:[#allocation4 + $0x10] sm:$0xff]
      %v1654 = vld [vmem:[#allocation4 + $0x50] sm:$0xff]
      $region58: #{tpu_custom_call.1} parent=40
        #allocation27 [shape = 'u8[4096]{0}', space=vmem, size = 0x1000, scoped, tag = 'scoped memory for tpu_custom_call.1']
        %1655 = vst [vmem:[#allocation27] sm:$0xff] %v1653
        %v1656 = vld [vmem:[#allocation27] sm:$0x3]
        %v1657 = vunpack.c.0.f8e4m3b11 %v1656
        %v1658 = vunpack.c.1.f8e4m3b11 %v1656
        %v1659 = vunpack.c.2.f8e4m3b11 %v1656
        %v1660 = vunpack.c.3.f8e4m3b11 %v1656
        %v1661 = vand.u32 2147483647, %v1657
        %vm1662 = vcmp.gt.f32.partialorder %v1661, 29.0
        %vm1663 = vcmp.ne.f32.partialorder %v1657, %v1657
        %v1664 = vmul.f32 %v1657, 16.0
        %v1665 = vsel %vm1663, -0.0, %v1664
        %v1666 = vsel %vm1662, nan, %v1665
        %v1667 = vand.u32 2147483647, %v1658
        %vm1668 = vcmp.gt.f32.partialorder %v1667, 29.0
        %vm1669 = vcmp.ne.f32.partialorder %v1658, %v1658
        %v1670 = vmul.f32 %v1658, 16.0
        %v1671 = vsel %vm1669, -0.0, %v1670
        %v1672 = vsel %vm1668, nan, %v1671
        %v1673 = vand.u32 2147483647, %v1659
        %vm1674 = vcmp.gt.f32.partialorder %v1673, 29.0
        %vm1675 = vcmp.ne.f32.partialorder %v1659, %v1659
        %v1676 = vmul.f32 %v1659, 16.0
        %v1677 = vsel %vm1675, -0.0, %v1676
        %v1678 = vsel %vm1674, nan, %v1677
        %v1679 = vand.u32 2147483647, %v1660
        %vm1680 = vcmp.gt.f32.partialorder %v1679, 29.0
        %vm1681 = vcmp.ne.f32.partialorder %v1660, %v1660
        %v1682 = vmul.f32 %v1660, 16.0
        %v1683 = vsel %vm1681, -0.0, %v1682
        %v1684 = vsel %vm1680, nan, %v1683
      $region59: #{tpu_custom_call.1} parent=40
        #allocation28 [shape = 'u8[4096]{0}', space=vmem, size = 0x1000, scoped, tag = 'scoped memory for tpu_custom_call.1']
        %1685 = vst [vmem:[#allocation28] sm:$0xff] %v1653
        %s1686 = scalar_lea.vmem [#allocation28], 2
        %v1687 = vld [vmem:[%s1686] sm:$0x3]
        %v1688 = vunpack.c.0.f8e4m3b11 %v1687
        %v1689 = vunpack.c.1.f8e4m3b11 %v1687
        %v1690 = vunpack.c.2.f8e4m3b11 %v1687
        %v1691 = vunpack.c.3.f8e4m3b11 %v1687
        %v1692 = vand.u32 2147483647, %v1688
        %vm1693 = vcmp.gt.f32.partialorder %v1692, 29.0
        %vm1694 = vcmp.ne.f32.partialorder %v1688, %v1688
        %v1695 = vmul.f32 %v1688, 16.0
        %v1696 = vsel %vm1694, -0.0, %v1695
        %v1697 = vsel %vm1693, nan, %v1696
        %v1698 = vand.u32 2147483647, %v1689
        %vm1699 = vcmp.gt.f32.partialorder %v1698, 29.0
        %vm1700 = vcmp.ne.f32.partialorder %v1689, %v1689
        %v1701 = vmul.f32 %v1689, 16.0
        %v1702 = vsel %vm1700, -0.0, %v1701
        %v1703 = vsel %vm1699, nan, %v1702
        %v1704 = vand.u32 2147483647, %v1690
        %vm1705 = vcmp.gt.f32.partialorder %v1704, 29.0
        %vm1706 = vcmp.ne.f32.partialorder %v1690, %v1690
        %v1707 = vmul.f32 %v1690, 16.0
        %v1708 = vsel %vm1706, -0.0, %v1707
        %v1709 = vsel %vm1705, nan, %v1708
        %v1710 = vand.u32 2147483647, %v1691
        %vm1711 = vcmp.gt.f32.partialorder %v1710, 29.0
        %vm1712 = vcmp.ne.f32.partialorder %v1691, %v1691
        %v1713 = vmul.f32 %v1691, 16.0
        %v1714 = vsel %vm1712, -0.0, %v1713
        %v1715 = vsel %vm1711, nan, %v1714
      $region60: #{tpu_custom_call.1} parent=40
        #allocation29 [shape = 'u8[4096]{0}', space=vmem, size = 0x1000, scoped, tag = 'scoped memory for tpu_custom_call.1']
        %1716 = vst [vmem:[#allocation29] sm:$0xff] %v1653
        %s1717 = scalar_lea.vmem [#allocation29], 4
        %v1718 = vld [vmem:[%s1717] sm:$0x3]
        %v1719 = vunpack.c.0.f8e4m3b11 %v1718
        %v1720 = vunpack.c.1.f8e4m3b11 %v1718
        %v1721 = vunpack.c.2.f8e4m3b11 %v1718
        %v1722 = vunpack.c.3.f8e4m3b11 %v1718
        %v1723 = vand.u32 2147483647, %v1719
        %vm1724 = vcmp.gt.f32.partialorder %v1723, 29.0
        %vm1725 = vcmp.ne.f32.partialorder %v1719, %v1719
        %v1726 = vmul.f32 %v1719, 16.0
        %v1727 = vsel %vm1725, -0.0, %v1726
        %v1728 = vsel %vm1724, nan, %v1727
        %v1729 = vand.u32 2147483647, %v1720
        %vm1730 = vcmp.gt.f32.partialorder %v1729, 29.0
        %vm1731 = vcmp.ne.f32.partialorder %v1720, %v1720
        %v1732 = vmul.f32 %v1720, 16.0
        %v1733 = vsel %vm1731, -0.0, %v1732
        %v1734 = vsel %vm1730, nan, %v1733
        %v1735 = vand.u32 2147483647, %v1721
        %vm1736 = vcmp.gt.f32.partialorder %v1735, 29.0
        %vm1737 = vcmp.ne.f32.partialorder %v1721, %v1721
        %v1738 = vmul.f32 %v1721, 16.0
        %v1739 = vsel %vm1737, -0.0, %v1738
        %v1740 = vsel %vm1736, nan, %v1739
        %v1741 = vand.u32 2147483647, %v1722
        %vm1742 = vcmp.gt.f32.partialorder %v1741, 29.0
        %vm1743 = vcmp.ne.f32.partialorder %v1722, %v1722
        %v1744 = vmul.f32 %v1722, 16.0
        %v1745 = vsel %vm1743, -0.0, %v1744
        %v1746 = vsel %vm1742, nan, %v1745
      $region61: #{tpu_custom_call.1} parent=40
        #allocation30 [shape = 'u8[4096]{0}', space=vmem, size = 0x1000, scoped, tag = 'scoped memory for tpu_custom_call.1']
        %1747 = vst [vmem:[#allocation30] sm:$0xff] %v1653
        %s1748 = scalar_lea.vmem [#allocation30], 6
        %v1749 = vld [vmem:[%s1748] sm:$0x3]
        %v1750 = vunpack.c.0.f8e4m3b11 %v1749
        %v1751 = vunpack.c.1.f8e4m3b11 %v1749
        %v1752 = vunpack.c.2.f8e4m3b11 %v1749
        %v1753 = vunpack.c.3.f8e4m3b11 %v1749
        %v1754 = vand.u32 2147483647, %v1750
        %vm1755 = vcmp.gt.f32.partialorder %v1754, 29.0
        %vm1756 = vcmp.ne.f32.partialorder %v1750, %v1750
        %v1757 = vmul.f32 %v1750, 16.0
        %v1758 = vsel %vm1756, -0.0, %v1757
        %v1759 = vsel %vm1755, nan, %v1758
        %v1760 = vand.u32 2147483647, %v1751
        %vm1761 = vcmp.gt.f32.partialorder %v1760, 29.0
        %vm1762 = vcmp.ne.f32.partialorder %v1751, %v1751
        %v1763 = vmul.f32 %v1751, 16.0
        %v1764 = vsel %vm1762, -0.0, %v1763
        %v1765 = vsel %vm1761, nan, %v1764
        %v1766 = vand.u32 2147483647, %v1752
        %vm1767 = vcmp.gt.f32.partialorder %v1766, 29.0
        %vm1768 = vcmp.ne.f32.partialorder %v1752, %v1752
        %v1769 = vmul.f32 %v1752, 16.0
        %v1770 = vsel %vm1768, -0.0, %v1769
        %v1771 = vsel %vm1767, nan, %v1770
        %v1772 = vand.u32 2147483647, %v1753
        %vm1773 = vcmp.gt.f32.partialorder %v1772, 29.0
        %vm1774 = vcmp.ne.f32.partialorder %v1753, %v1753
        %v1775 = vmul.f32 %v1753, 16.0
        %v1776 = vsel %vm1774, -0.0, %v1775
        %v1777 = vsel %vm1773, nan, %v1776
      $region62: #{tpu_custom_call.1} parent=40
        #allocation31 [shape = 'u8[4096]{0}', space=vmem, size = 0x1000, scoped, tag = 'scoped memory for tpu_custom_call.1']
        %1778 = vst [vmem:[#allocation31] sm:$0xff] %v1654
        %v1779 = vld [vmem:[#allocation31] sm:$0x3]
        %v1780 = vunpack.c.0.f8e4m3b11 %v1779
        %v1781 = vunpack.c.1.f8e4m3b11 %v1779
        %v1782 = vunpack.c.2.f8e4m3b11 %v1779
        %v1783 = vunpack.c.3.f8e4m3b11 %v1779
        %v1784 = vand.u32 2147483647, %v1780
        %vm1785 = vcmp.gt.f32.partialorder %v1784, 29.0
        %vm1786 = vcmp.ne.f32.partialorder %v1780, %v1780
        %v1787 = vmul.f32 %v1780, 16.0
        %v1788 = vsel %vm1786, -0.0, %v1787
        %v1789 = vsel %vm1785, nan, %v1788
        %v1790 = vand.u32 2147483647, %v1781
        %vm1791 = vcmp.gt.f32.partialorder %v1790, 29.0
        %vm1792 = vcmp.ne.f32.partialorder %v1781, %v1781
        %v1793 = vmul.f32 %v1781, 16.0
        %v1794 = vsel %vm1792, -0.0, %v1793
        %v1795 = vsel %vm1791, nan, %v1794
        %v1796 = vand.u32 2147483647, %v1782
        %vm1797 = vcmp.gt.f32.partialorder %v1796, 29.0
        %vm1798 = vcmp.ne.f32.partialorder %v1782, %v1782
        %v1799 = vmul.f32 %v1782, 16.0
        %v1800 = vsel %vm1798, -0.0, %v1799
        %v1801 = vsel %vm1797, nan, %v1800
        %v1802 = vand.u32 2147483647, %v1783
        %vm1803 = vcmp.gt.f32.partialorder %v1802, 29.0
        %vm1804 = vcmp.ne.f32.partialorder %v1783, %v1783
        %v1805 = vmul.f32 %v1783, 16.0
        %v1806 = vsel %vm1804, -0.0, %v1805
        %v1807 = vsel %vm1803, nan, %v1806
      $region63: #{tpu_custom_call.1} parent=40
        #allocation32 [shape = 'u8[4096]{0}', space=vmem, size = 0x1000, scoped, tag = 'scoped memory for tpu_custom_call.1']
        %1808 = vst [vmem:[#allocation32] sm:$0xff] %v1654
        %s1809 = scalar_lea.vmem [#allocation32], 2
        %v1810 = vld [vmem:[%s1809] sm:$0x3]
        %v1811 = vunpack.c.0.f8e4m3b11 %v1810
        %v1812 = vunpack.c.1.f8e4m3b11 %v1810
        %v1813 = vunpack.c.2.f8e4m3b11 %v1810
        %v1814 = vunpack.c.3.f8e4m3b11 %v1810
        %v1815 = vand.u32 2147483647, %v1811
        %vm1816 = vcmp.gt.f32.partialorder %v1815, 29.0
        %vm1817 = vcmp.ne.f32.partialorder %v1811, %v1811
        %v1818 = vmul.f32 %v1811, 16.0
        %v1819 = vsel %vm1817, -0.0, %v1818
        %v1820 = vsel %vm1816, nan, %v1819
        %v1821 = vand.u32 2147483647, %v1812
        %vm1822 = vcmp.gt.f32.partialorder %v1821, 29.0
        %vm1823 = vcmp.ne.f32.partialorder %v1812, %v1812
        %v1824 = vmul.f32 %v1812, 16.0
        %v1825 = vsel %vm1823, -0.0, %v1824
        %v1826 = vsel %vm1822, nan, %v1825
        %v1827 = vand.u32 2147483647, %v1813
        %vm1828 = vcmp.gt.f32.partialorder %v1827, 29.0
        %vm1829 = vcmp.ne.f32.partialorder %v1813, %v1813
        %v1830 = vmul.f32 %v1813, 16.0
        %v1831 = vsel %vm1829, -0.0, %v1830
        %v1832 = vsel %vm1828, nan, %v1831
        %v1833 = vand.u32 2147483647, %v1814
        %vm1834 = vcmp.gt.f32.partialorder %v1833, 29.0
        %vm1835 = vcmp.ne.f32.partialorder %v1814, %v1814
        %v1836 = vmul.f32 %v1814, 16.0
        %v1837 = vsel %vm1835, -0.0, %v1836
        %v1838 = vsel %vm1834, nan, %v1837
      $region64: #{tpu_custom_call.1} parent=40
        #allocation33 [shape = 'u8[4096]{0}', space=vmem, size = 0x1000, scoped, tag = 'scoped memory for tpu_custom_call.1']
        %1839 = vst [vmem:[#allocation33] sm:$0xff] %v1654
        %s1840 = scalar_lea.vmem [#allocation33], 4
        %v1841 = vld [vmem:[%s1840] sm:$0x3]
        %v1842 = vunpack.c.0.f8e4m3b11 %v1841
        %v1843 = vunpack.c.1.f8e4m3b11 %v1841
        %v1844 = vunpack.c.2.f8e4m3b11 %v1841
        %v1845 = vunpack.c.3.f8e4m3b11 %v1841
        %v1846 = vand.u32 2147483647, %v1842
        %vm1847 = vcmp.gt.f32.partialorder %v1846, 29.0
        %vm1848 = vcmp.ne.f32.partialorder %v1842, %v1842
        %v1849 = vmul.f32 %v1842, 16.0
        %v1850 = vsel %vm1848, -0.0, %v1849
        %v1851 = vsel %vm1847, nan, %v1850
        %v1852 = vand.u32 2147483647, %v1843
        %vm1853 = vcmp.gt.f32.partialorder %v1852, 29.0
        %vm1854 = vcmp.ne.f32.partialorder %v1843, %v1843
        %v1855 = vmul.f32 %v1843, 16.0
        %v1856 = vsel %vm1854, -0.0, %v1855
        %v1857 = vsel %vm1853, nan, %v1856
        %v1858 = vand.u32 2147483647, %v1844
        %vm1859 = vcmp.gt.f32.partialorder %v1858, 29.0
        %vm1860 = vcmp.ne.f32.partialorder %v1844, %v1844
        %v1861 = vmul.f32 %v1844, 16.0
        %v1862 = vsel %vm1860, -0.0, %v1861
        %v1863 = vsel %vm1859, nan, %v1862
        %v1864 = vand.u32 2147483647, %v1845
        %vm1865 = vcmp.gt.f32.partialorder %v1864, 29.0
        %vm1866 = vcmp.ne.f32.partialorder %v1845, %v1845
        %v1867 = vmul.f32 %v1845, 16.0
        %v1868 = vsel %vm1866, -0.0, %v1867
        %v1869 = vsel %vm1865, nan, %v1868
      $region65: #{tpu_custom_call.1} parent=40
        #allocation34 [shape = 'u8[4096]{0}', space=vmem, size = 0x1000, scoped, tag = 'scoped memory for tpu_custom_call.1']
        %1870 = vst [vmem:[#allocation34] sm:$0xff] %v1654
        %s1871 = scalar_lea.vmem [#allocation34], 6
        %v1872 = vld [vmem:[%s1871] sm:$0x3]
        %v1873 = vunpack.c.0.f8e4m3b11 %v1872
        %v1874 = vunpack.c.1.f8e4m3b11 %v1872
        %v1875 = vunpack.c.2.f8e4m3b11 %v1872
        %v1876 = vunpack.c.3.f8e4m3b11 %v1872
        %v1877 = vand.u32 2147483647, %v1873
        %vm1878 = vcmp.gt.f32.partialorder %v1877, 29.0
        %vm1879 = vcmp.ne.f32.partialorder %v1873, %v1873
        %v1880 = vmul.f32 %v1873, 16.0
        %v1881 = vsel %vm1879, -0.0, %v1880
        %v1882 = vsel %vm1878, nan, %v1881
        %v1883 = vand.u32 2147483647, %v1874
        %vm1884 = vcmp.gt.f32.partialorder %v1883, 29.0
        %vm1885 = vcmp.ne.f32.partialorder %v1874, %v1874
        %v1886 = vmul.f32 %v1874, 16.0
        %v1887 = vsel %vm1885, -0.0, %v1886
        %v1888 = vsel %vm1884, nan, %v1887
        %v1889 = vand.u32 2147483647, %v1875
        %vm1890 = vcmp.gt.f32.partialorder %v1889, 29.0
        %vm1891 = vcmp.ne.f32.partialorder %v1875, %v1875
        %v1892 = vmul.f32 %v1875, 16.0
        %v1893 = vsel %vm1891, -0.0, %v1892
        %v1894 = vsel %vm1890, nan, %v1893
        %v1895 = vand.u32 2147483647, %v1876
        %vm1896 = vcmp.gt.f32.partialorder %v1895, 29.0
        %vm1897 = vcmp.ne.f32.partialorder %v1876, %v1876
        %v1898 = vmul.f32 %v1876, 16.0
        %v1899 = vsel %vm1897, -0.0, %v1898
        %v1900 = vsel %vm1896, nan, %v1899
      %v1901 = vpack.c.bf16 %v1697, %v1666
      %v1902 = vpack.c.bf16 %v1759, %v1728
      %v1903 = vpack.c.bf16 %v1820, %v1789
      %v1904 = vpack.c.bf16 %v1882, %v1851
      %v1905 = vld [vmem:[#allocation3] sm:$0xff]
      %v1906 = vld [vmem:[#allocation3 + $0x8] sm:$0xff]
      %v1907 = vld [vmem:[#allocation3 + $0x10] sm:$0xff]
      %v1908 = vld [vmem:[#allocation3 + $0x18] sm:$0xff]
      %v1909 = vld [vmem:[#allocation3 + $0x20] sm:$0xff]
      %v1910 = vld [vmem:[#allocation3 + $0x28] sm:$0xff]
      %v1911 = vld [vmem:[#allocation3 + $0x30] sm:$0xff]
      %v1912 = vld [vmem:[#allocation3 + $0x38] sm:$0xff]
      %v1913 = vld [vmem:[#allocation3 + $0x40] sm:$0xff]
      %v1914 = vld [vmem:[#allocation3 + $0x48] sm:$0xff]
      %v1915 = vld [vmem:[#allocation3 + $0x50] sm:$0xff]
      %v1916 = vld [vmem:[#allocation3 + $0x58] sm:$0xff]
      %v1917 = vld [vmem:[#allocation3 + $0x60] sm:$0xff]
      %v1918 = vld [vmem:[#allocation3 + $0x68] sm:$0xff]
      %v1919 = vld [vmem:[#allocation3 + $0x70] sm:$0xff]
      %v1920 = vld [vmem:[#allocation3 + $0x78] sm:$0xff]
      %v1937 = vunpack.c.l.b16 %v1621
      %v1938 = vunpack.c.h.b16 %v1621
      %v1939 = vunpack.c.l.b16 %v1622
      %v1940 = vunpack.c.h.b16 %v1622
      %v1941 = vunpack.c.l.b16 %v1623
      %v1942 = vunpack.c.h.b16 %v1623
      %v1943 = vunpack.c.l.b16 %v1624
      %v1944 = vunpack.c.h.b16 %v1624
      %v1945 = vunpack.c.l.b16 %v1625
      %v1946 = vunpack.c.h.b16 %v1625
      %v1947 = vunpack.c.l.b16 %v1626
      %v1948 = vunpack.c.h.b16 %v1626
      %v1949 = vunpack.c.l.b16 %v1627
      %v1950 = vunpack.c.h.b16 %v1627
      %v1951 = vunpack.c.l.b16 %v1628
      %v1952 = vunpack.c.h.b16 %v1628
      %v1953 = vunpack.c.l.b16 %v1629
      %v1954 = vunpack.c.h.b16 %v1629
      %v1955 = vunpack.c.l.b16 %v1630
      %v1956 = vunpack.c.h.b16 %v1630
      %v1957 = vunpack.c.l.b16 %v1631
      %v1958 = vunpack.c.h.b16 %v1631
      %v1959 = vunpack.c.l.b16 %v1632
      %v1960 = vunpack.c.h.b16 %v1632
      %v1961 = vunpack.c.l.b16 %v1633
      %v1962 = vunpack.c.h.b16 %v1633
      %v1963 = vunpack.c.l.b16 %v1634
      %v1964 = vunpack.c.h.b16 %v1634
      %v1965 = vunpack.c.l.b16 %v1635
      %v1966 = vunpack.c.h.b16 %v1635
      %v1967 = vunpack.c.l.b16 %v1636
      %v1968 = vunpack.c.h.b16 %v1636
      %v1969 = vpack.c.b16 %v1939, %v1937
      %v1970 = vpack.c.b16 %v1940, %v1938
      %v1971 = vpack.c.b16 %v1943, %v1941
      %v1972 = vpack.c.b16 %v1944, %v1942
      %v1973 = vpack.c.b16 %v1947, %v1945
      %v1974 = vpack.c.b16 %v1948, %v1946
      %v1975 = vpack.c.b16 %v1951, %v1949
      %v1976 = vpack.c.b16 %v1952, %v1950
      %v1977 = vpack.c.b16 %v1955, %v1953
      %v1978 = vpack.c.b16 %v1956, %v1954
      %v1979 = vpack.c.b16 %v1959, %v1957
      %v1980 = vpack.c.b16 %v1960, %v1958
      %v1981 = vpack.c.b16 %v1963, %v1961
      %v1982 = vpack.c.b16 %v1964, %v1962
      %v1983 = vpack.c.b16 %v1967, %v1965
      %v1984 = vpack.c.b16 %v1968, %v1966
      %2001 = vmatpush.bf16.msra.mxu0 %v1983
      %2002 = vmatpush.bf16.msra.mxu0 %v1981
      %2003 = vmatpush.bf16.msra.mxu0 %v1979
      %2004 = vmatpush.bf16.msra.mxu0 %v1977
      %2005 = vmatpush.bf16.msra.mxu0 %v1975
      %2006 = vmatpush.bf16.msra.mxu0 %v1973
      %2007 = vmatpush.bf16.msra.mxu0 %v1971
      %2008 = vmatpush.bf16.msra.mxu0 %v1969
      %2009 = vmatmul.bf16.gmra.mxu0 %v1901
      %v2010 = vpop.f32.mrf.mxu0
      %v2011 = vadd.f32 0.0, %v2010
      %v2012 = vpop.f32.mrf.mxu0
      %v2013 = vadd.f32 0.0, %v2012
      %2014 = vmatmul.bf16.gmra.mxu0 %v1902
      %v2015 = vpop.f32.mrf.mxu0
      %v2016 = vadd.f32 0.0, %v2015
      %v2017 = vpop.f32.mrf.mxu0
      %v2018 = vadd.f32 0.0, %v2017
      %2019 = vmatmul.bf16.gmra.mxu0 %v1903
      %v2020 = vpop.f32.mrf.mxu0
      %v2021 = vadd.f32 0.0, %v2020
      %v2022 = vpop.f32.mrf.mxu0
      %v2023 = vadd.f32 0.0, %v2022
      %2024 = vmatmul.bf16.gmra.mxu0 %v1904
      %v2025 = vpop.f32.mrf.mxu0
      %v2026 = vadd.f32 0.0, %v2025
      %v2027 = vpop.f32.mrf.mxu0
      %v2028 = vadd.f32 0.0, %v2027
      %2029 = vdwg.mxu0
      %2030 = vmatpush.bf16.msra.mxu0 %v1984
      %2031 = vmatpush.bf16.msra.mxu0 %v1982
      %2032 = vmatpush.bf16.msra.mxu0 %v1980
      %2033 = vmatpush.bf16.msra.mxu0 %v1978
      %2034 = vmatpush.bf16.msra.mxu0 %v1976
      %2035 = vmatpush.bf16.msra.mxu0 %v1974
      %2036 = vmatpush.bf16.msra.mxu0 %v1972
      %2037 = vmatpush.bf16.msra.mxu0 %v1970
      %2038 = vmatmul.bf16.gmra.mxu0 %v1901
      %v2039 = vpop.f32.mrf.mxu0
      %v2040 = vadd.f32 0.0, %v2039
      %v2041 = vpop.f32.mrf.mxu0
      %v2042 = vadd.f32 0.0, %v2041
      %2043 = vmatmul.bf16.gmra.mxu0 %v1902
      %v2044 = vpop.f32.mrf.mxu0
      %v2045 = vadd.f32 0.0, %v2044
      %v2046 = vpop.f32.mrf.mxu0
      %v2047 = vadd.f32 0.0, %v2046
      %2048 = vmatmul.bf16.gmra.mxu0 %v1903
      %v2049 = vpop.f32.mrf.mxu0
      %v2050 = vadd.f32 0.0, %v2049
      %v2051 = vpop.f32.mrf.mxu0
      %v2052 = vadd.f32 0.0, %v2051
      %2053 = vmatmul.bf16.gmra.mxu0 %v1904
      %v2054 = vpop.f32.mrf.mxu0
      %v2055 = vadd.f32 0.0, %v2054
      %v2056 = vpop.f32.mrf.mxu0
      %v2057 = vadd.f32 0.0, %v2056
      %2058 = vdwg.mxu0
      %v2059 = vadd.f32 %v1905, %v2011
      %v2060 = vadd.f32 %v1906, %v2040
      %v2061 = vadd.f32 %v1907, %v2013
      %v2062 = vadd.f32 %v1908, %v2042
      %v2063 = vadd.f32 %v1909, %v2016
      %v2064 = vadd.f32 %v1910, %v2045
      %v2065 = vadd.f32 %v1911, %v2018
      %v2066 = vadd.f32 %v1912, %v2047
      %v2067 = vadd.f32 %v1913, %v2021
      %v2068 = vadd.f32 %v1914, %v2050
      %v2069 = vadd.f32 %v1915, %v2023
      %v2070 = vadd.f32 %v1916, %v2052
      %v2071 = vadd.f32 %v1917, %v2026
      %v2072 = vadd.f32 %v1918, %v2055
      %v2073 = vadd.f32 %v1919, %v2028
      %v2074 = vadd.f32 %v1920, %v2057
      %2075 = vst [vmem:[#allocation3] sm:$0xff] %v2059
      %2076 = vst [vmem:[#allocation3 + $0x8] sm:$0xff] %v2060
      %2077 = vst [vmem:[#allocation3 + $0x10] sm:$0xff] %v2061
      %2078 = vst [vmem:[#allocation3 + $0x18] sm:$0xff] %v2062
      %2079 = vst [vmem:[#allocation3 + $0x20] sm:$0xff] %v2063
      %2080 = vst [vmem:[#allocation3 + $0x28] sm:$0xff] %v2064
      %2081 = vst [vmem:[#allocation3 + $0x30] sm:$0xff] %v2065
      %2082 = vst [vmem:[#allocation3 + $0x38] sm:$0xff] %v2066
      %2083 = vst [vmem:[#allocation3 + $0x40] sm:$0xff] %v2067
      %2084 = vst [vmem:[#allocation3 + $0x48] sm:$0xff] %v2068
      %2085 = vst [vmem:[#allocation3 + $0x50] sm:$0xff] %v2069
      %2086 = vst [vmem:[#allocation3 + $0x58] sm:$0xff] %v2070
      %2087 = vst [vmem:[#allocation3 + $0x60] sm:$0xff] %v2071
      %2088 = vst [vmem:[#allocation3 + $0x68] sm:$0xff] %v2072
      %2089 = vst [vmem:[#allocation3 + $0x70] sm:$0xff] %v2073
      %2090 = vst [vmem:[#allocation3 + $0x78] sm:$0xff] %v2074
      %v2091 = vshll.u32 %v75, 16
      %v2092 = vshll.u32 %v76, 16
      %v2093 = vshll.u32 %v77, 16
      %v2094 = vshll.u32 %v78, 16
      %v2095 = vshll.u32 %v79, 16
      %v2096 = vshll.u32 %v80, 16
      %v2097 = vshll.u32 %v81, 16
      %v2098 = vshll.u32 %v82, 16
      %v2099 = vshll.u32 %v83, 16
      %v2100 = vshll.u32 %v84, 16
      %v2101 = vshll.u32 %v85, 16
      %v2102 = vshll.u32 %v86, 16
      %v2103 = vshll.u32 %v87, 16
      %v2104 = vshll.u32 %v88, 16
      %v2105 = vshll.u32 %v89, 16
      %v2106 = vshll.u32 %v90, 16
      %v2107 = vshll.u32 %v91, 16
      %v2108 = vshll.u32 %v92, 16
      %v2109 = vshll.u32 %v93, 16
      %v2110 = vshll.u32 %v94, 16
      %v2111 = vshll.u32 %v95, 16
      %v2112 = vshll.u32 %v96, 16
      %v2113 = vshll.u32 %v97, 16
      %v2114 = vshll.u32 %v98, 16
      %v2115 = vshll.u32 %v99, 16
      %v2116 = vshll.u32 %v100, 16
      %v2117 = vshll.u32 %v101, 16
      %v2118 = vshll.u32 %v102, 16
      %v2119 = vshll.u32 %v103, 16
      %v2120 = vshll.u32 %v104, 16
      %v2121 = vshll.u32 %v105, 16
      %v2122 = vshll.u32 %v106, 16
      %v2123 = vshra.s32 %v2091, 28
      %v2124 = vshra.s32 %v2092, 28
      %v2125 = vshra.s32 %v2093, 28
      %v2126 = vshra.s32 %v2094, 28
      %v2127 = vshra.s32 %v2095, 28
      %v2128 = vshra.s32 %v2096, 28
      %v2129 = vshra.s32 %v2097, 28
      %v2130 = vshra.s32 %v2098, 28
      %v2131 = vshra.s32 %v2099, 28
      %v2132 = vshra.s32 %v2100, 28
      %v2133 = vshra.s32 %v2101, 28
      %v2134 = vshra.s32 %v2102, 28
      %v2135 = vshra.s32 %v2103, 28
      %v2136 = vshra.s32 %v2104, 28
      %v2137 = vshra.s32 %v2105, 28
      %v2138 = vshra.s32 %v2106, 28
      %v2139 = vshra.s32 %v2107, 28
      %v2140 = vshra.s32 %v2108, 28
      %v2141 = vshra.s32 %v2109, 28
      %v2142 = vshra.s32 %v2110, 28
      %v2143 = vshra.s32 %v2111, 28
      %v2144 = vshra.s32 %v2112, 28
      %v2145 = vshra.s32 %v2113, 28
      %v2146 = vshra.s32 %v2114, 28
      %v2147 = vshra.s32 %v2115, 28
      %v2148 = vshra.s32 %v2116, 28
      %v2149 = vshra.s32 %v2117, 28
      %v2150 = vshra.s32 %v2118, 28
      %v2151 = vshra.s32 %v2119, 28
      %v2152 = vshra.s32 %v2120, 28
      %v2153 = vshra.s32 %v2121, 28
      %v2154 = vshra.s32 %v2122, 28
      %v2155 = vcvt.s32.f32 %v2123
      %v2156 = vcvt.s32.f32 %v2124
      %v2157 = vcvt.s32.f32 %v2125
      %v2158 = vcvt.s32.f32 %v2126
      %v2159 = vcvt.s32.f32 %v2127
      %v2160 = vcvt.s32.f32 %v2128
      %v2161 = vcvt.s32.f32 %v2129
      %v2162 = vcvt.s32.f32 %v2130
      %v2163 = vcvt.s32.f32 %v2131
      %v2164 = vcvt.s32.f32 %v2132
      %v2165 = vcvt.s32.f32 %v2133
      %v2166 = vcvt.s32.f32 %v2134
      %v2167 = vcvt.s32.f32 %v2135
      %v2168 = vcvt.s32.f32 %v2136
      %v2169 = vcvt.s32.f32 %v2137
      %v2170 = vcvt.s32.f32 %v2138
      %v2171 = vcvt.s32.f32 %v2139
      %v2172 = vcvt.s32.f32 %v2140
      %v2173 = vcvt.s32.f32 %v2141
      %v2174 = vcvt.s32.f32 %v2142
      %v2175 = vcvt.s32.f32 %v2143
      %v2176 = vcvt.s32.f32 %v2144
      %v2177 = vcvt.s32.f32 %v2145
      %v2178 = vcvt.s32.f32 %v2146
      %v2179 = vcvt.s32.f32 %v2147
      %v2180 = vcvt.s32.f32 %v2148
      %v2181 = vcvt.s32.f32 %v2149
      %v2182 = vcvt.s32.f32 %v2150
      %v2183 = vcvt.s32.f32 %v2151
      %v2184 = vcvt.s32.f32 %v2152
      %v2185 = vcvt.s32.f32 %v2153
      %v2186 = vcvt.s32.f32 %v2154
      %v2187 = vpack.c.bf16 %v2156, %v2155
      %v2188 = vpack.c.bf16 %v2158, %v2157
      %v2189 = vpack.c.bf16 %v2160, %v2159
      %v2190 = vpack.c.bf16 %v2162, %v2161
      %v2191 = vpack.c.bf16 %v2164, %v2163
      %v2192 = vpack.c.bf16 %v2166, %v2165
      %v2193 = vpack.c.bf16 %v2168, %v2167
      %v2194 = vpack.c.bf16 %v2170, %v2169
      %v2195 = vpack.c.bf16 %v2172, %v2171
      %v2196 = vpack.c.bf16 %v2174, %v2173
      %v2197 = vpack.c.bf16 %v2176, %v2175
      %v2198 = vpack.c.bf16 %v2178, %v2177
      %v2199 = vpack.c.bf16 %v2180, %v2179
      %v2200 = vpack.c.bf16 %v2182, %v2181
      %v2201 = vpack.c.bf16 %v2184, %v2183
      %v2202 = vpack.c.bf16 %v2186, %v2185
      %v2203 = vperm.slane %v898, 1
      %v2204 = vperm.slane %v902, 1
      %v2205 = vunpack.c.l.bf16 %v2187
      %v2206 = vunpack.c.h.bf16 %v2187
      %v2207 = vunpack.c.l.bf16 %v2188
      %v2208 = vunpack.c.h.bf16 %v2188
      %v2209 = vunpack.c.l.bf16 %v2189
      %v2210 = vunpack.c.h.bf16 %v2189
      %v2211 = vunpack.c.l.bf16 %v2190
      %v2212 = vunpack.c.h.bf16 %v2190
      %v2213 = vunpack.c.l.bf16 %v2191
      %v2214 = vunpack.c.h.bf16 %v2191
      %v2215 = vunpack.c.l.bf16 %v2192
      %v2216 = vunpack.c.h.bf16 %v2192
      %v2217 = vunpack.c.l.bf16 %v2193
      %v2218 = vunpack.c.h.bf16 %v2193
      %v2219 = vunpack.c.l.bf16 %v2194
      %v2220 = vunpack.c.h.bf16 %v2194
      %v2221 = vunpack.c.l.bf16 %v2195
      %v2222 = vunpack.c.h.bf16 %v2195
      %v2223 = vunpack.c.l.bf16 %v2196
      %v2224 = vunpack.c.h.bf16 %v2196
      %v2225 = vunpack.c.l.bf16 %v2197
      %v2226 = vunpack.c.h.bf16 %v2197
      %v2227 = vunpack.c.l.bf16 %v2198
      %v2228 = vunpack.c.h.bf16 %v2198
      %v2229 = vunpack.c.l.bf16 %v2199
      %v2230 = vunpack.c.h.bf16 %v2199
      %v2231 = vunpack.c.l.bf16 %v2200
      %v2232 = vunpack.c.h.bf16 %v2200
      %v2233 = vunpack.c.l.bf16 %v2201
      %v2234 = vunpack.c.h.bf16 %v2201
      %v2235 = vunpack.c.l.bf16 %v2202
      %v2236 = vunpack.c.h.bf16 %v2202
      %v2237 = vunpack.c.l.bf16 %v2203
      %v2238 = vunpack.c.l.bf16 %v2204
      %v2239 = vmul.f32 %v2205, %v2237
      %v2240 = vmul.f32 %v2206, %v2238
      %v2241 = vmul.f32 %v2207, %v2237
      %v2242 = vmul.f32 %v2208, %v2238
      %v2243 = vmul.f32 %v2209, %v2237
      %v2244 = vmul.f32 %v2210, %v2238
      %v2245 = vmul.f32 %v2211, %v2237
      %v2246 = vmul.f32 %v2212, %v2238
      %v2247 = vmul.f32 %v2213, %v2237
      %v2248 = vmul.f32 %v2214, %v2238
      %v2249 = vmul.f32 %v2215, %v2237
      %v2250 = vmul.f32 %v2216, %v2238
      %v2251 = vmul.f32 %v2217, %v2237
      %v2252 = vmul.f32 %v2218, %v2238
      %v2253 = vmul.f32 %v2219, %v2237
      %v2254 = vmul.f32 %v2220, %v2238
      %v2255 = vmul.f32 %v2221, %v2237
      %v2256 = vmul.f32 %v2222, %v2238
      %v2257 = vmul.f32 %v2223, %v2237
      %v2258 = vmul.f32 %v2224, %v2238
      %v2259 = vmul.f32 %v2225, %v2237
      %v2260 = vmul.f32 %v2226, %v2238
      %v2261 = vmul.f32 %v2227, %v2237
      %v2262 = vmul.f32 %v2228, %v2238
      %v2263 = vmul.f32 %v2229, %v2237
      %v2264 = vmul.f32 %v2230, %v2238
      %v2265 = vmul.f32 %v2231, %v2237
      %v2266 = vmul.f32 %v2232, %v2238
      %v2267 = vmul.f32 %v2233, %v2237
      %v2268 = vmul.f32 %v2234, %v2238
      %v2269 = vmul.f32 %v2235, %v2237
      %v2270 = vmul.f32 %v2236, %v2238
      %v2271 = vpack.c.bf16 %v2240, %v2239
      %v2272 = vpack.c.bf16 %v2242, %v2241
      %v2273 = vpack.c.bf16 %v2244, %v2243
      %v2274 = vpack.c.bf16 %v2246, %v2245
      %v2275 = vpack.c.bf16 %v2248, %v2247
      %v2276 = vpack.c.bf16 %v2250, %v2249
      %v2277 = vpack.c.bf16 %v2252, %v2251
      %v2278 = vpack.c.bf16 %v2254, %v2253
      %v2279 = vpack.c.bf16 %v2256, %v2255
      %v2280 = vpack.c.bf16 %v2258, %v2257
      %v2281 = vpack.c.bf16 %v2260, %v2259
      %v2282 = vpack.c.bf16 %v2262, %v2261
      %v2283 = vpack.c.bf16 %v2264, %v2263
      %v2284 = vpack.c.bf16 %v2266, %v2265
      %v2285 = vpack.c.bf16 %v2268, %v2267
      %v2286 = vpack.c.bf16 %v2270, %v2269
      %2287 = vst [vmem:[#allocation2 + $0x180] sm:$0xff] %v2271
      %2288 = vst [vmem:[#allocation2 + $0x188] sm:$0xff] %v2272
      %2289 = vst [vmem:[#allocation2 + $0x190] sm:$0xff] %v2273
      %2290 = vst [vmem:[#allocation2 + $0x198] sm:$0xff] %v2274
      %2291 = vst [vmem:[#allocation2 + $0x1a0] sm:$0xff] %v2275
      %2292 = vst [vmem:[#allocation2 + $0x1a8] sm:$0xff] %v2276
      %2293 = vst [vmem:[#allocation2 + $0x1b0] sm:$0xff] %v2277
      %2294 = vst [vmem:[#allocation2 + $0x1b8] sm:$0xff] %v2278
      %2295 = vst [vmem:[#allocation2 + $0x1c0] sm:$0xff] %v2279
      %2296 = vst [vmem:[#allocation2 + $0x1c8] sm:$0xff] %v2280
      %2297 = vst [vmem:[#allocation2 + $0x1d0] sm:$0xff] %v2281
      %2298 = vst [vmem:[#allocation2 + $0x1d8] sm:$0xff] %v2282
      %2299 = vst [vmem:[#allocation2 + $0x1e0] sm:$0xff] %v2283
      %2300 = vst [vmem:[#allocation2 + $0x1e8] sm:$0xff] %v2284
      %2301 = vst [vmem:[#allocation2 + $0x1f0] sm:$0xff] %v2285
      %2302 = vst [vmem:[#allocation2 + $0x1f8] sm:$0xff] %v2286
      %v2303 = vld [vmem:[#allocation4 + $0x18] sm:$0xff]
      %v2304 = vld [vmem:[#allocation4 + $0x58] sm:$0xff]
      $region66: #{tpu_custom_call.1} parent=40
        #allocation35 [shape = 'u8[4096]{0}', space=vmem, size = 0x1000, scoped, tag = 'scoped memory for tpu_custom_call.1']
        %2305 = vst [vmem:[#allocation35] sm:$0xff] %v2303
        %v2306 = vld [vmem:[#allocation35] sm:$0x3]
        %v2307 = vunpack.c.0.f8e4m3b11 %v2306
        %v2308 = vunpack.c.1.f8e4m3b11 %v2306
        %v2309 = vunpack.c.2.f8e4m3b11 %v2306
        %v2310 = vunpack.c.3.f8e4m3b11 %v2306
        %v2311 = vand.u32 2147483647, %v2307
        %vm2312 = vcmp.gt.f32.partialorder %v2311, 29.0
        %vm2313 = vcmp.ne.f32.partialorder %v2307, %v2307
        %v2314 = vmul.f32 %v2307, 16.0
        %v2315 = vsel %vm2313, -0.0, %v2314
        %v2316 = vsel %vm2312, nan, %v2315
        %v2317 = vand.u32 2147483647, %v2308
        %vm2318 = vcmp.gt.f32.partialorder %v2317, 29.0
        %vm2319 = vcmp.ne.f32.partialorder %v2308, %v2308
        %v2320 = vmul.f32 %v2308, 16.0
        %v2321 = vsel %vm2319, -0.0, %v2320
        %v2322 = vsel %vm2318, nan, %v2321
        %v2323 = vand.u32 2147483647, %v2309
        %vm2324 = vcmp.gt.f32.partialorder %v2323, 29.0
        %vm2325 = vcmp.ne.f32.partialorder %v2309, %v2309
        %v2326 = vmul.f32 %v2309, 16.0
        %v2327 = vsel %vm2325, -0.0, %v2326
        %v2328 = vsel %vm2324, nan, %v2327
        %v2329 = vand.u32 2147483647, %v2310
        %vm2330 = vcmp.gt.f32.partialorder %v2329, 29.0
        %vm2331 = vcmp.ne.f32.partialorder %v2310, %v2310
        %v2332 = vmul.f32 %v2310, 16.0
        %v2333 = vsel %vm2331, -0.0, %v2332
        %v2334 = vsel %vm2330, nan, %v2333
      $region67: #{tpu_custom_call.1} parent=40
        #allocation36 [shape = 'u8[4096]{0}', space=vmem, size = 0x1000, scoped, tag = 'scoped memory for tpu_custom_call.1']
        %2335 = vst [vmem:[#allocation36] sm:$0xff] %v2303
        %s2336 = scalar_lea.vmem [#allocation36], 2
        %v2337 = vld [vmem:[%s2336] sm:$0x3]
        %v2338 = vunpack.c.0.f8e4m3b11 %v2337
        %v2339 = vunpack.c.1.f8e4m3b11 %v2337
        %v2340 = vunpack.c.2.f8e4m3b11 %v2337
        %v2341 = vunpack.c.3.f8e4m3b11 %v2337
        %v2342 = vand.u32 2147483647, %v2338
        %vm2343 = vcmp.gt.f32.partialorder %v2342, 29.0
        %vm2344 = vcmp.ne.f32.partialorder %v2338, %v2338
        %v2345 = vmul.f32 %v2338, 16.0
        %v2346 = vsel %vm2344, -0.0, %v2345
        %v2347 = vsel %vm2343, nan, %v2346
        %v2348 = vand.u32 2147483647, %v2339
        %vm2349 = vcmp.gt.f32.partialorder %v2348, 29.0
        %vm2350 = vcmp.ne.f32.partialorder %v2339, %v2339
        %v2351 = vmul.f32 %v2339, 16.0
        %v2352 = vsel %vm2350, -0.0, %v2351
        %v2353 = vsel %vm2349, nan, %v2352
        %v2354 = vand.u32 2147483647, %v2340
        %vm2355 = vcmp.gt.f32.partialorder %v2354, 29.0
        %vm2356 = vcmp.ne.f32.partialorder %v2340, %v2340
        %v2357 = vmul.f32 %v2340, 16.0
        %v2358 = vsel %vm2356, -0.0, %v2357
        %v2359 = vsel %vm2355, nan, %v2358
        %v2360 = vand.u32 2147483647, %v2341
        %vm2361 = vcmp.gt.f32.partialorder %v2360, 29.0
        %vm2362 = vcmp.ne.f32.partialorder %v2341, %v2341
        %v2363 = vmul.f32 %v2341, 16.0
        %v2364 = vsel %vm2362, -0.0, %v2363
        %v2365 = vsel %vm2361, nan, %v2364
      $region68: #{tpu_custom_call.1} parent=40
        #allocation37 [shape = 'u8[4096]{0}', space=vmem, size = 0x1000, scoped, tag = 'scoped memory for tpu_custom_call.1']
        %2366 = vst [vmem:[#allocation37] sm:$0xff] %v2303
        %s2367 = scalar_lea.vmem [#allocation37], 4
        %v2368 = vld [vmem:[%s2367] sm:$0x3]
        %v2369 = vunpack.c.0.f8e4m3b11 %v2368
        %v2370 = vunpack.c.1.f8e4m3b11 %v2368
        %v2371 = vunpack.c.2.f8e4m3b11 %v2368
        %v2372 = vunpack.c.3.f8e4m3b11 %v2368
        %v2373 = vand.u32 2147483647, %v2369
        %vm2374 = vcmp.gt.f32.partialorder %v2373, 29.0
        %vm2375 = vcmp.ne.f32.partialorder %v2369, %v2369
        %v2376 = vmul.f32 %v2369, 16.0
        %v2377 = vsel %vm2375, -0.0, %v2376
        %v2378 = vsel %vm2374, nan, %v2377
        %v2379 = vand.u32 2147483647, %v2370
        %vm2380 = vcmp.gt.f32.partialorder %v2379, 29.0
        %vm2381 = vcmp.ne.f32.partialorder %v2370, %v2370
        %v2382 = vmul.f32 %v2370, 16.0
        %v2383 = vsel %vm2381, -0.0, %v2382
        %v2384 = vsel %vm2380, nan, %v2383
        %v2385 = vand.u32 2147483647, %v2371
        %vm2386 = vcmp.gt.f32.partialorder %v2385, 29.0
        %vm2387 = vcmp.ne.f32.partialorder %v2371, %v2371
        %v2388 = vmul.f32 %v2371, 16.0
        %v2389 = vsel %vm2387, -0.0, %v2388
        %v2390 = vsel %vm2386, nan, %v2389
        %v2391 = vand.u32 2147483647, %v2372
        %vm2392 = vcmp.gt.f32.partialorder %v2391, 29.0
        %vm2393 = vcmp.ne.f32.partialorder %v2372, %v2372
        %v2394 = vmul.f32 %v2372, 16.0
        %v2395 = vsel %vm2393, -0.0, %v2394
        %v2396 = vsel %vm2392, nan, %v2395
      $region69: #{tpu_custom_call.1} parent=40
        #allocation38 [shape = 'u8[4096]{0}', space=vmem, size = 0x1000, scoped, tag = 'scoped memory for tpu_custom_call.1']
        %2397 = vst [vmem:[#allocation38] sm:$0xff] %v2303
        %s2398 = scalar_lea.vmem [#allocation38], 6
        %v2399 = vld [vmem:[%s2398] sm:$0x3]
        %v2400 = vunpack.c.0.f8e4m3b11 %v2399
        %v2401 = vunpack.c.1.f8e4m3b11 %v2399
        %v2402 = vunpack.c.2.f8e4m3b11 %v2399
        %v2403 = vunpack.c.3.f8e4m3b11 %v2399
        %v2404 = vand.u32 2147483647, %v2400
        %vm2405 = vcmp.gt.f32.partialorder %v2404, 29.0
        %vm2406 = vcmp.ne.f32.partialorder %v2400, %v2400
        %v2407 = vmul.f32 %v2400, 16.0
        %v2408 = vsel %vm2406, -0.0, %v2407
        %v2409 = vsel %vm2405, nan, %v2408
        %v2410 = vand.u32 2147483647, %v2401
        %vm2411 = vcmp.gt.f32.partialorder %v2410, 29.0
        %vm2412 = vcmp.ne.f32.partialorder %v2401, %v2401
        %v2413 = vmul.f32 %v2401, 16.0
        %v2414 = vsel %vm2412, -0.0, %v2413
        %v2415 = vsel %vm2411, nan, %v2414
        %v2416 = vand.u32 2147483647, %v2402
        %vm2417 = vcmp.gt.f32.partialorder %v2416, 29.0
        %vm2418 = vcmp.ne.f32.partialorder %v2402, %v2402
        %v2419 = vmul.f32 %v2402, 16.0
        %v2420 = vsel %vm2418, -0.0, %v2419
        %v2421 = vsel %vm2417, nan, %v2420
        %v2422 = vand.u32 2147483647, %v2403
        %vm2423 = vcmp.gt.f32.partialorder %v2422, 29.0
        %vm2424 = vcmp.ne.f32.partialorder %v2403, %v2403
        %v2425 = vmul.f32 %v2403, 16.0
        %v2426 = vsel %vm2424, -0.0, %v2425
        %v2427 = vsel %vm2423, nan, %v2426
      $region70: #{tpu_custom_call.1} parent=40
        #allocation39 [shape = 'u8[4096]{0}', space=vmem, size = 0x1000, scoped, tag = 'scoped memory for tpu_custom_call.1']
        %2428 = vst [vmem:[#allocation39] sm:$0xff] %v2304
        %v2429 = vld [vmem:[#allocation39] sm:$0x3]
        %v2430 = vunpack.c.0.f8e4m3b11 %v2429
        %v2431 = vunpack.c.1.f8e4m3b11 %v2429
        %v2432 = vunpack.c.2.f8e4m3b11 %v2429
        %v2433 = vunpack.c.3.f8e4m3b11 %v2429
        %v2434 = vand.u32 2147483647, %v2430
        %vm2435 = vcmp.gt.f32.partialorder %v2434, 29.0
        %vm2436 = vcmp.ne.f32.partialorder %v2430, %v2430
        %v2437 = vmul.f32 %v2430, 16.0
        %v2438 = vsel %vm2436, -0.0, %v2437
        %v2439 = vsel %vm2435, nan, %v2438
        %v2440 = vand.u32 2147483647, %v2431
        %vm2441 = vcmp.gt.f32.partialorder %v2440, 29.0
        %vm2442 = vcmp.ne.f32.partialorder %v2431, %v2431
        %v2443 = vmul.f32 %v2431, 16.0
        %v2444 = vsel %vm2442, -0.0, %v2443
        %v2445 = vsel %vm2441, nan, %v2444
        %v2446 = vand.u32 2147483647, %v2432
        %vm2447 = vcmp.gt.f32.partialorder %v2446, 29.0
        %vm2448 = vcmp.ne.f32.partialorder %v2432, %v2432
        %v2449 = vmul.f32 %v2432, 16.0
        %v2450 = vsel %vm2448, -0.0, %v2449
        %v2451 = vsel %vm2447, nan, %v2450
        %v2452 = vand.u32 2147483647, %v2433
        %vm2453 = vcmp.gt.f32.partialorder %v2452, 29.0
        %vm2454 = vcmp.ne.f32.partialorder %v2433, %v2433
        %v2455 = vmul.f32 %v2433, 16.0
        %v2456 = vsel %vm2454, -0.0, %v2455
        %v2457 = vsel %vm2453, nan, %v2456
      $region71: #{tpu_custom_call.1} parent=40
        #allocation40 [shape = 'u8[4096]{0}', space=vmem, size = 0x1000, scoped, tag = 'scoped memory for tpu_custom_call.1']
        %2458 = vst [vmem:[#allocation40] sm:$0xff] %v2304
        %s2459 = scalar_lea.vmem [#allocation40], 2
        %v2460 = vld [vmem:[%s2459] sm:$0x3]
        %v2461 = vunpack.c.0.f8e4m3b11 %v2460
        %v2462 = vunpack.c.1.f8e4m3b11 %v2460
        %v2463 = vunpack.c.2.f8e4m3b11 %v2460
        %v2464 = vunpack.c.3.f8e4m3b11 %v2460
        %v2465 = vand.u32 2147483647, %v2461
        %vm2466 = vcmp.gt.f32.partialorder %v2465, 29.0
        %vm2467 = vcmp.ne.f32.partialorder %v2461, %v2461
        %v2468 = vmul.f32 %v2461, 16.0
        %v2469 = vsel %vm2467, -0.0, %v2468
        %v2470 = vsel %vm2466, nan, %v2469
        %v2471 = vand.u32 2147483647, %v2462
        %vm2472 = vcmp.gt.f32.partialorder %v2471, 29.0
        %vm2473 = vcmp.ne.f32.partialorder %v2462, %v2462
        %v2474 = vmul.f32 %v2462, 16.0
        %v2475 = vsel %vm2473, -0.0, %v2474
        %v2476 = vsel %vm2472, nan, %v2475
        %v2477 = vand.u32 2147483647, %v2463
        %vm2478 = vcmp.gt.f32.partialorder %v2477, 29.0
        %vm2479 = vcmp.ne.f32.partialorder %v2463, %v2463
        %v2480 = vmul.f32 %v2463, 16.0
        %v2481 = vsel %vm2479, -0.0, %v2480
        %v2482 = vsel %vm2478, nan, %v2481
        %v2483 = vand.u32 2147483647, %v2464
        %vm2484 = vcmp.gt.f32.partialorder %v2483, 29.0
        %vm2485 = vcmp.ne.f32.partialorder %v2464, %v2464
        %v2486 = vmul.f32 %v2464, 16.0
        %v2487 = vsel %vm2485, -0.0, %v2486
        %v2488 = vsel %vm2484, nan, %v2487
      $region72: #{tpu_custom_call.1} parent=40
        #allocation41 [shape = 'u8[4096]{0}', space=vmem, size = 0x1000, scoped, tag = 'scoped memory for tpu_custom_call.1']
        %2489 = vst [vmem:[#allocation41] sm:$0xff] %v2304
        %s2490 = scalar_lea.vmem [#allocation41], 4
        %v2491 = vld [vmem:[%s2490] sm:$0x3]
        %v2492 = vunpack.c.0.f8e4m3b11 %v2491
        %v2493 = vunpack.c.1.f8e4m3b11 %v2491
        %v2494 = vunpack.c.2.f8e4m3b11 %v2491
        %v2495 = vunpack.c.3.f8e4m3b11 %v2491
        %v2496 = vand.u32 2147483647, %v2492
        %vm2497 = vcmp.gt.f32.partialorder %v2496, 29.0
        %vm2498 = vcmp.ne.f32.partialorder %v2492, %v2492
        %v2499 = vmul.f32 %v2492, 16.0
        %v2500 = vsel %vm2498, -0.0, %v2499
        %v2501 = vsel %vm2497, nan, %v2500
        %v2502 = vand.u32 2147483647, %v2493
        %vm2503 = vcmp.gt.f32.partialorder %v2502, 29.0
        %vm2504 = vcmp.ne.f32.partialorder %v2493, %v2493
        %v2505 = vmul.f32 %v2493, 16.0
        %v2506 = vsel %vm2504, -0.0, %v2505
        %v2507 = vsel %vm2503, nan, %v2506
        %v2508 = vand.u32 2147483647, %v2494
        %vm2509 = vcmp.gt.f32.partialorder %v2508, 29.0
        %vm2510 = vcmp.ne.f32.partialorder %v2494, %v2494
        %v2511 = vmul.f32 %v2494, 16.0
        %v2512 = vsel %vm2510, -0.0, %v2511
        %v2513 = vsel %vm2509, nan, %v2512
        %v2514 = vand.u32 2147483647, %v2495
        %vm2515 = vcmp.gt.f32.partialorder %v2514, 29.0
        %vm2516 = vcmp.ne.f32.partialorder %v2495, %v2495
        %v2517 = vmul.f32 %v2495, 16.0
        %v2518 = vsel %vm2516, -0.0, %v2517
        %v2519 = vsel %vm2515, nan, %v2518
      $region73: #{tpu_custom_call.1} parent=40
        #allocation42 [shape = 'u8[4096]{0}', space=vmem, size = 0x1000, scoped, tag = 'scoped memory for tpu_custom_call.1']
        %2520 = vst [vmem:[#allocation42] sm:$0xff] %v2304
        %s2521 = scalar_lea.vmem [#allocation42], 6
        %v2522 = vld [vmem:[%s2521] sm:$0x3]
        %v2523 = vunpack.c.0.f8e4m3b11 %v2522
        %v2524 = vunpack.c.1.f8e4m3b11 %v2522
        %v2525 = vunpack.c.2.f8e4m3b11 %v2522
        %v2526 = vunpack.c.3.f8e4m3b11 %v2522
        %v2527 = vand.u32 2147483647, %v2523
        %vm2528 = vcmp.gt.f32.partialorder %v2527, 29.0
        %vm2529 = vcmp.ne.f32.partialorder %v2523, %v2523
        %v2530 = vmul.f32 %v2523, 16.0
        %v2531 = vsel %vm2529, -0.0, %v2530
        %v2532 = vsel %vm2528, nan, %v2531
        %v2533 = vand.u32 2147483647, %v2524
        %vm2534 = vcmp.gt.f32.partialorder %v2533, 29.0
        %vm2535 = vcmp.ne.f32.partialorder %v2524, %v2524
        %v2536 = vmul.f32 %v2524, 16.0
        %v2537 = vsel %vm2535, -0.0, %v2536
        %v2538 = vsel %vm2534, nan, %v2537
        %v2539 = vand.u32 2147483647, %v2525
        %vm2540 = vcmp.gt.f32.partialorder %v2539, 29.0
        %vm2541 = vcmp.ne.f32.partialorder %v2525, %v2525
        %v2542 = vmul.f32 %v2525, 16.0
        %v2543 = vsel %vm2541, -0.0, %v2542
        %v2544 = vsel %vm2540, nan, %v2543
        %v2545 = vand.u32 2147483647, %v2526
        %vm2546 = vcmp.gt.f32.partialorder %v2545, 29.0
        %vm2547 = vcmp.ne.f32.partialorder %v2526, %v2526
        %v2548 = vmul.f32 %v2526, 16.0
        %v2549 = vsel %vm2547, -0.0, %v2548
        %v2550 = vsel %vm2546, nan, %v2549
      %v2551 = vpack.c.bf16 %v2347, %v2316
      %v2552 = vpack.c.bf16 %v2409, %v2378
      %v2553 = vpack.c.bf16 %v2470, %v2439
      %v2554 = vpack.c.bf16 %v2532, %v2501
      %v2555 = vld [vmem:[#allocation3] sm:$0xff]
      %v2556 = vld [vmem:[#allocation3 + $0x8] sm:$0xff]
      %v2557 = vld [vmem:[#allocation3 + $0x10] sm:$0xff]
      %v2558 = vld [vmem:[#allocation3 + $0x18] sm:$0xff]
      %v2559 = vld [vmem:[#allocation3 + $0x20] sm:$0xff]
      %v2560 = vld [vmem:[#allocation3 + $0x28] sm:$0xff]
      %v2561 = vld [vmem:[#allocation3 + $0x30] sm:$0xff]
      %v2562 = vld [vmem:[#allocation3 + $0x38] sm:$0xff]
      %v2563 = vld [vmem:[#allocation3 + $0x40] sm:$0xff]
      %v2564 = vld [vmem:[#allocation3 + $0x48] sm:$0xff]
      %v2565 = vld [vmem:[#allocation3 + $0x50] sm:$0xff]
      %v2566 = vld [vmem:[#allocation3 + $0x58] sm:$0xff]
      %v2567 = vld [vmem:[#allocation3 + $0x60] sm:$0xff]
      %v2568 = vld [vmem:[#allocation3 + $0x68] sm:$0xff]
      %v2569 = vld [vmem:[#allocation3 + $0x70] sm:$0xff]
      %v2570 = vld [vmem:[#allocation3 + $0x78] sm:$0xff]
      %v2587 = vunpack.c.l.b16 %v2271
      %v2588 = vunpack.c.h.b16 %v2271
      %v2589 = vunpack.c.l.b16 %v2272
      %v2590 = vunpack.c.h.b16 %v2272
      %v2591 = vunpack.c.l.b16 %v2273
      %v2592 = vunpack.c.h.b16 %v2273
      %v2593 = vunpack.c.l.b16 %v2274
      %v2594 = vunpack.c.h.b16 %v2274
      %v2595 = vunpack.c.l.b16 %v2275
      %v2596 = vunpack.c.h.b16 %v2275
      %v2597 = vunpack.c.l.b16 %v2276
      %v2598 = vunpack.c.h.b16 %v2276
      %v2599 = vunpack.c.l.b16 %v2277
      %v2600 = vunpack.c.h.b16 %v2277
      %v2601 = vunpack.c.l.b16 %v2278
      %v2602 = vunpack.c.h.b16 %v2278
      %v2603 = vunpack.c.l.b16 %v2279
      %v2604 = vunpack.c.h.b16 %v2279
      %v2605 = vunpack.c.l.b16 %v2280
      %v2606 = vunpack.c.h.b16 %v2280
      %v2607 = vunpack.c.l.b16 %v2281
      %v2608 = vunpack.c.h.b16 %v2281
      %v2609 = vunpack.c.l.b16 %v2282
      %v2610 = vunpack.c.h.b16 %v2282
      %v2611 = vunpack.c.l.b16 %v2283
      %v2612 = vunpack.c.h.b16 %v2283
      %v2613 = vunpack.c.l.b16 %v2284
      %v2614 = vunpack.c.h.b16 %v2284
      %v2615 = vunpack.c.l.b16 %v2285
      %v2616 = vunpack.c.h.b16 %v2285
      %v2617 = vunpack.c.l.b16 %v2286
      %v2618 = vunpack.c.h.b16 %v2286
      %v2619 = vpack.c.b16 %v2589, %v2587
      %v2620 = vpack.c.b16 %v2590, %v2588
      %v2621 = vpack.c.b16 %v2593, %v2591
      %v2622 = vpack.c.b16 %v2594, %v2592
      %v2623 = vpack.c.b16 %v2597, %v2595
      %v2624 = vpack.c.b16 %v2598, %v2596
      %v2625 = vpack.c.b16 %v2601, %v2599
      %v2626 = vpack.c.b16 %v2602, %v2600
      %v2627 = vpack.c.b16 %v2605, %v2603
      %v2628 = vpack.c.b16 %v2606, %v2604
      %v2629 = vpack.c.b16 %v2609, %v2607
      %v2630 = vpack.c.b16 %v2610, %v2608
      %v2631 = vpack.c.b16 %v2613, %v2611
      %v2632 = vpack.c.b16 %v2614, %v2612
      %v2633 = vpack.c.b16 %v2617, %v2615
      %v2634 = vpack.c.b16 %v2618, %v2616
      %2651 = vmatpush.bf16.msra.mxu0 %v2633
      %2652 = vmatpush.bf16.msra.mxu0 %v2631
      %2653 = vmatpush.bf16.msra.mxu0 %v2629
      %2654 = vmatpush.bf16.msra.mxu0 %v2627
      %2655 = vmatpush.bf16.msra.mxu0 %v2625
      %2656 = vmatpush.bf16.msra.mxu0 %v2623
      %2657 = vmatpush.bf16.msra.mxu0 %v2621
      %2658 = vmatpush.bf16.msra.mxu0 %v2619
      %2659 = vmatmul.bf16.gmra.mxu0 %v2551
      %v2660 = vpop.f32.mrf.mxu0
      %v2661 = vadd.f32 0.0, %v2660
      %v2662 = vpop.f32.mrf.mxu0
      %v2663 = vadd.f32 0.0, %v2662
      %2664 = vmatmul.bf16.gmra.mxu0 %v2552
      %v2665 = vpop.f32.mrf.mxu0
      %v2666 = vadd.f32 0.0, %v2665
      %v2667 = vpop.f32.mrf.mxu0
      %v2668 = vadd.f32 0.0, %v2667
      %2669 = vmatmul.bf16.gmra.mxu0 %v2553
      %v2670 = vpop.f32.mrf.mxu0
      %v2671 = vadd.f32 0.0, %v2670
      %v2672 = vpop.f32.mrf.mxu0
      %v2673 = vadd.f32 0.0, %v2672
      %2674 = vmatmul.bf16.gmra.mxu0 %v2554
      %v2675 = vpop.f32.mrf.mxu0
      %v2676 = vadd.f32 0.0, %v2675
      %v2677 = vpop.f32.mrf.mxu0
      %v2678 = vadd.f32 0.0, %v2677
      %2679 = vdwg.mxu0
      %2680 = vmatpush.bf16.msra.mxu0 %v2634
      %2681 = vmatpush.bf16.msra.mxu0 %v2632
      %2682 = vmatpush.bf16.msra.mxu0 %v2630
      %2683 = vmatpush.bf16.msra.mxu0 %v2628
      %2684 = vmatpush.bf16.msra.mxu0 %v2626
      %2685 = vmatpush.bf16.msra.mxu0 %v2624
      %2686 = vmatpush.bf16.msra.mxu0 %v2622
      %2687 = vmatpush.bf16.msra.mxu0 %v2620
      %2688 = vmatmul.bf16.gmra.mxu0 %v2551
      %v2689 = vpop.f32.mrf.mxu0
      %v2690 = vadd.f32 0.0, %v2689
      %v2691 = vpop.f32.mrf.mxu0
      %v2692 = vadd.f32 0.0, %v2691
      %2693 = vmatmul.bf16.gmra.mxu0 %v2552
      %v2694 = vpop.f32.mrf.mxu0
      %v2695 = vadd.f32 0.0, %v2694
      %v2696 = vpop.f32.mrf.mxu0
      %v2697 = vadd.f32 0.0, %v2696
      %2698 = vmatmul.bf16.gmra.mxu0 %v2553
      %v2699 = vpop.f32.mrf.mxu0
      %v2700 = vadd.f32 0.0, %v2699
      %v2701 = vpop.f32.mrf.mxu0
      %v2702 = vadd.f32 0.0, %v2701
      %2703 = vmatmul.bf16.gmra.mxu0 %v2554
      %v2704 = vpop.f32.mrf.mxu0
      %v2705 = vadd.f32 0.0, %v2704
      %v2706 = vpop.f32.mrf.mxu0
      %v2707 = vadd.f32 0.0, %v2706
      %2708 = vdwg.mxu0
      %v2709 = vadd.f32 %v2555, %v2661
      %v2710 = vadd.f32 %v2556, %v2690
      %v2711 = vadd.f32 %v2557, %v2663
      %v2712 = vadd.f32 %v2558, %v2692
      %v2713 = vadd.f32 %v2559, %v2666
      %v2714 = vadd.f32 %v2560, %v2695
      %v2715 = vadd.f32 %v2561, %v2668
      %v2716 = vadd.f32 %v2562, %v2697
      %v2717 = vadd.f32 %v2563, %v2671
      %v2718 = vadd.f32 %v2564, %v2700
      %v2719 = vadd.f32 %v2565, %v2673
      %v2720 = vadd.f32 %v2566, %v2702
      %v2721 = vadd.f32 %v2567, %v2676
      %v2722 = vadd.f32 %v2568, %v2705
      %v2723 = vadd.f32 %v2569, %v2678
      %v2724 = vadd.f32 %v2570, %v2707
      %2725 = vst [vmem:[#allocation3] sm:$0xff] %v2709
      %2726 = vst [vmem:[#allocation3 + $0x8] sm:$0xff] %v2710
      %2727 = vst [vmem:[#allocation3 + $0x10] sm:$0xff] %v2711
      %2728 = vst [vmem:[#allocation3 + $0x18] sm:$0xff] %v2712
      %2729 = vst [vmem:[#allocation3 + $0x20] sm:$0xff] %v2713
      %2730 = vst [vmem:[#allocation3 + $0x28] sm:$0xff] %v2714
      %2731 = vst [vmem:[#allocation3 + $0x30] sm:$0xff] %v2715
      %2732 = vst [vmem:[#allocation3 + $0x38] sm:$0xff] %v2716
      %2733 = vst [vmem:[#allocation3 + $0x40] sm:$0xff] %v2717
      %2734 = vst [vmem:[#allocation3 + $0x48] sm:$0xff] %v2718
      %2735 = vst [vmem:[#allocation3 + $0x50] sm:$0xff] %v2719
      %2736 = vst [vmem:[#allocation3 + $0x58] sm:$0xff] %v2720
      %2737 = vst [vmem:[#allocation3 + $0x60] sm:$0xff] %v2721
      %2738 = vst [vmem:[#allocation3 + $0x68] sm:$0xff] %v2722
      %2739 = vst [vmem:[#allocation3 + $0x70] sm:$0xff] %v2723
      %2740 = vst [vmem:[#allocation3 + $0x78] sm:$0xff] %v2724
      %v2741 = vshll.u32 %v75, 12
      %v2742 = vshll.u32 %v76, 12
      %v2743 = vshll.u32 %v77, 12
      %v2744 = vshll.u32 %v78, 12
      %v2745 = vshll.u32 %v79, 12
      %v2746 = vshll.u32 %v80, 12
      %v2747 = vshll.u32 %v81, 12
      %v2748 = vshll.u32 %v82, 12
      %v2749 = vshll.u32 %v83, 12
      %v2750 = vshll.u32 %v84, 12
      %v2751 = vshll.u32 %v85, 12
      %v2752 = vshll.u32 %v86, 12
      %v2753 = vshll.u32 %v87, 12
      %v2754 = vshll.u32 %v88, 12
      %v2755 = vshll.u32 %v89, 12
      %v2756 = vshll.u32 %v90, 12
      %v2757 = vshll.u32 %v91, 12
      %v2758 = vshll.u32 %v92, 12
      %v2759 = vshll.u32 %v93, 12
      %v2760 = vshll.u32 %v94, 12
      %v2761 = vshll.u32 %v95, 12
      %v2762 = vshll.u32 %v96, 12
      %v2763 = vshll.u32 %v97, 12
      %v2764 = vshll.u32 %v98, 12
      %v2765 = vshll.u32 %v99, 12
      %v2766 = vshll.u32 %v100, 12
      %v2767 = vshll.u32 %v101, 12
      %v2768 = vshll.u32 %v102, 12
      %v2769 = vshll.u32 %v103, 12
      %v2770 = vshll.u32 %v104, 12
      %v2771 = vshll.u32 %v105, 12
      %v2772 = vshll.u32 %v106, 12
      %v2773 = vshra.s32 %v2741, 28
      %v2774 = vshra.s32 %v2742, 28
      %v2775 = vshra.s32 %v2743, 28
      %v2776 = vshra.s32 %v2744, 28
      %v2777 = vshra.s32 %v2745, 28
      %v2778 = vshra.s32 %v2746, 28
      %v2779 = vshra.s32 %v2747, 28
      %v2780 = vshra.s32 %v2748, 28
      %v2781 = vshra.s32 %v2749, 28
      %v2782 = vshra.s32 %v2750, 28
      %v2783 = vshra.s32 %v2751, 28
      %v2784 = vshra.s32 %v2752, 28
      %v2785 = vshra.s32 %v2753, 28
      %v2786 = vshra.s32 %v2754, 28
      %v2787 = vshra.s32 %v2755, 28
      %v2788 = vshra.s32 %v2756, 28
      %v2789 = vshra.s32 %v2757, 28
      %v2790 = vshra.s32 %v2758, 28
      %v2791 = vshra.s32 %v2759, 28
      %v2792 = vshra.s32 %v2760, 28
      %v2793 = vshra.s32 %v2761, 28
      %v2794 = vshra.s32 %v2762, 28
      %v2795 = vshra.s32 %v2763, 28
      %v2796 = vshra.s32 %v2764, 28
      %v2797 = vshra.s32 %v2765, 28
      %v2798 = vshra.s32 %v2766, 28
      %v2799 = vshra.s32 %v2767, 28
      %v2800 = vshra.s32 %v2768, 28
      %v2801 = vshra.s32 %v2769, 28
      %v2802 = vshra.s32 %v2770, 28
      %v2803 = vshra.s32 %v2771, 28
      %v2804 = vshra.s32 %v2772, 28
      %v2805 = vcvt.s32.f32 %v2773
      %v2806 = vcvt.s32.f32 %v2774
      %v2807 = vcvt.s32.f32 %v2775
      %v2808 = vcvt.s32.f32 %v2776
      %v2809 = vcvt.s32.f32 %v2777
      %v2810 = vcvt.s32.f32 %v2778
      %v2811 = vcvt.s32.f32 %v2779
      %v2812 = vcvt.s32.f32 %v2780
      %v2813 = vcvt.s32.f32 %v2781
      %v2814 = vcvt.s32.f32 %v2782
      %v2815 = vcvt.s32.f32 %v2783
      %v2816 = vcvt.s32.f32 %v2784
      %v2817 = vcvt.s32.f32 %v2785
      %v2818 = vcvt.s32.f32 %v2786
      %v2819 = vcvt.s32.f32 %v2787
      %v2820 = vcvt.s32.f32 %v2788
      %v2821 = vcvt.s32.f32 %v2789
      %v2822 = vcvt.s32.f32 %v2790
      %v2823 = vcvt.s32.f32 %v2791
      %v2824 = vcvt.s32.f32 %v2792
      %v2825 = vcvt.s32.f32 %v2793
      %v2826 = vcvt.s32.f32 %v2794
      %v2827 = vcvt.s32.f32 %v2795
      %v2828 = vcvt.s32.f32 %v2796
      %v2829 = vcvt.s32.f32 %v2797
      %v2830 = vcvt.s32.f32 %v2798
      %v2831 = vcvt.s32.f32 %v2799
      %v2832 = vcvt.s32.f32 %v2800
      %v2833 = vcvt.s32.f32 %v2801
      %v2834 = vcvt.s32.f32 %v2802
      %v2835 = vcvt.s32.f32 %v2803
      %v2836 = vcvt.s32.f32 %v2804
      %v2837 = vpack.c.bf16 %v2806, %v2805
      %v2838 = vpack.c.bf16 %v2808, %v2807
      %v2839 = vpack.c.bf16 %v2810, %v2809
      %v2840 = vpack.c.bf16 %v2812, %v2811
      %v2841 = vpack.c.bf16 %v2814, %v2813
      %v2842 = vpack.c.bf16 %v2816, %v2815
      %v2843 = vpack.c.bf16 %v2818, %v2817
      %v2844 = vpack.c.bf16 %v2820, %v2819
      %v2845 = vpack.c.bf16 %v2822, %v2821
      %v2846 = vpack.c.bf16 %v2824, %v2823
      %v2847 = vpack.c.bf16 %v2826, %v2825
      %v2848 = vpack.c.bf16 %v2828, %v2827
      %v2849 = vpack.c.bf16 %v2830, %v2829
      %v2850 = vpack.c.bf16 %v2832, %v2831
      %v2851 = vpack.c.bf16 %v2834, %v2833
      %v2852 = vpack.c.bf16 %v2836, %v2835
      %v2853 = vperm.slane %v242, 2
      %v2854 = vperm.slane %v246, 2
      %v2855 = vunpack.c.l.bf16 %v2837
      %v2856 = vunpack.c.h.bf16 %v2837
      %v2857 = vunpack.c.l.bf16 %v2838
      %v2858 = vunpack.c.h.bf16 %v2838
      %v2859 = vunpack.c.l.bf16 %v2839
      %v2860 = vunpack.c.h.bf16 %v2839
      %v2861 = vunpack.c.l.bf16 %v2840
      %v2862 = vunpack.c.h.bf16 %v2840
      %v2863 = vunpack.c.l.bf16 %v2841
      %v2864 = vunpack.c.h.bf16 %v2841
      %v2865 = vunpack.c.l.bf16 %v2842
      %v2866 = vunpack.c.h.bf16 %v2842
      %v2867 = vunpack.c.l.bf16 %v2843
      %v2868 = vunpack.c.h.bf16 %v2843
      %v2869 = vunpack.c.l.bf16 %v2844
      %v2870 = vunpack.c.h.bf16 %v2844
      %v2871 = vunpack.c.l.bf16 %v2845
      %v2872 = vunpack.c.h.bf16 %v2845
      %v2873 = vunpack.c.l.bf16 %v2846
      %v2874 = vunpack.c.h.bf16 %v2846
      %v2875 = vunpack.c.l.bf16 %v2847
      %v2876 = vunpack.c.h.bf16 %v2847
      %v2877 = vunpack.c.l.bf16 %v2848
      %v2878 = vunpack.c.h.bf16 %v2848
      %v2879 = vunpack.c.l.bf16 %v2849
      %v2880 = vunpack.c.h.bf16 %v2849
      %v2881 = vunpack.c.l.bf16 %v2850
      %v2882 = vunpack.c.h.bf16 %v2850
      %v2883 = vunpack.c.l.bf16 %v2851
      %v2884 = vunpack.c.h.bf16 %v2851
      %v2885 = vunpack.c.l.bf16 %v2852
      %v2886 = vunpack.c.h.bf16 %v2852
      %v2887 = vunpack.c.l.bf16 %v2853
      %v2888 = vunpack.c.l.bf16 %v2854
      %v2889 = vmul.f32 %v2855, %v2887
      %v2890 = vmul.f32 %v2856, %v2888
      %v2891 = vmul.f32 %v2857, %v2887
      %v2892 = vmul.f32 %v2858, %v2888
      %v2893 = vmul.f32 %v2859, %v2887
      %v2894 = vmul.f32 %v2860, %v2888
      %v2895 = vmul.f32 %v2861, %v2887
      %v2896 = vmul.f32 %v2862, %v2888
      %v2897 = vmul.f32 %v2863, %v2887
      %v2898 = vmul.f32 %v2864, %v2888
      %v2899 = vmul.f32 %v2865, %v2887
      %v2900 = vmul.f32 %v2866, %v2888
      %v2901 = vmul.f32 %v2867, %v2887
      %v2902 = vmul.f32 %v2868, %v2888
      %v2903 = vmul.f32 %v2869, %v2887
      %v2904 = vmul.f32 %v2870, %v2888
      %v2905 = vmul.f32 %v2871, %v2887
      %v2906 = vmul.f32 %v2872, %v2888
      %v2907 = vmul.f32 %v2873, %v2887
      %v2908 = vmul.f32 %v2874, %v2888
      %v2909 = vmul.f32 %v2875, %v2887
      %v2910 = vmul.f32 %v2876, %v2888
      %v2911 = vmul.f32 %v2877, %v2887
      %v2912 = vmul.f32 %v2878, %v2888
      %v2913 = vmul.f32 %v2879, %v2887
      %v2914 = vmul.f32 %v2880, %v2888
      %v2915 = vmul.f32 %v2881, %v2887
      %v2916 = vmul.f32 %v2882, %v2888
      %v2917 = vmul.f32 %v2883, %v2887
      %v2918 = vmul.f32 %v2884, %v2888
      %v2919 = vmul.f32 %v2885, %v2887
      %v2920 = vmul.f32 %v2886, %v2888
      %v2921 = vpack.c.bf16 %v2890, %v2889
      %v2922 = vpack.c.bf16 %v2892, %v2891
      %v2923 = vpack.c.bf16 %v2894, %v2893
      %v2924 = vpack.c.bf16 %v2896, %v2895
      %v2925 = vpack.c.bf16 %v2898, %v2897
      %v2926 = vpack.c.bf16 %v2900, %v2899
      %v2927 = vpack.c.bf16 %v2902, %v2901
      %v2928 = vpack.c.bf16 %v2904, %v2903
      %v2929 = vpack.c.bf16 %v2906, %v2905
      %v2930 = vpack.c.bf16 %v2908, %v2907
      %v2931 = vpack.c.bf16 %v2910, %v2909
      %v2932 = vpack.c.bf16 %v2912, %v2911
      %v2933 = vpack.c.bf16 %v2914, %v2913
      %v2934 = vpack.c.bf16 %v2916, %v2915
      %v2935 = vpack.c.bf16 %v2918, %v2917
      %v2936 = vpack.c.bf16 %v2920, %v2919
      %2937 = vst [vmem:[#allocation2 + $0x200] sm:$0xff] %v2921
      %2938 = vst [vmem:[#allocation2 + $0x208] sm:$0xff] %v2922
      %2939 = vst [vmem:[#allocation2 + $0x210] sm:$0xff] %v2923
      %2940 = vst [vmem:[#allocation2 + $0x218] sm:$0xff] %v2924
      %2941 = vst [vmem:[#allocation2 + $0x220] sm:$0xff] %v2925
      %2942 = vst [vmem:[#allocation2 + $0x228] sm:$0xff] %v2926
      %2943 = vst [vmem:[#allocation2 + $0x230] sm:$0xff] %v2927
      %2944 = vst [vmem:[#allocation2 + $0x238] sm:$0xff] %v2928
      %2945 = vst [vmem:[#allocation2 + $0x240] sm:$0xff] %v2929
      %2946 = vst [vmem:[#allocation2 + $0x248] sm:$0xff] %v2930
      %2947 = vst [vmem:[#allocation2 + $0x250] sm:$0xff] %v2931
      %2948 = vst [vmem:[#allocation2 + $0x258] sm:$0xff] %v2932
      %2949 = vst [vmem:[#allocation2 + $0x260] sm:$0xff] %v2933
      %2950 = vst [vmem:[#allocation2 + $0x268] sm:$0xff] %v2934
      %2951 = vst [vmem:[#allocation2 + $0x270] sm:$0xff] %v2935
      %2952 = vst [vmem:[#allocation2 + $0x278] sm:$0xff] %v2936
      %v2953 = vld [vmem:[#allocation4 + $0x20] sm:$0xff]
      %v2954 = vld [vmem:[#allocation4 + $0x60] sm:$0xff]
      $region74: #{tpu_custom_call.1} parent=40
        #allocation43 [shape = 'u8[4096]{0}', space=vmem, size = 0x1000, scoped, tag = 'scoped memory for tpu_custom_call.1']
        %2955 = vst [vmem:[#allocation43] sm:$0xff] %v2953
        %v2956 = vld [vmem:[#allocation43] sm:$0x3]
        %v2957 = vunpack.c.0.f8e4m3b11 %v2956
        %v2958 = vunpack.c.1.f8e4m3b11 %v2956
        %v2959 = vunpack.c.2.f8e4m3b11 %v2956
        %v2960 = vunpack.c.3.f8e4m3b11 %v2956
        %v2961 = vand.u32 2147483647, %v2957
        %vm2962 = vcmp.gt.f32.partialorder %v2961, 29.0
        %vm2963 = vcmp.ne.f32.partialorder %v2957, %v2957
        %v2964 = vmul.f32 %v2957, 16.0
        %v2965 = vsel %vm2963, -0.0, %v2964
        %v2966 = vsel %vm2962, nan, %v2965
        %v2967 = vand.u32 2147483647, %v2958
        %vm2968 = vcmp.gt.f32.partialorder %v2967, 29.0
        %vm2969 = vcmp.ne.f32.partialorder %v2958, %v2958
        %v2970 = vmul.f32 %v2958, 16.0
        %v2971 = vsel %vm2969, -0.0, %v2970
        %v2972 = vsel %vm2968, nan, %v2971
        %v2973 = vand.u32 2147483647, %v2959
        %vm2974 = vcmp.gt.f32.partialorder %v2973, 29.0
        %vm2975 = vcmp.ne.f32.partialorder %v2959, %v2959
        %v2976 = vmul.f32 %v2959, 16.0
        %v2977 = vsel %vm2975, -0.0, %v2976
        %v2978 = vsel %vm2974, nan, %v2977
        %v2979 = vand.u32 2147483647, %v2960
        %vm2980 = vcmp.gt.f32.partialorder %v2979, 29.0
        %vm2981 = vcmp.ne.f32.partialorder %v2960, %v2960
        %v2982 = vmul.f32 %v2960, 16.0
        %v2983 = vsel %vm2981, -0.0, %v2982
        %v2984 = vsel %vm2980, nan, %v2983
      $region75: #{tpu_custom_call.1} parent=40
        #allocation44 [shape = 'u8[4096]{0}', space=vmem, size = 0x1000, scoped, tag = 'scoped memory for tpu_custom_call.1']
        %2985 = vst [vmem:[#allocation44] sm:$0xff] %v2953
        %s2986 = scalar_lea.vmem [#allocation44], 2
        %v2987 = vld [vmem:[%s2986] sm:$0x3]
        %v2988 = vunpack.c.0.f8e4m3b11 %v2987
        %v2989 = vunpack.c.1.f8e4m3b11 %v2987
        %v2990 = vunpack.c.2.f8e4m3b11 %v2987
        %v2991 = vunpack.c.3.f8e4m3b11 %v2987
        %v2992 = vand.u32 2147483647, %v2988
        %vm2993 = vcmp.gt.f32.partialorder %v2992, 29.0
        %vm2994 = vcmp.ne.f32.partialorder %v2988, %v2988
        %v2995 = vmul.f32 %v2988, 16.0
        %v2996 = vsel %vm2994, -0.0, %v2995
        %v2997 = vsel %vm2993, nan, %v2996
        %v2998 = vand.u32 2147483647, %v2989
        %vm2999 = vcmp.gt.f32.partialorder %v2998, 29.0
        %vm3000 = vcmp.ne.f32.partialorder %v2989, %v2989
        %v3001 = vmul.f32 %v2989, 16.0
        %v3002 = vsel %vm3000, -0.0, %v3001
        %v3003 = vsel %vm2999, nan, %v3002
        %v3004 = vand.u32 2147483647, %v2990
        %vm3005 = vcmp.gt.f32.partialorder %v3004, 29.0
        %vm3006 = vcmp.ne.f32.partialorder %v2990, %v2990
        %v3007 = vmul.f32 %v2990, 16.0
        %v3008 = vsel %vm3006, -0.0, %v3007
        %v3009 = vsel %vm3005, nan, %v3008
        %v3010 = vand.u32 2147483647, %v2991
        %vm3011 = vcmp.gt.f32.partialorder %v3010, 29.0
        %vm3012 = vcmp.ne.f32.partialorder %v2991, %v2991
        %v3013 = vmul.f32 %v2991, 16.0
        %v3014 = vsel %vm3012, -0.0, %v3013
        %v3015 = vsel %vm3011, nan, %v3014
      $region76: #{tpu_custom_call.1} parent=40
        #allocation45 [shape = 'u8[4096]{0}', space=vmem, size = 0x1000, scoped, tag = 'scoped memory for tpu_custom_call.1']
        %3016 = vst [vmem:[#allocation45] sm:$0xff] %v2953
        %s3017 = scalar_lea.vmem [#allocation45], 4
        %v3018 = vld [vmem:[%s3017] sm:$0x3]
        %v3019 = vunpack.c.0.f8e4m3b11 %v3018
        %v3020 = vunpack.c.1.f8e4m3b11 %v3018
        %v3021 = vunpack.c.2.f8e4m3b11 %v3018
        %v3022 = vunpack.c.3.f8e4m3b11 %v3018
        %v3023 = vand.u32 2147483647, %v3019
        %vm3024 = vcmp.gt.f32.partialorder %v3023, 29.0
        %vm3025 = vcmp.ne.f32.partialorder %v3019, %v3019
        %v3026 = vmul.f32 %v3019, 16.0
        %v3027 = vsel %vm3025, -0.0, %v3026
        %v3028 = vsel %vm3024, nan, %v3027
        %v3029 = vand.u32 2147483647, %v3020
        %vm3030 = vcmp.gt.f32.partialorder %v3029, 29.0
        %vm3031 = vcmp.ne.f32.partialorder %v3020, %v3020
        %v3032 = vmul.f32 %v3020, 16.0
        %v3033 = vsel %vm3031, -0.0, %v3032
        %v3034 = vsel %vm3030, nan, %v3033
        %v3035 = vand.u32 2147483647, %v3021
        %vm3036 = vcmp.gt.f32.partialorder %v3035, 29.0
        %vm3037 = vcmp.ne.f32.partialorder %v3021, %v3021
        %v3038 = vmul.f32 %v3021, 16.0
        %v3039 = vsel %vm3037, -0.0, %v3038
        %v3040 = vsel %vm3036, nan, %v3039
        %v3041 = vand.u32 2147483647, %v3022
        %vm3042 = vcmp.gt.f32.partialorder %v3041, 29.0
        %vm3043 = vcmp.ne.f32.partialorder %v3022, %v3022
        %v3044 = vmul.f32 %v3022, 16.0
        %v3045 = vsel %vm3043, -0.0, %v3044
        %v3046 = vsel %vm3042, nan, %v3045
      $region77: #{tpu_custom_call.1} parent=40
        #allocation46 [shape = 'u8[4096]{0}', space=vmem, size = 0x1000, scoped, tag = 'scoped memory for tpu_custom_call.1']
        %3047 = vst [vmem:[#allocation46] sm:$0xff] %v2953
        %s3048 = scalar_lea.vmem [#allocation46], 6
        %v3049 = vld [vmem:[%s3048] sm:$0x3]
        %v3050 = vunpack.c.0.f8e4m3b11 %v3049
        %v3051 = vunpack.c.1.f8e4m3b11 %v3049
        %v3052 = vunpack.c.2.f8e4m3b11 %v3049
        %v3053 = vunpack.c.3.f8e4m3b11 %v3049
        %v3054 = vand.u32 2147483647, %v3050
        %vm3055 = vcmp.gt.f32.partialorder %v3054, 29.0
        %vm3056 = vcmp.ne.f32.partialorder %v3050, %v3050
        %v3057 = vmul.f32 %v3050, 16.0
        %v3058 = vsel %vm3056, -0.0, %v3057
        %v3059 = vsel %vm3055, nan, %v3058
        %v3060 = vand.u32 2147483647, %v3051
        %vm3061 = vcmp.gt.f32.partialorder %v3060, 29.0
        %vm3062 = vcmp.ne.f32.partialorder %v3051, %v3051
        %v3063 = vmul.f32 %v3051, 16.0
        %v3064 = vsel %vm3062, -0.0, %v3063
        %v3065 = vsel %vm3061, nan, %v3064
        %v3066 = vand.u32 2147483647, %v3052
        %vm3067 = vcmp.gt.f32.partialorder %v3066, 29.0
        %vm3068 = vcmp.ne.f32.partialorder %v3052, %v3052
        %v3069 = vmul.f32 %v3052, 16.0
        %v3070 = vsel %vm3068, -0.0, %v3069
        %v3071 = vsel %vm3067, nan, %v3070
        %v3072 = vand.u32 2147483647, %v3053
        %vm3073 = vcmp.gt.f32.partialorder %v3072, 29.0
        %vm3074 = vcmp.ne.f32.partialorder %v3053, %v3053
        %v3075 = vmul.f32 %v3053, 16.0
        %v3076 = vsel %vm3074, -0.0, %v3075
        %v3077 = vsel %vm3073, nan, %v3076
      $region78: #{tpu_custom_call.1} parent=40
        #allocation47 [shape = 'u8[4096]{0}', space=vmem, size = 0x1000, scoped, tag = 'scoped memory for tpu_custom_call.1']
        %3078 = vst [vmem:[#allocation47] sm:$0xff] %v2954
        %v3079 = vld [vmem:[#allocation47] sm:$0x3]
        %v3080 = vunpack.c.0.f8e4m3b11 %v3079
        %v3081 = vunpack.c.1.f8e4m3b11 %v3079
        %v3082 = vunpack.c.2.f8e4m3b11 %v3079
        %v3083 = vunpack.c.3.f8e4m3b11 %v3079
        %v3084 = vand.u32 2147483647, %v3080
        %vm3085 = vcmp.gt.f32.partialorder %v3084, 29.0
        %vm3086 = vcmp.ne.f32.partialorder %v3080, %v3080
        %v3087 = vmul.f32 %v3080, 16.0
        %v3088 = vsel %vm3086, -0.0, %v3087
        %v3089 = vsel %vm3085, nan, %v3088
        %v3090 = vand.u32 2147483647, %v3081
        %vm3091 = vcmp.gt.f32.partialorder %v3090, 29.0
        %vm3092 = vcmp.ne.f32.partialorder %v3081, %v3081
        %v3093 = vmul.f32 %v3081, 16.0
        %v3094 = vsel %vm3092, -0.0, %v3093
        %v3095 = vsel %vm3091, nan, %v3094
        %v3096 = vand.u32 2147483647, %v3082
        %vm3097 = vcmp.gt.f32.partialorder %v3096, 29.0
        %vm3098 = vcmp.ne.f32.partialorder %v3082, %v3082
        %v3099 = vmul.f32 %v3082, 16.0
        %v3100 = vsel %vm3098, -0.0, %v3099
        %v3101 = vsel %vm3097, nan, %v3100
        %v3102 = vand.u32 2147483647, %v3083
        %vm3103 = vcmp.gt.f32.partialorder %v3102, 29.0
        %vm3104 = vcmp.ne.f32.partialorder %v3083, %v3083
        %v3105 = vmul.f32 %v3083, 16.0
        %v3106 = vsel %vm3104, -0.0, %v3105
        %v3107 = vsel %vm3103, nan, %v3106
      $region79: #{tpu_custom_call.1} parent=40
        #allocation48 [shape = 'u8[4096]{0}', space=vmem, size = 0x1000, scoped, tag = 'scoped memory for tpu_custom_call.1']
        %3108 = vst [vmem:[#allocation48] sm:$0xff] %v2954
        %s3109 = scalar_lea.vmem [#allocation48], 2
        %v3110 = vld [vmem:[%s3109] sm:$0x3]
        %v3111 = vunpack.c.0.f8e4m3b11 %v3110
        %v3112 = vunpack.c.1.f8e4m3b11 %v3110
        %v3113 = vunpack.c.2.f8e4m3b11 %v3110
        %v3114 = vunpack.c.3.f8e4m3b11 %v3110
        %v3115 = vand.u32 2147483647, %v3111
        %vm3116 = vcmp.gt.f32.partialorder %v3115, 29.0
        %vm3117 = vcmp.ne.f32.partialorder %v3111, %v3111
        %v3118 = vmul.f32 %v3111, 16.0
        %v3119 = vsel %vm3117, -0.0, %v3118
        %v3120 = vsel %vm3116, nan, %v3119
        %v3121 = vand.u32 2147483647, %v3112
        %vm3122 = vcmp.gt.f32.partialorder %v3121, 29.0
        %vm3123 = vcmp.ne.f32.partialorder %v3112, %v3112
        %v3124 = vmul.f32 %v3112, 16.0
        %v3125 = vsel %vm3123, -0.0, %v3124
        %v3126 = vsel %vm3122, nan, %v3125
        %v3127 = vand.u32 2147483647, %v3113
        %vm3128 = vcmp.gt.f32.partialorder %v3127, 29.0
        %vm3129 = vcmp.ne.f32.partialorder %v3113, %v3113
        %v3130 = vmul.f32 %v3113, 16.0
        %v3131 = vsel %vm3129, -0.0, %v3130
        %v3132 = vsel %vm3128, nan, %v3131
        %v3133 = vand.u32 2147483647, %v3114
        %vm3134 = vcmp.gt.f32.partialorder %v3133, 29.0
        %vm3135 = vcmp.ne.f32.partialorder %v3114, %v3114
        %v3136 = vmul.f32 %v3114, 16.0
        %v3137 = vsel %vm3135, -0.0, %v3136
        %v3138 = vsel %vm3134, nan, %v3137
      $region80: #{tpu_custom_call.1} parent=40
        #allocation49 [shape = 'u8[4096]{0}', space=vmem, size = 0x1000, scoped, tag = 'scoped memory for tpu_custom_call.1']
        %3139 = vst [vmem:[#allocation49] sm:$0xff] %v2954
        %s3140 = scalar_lea.vmem [#allocation49], 4
        %v3141 = vld [vmem:[%s3140] sm:$0x3]
        %v3142 = vunpack.c.0.f8e4m3b11 %v3141
        %v3143 = vunpack.c.1.f8e4m3b11 %v3141
        %v3144 = vunpack.c.2.f8e4m3b11 %v3141
        %v3145 = vunpack.c.3.f8e4m3b11 %v3141
        %v3146 = vand.u32 2147483647, %v3142
        %vm3147 = vcmp.gt.f32.partialorder %v3146, 29.0
        %vm3148 = vcmp.ne.f32.partialorder %v3142, %v3142
        %v3149 = vmul.f32 %v3142, 16.0
        %v3150 = vsel %vm3148, -0.0, %v3149
        %v3151 = vsel %vm3147, nan, %v3150
        %v3152 = vand.u32 2147483647, %v3143
        %vm3153 = vcmp.gt.f32.partialorder %v3152, 29.0
        %vm3154 = vcmp.ne.f32.partialorder %v3143, %v3143
        %v3155 = vmul.f32 %v3143, 16.0
        %v3156 = vsel %vm3154, -0.0, %v3155
        %v3157 = vsel %vm3153, nan, %v3156
        %v3158 = vand.u32 2147483647, %v3144
        %vm3159 = vcmp.gt.f32.partialorder %v3158, 29.0
        %vm3160 = vcmp.ne.f32.partialorder %v3144, %v3144
        %v3161 = vmul.f32 %v3144, 16.0
        %v3162 = vsel %vm3160, -0.0, %v3161
        %v3163 = vsel %vm3159, nan, %v3162
        %v3164 = vand.u32 2147483647, %v3145
        %vm3165 = vcmp.gt.f32.partialorder %v3164, 29.0
        %vm3166 = vcmp.ne.f32.partialorder %v3145, %v3145
        %v3167 = vmul.f32 %v3145, 16.0
        %v3168 = vsel %vm3166, -0.0, %v3167
        %v3169 = vsel %vm3165, nan, %v3168
      $region81: #{tpu_custom_call.1} parent=40
        #allocation50 [shape = 'u8[4096]{0}', space=vmem, size = 0x1000, scoped, tag = 'scoped memory for tpu_custom_call.1']
        %3170 = vst [vmem:[#allocation50] sm:$0xff] %v2954
        %s3171 = scalar_lea.vmem [#allocation50], 6
        %v3172 = vld [vmem:[%s3171] sm:$0x3]
        %v3173 = vunpack.c.0.f8e4m3b11 %v3172
        %v3174 = vunpack.c.1.f8e4m3b11 %v3172
        %v3175 = vunpack.c.2.f8e4m3b11 %v3172
        %v3176 = vunpack.c.3.f8e4m3b11 %v3172
        %v3177 = vand.u32 2147483647, %v3173
        %vm3178 = vcmp.gt.f32.partialorder %v3177, 29.0
        %vm3179 = vcmp.ne.f32.partialorder %v3173, %v3173
        %v3180 = vmul.f32 %v3173, 16.0
        %v3181 = vsel %vm3179, -0.0, %v3180
        %v3182 = vsel %vm3178, nan, %v3181
        %v3183 = vand.u32 2147483647, %v3174
        %vm3184 = vcmp.gt.f32.partialorder %v3183, 29.0
        %vm3185 = vcmp.ne.f32.partialorder %v3174, %v3174
        %v3186 = vmul.f32 %v3174, 16.0
        %v3187 = vsel %vm3185, -0.0, %v3186
        %v3188 = vsel %vm3184, nan, %v3187
        %v3189 = vand.u32 2147483647, %v3175
        %vm3190 = vcmp.gt.f32.partialorder %v3189, 29.0
        %vm3191 = vcmp.ne.f32.partialorder %v3175, %v3175
        %v3192 = vmul.f32 %v3175, 16.0
        %v3193 = vsel %vm3191, -0.0, %v3192
        %v3194 = vsel %vm3190, nan, %v3193
        %v3195 = vand.u32 2147483647, %v3176
        %vm3196 = vcmp.gt.f32.partialorder %v3195, 29.0
        %vm3197 = vcmp.ne.f32.partialorder %v3176, %v3176
        %v3198 = vmul.f32 %v3176, 16.0
        %v3199 = vsel %vm3197, -0.0, %v3198
        %v3200 = vsel %vm3196, nan, %v3199
      %v3201 = vpack.c.bf16 %v2997, %v2966
      %v3202 = vpack.c.bf16 %v3059, %v3028
      %v3203 = vpack.c.bf16 %v3120, %v3089
      %v3204 = vpack.c.bf16 %v3182, %v3151
      %v3205 = vld [vmem:[#allocation3] sm:$0xff]
      %v3206 = vld [vmem:[#allocation3 + $0x8] sm:$0xff]
      %v3207 = vld [vmem:[#allocation3 + $0x10] sm:$0xff]
      %v3208 = vld [vmem:[#allocation3 + $0x18] sm:$0xff]
      %v3209 = vld [vmem:[#allocation3 + $0x20] sm:$0xff]
      %v3210 = vld [vmem:[#allocation3 + $0x28] sm:$0xff]
      %v3211 = vld [vmem:[#allocation3 + $0x30] sm:$0xff]
      %v3212 = vld [vmem:[#allocation3 + $0x38] sm:$0xff]
      %v3213 = vld [vmem:[#allocation3 + $0x40] sm:$0xff]
      %v3214 = vld [vmem:[#allocation3 + $0x48] sm:$0xff]
      %v3215 = vld [vmem:[#allocation3 + $0x50] sm:$0xff]
      %v3216 = vld [vmem:[#allocation3 + $0x58] sm:$0xff]
      %v3217 = vld [vmem:[#allocation3 + $0x60] sm:$0xff]
      %v3218 = vld [vmem:[#allocation3 + $0x68] sm:$0xff]
      %v3219 = vld [vmem:[#allocation3 + $0x70] sm:$0xff]
      %v3220 = vld [vmem:[#allocation3 + $0x78] sm:$0xff]
      %v3237 = vunpack.c.l.b16 %v2921
      %v3238 = vunpack.c.h.b16 %v2921
      %v3239 = vunpack.c.l.b16 %v2922
      %v3240 = vunpack.c.h.b16 %v2922
      %v3241 = vunpack.c.l.b16 %v2923
      %v3242 = vunpack.c.h.b16 %v2923
      %v3243 = vunpack.c.l.b16 %v2924
      %v3244 = vunpack.c.h.b16 %v2924
      %v3245 = vunpack.c.l.b16 %v2925
      %v3246 = vunpack.c.h.b16 %v2925
      %v3247 = vunpack.c.l.b16 %v2926
      %v3248 = vunpack.c.h.b16 %v2926
      %v3249 = vunpack.c.l.b16 %v2927
      %v3250 = vunpack.c.h.b16 %v2927
      %v3251 = vunpack.c.l.b16 %v2928
      %v3252 = vunpack.c.h.b16 %v2928
      %v3253 = vunpack.c.l.b16 %v2929
      %v3254 = vunpack.c.h.b16 %v2929
      %v3255 = vunpack.c.l.b16 %v2930
      %v3256 = vunpack.c.h.b16 %v2930
      %v3257 = vunpack.c.l.b16 %v2931
      %v3258 = vunpack.c.h.b16 %v2931
      %v3259 = vunpack.c.l.b16 %v2932
      %v3260 = vunpack.c.h.b16 %v2932
      %v3261 = vunpack.c.l.b16 %v2933
      %v3262 = vunpack.c.h.b16 %v2933
      %v3263 = vunpack.c.l.b16 %v2934
      %v3264 = vunpack.c.h.b16 %v2934
      %v3265 = vunpack.c.l.b16 %v2935
      %v3266 = vunpack.c.h.b16 %v2935
      %v3267 = vunpack.c.l.b16 %v2936
      %v3268 = vunpack.c.h.b16 %v2936
      %v3269 = vpack.c.b16 %v3239, %v3237
      %v3270 = vpack.c.b16 %v3240, %v3238
      %v3271 = vpack.c.b16 %v3243, %v3241
      %v3272 = vpack.c.b16 %v3244, %v3242
      %v3273 = vpack.c.b16 %v3247, %v3245
      %v3274 = vpack.c.b16 %v3248, %v3246
      %v3275 = vpack.c.b16 %v3251, %v3249
      %v3276 = vpack.c.b16 %v3252, %v3250
      %v3277 = vpack.c.b16 %v3255, %v3253
      %v3278 = vpack.c.b16 %v3256, %v3254
      %v3279 = vpack.c.b16 %v3259, %v3257
      %v3280 = vpack.c.b16 %v3260, %v3258
      %v3281 = vpack.c.b16 %v3263, %v3261
      %v3282 = vpack.c.b16 %v3264, %v3262
      %v3283 = vpack.c.b16 %v3267, %v3265
      %v3284 = vpack.c.b16 %v3268, %v3266
      %3301 = vmatpush.bf16.msra.mxu0 %v3283
      %3302 = vmatpush.bf16.msra.mxu0 %v3281
      %3303 = vmatpush.bf16.msra.mxu0 %v3279
      %3304 = vmatpush.bf16.msra.mxu0 %v3277
      %3305 = vmatpush.bf16.msra.mxu0 %v3275
      %3306 = vmatpush.bf16.msra.mxu0 %v3273
      %3307 = vmatpush.bf16.msra.mxu0 %v3271
      %3308 = vmatpush.bf16.msra.mxu0 %v3269
      %3309 = vmatmul.bf16.gmra.mxu0 %v3201
      %v3310 = vpop.f32.mrf.mxu0
      %v3311 = vadd.f32 0.0, %v3310
      %v3312 = vpop.f32.mrf.mxu0
      %v3313 = vadd.f32 0.0, %v3312
      %3314 = vmatmul.bf16.gmra.mxu0 %v3202
      %v3315 = vpop.f32.mrf.mxu0
      %v3316 = vadd.f32 0.0, %v3315
      %v3317 = vpop.f32.mrf.mxu0
      %v3318 = vadd.f32 0.0, %v3317
      %3319 = vmatmul.bf16.gmra.mxu0 %v3203
      %v3320 = vpop.f32.mrf.mxu0
      %v3321 = vadd.f32 0.0, %v3320
      %v3322 = vpop.f32.mrf.mxu0
      %v3323 = vadd.f32 0.0, %v3322
      %3324 = vmatmul.bf16.gmra.mxu0 %v3204
      %v3325 = vpop.f32.mrf.mxu0
      %v3326 = vadd.f32 0.0, %v3325
      %v3327 = vpop.f32.mrf.mxu0
      %v3328 = vadd.f32 0.0, %v3327
      %3329 = vdwg.mxu0
      %3330 = vmatpush.bf16.msra.mxu0 %v3284
      %3331 = vmatpush.bf16.msra.mxu0 %v3282
      %3332 = vmatpush.bf16.msra.mxu0 %v3280
      %3333 = vmatpush.bf16.msra.mxu0 %v3278
      %3334 = vmatpush.bf16.msra.mxu0 %v3276
      %3335 = vmatpush.bf16.msra.mxu0 %v3274
      %3336 = vmatpush.bf16.msra.mxu0 %v3272
      %3337 = vmatpush.bf16.msra.mxu0 %v3270
      %3338 = vmatmul.bf16.gmra.mxu0 %v3201
      %v3339 = vpop.f32.mrf.mxu0
      %v3340 = vadd.f32 0.0, %v3339
      %v3341 = vpop.f32.mrf.mxu0
      %v3342 = vadd.f32 0.0, %v3341
      %3343 = vmatmul.bf16.gmra.mxu0 %v3202
      %v3344 = vpop.f32.mrf.mxu0
      %v3345 = vadd.f32 0.0, %v3344
      %v3346 = vpop.f32.mrf.mxu0
      %v3347 = vadd.f32 0.0, %v3346
      %3348 = vmatmul.bf16.gmra.mxu0 %v3203
      %v3349 = vpop.f32.mrf.mxu0
      %v3350 = vadd.f32 0.0, %v3349
      %v3351 = vpop.f32.mrf.mxu0
      %v3352 = vadd.f32 0.0, %v3351
      %3353 = vmatmul.bf16.gmra.mxu0 %v3204
      %v3354 = vpop.f32.mrf.mxu0
      %v3355 = vadd.f32 0.0, %v3354
      %v3356 = vpop.f32.mrf.mxu0
      %v3357 = vadd.f32 0.0, %v3356
      %3358 = vdwg.mxu0
      %v3359 = vadd.f32 %v3205, %v3311
      %v3360 = vadd.f32 %v3206, %v3340
      %v3361 = vadd.f32 %v3207, %v3313
      %v3362 = vadd.f32 %v3208, %v3342
      %v3363 = vadd.f32 %v3209, %v3316
      %v3364 = vadd.f32 %v3210, %v3345
      %v3365 = vadd.f32 %v3211, %v3318
      %v3366 = vadd.f32 %v3212, %v3347
      %v3367 = vadd.f32 %v3213, %v3321
      %v3368 = vadd.f32 %v3214, %v3350
      %v3369 = vadd.f32 %v3215, %v3323
      %v3370 = vadd.f32 %v3216, %v3352
      %v3371 = vadd.f32 %v3217, %v3326
      %v3372 = vadd.f32 %v3218, %v3355
      %v3373 = vadd.f32 %v3219, %v3328
      %v3374 = vadd.f32 %v3220, %v3357
      %3375 = vst [vmem:[#allocation3] sm:$0xff] %v3359
      %3376 = vst [vmem:[#allocation3 + $0x8] sm:$0xff] %v3360
      %3377 = vst [vmem:[#allocation3 + $0x10] sm:$0xff] %v3361
      %3378 = vst [vmem:[#allocation3 + $0x18] sm:$0xff] %v3362
      %3379 = vst [vmem:[#allocation3 + $0x20] sm:$0xff] %v3363
      %3380 = vst [vmem:[#allocation3 + $0x28] sm:$0xff] %v3364
      %3381 = vst [vmem:[#allocation3 + $0x30] sm:$0xff] %v3365
      %3382 = vst [vmem:[#allocation3 + $0x38] sm:$0xff] %v3366
      %3383 = vst [vmem:[#allocation3 + $0x40] sm:$0xff] %v3367
      %3384 = vst [vmem:[#allocation3 + $0x48] sm:$0xff] %v3368
      %3385 = vst [vmem:[#allocation3 + $0x50] sm:$0xff] %v3369
      %3386 = vst [vmem:[#allocation3 + $0x58] sm:$0xff] %v3370
      %3387 = vst [vmem:[#allocation3 + $0x60] sm:$0xff] %v3371
      %3388 = vst [vmem:[#allocation3 + $0x68] sm:$0xff] %v3372
      %3389 = vst [vmem:[#allocation3 + $0x70] sm:$0xff] %v3373
      %3390 = vst [vmem:[#allocation3 + $0x78] sm:$0xff] %v3374
      %v3391 = vshll.u32 %v75, 8
      %v3392 = vshll.u32 %v76, 8
      %v3393 = vshll.u32 %v77, 8
      %v3394 = vshll.u32 %v78, 8
      %v3395 = vshll.u32 %v79, 8
      %v3396 = vshll.u32 %v80, 8
      %v3397 = vshll.u32 %v81, 8
      %v3398 = vshll.u32 %v82, 8
      %v3399 = vshll.u32 %v83, 8
      %v3400 = vshll.u32 %v84, 8
      %v3401 = vshll.u32 %v85, 8
      %v3402 = vshll.u32 %v86, 8
      %v3403 = vshll.u32 %v87, 8
      %v3404 = vshll.u32 %v88, 8
      %v3405 = vshll.u32 %v89, 8
      %v3406 = vshll.u32 %v90, 8
      %v3407 = vshll.u32 %v91, 8
      %v3408 = vshll.u32 %v92, 8
      %v3409 = vshll.u32 %v93, 8
      %v3410 = vshll.u32 %v94, 8
      %v3411 = vshll.u32 %v95, 8
      %v3412 = vshll.u32 %v96, 8
      %v3413 = vshll.u32 %v97, 8
      %v3414 = vshll.u32 %v98, 8
      %v3415 = vshll.u32 %v99, 8
      %v3416 = vshll.u32 %v100, 8
      %v3417 = vshll.u32 %v101, 8
      %v3418 = vshll.u32 %v102, 8
      %v3419 = vshll.u32 %v103, 8
      %v3420 = vshll.u32 %v104, 8
      %v3421 = vshll.u32 %v105, 8
      %v3422 = vshll.u32 %v106, 8
      %v3423 = vshra.s32 %v3391, 28
      %v3424 = vshra.s32 %v3392, 28
      %v3425 = vshra.s32 %v3393, 28
      %v3426 = vshra.s32 %v3394, 28
      %v3427 = vshra.s32 %v3395, 28
      %v3428 = vshra.s32 %v3396, 28
      %v3429 = vshra.s32 %v3397, 28
      %v3430 = vshra.s32 %v3398, 28
      %v3431 = vshra.s32 %v3399, 28
      %v3432 = vshra.s32 %v3400, 28
      %v3433 = vshra.s32 %v3401, 28
      %v3434 = vshra.s32 %v3402, 28
      %v3435 = vshra.s32 %v3403, 28
      %v3436 = vshra.s32 %v3404, 28
      %v3437 = vshra.s32 %v3405, 28
      %v3438 = vshra.s32 %v3406, 28
      %v3439 = vshra.s32 %v3407, 28
      %v3440 = vshra.s32 %v3408, 28
      %v3441 = vshra.s32 %v3409, 28
      %v3442 = vshra.s32 %v3410, 28
      %v3443 = vshra.s32 %v3411, 28
      %v3444 = vshra.s32 %v3412, 28
      %v3445 = vshra.s32 %v3413, 28
      %v3446 = vshra.s32 %v3414, 28
      %v3447 = vshra.s32 %v3415, 28
      %v3448 = vshra.s32 %v3416, 28
      %v3449 = vshra.s32 %v3417, 28
      %v3450 = vshra.s32 %v3418, 28
      %v3451 = vshra.s32 %v3419, 28
      %v3452 = vshra.s32 %v3420, 28
      %v3453 = vshra.s32 %v3421, 28
      %v3454 = vshra.s32 %v3422, 28
      %v3455 = vcvt.s32.f32 %v3423
      %v3456 = vcvt.s32.f32 %v3424
      %v3457 = vcvt.s32.f32 %v3425
      %v3458 = vcvt.s32.f32 %v3426
      %v3459 = vcvt.s32.f32 %v3427
      %v3460 = vcvt.s32.f32 %v3428
      %v3461 = vcvt.s32.f32 %v3429
      %v3462 = vcvt.s32.f32 %v3430
      %v3463 = vcvt.s32.f32 %v3431
      %v3464 = vcvt.s32.f32 %v3432
      %v3465 = vcvt.s32.f32 %v3433
      %v3466 = vcvt.s32.f32 %v3434
      %v3467 = vcvt.s32.f32 %v3435
      %v3468 = vcvt.s32.f32 %v3436
      %v3469 = vcvt.s32.f32 %v3437
      %v3470 = vcvt.s32.f32 %v3438
      %v3471 = vcvt.s32.f32 %v3439
      %v3472 = vcvt.s32.f32 %v3440
      %v3473 = vcvt.s32.f32 %v3441
      %v3474 = vcvt.s32.f32 %v3442
      %v3475 = vcvt.s32.f32 %v3443
      %v3476 = vcvt.s32.f32 %v3444
      %v3477 = vcvt.s32.f32 %v3445
      %v3478 = vcvt.s32.f32 %v3446
      %v3479 = vcvt.s32.f32 %v3447
      %v3480 = vcvt.s32.f32 %v3448
      %v3481 = vcvt.s32.f32 %v3449
      %v3482 = vcvt.s32.f32 %v3450
      %v3483 = vcvt.s32.f32 %v3451
      %v3484 = vcvt.s32.f32 %v3452
      %v3485 = vcvt.s32.f32 %v3453
      %v3486 = vcvt.s32.f32 %v3454
      %v3487 = vpack.c.bf16 %v3456, %v3455
      %v3488 = vpack.c.bf16 %v3458, %v3457
      %v3489 = vpack.c.bf16 %v3460, %v3459
      %v3490 = vpack.c.bf16 %v3462, %v3461
      %v3491 = vpack.c.bf16 %v3464, %v3463
      %v3492 = vpack.c.bf16 %v3466, %v3465
      %v3493 = vpack.c.bf16 %v3468, %v3467
      %v3494 = vpack.c.bf16 %v3470, %v3469
      %v3495 = vpack.c.bf16 %v3472, %v3471
      %v3496 = vpack.c.bf16 %v3474, %v3473
      %v3497 = vpack.c.bf16 %v3476, %v3475
      %v3498 = vpack.c.bf16 %v3478, %v3477
      %v3499 = vpack.c.bf16 %v3480, %v3479
      %v3500 = vpack.c.bf16 %v3482, %v3481
      %v3501 = vpack.c.bf16 %v3484, %v3483
      %v3502 = vpack.c.bf16 %v3486, %v3485
      %v3503 = vperm.slane %v898, 2
      %v3504 = vperm.slane %v902, 2
      %v3505 = vunpack.c.l.bf16 %v3487
      %v3506 = vunpack.c.h.bf16 %v3487
      %v3507 = vunpack.c.l.bf16 %v3488
      %v3508 = vunpack.c.h.bf16 %v3488
      %v3509 = vunpack.c.l.bf16 %v3489
      %v3510 = vunpack.c.h.bf16 %v3489
      %v3511 = vunpack.c.l.bf16 %v3490
      %v3512 = vunpack.c.h.bf16 %v3490
      %v3513 = vunpack.c.l.bf16 %v3491
      %v3514 = vunpack.c.h.bf16 %v3491
      %v3515 = vunpack.c.l.bf16 %v3492
      %v3516 = vunpack.c.h.bf16 %v3492
      %v3517 = vunpack.c.l.bf16 %v3493
      %v3518 = vunpack.c.h.bf16 %v3493
      %v3519 = vunpack.c.l.bf16 %v3494
      %v3520 = vunpack.c.h.bf16 %v3494
      %v3521 = vunpack.c.l.bf16 %v3495
      %v3522 = vunpack.c.h.bf16 %v3495
      %v3523 = vunpack.c.l.bf16 %v3496
      %v3524 = vunpack.c.h.bf16 %v3496
      %v3525 = vunpack.c.l.bf16 %v3497
      %v3526 = vunpack.c.h.bf16 %v3497
      %v3527 = vunpack.c.l.bf16 %v3498
      %v3528 = vunpack.c.h.bf16 %v3498
      %v3529 = vunpack.c.l.bf16 %v3499
      %v3530 = vunpack.c.h.bf16 %v3499
      %v3531 = vunpack.c.l.bf16 %v3500
      %v3532 = vunpack.c.h.bf16 %v3500
      %v3533 = vunpack.c.l.bf16 %v3501
      %v3534 = vunpack.c.h.bf16 %v3501
      %v3535 = vunpack.c.l.bf16 %v3502
      %v3536 = vunpack.c.h.bf16 %v3502
      %v3537 = vunpack.c.l.bf16 %v3503
      %v3538 = vunpack.c.l.bf16 %v3504
      %v3539 = vmul.f32 %v3505, %v3537
      %v3540 = vmul.f32 %v3506, %v3538
      %v3541 = vmul.f32 %v3507, %v3537
      %v3542 = vmul.f32 %v3508, %v3538
      %v3543 = vmul.f32 %v3509, %v3537
      %v3544 = vmul.f32 %v3510, %v3538
      %v3545 = vmul.f32 %v3511, %v3537
      %v3546 = vmul.f32 %v3512, %v3538
      %v3547 = vmul.f32 %v3513, %v3537
      %v3548 = vmul.f32 %v3514, %v3538
      %v3549 = vmul.f32 %v3515, %v3537
      %v3550 = vmul.f32 %v3516, %v3538
      %v3551 = vmul.f32 %v3517, %v3537
      %v3552 = vmul.f32 %v3518, %v3538
      %v3553 = vmul.f32 %v3519, %v3537
      %v3554 = vmul.f32 %v3520, %v3538
      %v3555 = vmul.f32 %v3521, %v3537
      %v3556 = vmul.f32 %v3522, %v3538
      %v3557 = vmul.f32 %v3523, %v3537
      %v3558 = vmul.f32 %v3524, %v3538
      %v3559 = vmul.f32 %v3525, %v3537
      %v3560 = vmul.f32 %v3526, %v3538
      %v3561 = vmul.f32 %v3527, %v3537
      %v3562 = vmul.f32 %v3528, %v3538
      %v3563 = vmul.f32 %v3529, %v3537
      %v3564 = vmul.f32 %v3530, %v3538
      %v3565 = vmul.f32 %v3531, %v3537
      %v3566 = vmul.f32 %v3532, %v3538
      %v3567 = vmul.f32 %v3533, %v3537
      %v3568 = vmul.f32 %v3534, %v3538
      %v3569 = vmul.f32 %v3535, %v3537
      %v3570 = vmul.f32 %v3536, %v3538
      %v3571 = vpack.c.bf16 %v3540, %v3539
      %v3572 = vpack.c.bf16 %v3542, %v3541
      %v3573 = vpack.c.bf16 %v3544, %v3543
      %v3574 = vpack.c.bf16 %v3546, %v3545
      %v3575 = vpack.c.bf16 %v3548, %v3547
      %v3576 = vpack.c.bf16 %v3550, %v3549
      %v3577 = vpack.c.bf16 %v3552, %v3551
      %v3578 = vpack.c.bf16 %v3554, %v3553
      %v3579 = vpack.c.bf16 %v3556, %v3555
      %v3580 = vpack.c.bf16 %v3558, %v3557
      %v3581 = vpack.c.bf16 %v3560, %v3559
      %v3582 = vpack.c.bf16 %v3562, %v3561
      %v3583 = vpack.c.bf16 %v3564, %v3563
      %v3584 = vpack.c.bf16 %v3566, %v3565
      %v3585 = vpack.c.bf16 %v3568, %v3567
      %v3586 = vpack.c.bf16 %v3570, %v3569
      %3587 = vst [vmem:[#allocation2 + $0x280] sm:$0xff] %v3571
      %3588 = vst [vmem:[#allocation2 + $0x288] sm:$0xff] %v3572
      %3589 = vst [vmem:[#allocation2 + $0x290] sm:$0xff] %v3573
      %3590 = vst [vmem:[#allocation2 + $0x298] sm:$0xff] %v3574
      %3591 = vst [vmem:[#allocation2 + $0x2a0] sm:$0xff] %v3575
      %3592 = vst [vmem:[#allocation2 + $0x2a8] sm:$0xff] %v3576
      %3593 = vst [vmem:[#allocation2 + $0x2b0] sm:$0xff] %v3577
      %3594 = vst [vmem:[#allocation2 + $0x2b8] sm:$0xff] %v3578
      %3595 = vst [vmem:[#allocation2 + $0x2c0] sm:$0xff] %v3579
      %3596 = vst [vmem:[#allocation2 + $0x2c8] sm:$0xff] %v3580
      %3597 = vst [vmem:[#allocation2 + $0x2d0] sm:$0xff] %v3581
      %3598 = vst [vmem:[#allocation2 + $0x2d8] sm:$0xff] %v3582
      %3599 = vst [vmem:[#allocation2 + $0x2e0] sm:$0xff] %v3583
      %3600 = vst [vmem:[#allocation2 + $0x2e8] sm:$0xff] %v3584
      %3601 = vst [vmem:[#allocation2 + $0x2f0] sm:$0xff] %v3585
      %3602 = vst [vmem:[#allocation2 + $0x2f8] sm:$0xff] %v3586
      %v3603 = vld [vmem:[#allocation4 + $0x28] sm:$0xff]
      %v3604 = vld [vmem:[#allocation4 + $0x68] sm:$0xff]
      $region82: #{tpu_custom_call.1} parent=40
        #allocation51 [shape = 'u8[4096]{0}', space=vmem, size = 0x1000, scoped, tag = 'scoped memory for tpu_custom_call.1']
        %3605 = vst [vmem:[#allocation51] sm:$0xff] %v3603
        %v3606 = vld [vmem:[#allocation51] sm:$0x3]
        %v3607 = vunpack.c.0.f8e4m3b11 %v3606
        %v3608 = vunpack.c.1.f8e4m3b11 %v3606
        %v3609 = vunpack.c.2.f8e4m3b11 %v3606
        %v3610 = vunpack.c.3.f8e4m3b11 %v3606
        %v3611 = vand.u32 2147483647, %v3607
        %vm3612 = vcmp.gt.f32.partialorder %v3611, 29.0
        %vm3613 = vcmp.ne.f32.partialorder %v3607, %v3607
        %v3614 = vmul.f32 %v3607, 16.0
        %v3615 = vsel %vm3613, -0.0, %v3614
        %v3616 = vsel %vm3612, nan, %v3615
        %v3617 = vand.u32 2147483647, %v3608
        %vm3618 = vcmp.gt.f32.partialorder %v3617, 29.0
        %vm3619 = vcmp.ne.f32.partialorder %v3608, %v3608
        %v3620 = vmul.f32 %v3608, 16.0
        %v3621 = vsel %vm3619, -0.0, %v3620
        %v3622 = vsel %vm3618, nan, %v3621
        %v3623 = vand.u32 2147483647, %v3609
        %vm3624 = vcmp.gt.f32.partialorder %v3623, 29.0
        %vm3625 = vcmp.ne.f32.partialorder %v3609, %v3609
        %v3626 = vmul.f32 %v3609, 16.0
        %v3627 = vsel %vm3625, -0.0, %v3626
        %v3628 = vsel %vm3624, nan, %v3627
        %v3629 = vand.u32 2147483647, %v3610
        %vm3630 = vcmp.gt.f32.partialorder %v3629, 29.0
        %vm3631 = vcmp.ne.f32.partialorder %v3610, %v3610
        %v3632 = vmul.f32 %v3610, 16.0
        %v3633 = vsel %vm3631, -0.0, %v3632
        %v3634 = vsel %vm3630, nan, %v3633
      $region83: #{tpu_custom_call.1} parent=40
        #allocation52 [shape = 'u8[4096]{0}', space=vmem, size = 0x1000, scoped, tag = 'scoped memory for tpu_custom_call.1']
        %3635 = vst [vmem:[#allocation52] sm:$0xff] %v3603
        %s3636 = scalar_lea.vmem [#allocation52], 2
        %v3637 = vld [vmem:[%s3636] sm:$0x3]
        %v3638 = vunpack.c.0.f8e4m3b11 %v3637
        %v3639 = vunpack.c.1.f8e4m3b11 %v3637
        %v3640 = vunpack.c.2.f8e4m3b11 %v3637
        %v3641 = vunpack.c.3.f8e4m3b11 %v3637
        %v3642 = vand.u32 2147483647, %v3638
        %vm3643 = vcmp.gt.f32.partialorder %v3642, 29.0
        %vm3644 = vcmp.ne.f32.partialorder %v3638, %v3638
        %v3645 = vmul.f32 %v3638, 16.0
        %v3646 = vsel %vm3644, -0.0, %v3645
        %v3647 = vsel %vm3643, nan, %v3646
        %v3648 = vand.u32 2147483647, %v3639
        %vm3649 = vcmp.gt.f32.partialorder %v3648, 29.0
        %vm3650 = vcmp.ne.f32.partialorder %v3639, %v3639
        %v3651 = vmul.f32 %v3639, 16.0
        %v3652 = vsel %vm3650, -0.0, %v3651
        %v3653 = vsel %vm3649, nan, %v3652
        %v3654 = vand.u32 2147483647, %v3640
        %vm3655 = vcmp.gt.f32.partialorder %v3654, 29.0
        %vm3656 = vcmp.ne.f32.partialorder %v3640, %v3640
        %v3657 = vmul.f32 %v3640, 16.0
        %v3658 = vsel %vm3656, -0.0, %v3657
        %v3659 = vsel %vm3655, nan, %v3658
        %v3660 = vand.u32 2147483647, %v3641
        %vm3661 = vcmp.gt.f32.partialorder %v3660, 29.0
        %vm3662 = vcmp.ne.f32.partialorder %v3641, %v3641
        %v3663 = vmul.f32 %v3641, 16.0
        %v3664 = vsel %vm3662, -0.0, %v3663
        %v3665 = vsel %vm3661, nan, %v3664
      $region84: #{tpu_custom_call.1} parent=40
        #allocation53 [shape = 'u8[4096]{0}', space=vmem, size = 0x1000, scoped, tag = 'scoped memory for tpu_custom_call.1']
        %3666 = vst [vmem:[#allocation53] sm:$0xff] %v3603
        %s3667 = scalar_lea.vmem [#allocation53], 4
        %v3668 = vld [vmem:[%s3667] sm:$0x3]
        %v3669 = vunpack.c.0.f8e4m3b11 %v3668
        %v3670 = vunpack.c.1.f8e4m3b11 %v3668
        %v3671 = vunpack.c.2.f8e4m3b11 %v3668
        %v3672 = vunpack.c.3.f8e4m3b11 %v3668
        %v3673 = vand.u32 2147483647, %v3669
        %vm3674 = vcmp.gt.f32.partialorder %v3673, 29.0
        %vm3675 = vcmp.ne.f32.partialorder %v3669, %v3669
        %v3676 = vmul.f32 %v3669, 16.0
        %v3677 = vsel %vm3675, -0.0, %v3676
        %v3678 = vsel %vm3674, nan, %v3677
        %v3679 = vand.u32 2147483647, %v3670
        %vm3680 = vcmp.gt.f32.partialorder %v3679, 29.0
        %vm3681 = vcmp.ne.f32.partialorder %v3670, %v3670
        %v3682 = vmul.f32 %v3670, 16.0
        %v3683 = vsel %vm3681, -0.0, %v3682
        %v3684 = vsel %vm3680, nan, %v3683
        %v3685 = vand.u32 2147483647, %v3671
        %vm3686 = vcmp.gt.f32.partialorder %v3685, 29.0
        %vm3687 = vcmp.ne.f32.partialorder %v3671, %v3671
        %v3688 = vmul.f32 %v3671, 16.0
        %v3689 = vsel %vm3687, -0.0, %v3688
        %v3690 = vsel %vm3686, nan, %v3689
        %v3691 = vand.u32 2147483647, %v3672
        %vm3692 = vcmp.gt.f32.partialorder %v3691, 29.0
        %vm3693 = vcmp.ne.f32.partialorder %v3672, %v3672
        %v3694 = vmul.f32 %v3672, 16.0
        %v3695 = vsel %vm3693, -0.0, %v3694
        %v3696 = vsel %vm3692, nan, %v3695
      $region85: #{tpu_custom_call.1} parent=40
        #allocation54 [shape = 'u8[4096]{0}', space=vmem, size = 0x1000, scoped, tag = 'scoped memory for tpu_custom_call.1']
        %3697 = vst [vmem:[#allocation54] sm:$0xff] %v3603
        %s3698 = scalar_lea.vmem [#allocation54], 6
        %v3699 = vld [vmem:[%s3698] sm:$0x3]
        %v3700 = vunpack.c.0.f8e4m3b11 %v3699
        %v3701 = vunpack.c.1.f8e4m3b11 %v3699
        %v3702 = vunpack.c.2.f8e4m3b11 %v3699
        %v3703 = vunpack.c.3.f8e4m3b11 %v3699
        %v3704 = vand.u32 2147483647, %v3700
        %vm3705 = vcmp.gt.f32.partialorder %v3704, 29.0
        %vm3706 = vcmp.ne.f32.partialorder %v3700, %v3700
        %v3707 = vmul.f32 %v3700, 16.0
        %v3708 = vsel %vm3706, -0.0, %v3707
        %v3709 = vsel %vm3705, nan, %v3708
        %v3710 = vand.u32 2147483647, %v3701
        %vm3711 = vcmp.gt.f32.partialorder %v3710, 29.0
        %vm3712 = vcmp.ne.f32.partialorder %v3701, %v3701
        %v3713 = vmul.f32 %v3701, 16.0
        %v3714 = vsel %vm3712, -0.0, %v3713
        %v3715 = vsel %vm3711, nan, %v3714
        %v3716 = vand.u32 2147483647, %v3702
        %vm3717 = vcmp.gt.f32.partialorder %v3716, 29.0
        %vm3718 = vcmp.ne.f32.partialorder %v3702, %v3702
        %v3719 = vmul.f32 %v3702, 16.0
        %v3720 = vsel %vm3718, -0.0, %v3719
        %v3721 = vsel %vm3717, nan, %v3720
        %v3722 = vand.u32 2147483647, %v3703
        %vm3723 = vcmp.gt.f32.partialorder %v3722, 29.0
        %vm3724 = vcmp.ne.f32.partialorder %v3703, %v3703
        %v3725 = vmul.f32 %v3703, 16.0
        %v3726 = vsel %vm3724, -0.0, %v3725
        %v3727 = vsel %vm3723, nan, %v3726
      $region86: #{tpu_custom_call.1} parent=40
        #allocation55 [shape = 'u8[4096]{0}', space=vmem, size = 0x1000, scoped, tag = 'scoped memory for tpu_custom_call.1']
        %3728 = vst [vmem:[#allocation55] sm:$0xff] %v3604
        %v3729 = vld [vmem:[#allocation55] sm:$0x3]
        %v3730 = vunpack.c.0.f8e4m3b11 %v3729
        %v3731 = vunpack.c.1.f8e4m3b11 %v3729
        %v3732 = vunpack.c.2.f8e4m3b11 %v3729
        %v3733 = vunpack.c.3.f8e4m3b11 %v3729
        %v3734 = vand.u32 2147483647, %v3730
        %vm3735 = vcmp.gt.f32.partialorder %v3734, 29.0
        %vm3736 = vcmp.ne.f32.partialorder %v3730, %v3730
        %v3737 = vmul.f32 %v3730, 16.0
        %v3738 = vsel %vm3736, -0.0, %v3737
        %v3739 = vsel %vm3735, nan, %v3738
        %v3740 = vand.u32 2147483647, %v3731
        %vm3741 = vcmp.gt.f32.partialorder %v3740, 29.0
        %vm3742 = vcmp.ne.f32.partialorder %v3731, %v3731
        %v3743 = vmul.f32 %v3731, 16.0
        %v3744 = vsel %vm3742, -0.0, %v3743
        %v3745 = vsel %vm3741, nan, %v3744
        %v3746 = vand.u32 2147483647, %v3732
        %vm3747 = vcmp.gt.f32.partialorder %v3746, 29.0
        %vm3748 = vcmp.ne.f32.partialorder %v3732, %v3732
        %v3749 = vmul.f32 %v3732, 16.0
        %v3750 = vsel %vm3748, -0.0, %v3749
        %v3751 = vsel %vm3747, nan, %v3750
        %v3752 = vand.u32 2147483647, %v3733
        %vm3753 = vcmp.gt.f32.partialorder %v3752, 29.0
        %vm3754 = vcmp.ne.f32.partialorder %v3733, %v3733
        %v3755 = vmul.f32 %v3733, 16.0
        %v3756 = vsel %vm3754, -0.0, %v3755
        %v3757 = vsel %vm3753, nan, %v3756
      $region87: #{tpu_custom_call.1} parent=40
        #allocation56 [shape = 'u8[4096]{0}', space=vmem, size = 0x1000, scoped, tag = 'scoped memory for tpu_custom_call.1']
        %3758 = vst [vmem:[#allocation56] sm:$0xff] %v3604
        %s3759 = scalar_lea.vmem [#allocation56], 2
        %v3760 = vld [vmem:[%s3759] sm:$0x3]
        %v3761 = vunpack.c.0.f8e4m3b11 %v3760
        %v3762 = vunpack.c.1.f8e4m3b11 %v3760
        %v3763 = vunpack.c.2.f8e4m3b11 %v3760
        %v3764 = vunpack.c.3.f8e4m3b11 %v3760
        %v3765 = vand.u32 2147483647, %v3761
        %vm3766 = vcmp.gt.f32.partialorder %v3765, 29.0
        %vm3767 = vcmp.ne.f32.partialorder %v3761, %v3761
        %v3768 = vmul.f32 %v3761, 16.0
        %v3769 = vsel %vm3767, -0.0, %v3768
        %v3770 = vsel %vm3766, nan, %v3769
        %v3771 = vand.u32 2147483647, %v3762
        %vm3772 = vcmp.gt.f32.partialorder %v3771, 29.0
        %vm3773 = vcmp.ne.f32.partialorder %v3762, %v3762
        %v3774 = vmul.f32 %v3762, 16.0
        %v3775 = vsel %vm3773, -0.0, %v3774
        %v3776 = vsel %vm3772, nan, %v3775
        %v3777 = vand.u32 2147483647, %v3763
        %vm3778 = vcmp.gt.f32.partialorder %v3777, 29.0
        %vm3779 = vcmp.ne.f32.partialorder %v3763, %v3763
        %v3780 = vmul.f32 %v3763, 16.0
        %v3781 = vsel %vm3779, -0.0, %v3780
        %v3782 = vsel %vm3778, nan, %v3781
        %v3783 = vand.u32 2147483647, %v3764
        %vm3784 = vcmp.gt.f32.partialorder %v3783, 29.0
        %vm3785 = vcmp.ne.f32.partialorder %v3764, %v3764
        %v3786 = vmul.f32 %v3764, 16.0
        %v3787 = vsel %vm3785, -0.0, %v3786
        %v3788 = vsel %vm3784, nan, %v3787
      $region88: #{tpu_custom_call.1} parent=40
        #allocation57 [shape = 'u8[4096]{0}', space=vmem, size = 0x1000, scoped, tag = 'scoped memory for tpu_custom_call.1']
        %3789 = vst [vmem:[#allocation57] sm:$0xff] %v3604
        %s3790 = scalar_lea.vmem [#allocation57], 4
        %v3791 = vld [vmem:[%s3790] sm:$0x3]
        %v3792 = vunpack.c.0.f8e4m3b11 %v3791
        %v3793 = vunpack.c.1.f8e4m3b11 %v3791
        %v3794 = vunpack.c.2.f8e4m3b11 %v3791
        %v3795 = vunpack.c.3.f8e4m3b11 %v3791
        %v3796 = vand.u32 2147483647, %v3792
        %vm3797 = vcmp.gt.f32.partialorder %v3796, 29.0
        %vm3798 = vcmp.ne.f32.partialorder %v3792, %v3792
        %v3799 = vmul.f32 %v3792, 16.0
        %v3800 = vsel %vm3798, -0.0, %v3799
        %v3801 = vsel %vm3797, nan, %v3800
        %v3802 = vand.u32 2147483647, %v3793
        %vm3803 = vcmp.gt.f32.partialorder %v3802, 29.0
        %vm3804 = vcmp.ne.f32.partialorder %v3793, %v3793
        %v3805 = vmul.f32 %v3793, 16.0
        %v3806 = vsel %vm3804, -0.0, %v3805
        %v3807 = vsel %vm3803, nan, %v3806
        %v3808 = vand.u32 2147483647, %v3794
        %vm3809 = vcmp.gt.f32.partialorder %v3808, 29.0
        %vm3810 = vcmp.ne.f32.partialorder %v3794, %v3794
        %v3811 = vmul.f32 %v3794, 16.0
        %v3812 = vsel %vm3810, -0.0, %v3811
        %v3813 = vsel %vm3809, nan, %v3812
        %v3814 = vand.u32 2147483647, %v3795
        %vm3815 = vcmp.gt.f32.partialorder %v3814, 29.0
        %vm3816 = vcmp.ne.f32.partialorder %v3795, %v3795
        %v3817 = vmul.f32 %v3795, 16.0
        %v3818 = vsel %vm3816, -0.0, %v3817
        %v3819 = vsel %vm3815, nan, %v3818
      $region89: #{tpu_custom_call.1} parent=40
        #allocation58 [shape = 'u8[4096]{0}', space=vmem, size = 0x1000, scoped, tag = 'scoped memory for tpu_custom_call.1']
        %3820 = vst [vmem:[#allocation58] sm:$0xff] %v3604
        %s3821 = scalar_lea.vmem [#allocation58], 6
        %v3822 = vld [vmem:[%s3821] sm:$0x3]
        %v3823 = vunpack.c.0.f8e4m3b11 %v3822
        %v3824 = vunpack.c.1.f8e4m3b11 %v3822
        %v3825 = vunpack.c.2.f8e4m3b11 %v3822
        %v3826 = vunpack.c.3.f8e4m3b11 %v3822
        %v3827 = vand.u32 2147483647, %v3823
        %vm3828 = vcmp.gt.f32.partialorder %v3827, 29.0
        %vm3829 = vcmp.ne.f32.partialorder %v3823, %v3823
        %v3830 = vmul.f32 %v3823, 16.0
        %v3831 = vsel %vm3829, -0.0, %v3830
        %v3832 = vsel %vm3828, nan, %v3831
        %v3833 = vand.u32 2147483647, %v3824
        %vm3834 = vcmp.gt.f32.partialorder %v3833, 29.0
        %vm3835 = vcmp.ne.f32.partialorder %v3824, %v3824
        %v3836 = vmul.f32 %v3824, 16.0
        %v3837 = vsel %vm3835, -0.0, %v3836
        %v3838 = vsel %vm3834, nan, %v3837
        %v3839 = vand.u32 2147483647, %v3825
        %vm3840 = vcmp.gt.f32.partialorder %v3839, 29.0
        %vm3841 = vcmp.ne.f32.partialorder %v3825, %v3825
        %v3842 = vmul.f32 %v3825, 16.0
        %v3843 = vsel %vm3841, -0.0, %v3842
        %v3844 = vsel %vm3840, nan, %v3843
        %v3845 = vand.u32 2147483647, %v3826
        %vm3846 = vcmp.gt.f32.partialorder %v3845, 29.0
        %vm3847 = vcmp.ne.f32.partialorder %v3826, %v3826
        %v3848 = vmul.f32 %v3826, 16.0
        %v3849 = vsel %vm3847, -0.0, %v3848
        %v3850 = vsel %vm3846, nan, %v3849
      %v3851 = vpack.c.bf16 %v3647, %v3616
      %v3852 = vpack.c.bf16 %v3709, %v3678
      %v3853 = vpack.c.bf16 %v3770, %v3739
      %v3854 = vpack.c.bf16 %v3832, %v3801
      %v3855 = vld [vmem:[#allocation3] sm:$0xff]
      %v3856 = vld [vmem:[#allocation3 + $0x8] sm:$0xff]
      %v3857 = vld [vmem:[#allocation3 + $0x10] sm:$0xff]
      %v3858 = vld [vmem:[#allocation3 + $0x18] sm:$0xff]
      %v3859 = vld [vmem:[#allocation3 + $0x20] sm:$0xff]
      %v3860 = vld [vmem:[#allocation3 + $0x28] sm:$0xff]
      %v3861 = vld [vmem:[#allocation3 + $0x30] sm:$0xff]
      %v3862 = vld [vmem:[#allocation3 + $0x38] sm:$0xff]
      %v3863 = vld [vmem:[#allocation3 + $0x40] sm:$0xff]
      %v3864 = vld [vmem:[#allocation3 + $0x48] sm:$0xff]
      %v3865 = vld [vmem:[#allocation3 + $0x50] sm:$0xff]
      %v3866 = vld [vmem:[#allocation3 + $0x58] sm:$0xff]
      %v3867 = vld [vmem:[#allocation3 + $0x60] sm:$0xff]
      %v3868 = vld [vmem:[#allocation3 + $0x68] sm:$0xff]
      %v3869 = vld [vmem:[#allocation3 + $0x70] sm:$0xff]
      %v3870 = vld [vmem:[#allocation3 + $0x78] sm:$0xff]
      %v3887 = vunpack.c.l.b16 %v3571
      %v3888 = vunpack.c.h.b16 %v3571
      %v3889 = vunpack.c.l.b16 %v3572
      %v3890 = vunpack.c.h.b16 %v3572
      %v3891 = vunpack.c.l.b16 %v3573
      %v3892 = vunpack.c.h.b16 %v3573
      %v3893 = vunpack.c.l.b16 %v3574
      %v3894 = vunpack.c.h.b16 %v3574
      %v3895 = vunpack.c.l.b16 %v3575
      %v3896 = vunpack.c.h.b16 %v3575
      %v3897 = vunpack.c.l.b16 %v3576
      %v3898 = vunpack.c.h.b16 %v3576
      %v3899 = vunpack.c.l.b16 %v3577
      %v3900 = vunpack.c.h.b16 %v3577
      %v3901 = vunpack.c.l.b16 %v3578
      %v3902 = vunpack.c.h.b16 %v3578
      %v3903 = vunpack.c.l.b16 %v3579
      %v3904 = vunpack.c.h.b16 %v3579
      %v3905 = vunpack.c.l.b16 %v3580
      %v3906 = vunpack.c.h.b16 %v3580
      %v3907 = vunpack.c.l.b16 %v3581
      %v3908 = vunpack.c.h.b16 %v3581
      %v3909 = vunpack.c.l.b16 %v3582
      %v3910 = vunpack.c.h.b16 %v3582
      %v3911 = vunpack.c.l.b16 %v3583
      %v3912 = vunpack.c.h.b16 %v3583
      %v3913 = vunpack.c.l.b16 %v3584
      %v3914 = vunpack.c.h.b16 %v3584
      %v3915 = vunpack.c.l.b16 %v3585
      %v3916 = vunpack.c.h.b16 %v3585
      %v3917 = vunpack.c.l.b16 %v3586
      %v3918 = vunpack.c.h.b16 %v3586
      %v3919 = vpack.c.b16 %v3889, %v3887
      %v3920 = vpack.c.b16 %v3890, %v3888
      %v3921 = vpack.c.b16 %v3893, %v3891
      %v3922 = vpack.c.b16 %v3894, %v3892
      %v3923 = vpack.c.b16 %v3897, %v3895
      %v3924 = vpack.c.b16 %v3898, %v3896
      %v3925 = vpack.c.b16 %v3901, %v3899
      %v3926 = vpack.c.b16 %v3902, %v3900
      %v3927 = vpack.c.b16 %v3905, %v3903
      %v3928 = vpack.c.b16 %v3906, %v3904
      %v3929 = vpack.c.b16 %v3909, %v3907
      %v3930 = vpack.c.b16 %v3910, %v3908
      %v3931 = vpack.c.b16 %v3913, %v3911
      %v3932 = vpack.c.b16 %v3914, %v3912
      %v3933 = vpack.c.b16 %v3917, %v3915
      %v3934 = vpack.c.b16 %v3918, %v3916
      %3951 = vmatpush.bf16.msra.mxu0 %v3933
      %3952 = vmatpush.bf16.msra.mxu0 %v3931
      %3953 = vmatpush.bf16.msra.mxu0 %v3929
      %3954 = vmatpush.bf16.msra.mxu0 %v3927
      %3955 = vmatpush.bf16.msra.mxu0 %v3925
      %3956 = vmatpush.bf16.msra.mxu0 %v3923
      %3957 = vmatpush.bf16.msra.mxu0 %v3921
      %3958 = vmatpush.bf16.msra.mxu0 %v3919
      %3959 = vmatmul.bf16.gmra.mxu0 %v3851
      %v3960 = vpop.f32.mrf.mxu0
      %v3961 = vadd.f32 0.0, %v3960
      %v3962 = vpop.f32.mrf.mxu0
      %v3963 = vadd.f32 0.0, %v3962
      %3964 = vmatmul.bf16.gmra.mxu0 %v3852
      %v3965 = vpop.f32.mrf.mxu0
      %v3966 = vadd.f32 0.0, %v3965
      %v3967 = vpop.f32.mrf.mxu0
      %v3968 = vadd.f32 0.0, %v3967
      %3969 = vmatmul.bf16.gmra.mxu0 %v3853
      %v3970 = vpop.f32.mrf.mxu0
      %v3971 = vadd.f32 0.0, %v3970
      %v3972 = vpop.f32.mrf.mxu0
      %v3973 = vadd.f32 0.0, %v3972
      %3974 = vmatmul.bf16.gmra.mxu0 %v3854
      %v3975 = vpop.f32.mrf.mxu0
      %v3976 = vadd.f32 0.0, %v3975
      %v3977 = vpop.f32.mrf.mxu0
      %v3978 = vadd.f32 0.0, %v3977
      %3979 = vdwg.mxu0
      %3980 = vmatpush.bf16.msra.mxu0 %v3934
      %3981 = vmatpush.bf16.msra.mxu0 %v3932
      %3982 = vmatpush.bf16.msra.mxu0 %v3930
      %3983 = vmatpush.bf16.msra.mxu0 %v3928
      %3984 = vmatpush.bf16.msra.mxu0 %v3926
      %3985 = vmatpush.bf16.msra.mxu0 %v3924
      %3986 = vmatpush.bf16.msra.mxu0 %v3922
      %3987 = vmatpush.bf16.msra.mxu0 %v3920
      %3988 = vmatmul.bf16.gmra.mxu0 %v3851
      %v3989 = vpop.f32.mrf.mxu0
      %v3990 = vadd.f32 0.0, %v3989
      %v3991 = vpop.f32.mrf.mxu0
      %v3992 = vadd.f32 0.0, %v3991
      %3993 = vmatmul.bf16.gmra.mxu0 %v3852
      %v3994 = vpop.f32.mrf.mxu0
      %v3995 = vadd.f32 0.0, %v3994
      %v3996 = vpop.f32.mrf.mxu0
      %v3997 = vadd.f32 0.0, %v3996
      %3998 = vmatmul.bf16.gmra.mxu0 %v3853
      %v3999 = vpop.f32.mrf.mxu0
      %v4000 = vadd.f32 0.0, %v3999
      %v4001 = vpop.f32.mrf.mxu0
      %v4002 = vadd.f32 0.0, %v4001
      %4003 = vmatmul.bf16.gmra.mxu0 %v3854
      %v4004 = vpop.f32.mrf.mxu0
      %v4005 = vadd.f32 0.0, %v4004
      %v4006 = vpop.f32.mrf.mxu0
      %v4007 = vadd.f32 0.0, %v4006
      %4008 = vdwg.mxu0
      %v4009 = vadd.f32 %v3855, %v3961
      %v4010 = vadd.f32 %v3856, %v3990
      %v4011 = vadd.f32 %v3857, %v3963
      %v4012 = vadd.f32 %v3858, %v3992
      %v4013 = vadd.f32 %v3859, %v3966
      %v4014 = vadd.f32 %v3860, %v3995
      %v4015 = vadd.f32 %v3861, %v3968
      %v4016 = vadd.f32 %v3862, %v3997
      %v4017 = vadd.f32 %v3863, %v3971
      %v4018 = vadd.f32 %v3864, %v4000
      %v4019 = vadd.f32 %v3865, %v3973
      %v4020 = vadd.f32 %v3866, %v4002
      %v4021 = vadd.f32 %v3867, %v3976
      %v4022 = vadd.f32 %v3868, %v4005
      %v4023 = vadd.f32 %v3869, %v3978
      %v4024 = vadd.f32 %v3870, %v4007
      %4025 = vst [vmem:[#allocation3] sm:$0xff] %v4009
      %4026 = vst [vmem:[#allocation3 + $0x8] sm:$0xff] %v4010
      %4027 = vst [vmem:[#allocation3 + $0x10] sm:$0xff] %v4011
      %4028 = vst [vmem:[#allocation3 + $0x18] sm:$0xff] %v4012
      %4029 = vst [vmem:[#allocation3 + $0x20] sm:$0xff] %v4013
      %4030 = vst [vmem:[#allocation3 + $0x28] sm:$0xff] %v4014
      %4031 = vst [vmem:[#allocation3 + $0x30] sm:$0xff] %v4015
      %4032 = vst [vmem:[#allocation3 + $0x38] sm:$0xff] %v4016
      %4033 = vst [vmem:[#allocation3 + $0x40] sm:$0xff] %v4017
      %4034 = vst [vmem:[#allocation3 + $0x48] sm:$0xff] %v4018
      %4035 = vst [vmem:[#allocation3 + $0x50] sm:$0xff] %v4019
      %4036 = vst [vmem:[#allocation3 + $0x58] sm:$0xff] %v4020
      %4037 = vst [vmem:[#allocation3 + $0x60] sm:$0xff] %v4021
      %4038 = vst [vmem:[#allocation3 + $0x68] sm:$0xff] %v4022
      %4039 = vst [vmem:[#allocation3 + $0x70] sm:$0xff] %v4023
      %4040 = vst [vmem:[#allocation3 + $0x78] sm:$0xff] %v4024
      %v4041 = vshll.u32 %v75, 4
      %v4042 = vshll.u32 %v76, 4
      %v4043 = vshll.u32 %v77, 4
      %v4044 = vshll.u32 %v78, 4
      %v4045 = vshll.u32 %v79, 4
      %v4046 = vshll.u32 %v80, 4
      %v4047 = vshll.u32 %v81, 4
      %v4048 = vshll.u32 %v82, 4
      %v4049 = vshll.u32 %v83, 4
      %v4050 = vshll.u32 %v84, 4
      %v4051 = vshll.u32 %v85, 4
      %v4052 = vshll.u32 %v86, 4
      %v4053 = vshll.u32 %v87, 4
      %v4054 = vshll.u32 %v88, 4
      %v4055 = vshll.u32 %v89, 4
      %v4056 = vshll.u32 %v90, 4
      %v4057 = vshll.u32 %v91, 4
      %v4058 = vshll.u32 %v92, 4
      %v4059 = vshll.u32 %v93, 4
      %v4060 = vshll.u32 %v94, 4
      %v4061 = vshll.u32 %v95, 4
      %v4062 = vshll.u32 %v96, 4
      %v4063 = vshll.u32 %v97, 4
      %v4064 = vshll.u32 %v98, 4
      %v4065 = vshll.u32 %v99, 4
      %v4066 = vshll.u32 %v100, 4
      %v4067 = vshll.u32 %v101, 4
      %v4068 = vshll.u32 %v102, 4
      %v4069 = vshll.u32 %v103, 4
      %v4070 = vshll.u32 %v104, 4
      %v4071 = vshll.u32 %v105, 4
      %v4072 = vshll.u32 %v106, 4
      %v4073 = vshra.s32 %v4041, 28
      %v4074 = vshra.s32 %v4042, 28
      %v4075 = vshra.s32 %v4043, 28
      %v4076 = vshra.s32 %v4044, 28
      %v4077 = vshra.s32 %v4045, 28
      %v4078 = vshra.s32 %v4046, 28
      %v4079 = vshra.s32 %v4047, 28
      %v4080 = vshra.s32 %v4048, 28
      %v4081 = vshra.s32 %v4049, 28
      %v4082 = vshra.s32 %v4050, 28
      %v4083 = vshra.s32 %v4051, 28
      %v4084 = vshra.s32 %v4052, 28
      %v4085 = vshra.s32 %v4053, 28
      %v4086 = vshra.s32 %v4054, 28
      %v4087 = vshra.s32 %v4055, 28
      %v4088 = vshra.s32 %v4056, 28
      %v4089 = vshra.s32 %v4057, 28
      %v4090 = vshra.s32 %v4058, 28
      %v4091 = vshra.s32 %v4059, 28
      %v4092 = vshra.s32 %v4060, 28
      %v4093 = vshra.s32 %v4061, 28
      %v4094 = vshra.s32 %v4062, 28
      %v4095 = vshra.s32 %v4063, 28
      %v4096 = vshra.s32 %v4064, 28
      %v4097 = vshra.s32 %v4065, 28
      %v4098 = vshra.s32 %v4066, 28
      %v4099 = vshra.s32 %v4067, 28
      %v4100 = vshra.s32 %v4068, 28
      %v4101 = vshra.s32 %v4069, 28
      %v4102 = vshra.s32 %v4070, 28
      %v4103 = vshra.s32 %v4071, 28
      %v4104 = vshra.s32 %v4072, 28
      %v4105 = vcvt.s32.f32 %v4073
      %v4106 = vcvt.s32.f32 %v4074
      %v4107 = vcvt.s32.f32 %v4075
      %v4108 = vcvt.s32.f32 %v4076
      %v4109 = vcvt.s32.f32 %v4077
      %v4110 = vcvt.s32.f32 %v4078
      %v4111 = vcvt.s32.f32 %v4079
      %v4112 = vcvt.s32.f32 %v4080
      %v4113 = vcvt.s32.f32 %v4081
      %v4114 = vcvt.s32.f32 %v4082
      %v4115 = vcvt.s32.f32 %v4083
      %v4116 = vcvt.s32.f32 %v4084
      %v4117 = vcvt.s32.f32 %v4085
      %v4118 = vcvt.s32.f32 %v4086
      %v4119 = vcvt.s32.f32 %v4087
      %v4120 = vcvt.s32.f32 %v4088
      %v4121 = vcvt.s32.f32 %v4089
      %v4122 = vcvt.s32.f32 %v4090
      %v4123 = vcvt.s32.f32 %v4091
      %v4124 = vcvt.s32.f32 %v4092
      %v4125 = vcvt.s32.f32 %v4093
      %v4126 = vcvt.s32.f32 %v4094
      %v4127 = vcvt.s32.f32 %v4095
      %v4128 = vcvt.s32.f32 %v4096
      %v4129 = vcvt.s32.f32 %v4097
      %v4130 = vcvt.s32.f32 %v4098
      %v4131 = vcvt.s32.f32 %v4099
      %v4132 = vcvt.s32.f32 %v4100
      %v4133 = vcvt.s32.f32 %v4101
      %v4134 = vcvt.s32.f32 %v4102
      %v4135 = vcvt.s32.f32 %v4103
      %v4136 = vcvt.s32.f32 %v4104
      %v4137 = vpack.c.bf16 %v4106, %v4105
      %v4138 = vpack.c.bf16 %v4108, %v4107
      %v4139 = vpack.c.bf16 %v4110, %v4109
      %v4140 = vpack.c.bf16 %v4112, %v4111
      %v4141 = vpack.c.bf16 %v4114, %v4113
      %v4142 = vpack.c.bf16 %v4116, %v4115
      %v4143 = vpack.c.bf16 %v4118, %v4117
      %v4144 = vpack.c.bf16 %v4120, %v4119
      %v4145 = vpack.c.bf16 %v4122, %v4121
      %v4146 = vpack.c.bf16 %v4124, %v4123
      %v4147 = vpack.c.bf16 %v4126, %v4125
      %v4148 = vpack.c.bf16 %v4128, %v4127
      %v4149 = vpack.c.bf16 %v4130, %v4129
      %v4150 = vpack.c.bf16 %v4132, %v4131
      %v4151 = vpack.c.bf16 %v4134, %v4133
      %v4152 = vpack.c.bf16 %v4136, %v4135
      %v4153 = vperm.slane %v242, 3
      %v4154 = vperm.slane %v246, 3
      %v4155 = vunpack.c.l.bf16 %v4137
      %v4156 = vunpack.c.h.bf16 %v4137
      %v4157 = vunpack.c.l.bf16 %v4138
      %v4158 = vunpack.c.h.bf16 %v4138
      %v4159 = vunpack.c.l.bf16 %v4139
      %v4160 = vunpack.c.h.bf16 %v4139
      %v4161 = vunpack.c.l.bf16 %v4140
      %v4162 = vunpack.c.h.bf16 %v4140
      %v4163 = vunpack.c.l.bf16 %v4141
      %v4164 = vunpack.c.h.bf16 %v4141
      %v4165 = vunpack.c.l.bf16 %v4142
      %v4166 = vunpack.c.h.bf16 %v4142
      %v4167 = vunpack.c.l.bf16 %v4143
      %v4168 = vunpack.c.h.bf16 %v4143
      %v4169 = vunpack.c.l.bf16 %v4144
      %v4170 = vunpack.c.h.bf16 %v4144
      %v4171 = vunpack.c.l.bf16 %v4145
      %v4172 = vunpack.c.h.bf16 %v4145
      %v4173 = vunpack.c.l.bf16 %v4146
      %v4174 = vunpack.c.h.bf16 %v4146
      %v4175 = vunpack.c.l.bf16 %v4147
      %v4176 = vunpack.c.h.bf16 %v4147
      %v4177 = vunpack.c.l.bf16 %v4148
      %v4178 = vunpack.c.h.bf16 %v4148
      %v4179 = vunpack.c.l.bf16 %v4149
      %v4180 = vunpack.c.h.bf16 %v4149
      %v4181 = vunpack.c.l.bf16 %v4150
      %v4182 = vunpack.c.h.bf16 %v4150
      %v4183 = vunpack.c.l.bf16 %v4151
      %v4184 = vunpack.c.h.bf16 %v4151
      %v4185 = vunpack.c.l.bf16 %v4152
      %v4186 = vunpack.c.h.bf16 %v4152
      %v4187 = vunpack.c.l.bf16 %v4153
      %v4188 = vunpack.c.l.bf16 %v4154
      %v4189 = vmul.f32 %v4155, %v4187
      %v4190 = vmul.f32 %v4156, %v4188
      %v4191 = vmul.f32 %v4157, %v4187
      %v4192 = vmul.f32 %v4158, %v4188
      %v4193 = vmul.f32 %v4159, %v4187
      %v4194 = vmul.f32 %v4160, %v4188
      %v4195 = vmul.f32 %v4161, %v4187
      %v4196 = vmul.f32 %v4162, %v4188
      %v4197 = vmul.f32 %v4163, %v4187
      %v4198 = vmul.f32 %v4164, %v4188
      %v4199 = vmul.f32 %v4165, %v4187
      %v4200 = vmul.f32 %v4166, %v4188
      %v4201 = vmul.f32 %v4167, %v4187
      %v4202 = vmul.f32 %v4168, %v4188
      %v4203 = vmul.f32 %v4169, %v4187
      %v4204 = vmul.f32 %v4170, %v4188
      %v4205 = vmul.f32 %v4171, %v4187
      %v4206 = vmul.f32 %v4172, %v4188
      %v4207 = vmul.f32 %v4173, %v4187
      %v4208 = vmul.f32 %v4174, %v4188
      %v4209 = vmul.f32 %v4175, %v4187
      %v4210 = vmul.f32 %v4176, %v4188
      %v4211 = vmul.f32 %v4177, %v4187
      %v4212 = vmul.f32 %v4178, %v4188
      %v4213 = vmul.f32 %v4179, %v4187
      %v4214 = vmul.f32 %v4180, %v4188
      %v4215 = vmul.f32 %v4181, %v4187
      %v4216 = vmul.f32 %v4182, %v4188
      %v4217 = vmul.f32 %v4183, %v4187
      %v4218 = vmul.f32 %v4184, %v4188
      %v4219 = vmul.f32 %v4185, %v4187
      %v4220 = vmul.f32 %v4186, %v4188
      %v4221 = vpack.c.bf16 %v4190, %v4189
      %v4222 = vpack.c.bf16 %v4192, %v4191
      %v4223 = vpack.c.bf16 %v4194, %v4193
      %v4224 = vpack.c.bf16 %v4196, %v4195
      %v4225 = vpack.c.bf16 %v4198, %v4197
      %v4226 = vpack.c.bf16 %v4200, %v4199
      %v4227 = vpack.c.bf16 %v4202, %v4201
      %v4228 = vpack.c.bf16 %v4204, %v4203
      %v4229 = vpack.c.bf16 %v4206, %v4205
      %v4230 = vpack.c.bf16 %v4208, %v4207
      %v4231 = vpack.c.bf16 %v4210, %v4209
      %v4232 = vpack.c.bf16 %v4212, %v4211
      %v4233 = vpack.c.bf16 %v4214, %v4213
      %v4234 = vpack.c.bf16 %v4216, %v4215
      %v4235 = vpack.c.bf16 %v4218, %v4217
      %v4236 = vpack.c.bf16 %v4220, %v4219
      %4237 = vst [vmem:[#allocation2 + $0x300] sm:$0xff] %v4221
      %4238 = vst [vmem:[#allocation2 + $0x308] sm:$0xff] %v4222
      %4239 = vst [vmem:[#allocation2 + $0x310] sm:$0xff] %v4223
      %4240 = vst [vmem:[#allocation2 + $0x318] sm:$0xff] %v4224
      %4241 = vst [vmem:[#allocation2 + $0x320] sm:$0xff] %v4225
      %4242 = vst [vmem:[#allocation2 + $0x328] sm:$0xff] %v4226
      %4243 = vst [vmem:[#allocation2 + $0x330] sm:$0xff] %v4227
      %4244 = vst [vmem:[#allocation2 + $0x338] sm:$0xff] %v4228
      %4245 = vst [vmem:[#allocation2 + $0x340] sm:$0xff] %v4229
      %4246 = vst [vmem:[#allocation2 + $0x348] sm:$0xff] %v4230
      %4247 = vst [vmem:[#allocation2 + $0x350] sm:$0xff] %v4231
      %4248 = vst [vmem:[#allocation2 + $0x358] sm:$0xff] %v4232
      %4249 = vst [vmem:[#allocation2 + $0x360] sm:$0xff] %v4233
      %4250 = vst [vmem:[#allocation2 + $0x368] sm:$0xff] %v4234
      %4251 = vst [vmem:[#allocation2 + $0x370] sm:$0xff] %v4235
      %4252 = vst [vmem:[#allocation2 + $0x378] sm:$0xff] %v4236
      %v4253 = vld [vmem:[#allocation4 + $0x30] sm:$0xff]
      %v4254 = vld [vmem:[#allocation4 + $0x70] sm:$0xff]
      $region90: #{tpu_custom_call.1} parent=40
        #allocation59 [shape = 'u8[4096]{0}', space=vmem, size = 0x1000, scoped, tag = 'scoped memory for tpu_custom_call.1']
        %4255 = vst [vmem:[#allocation59] sm:$0xff] %v4253
        %v4256 = vld [vmem:[#allocation59] sm:$0x3]
        %v4257 = vunpack.c.0.f8e4m3b11 %v4256
        %v4258 = vunpack.c.1.f8e4m3b11 %v4256
        %v4259 = vunpack.c.2.f8e4m3b11 %v4256
        %v4260 = vunpack.c.3.f8e4m3b11 %v4256
        %v4261 = vand.u32 2147483647, %v4257
        %vm4262 = vcmp.gt.f32.partialorder %v4261, 29.0
        %vm4263 = vcmp.ne.f32.partialorder %v4257, %v4257
        %v4264 = vmul.f32 %v4257, 16.0
        %v4265 = vsel %vm4263, -0.0, %v4264
        %v4266 = vsel %vm4262, nan, %v4265
        %v4267 = vand.u32 2147483647, %v4258
        %vm4268 = vcmp.gt.f32.partialorder %v4267, 29.0
        %vm4269 = vcmp.ne.f32.partialorder %v4258, %v4258
        %v4270 = vmul.f32 %v4258, 16.0
        %v4271 = vsel %vm4269, -0.0, %v4270
        %v4272 = vsel %vm4268, nan, %v4271
        %v4273 = vand.u32 2147483647, %v4259
        %vm4274 = vcmp.gt.f32.partialorder %v4273, 29.0
        %vm4275 = vcmp.ne.f32.partialorder %v4259, %v4259
        %v4276 = vmul.f32 %v4259, 16.0
        %v4277 = vsel %vm4275, -0.0, %v4276
        %v4278 = vsel %vm4274, nan, %v4277
        %v4279 = vand.u32 2147483647, %v4260
        %vm4280 = vcmp.gt.f32.partialorder %v4279, 29.0
        %vm4281 = vcmp.ne.f32.partialorder %v4260, %v4260
        %v4282 = vmul.f32 %v4260, 16.0
        %v4283 = vsel %vm4281, -0.0, %v4282
        %v4284 = vsel %vm4280, nan, %v4283
      $region91: #{tpu_custom_call.1} parent=40
        #allocation60 [shape = 'u8[4096]{0}', space=vmem, size = 0x1000, scoped, tag = 'scoped memory for tpu_custom_call.1']
        %4285 = vst [vmem:[#allocation60] sm:$0xff] %v4253
        %s4286 = scalar_lea.vmem [#allocation60], 2
        %v4287 = vld [vmem:[%s4286] sm:$0x3]
        %v4288 = vunpack.c.0.f8e4m3b11 %v4287
        %v4289 = vunpack.c.1.f8e4m3b11 %v4287
        %v4290 = vunpack.c.2.f8e4m3b11 %v4287
        %v4291 = vunpack.c.3.f8e4m3b11 %v4287
        %v4292 = vand.u32 2147483647, %v4288
        %vm4293 = vcmp.gt.f32.partialorder %v4292, 29.0
        %vm4294 = vcmp.ne.f32.partialorder %v4288, %v4288
        %v4295 = vmul.f32 %v4288, 16.0
        %v4296 = vsel %vm4294, -0.0, %v4295
        %v4297 = vsel %vm4293, nan, %v4296
        %v4298 = vand.u32 2147483647, %v4289
        %vm4299 = vcmp.gt.f32.partialorder %v4298, 29.0
        %vm4300 = vcmp.ne.f32.partialorder %v4289, %v4289
        %v4301 = vmul.f32 %v4289, 16.0
        %v4302 = vsel %vm4300, -0.0, %v4301
        %v4303 = vsel %vm4299, nan, %v4302
        %v4304 = vand.u32 2147483647, %v4290
        %vm4305 = vcmp.gt.f32.partialorder %v4304, 29.0
        %vm4306 = vcmp.ne.f32.partialorder %v4290, %v4290
        %v4307 = vmul.f32 %v4290, 16.0
        %v4308 = vsel %vm4306, -0.0, %v4307
        %v4309 = vsel %vm4305, nan, %v4308
        %v4310 = vand.u32 2147483647, %v4291
        %vm4311 = vcmp.gt.f32.partialorder %v4310, 29.0
        %vm4312 = vcmp.ne.f32.partialorder %v4291, %v4291
        %v4313 = vmul.f32 %v4291, 16.0
        %v4314 = vsel %vm4312, -0.0, %v4313
        %v4315 = vsel %vm4311, nan, %v4314
      $region92: #{tpu_custom_call.1} parent=40
        #allocation61 [shape = 'u8[4096]{0}', space=vmem, size = 0x1000, scoped, tag = 'scoped memory for tpu_custom_call.1']
        %4316 = vst [vmem:[#allocation61] sm:$0xff] %v4253
        %s4317 = scalar_lea.vmem [#allocation61], 4
        %v4318 = vld [vmem:[%s4317] sm:$0x3]
        %v4319 = vunpack.c.0.f8e4m3b11 %v4318
        %v4320 = vunpack.c.1.f8e4m3b11 %v4318
        %v4321 = vunpack.c.2.f8e4m3b11 %v4318
        %v4322 = vunpack.c.3.f8e4m3b11 %v4318
        %v4323 = vand.u32 2147483647, %v4319
        %vm4324 = vcmp.gt.f32.partialorder %v4323, 29.0
        %vm4325 = vcmp.ne.f32.partialorder %v4319, %v4319
        %v4326 = vmul.f32 %v4319, 16.0
        %v4327 = vsel %vm4325, -0.0, %v4326
        %v4328 = vsel %vm4324, nan, %v4327
        %v4329 = vand.u32 2147483647, %v4320
        %vm4330 = vcmp.gt.f32.partialorder %v4329, 29.0
        %vm4331 = vcmp.ne.f32.partialorder %v4320, %v4320
        %v4332 = vmul.f32 %v4320, 16.0
        %v4333 = vsel %vm4331, -0.0, %v4332
        %v4334 = vsel %vm4330, nan, %v4333
        %v4335 = vand.u32 2147483647, %v4321
        %vm4336 = vcmp.gt.f32.partialorder %v4335, 29.0
        %vm4337 = vcmp.ne.f32.partialorder %v4321, %v4321
        %v4338 = vmul.f32 %v4321, 16.0
        %v4339 = vsel %vm4337, -0.0, %v4338
        %v4340 = vsel %vm4336, nan, %v4339
        %v4341 = vand.u32 2147483647, %v4322
        %vm4342 = vcmp.gt.f32.partialorder %v4341, 29.0
        %vm4343 = vcmp.ne.f32.partialorder %v4322, %v4322
        %v4344 = vmul.f32 %v4322, 16.0
        %v4345 = vsel %vm4343, -0.0, %v4344
        %v4346 = vsel %vm4342, nan, %v4345
      $region93: #{tpu_custom_call.1} parent=40
        #allocation62 [shape = 'u8[4096]{0}', space=vmem, size = 0x1000, scoped, tag = 'scoped memory for tpu_custom_call.1']
        %4347 = vst [vmem:[#allocation62] sm:$0xff] %v4253
        %s4348 = scalar_lea.vmem [#allocation62], 6
        %v4349 = vld [vmem:[%s4348] sm:$0x3]
        %v4350 = vunpack.c.0.f8e4m3b11 %v4349
        %v4351 = vunpack.c.1.f8e4m3b11 %v4349
        %v4352 = vunpack.c.2.f8e4m3b11 %v4349
        %v4353 = vunpack.c.3.f8e4m3b11 %v4349
        %v4354 = vand.u32 2147483647, %v4350
        %vm4355 = vcmp.gt.f32.partialorder %v4354, 29.0
        %vm4356 = vcmp.ne.f32.partialorder %v4350, %v4350
        %v4357 = vmul.f32 %v4350, 16.0
        %v4358 = vsel %vm4356, -0.0, %v4357
        %v4359 = vsel %vm4355, nan, %v4358
        %v4360 = vand.u32 2147483647, %v4351
        %vm4361 = vcmp.gt.f32.partialorder %v4360, 29.0
        %vm4362 = vcmp.ne.f32.partialorder %v4351, %v4351
        %v4363 = vmul.f32 %v4351, 16.0
        %v4364 = vsel %vm4362, -0.0, %v4363
        %v4365 = vsel %vm4361, nan, %v4364
        %v4366 = vand.u32 2147483647, %v4352
        %vm4367 = vcmp.gt.f32.partialorder %v4366, 29.0
        %vm4368 = vcmp.ne.f32.partialorder %v4352, %v4352
        %v4369 = vmul.f32 %v4352, 16.0
        %v4370 = vsel %vm4368, -0.0, %v4369
        %v4371 = vsel %vm4367, nan, %v4370
        %v4372 = vand.u32 2147483647, %v4353
        %vm4373 = vcmp.gt.f32.partialorder %v4372, 29.0
        %vm4374 = vcmp.ne.f32.partialorder %v4353, %v4353
        %v4375 = vmul.f32 %v4353, 16.0
        %v4376 = vsel %vm4374, -0.0, %v4375
        %v4377 = vsel %vm4373, nan, %v4376
      $region94: #{tpu_custom_call.1} parent=40
        #allocation63 [shape = 'u8[4096]{0}', space=vmem, size = 0x1000, scoped, tag = 'scoped memory for tpu_custom_call.1']
        %4378 = vst [vmem:[#allocation63] sm:$0xff] %v4254
        %v4379 = vld [vmem:[#allocation63] sm:$0x3]
        %v4380 = vunpack.c.0.f8e4m3b11 %v4379
        %v4381 = vunpack.c.1.f8e4m3b11 %v4379
        %v4382 = vunpack.c.2.f8e4m3b11 %v4379
        %v4383 = vunpack.c.3.f8e4m3b11 %v4379
        %v4384 = vand.u32 2147483647, %v4380
        %vm4385 = vcmp.gt.f32.partialorder %v4384, 29.0
        %vm4386 = vcmp.ne.f32.partialorder %v4380, %v4380
        %v4387 = vmul.f32 %v4380, 16.0
        %v4388 = vsel %vm4386, -0.0, %v4387
        %v4389 = vsel %vm4385, nan, %v4388
        %v4390 = vand.u32 2147483647, %v4381
        %vm4391 = vcmp.gt.f32.partialorder %v4390, 29.0
        %vm4392 = vcmp.ne.f32.partialorder %v4381, %v4381
        %v4393 = vmul.f32 %v4381, 16.0
        %v4394 = vsel %vm4392, -0.0, %v4393
        %v4395 = vsel %vm4391, nan, %v4394
        %v4396 = vand.u32 2147483647, %v4382
        %vm4397 = vcmp.gt.f32.partialorder %v4396, 29.0
        %vm4398 = vcmp.ne.f32.partialorder %v4382, %v4382
        %v4399 = vmul.f32 %v4382, 16.0
        %v4400 = vsel %vm4398, -0.0, %v4399
        %v4401 = vsel %vm4397, nan, %v4400
        %v4402 = vand.u32 2147483647, %v4383
        %vm4403 = vcmp.gt.f32.partialorder %v4402, 29.0
        %vm4404 = vcmp.ne.f32.partialorder %v4383, %v4383
        %v4405 = vmul.f32 %v4383, 16.0
        %v4406 = vsel %vm4404, -0.0, %v4405
        %v4407 = vsel %vm4403, nan, %v4406
      $region95: #{tpu_custom_call.1} parent=40
        #allocation64 [shape = 'u8[4096]{0}', space=vmem, size = 0x1000, scoped, tag = 'scoped memory for tpu_custom_call.1']
        %4408 = vst [vmem:[#allocation64] sm:$0xff] %v4254
        %s4409 = scalar_lea.vmem [#allocation64], 2
        %v4410 = vld [vmem:[%s4409] sm:$0x3]
        %v4411 = vunpack.c.0.f8e4m3b11 %v4410
        %v4412 = vunpack.c.1.f8e4m3b11 %v4410
        %v4413 = vunpack.c.2.f8e4m3b11 %v4410
        %v4414 = vunpack.c.3.f8e4m3b11 %v4410
        %v4415 = vand.u32 2147483647, %v4411
        %vm4416 = vcmp.gt.f32.partialorder %v4415, 29.0
        %vm4417 = vcmp.ne.f32.partialorder %v4411, %v4411
        %v4418 = vmul.f32 %v4411, 16.0
        %v4419 = vsel %vm4417, -0.0, %v4418
        %v4420 = vsel %vm4416, nan, %v4419
        %v4421 = vand.u32 2147483647, %v4412
        %vm4422 = vcmp.gt.f32.partialorder %v4421, 29.0
        %vm4423 = vcmp.ne.f32.partialorder %v4412, %v4412
        %v4424 = vmul.f32 %v4412, 16.0
        %v4425 = vsel %vm4423, -0.0, %v4424
        %v4426 = vsel %vm4422, nan, %v4425
        %v4427 = vand.u32 2147483647, %v4413
        %vm4428 = vcmp.gt.f32.partialorder %v4427, 29.0
        %vm4429 = vcmp.ne.f32.partialorder %v4413, %v4413
        %v4430 = vmul.f32 %v4413, 16.0
        %v4431 = vsel %vm4429, -0.0, %v4430
        %v4432 = vsel %vm4428, nan, %v4431
        %v4433 = vand.u32 2147483647, %v4414
        %vm4434 = vcmp.gt.f32.partialorder %v4433, 29.0
        %vm4435 = vcmp.ne.f32.partialorder %v4414, %v4414
        %v4436 = vmul.f32 %v4414, 16.0
        %v4437 = vsel %vm4435, -0.0, %v4436
        %v4438 = vsel %vm4434, nan, %v4437
      $region96: #{tpu_custom_call.1} parent=40
        #allocation65 [shape = 'u8[4096]{0}', space=vmem, size = 0x1000, scoped, tag = 'scoped memory for tpu_custom_call.1']
        %4439 = vst [vmem:[#allocation65] sm:$0xff] %v4254
        %s4440 = scalar_lea.vmem [#allocation65], 4
        %v4441 = vld [vmem:[%s4440] sm:$0x3]
        %v4442 = vunpack.c.0.f8e4m3b11 %v4441
        %v4443 = vunpack.c.1.f8e4m3b11 %v4441
        %v4444 = vunpack.c.2.f8e4m3b11 %v4441
        %v4445 = vunpack.c.3.f8e4m3b11 %v4441
        %v4446 = vand.u32 2147483647, %v4442
        %vm4447 = vcmp.gt.f32.partialorder %v4446, 29.0
        %vm4448 = vcmp.ne.f32.partialorder %v4442, %v4442
        %v4449 = vmul.f32 %v4442, 16.0
        %v4450 = vsel %vm4448, -0.0, %v4449
        %v4451 = vsel %vm4447, nan, %v4450
        %v4452 = vand.u32 2147483647, %v4443
        %vm4453 = vcmp.gt.f32.partialorder %v4452, 29.0
        %vm4454 = vcmp.ne.f32.partialorder %v4443, %v4443
        %v4455 = vmul.f32 %v4443, 16.0
        %v4456 = vsel %vm4454, -0.0, %v4455
        %v4457 = vsel %vm4453, nan, %v4456
        %v4458 = vand.u32 2147483647, %v4444
        %vm4459 = vcmp.gt.f32.partialorder %v4458, 29.0
        %vm4460 = vcmp.ne.f32.partialorder %v4444, %v4444
        %v4461 = vmul.f32 %v4444, 16.0
        %v4462 = vsel %vm4460, -0.0, %v4461
        %v4463 = vsel %vm4459, nan, %v4462
        %v4464 = vand.u32 2147483647, %v4445
        %vm4465 = vcmp.gt.f32.partialorder %v4464, 29.0
        %vm4466 = vcmp.ne.f32.partialorder %v4445, %v4445
        %v4467 = vmul.f32 %v4445, 16.0
        %v4468 = vsel %vm4466, -0.0, %v4467
        %v4469 = vsel %vm4465, nan, %v4468
      $region97: #{tpu_custom_call.1} parent=40
        #allocation66 [shape = 'u8[4096]{0}', space=vmem, size = 0x1000, scoped, tag = 'scoped memory for tpu_custom_call.1']
        %4470 = vst [vmem:[#allocation66] sm:$0xff] %v4254
        %s4471 = scalar_lea.vmem [#allocation66], 6
        %v4472 = vld [vmem:[%s4471] sm:$0x3]
        %v4473 = vunpack.c.0.f8e4m3b11 %v4472
        %v4474 = vunpack.c.1.f8e4m3b11 %v4472
        %v4475 = vunpack.c.2.f8e4m3b11 %v4472
        %v4476 = vunpack.c.3.f8e4m3b11 %v4472
        %v4477 = vand.u32 2147483647, %v4473
        %vm4478 = vcmp.gt.f32.partialorder %v4477, 29.0
        %vm4479 = vcmp.ne.f32.partialorder %v4473, %v4473
        %v4480 = vmul.f32 %v4473, 16.0
        %v4481 = vsel %vm4479, -0.0, %v4480
        %v4482 = vsel %vm4478, nan, %v4481
        %v4483 = vand.u32 2147483647, %v4474
        %vm4484 = vcmp.gt.f32.partialorder %v4483, 29.0
        %vm4485 = vcmp.ne.f32.partialorder %v4474, %v4474
        %v4486 = vmul.f32 %v4474, 16.0
        %v4487 = vsel %vm4485, -0.0, %v4486
        %v4488 = vsel %vm4484, nan, %v4487
        %v4489 = vand.u32 2147483647, %v4475
        %vm4490 = vcmp.gt.f32.partialorder %v4489, 29.0
        %vm4491 = vcmp.ne.f32.partialorder %v4475, %v4475
        %v4492 = vmul.f32 %v4475, 16.0
        %v4493 = vsel %vm4491, -0.0, %v4492
        %v4494 = vsel %vm4490, nan, %v4493
        %v4495 = vand.u32 2147483647, %v4476
        %vm4496 = vcmp.gt.f32.partialorder %v4495, 29.0
        %vm4497 = vcmp.ne.f32.partialorder %v4476, %v4476
        %v4498 = vmul.f32 %v4476, 16.0
        %v4499 = vsel %vm4497, -0.0, %v4498
        %v4500 = vsel %vm4496, nan, %v4499
      %v4501 = vpack.c.bf16 %v4297, %v4266
      %v4502 = vpack.c.bf16 %v4359, %v4328
      %v4503 = vpack.c.bf16 %v4420, %v4389
      %v4504 = vpack.c.bf16 %v4482, %v4451
      %v4505 = vld [vmem:[#allocation3] sm:$0xff]
      %v4506 = vld [vmem:[#allocation3 + $0x8] sm:$0xff]
      %v4507 = vld [vmem:[#allocation3 + $0x10] sm:$0xff]
      %v4508 = vld [vmem:[#allocation3 + $0x18] sm:$0xff]
      %v4509 = vld [vmem:[#allocation3 + $0x20] sm:$0xff]
      %v4510 = vld [vmem:[#allocation3 + $0x28] sm:$0xff]
      %v4511 = vld [vmem:[#allocation3 + $0x30] sm:$0xff]
      %v4512 = vld [vmem:[#allocation3 + $0x38] sm:$0xff]
      %v4513 = vld [vmem:[#allocation3 + $0x40] sm:$0xff]
      %v4514 = vld [vmem:[#allocation3 + $0x48] sm:$0xff]
      %v4515 = vld [vmem:[#allocation3 + $0x50] sm:$0xff]
      %v4516 = vld [vmem:[#allocation3 + $0x58] sm:$0xff]
      %v4517 = vld [vmem:[#allocation3 + $0x60] sm:$0xff]
      %v4518 = vld [vmem:[#allocation3 + $0x68] sm:$0xff]
      %v4519 = vld [vmem:[#allocation3 + $0x70] sm:$0xff]
      %v4520 = vld [vmem:[#allocation3 + $0x78] sm:$0xff]
      %v4537 = vunpack.c.l.b16 %v4221
      %v4538 = vunpack.c.h.b16 %v4221
      %v4539 = vunpack.c.l.b16 %v4222
      %v4540 = vunpack.c.h.b16 %v4222
      %v4541 = vunpack.c.l.b16 %v4223
      %v4542 = vunpack.c.h.b16 %v4223
      %v4543 = vunpack.c.l.b16 %v4224
      %v4544 = vunpack.c.h.b16 %v4224
      %v4545 = vunpack.c.l.b16 %v4225
      %v4546 = vunpack.c.h.b16 %v4225
      %v4547 = vunpack.c.l.b16 %v4226
      %v4548 = vunpack.c.h.b16 %v4226
      %v4549 = vunpack.c.l.b16 %v4227
      %v4550 = vunpack.c.h.b16 %v4227
      %v4551 = vunpack.c.l.b16 %v4228
      %v4552 = vunpack.c.h.b16 %v4228
      %v4553 = vunpack.c.l.b16 %v4229
      %v4554 = vunpack.c.h.b16 %v4229
      %v4555 = vunpack.c.l.b16 %v4230
      %v4556 = vunpack.c.h.b16 %v4230
      %v4557 = vunpack.c.l.b16 %v4231
      %v4558 = vunpack.c.h.b16 %v4231
      %v4559 = vunpack.c.l.b16 %v4232
      %v4560 = vunpack.c.h.b16 %v4232
      %v4561 = vunpack.c.l.b16 %v4233
      %v4562 = vunpack.c.h.b16 %v4233
      %v4563 = vunpack.c.l.b16 %v4234
      %v4564 = vunpack.c.h.b16 %v4234
      %v4565 = vunpack.c.l.b16 %v4235
      %v4566 = vunpack.c.h.b16 %v4235
      %v4567 = vunpack.c.l.b16 %v4236
      %v4568 = vunpack.c.h.b16 %v4236
      %v4569 = vpack.c.b16 %v4539, %v4537
      %v4570 = vpack.c.b16 %v4540, %v4538
      %v4571 = vpack.c.b16 %v4543, %v4541
      %v4572 = vpack.c.b16 %v4544, %v4542
      %v4573 = vpack.c.b16 %v4547, %v4545
      %v4574 = vpack.c.b16 %v4548, %v4546
      %v4575 = vpack.c.b16 %v4551, %v4549
      %v4576 = vpack.c.b16 %v4552, %v4550
      %v4577 = vpack.c.b16 %v4555, %v4553
      %v4578 = vpack.c.b16 %v4556, %v4554
      %v4579 = vpack.c.b16 %v4559, %v4557
      %v4580 = vpack.c.b16 %v4560, %v4558
      %v4581 = vpack.c.b16 %v4563, %v4561
      %v4582 = vpack.c.b16 %v4564, %v4562
      %v4583 = vpack.c.b16 %v4567, %v4565
      %v4584 = vpack.c.b16 %v4568, %v4566
      %4601 = vmatpush.bf16.msra.mxu0 %v4583
      %4602 = vmatpush.bf16.msra.mxu0 %v4581
      %4603 = vmatpush.bf16.msra.mxu0 %v4579
      %4604 = vmatpush.bf16.msra.mxu0 %v4577
      %4605 = vmatpush.bf16.msra.mxu0 %v4575
      %4606 = vmatpush.bf16.msra.mxu0 %v4573
      %4607 = vmatpush.bf16.msra.mxu0 %v4571
      %4608 = vmatpush.bf16.msra.mxu0 %v4569
      %4609 = vmatmul.bf16.gmra.mxu0 %v4501
      %v4610 = vpop.f32.mrf.mxu0
      %v4611 = vadd.f32 0.0, %v4610
      %v4612 = vpop.f32.mrf.mxu0
      %v4613 = vadd.f32 0.0, %v4612
      %4614 = vmatmul.bf16.gmra.mxu0 %v4502
      %v4615 = vpop.f32.mrf.mxu0
      %v4616 = vadd.f32 0.0, %v4615
      %v4617 = vpop.f32.mrf.mxu0
      %v4618 = vadd.f32 0.0, %v4617
      %4619 = vmatmul.bf16.gmra.mxu0 %v4503
      %v4620 = vpop.f32.mrf.mxu0
      %v4621 = vadd.f32 0.0, %v4620
      %v4622 = vpop.f32.mrf.mxu0
      %v4623 = vadd.f32 0.0, %v4622
      %4624 = vmatmul.bf16.gmra.mxu0 %v4504
      %v4625 = vpop.f32.mrf.mxu0
      %v4626 = vadd.f32 0.0, %v4625
      %v4627 = vpop.f32.mrf.mxu0
      %v4628 = vadd.f32 0.0, %v4627
      %4629 = vdwg.mxu0
      %4630 = vmatpush.bf16.msra.mxu0 %v4584
      %4631 = vmatpush.bf16.msra.mxu0 %v4582
      %4632 = vmatpush.bf16.msra.mxu0 %v4580
      %4633 = vmatpush.bf16.msra.mxu0 %v4578
      %4634 = vmatpush.bf16.msra.mxu0 %v4576
      %4635 = vmatpush.bf16.msra.mxu0 %v4574
      %4636 = vmatpush.bf16.msra.mxu0 %v4572
      %4637 = vmatpush.bf16.msra.mxu0 %v4570
      %4638 = vmatmul.bf16.gmra.mxu0 %v4501
      %v4639 = vpop.f32.mrf.mxu0
      %v4640 = vadd.f32 0.0, %v4639
      %v4641 = vpop.f32.mrf.mxu0
      %v4642 = vadd.f32 0.0, %v4641
      %4643 = vmatmul.bf16.gmra.mxu0 %v4502
      %v4644 = vpop.f32.mrf.mxu0
      %v4645 = vadd.f32 0.0, %v4644
      %v4646 = vpop.f32.mrf.mxu0
      %v4647 = vadd.f32 0.0, %v4646
      %4648 = vmatmul.bf16.gmra.mxu0 %v4503
      %v4649 = vpop.f32.mrf.mxu0
      %v4650 = vadd.f32 0.0, %v4649
      %v4651 = vpop.f32.mrf.mxu0
      %v4652 = vadd.f32 0.0, %v4651
      %4653 = vmatmul.bf16.gmra.mxu0 %v4504
      %v4654 = vpop.f32.mrf.mxu0
      %v4655 = vadd.f32 0.0, %v4654
      %v4656 = vpop.f32.mrf.mxu0
      %v4657 = vadd.f32 0.0, %v4656
      %4658 = vdwg.mxu0
      %v4659 = vadd.f32 %v4505, %v4611
      %v4660 = vadd.f32 %v4506, %v4640
      %v4661 = vadd.f32 %v4507, %v4613
      %v4662 = vadd.f32 %v4508, %v4642
      %v4663 = vadd.f32 %v4509, %v4616
      %v4664 = vadd.f32 %v4510, %v4645
      %v4665 = vadd.f32 %v4511, %v4618
      %v4666 = vadd.f32 %v4512, %v4647
      %v4667 = vadd.f32 %v4513, %v4621
      %v4668 = vadd.f32 %v4514, %v4650
      %v4669 = vadd.f32 %v4515, %v4623
      %v4670 = vadd.f32 %v4516, %v4652
      %v4671 = vadd.f32 %v4517, %v4626
      %v4672 = vadd.f32 %v4518, %v4655
      %v4673 = vadd.f32 %v4519, %v4628
      %v4674 = vadd.f32 %v4520, %v4657
      %4675 = vst [vmem:[#allocation3] sm:$0xff] %v4659
      %4676 = vst [vmem:[#allocation3 + $0x8] sm:$0xff] %v4660
      %4677 = vst [vmem:[#allocation3 + $0x10] sm:$0xff] %v4661
      %4678 = vst [vmem:[#allocation3 + $0x18] sm:$0xff] %v4662
      %4679 = vst [vmem:[#allocation3 + $0x20] sm:$0xff] %v4663
      %4680 = vst [vmem:[#allocation3 + $0x28] sm:$0xff] %v4664
      %4681 = vst [vmem:[#allocation3 + $0x30] sm:$0xff] %v4665
      %4682 = vst [vmem:[#allocation3 + $0x38] sm:$0xff] %v4666
      %4683 = vst [vmem:[#allocation3 + $0x40] sm:$0xff] %v4667
      %4684 = vst [vmem:[#allocation3 + $0x48] sm:$0xff] %v4668
      %4685 = vst [vmem:[#allocation3 + $0x50] sm:$0xff] %v4669
      %4686 = vst [vmem:[#allocation3 + $0x58] sm:$0xff] %v4670
      %4687 = vst [vmem:[#allocation3 + $0x60] sm:$0xff] %v4671
      %4688 = vst [vmem:[#allocation3 + $0x68] sm:$0xff] %v4672
      %4689 = vst [vmem:[#allocation3 + $0x70] sm:$0xff] %v4673
      %4690 = vst [vmem:[#allocation3 + $0x78] sm:$0xff] %v4674
      %v4691 = vshra.s32 %v75, 28
      %v4692 = vshra.s32 %v76, 28
      %v4693 = vshra.s32 %v77, 28
      %v4694 = vshra.s32 %v78, 28
      %v4695 = vshra.s32 %v79, 28
      %v4696 = vshra.s32 %v80, 28
      %v4697 = vshra.s32 %v81, 28
      %v4698 = vshra.s32 %v82, 28
      %v4699 = vshra.s32 %v83, 28
      %v4700 = vshra.s32 %v84, 28
      %v4701 = vshra.s32 %v85, 28
      %v4702 = vshra.s32 %v86, 28
      %v4703 = vshra.s32 %v87, 28
      %v4704 = vshra.s32 %v88, 28
      %v4705 = vshra.s32 %v89, 28
      %v4706 = vshra.s32 %v90, 28
      %v4707 = vshra.s32 %v91, 28
      %v4708 = vshra.s32 %v92, 28
      %v4709 = vshra.s32 %v93, 28
      %v4710 = vshra.s32 %v94, 28
      %v4711 = vshra.s32 %v95, 28
      %v4712 = vshra.s32 %v96, 28
      %v4713 = vshra.s32 %v97, 28
      %v4714 = vshra.s32 %v98, 28
      %v4715 = vshra.s32 %v99, 28
      %v4716 = vshra.s32 %v100, 28
      %v4717 = vshra.s32 %v101, 28
      %v4718 = vshra.s32 %v102, 28
      %v4719 = vshra.s32 %v103, 28
      %v4720 = vshra.s32 %v104, 28
      %v4721 = vshra.s32 %v105, 28
      %v4722 = vshra.s32 %v106, 28
      %v4723 = vcvt.s32.f32 %v4691
      %v4724 = vcvt.s32.f32 %v4692
      %v4725 = vcvt.s32.f32 %v4693
      %v4726 = vcvt.s32.f32 %v4694
      %v4727 = vcvt.s32.f32 %v4695
      %v4728 = vcvt.s32.f32 %v4696
      %v4729 = vcvt.s32.f32 %v4697
      %v4730 = vcvt.s32.f32 %v4698
      %v4731 = vcvt.s32.f32 %v4699
      %v4732 = vcvt.s32.f32 %v4700
      %v4733 = vcvt.s32.f32 %v4701
      %v4734 = vcvt.s32.f32 %v4702
      %v4735 = vcvt.s32.f32 %v4703
      %v4736 = vcvt.s32.f32 %v4704
      %v4737 = vcvt.s32.f32 %v4705
      %v4738 = vcvt.s32.f32 %v4706
      %v4739 = vcvt.s32.f32 %v4707
      %v4740 = vcvt.s32.f32 %v4708
      %v4741 = vcvt.s32.f32 %v4709
      %v4742 = vcvt.s32.f32 %v4710
      %v4743 = vcvt.s32.f32 %v4711
      %v4744 = vcvt.s32.f32 %v4712
      %v4745 = vcvt.s32.f32 %v4713
      %v4746 = vcvt.s32.f32 %v4714
      %v4747 = vcvt.s32.f32 %v4715
      %v4748 = vcvt.s32.f32 %v4716
      %v4749 = vcvt.s32.f32 %v4717
      %v4750 = vcvt.s32.f32 %v4718
      %v4751 = vcvt.s32.f32 %v4719
      %v4752 = vcvt.s32.f32 %v4720
      %v4753 = vcvt.s32.f32 %v4721
      %v4754 = vcvt.s32.f32 %v4722
      %v4755 = vpack.c.bf16 %v4724, %v4723
      %v4756 = vpack.c.bf16 %v4726, %v4725
      %v4757 = vpack.c.bf16 %v4728, %v4727
      %v4758 = vpack.c.bf16 %v4730, %v4729
      %v4759 = vpack.c.bf16 %v4732, %v4731
      %v4760 = vpack.c.bf16 %v4734, %v4733
      %v4761 = vpack.c.bf16 %v4736, %v4735
      %v4762 = vpack.c.bf16 %v4738, %v4737
      %v4763 = vpack.c.bf16 %v4740, %v4739
      %v4764 = vpack.c.bf16 %v4742, %v4741
      %v4765 = vpack.c.bf16 %v4744, %v4743
      %v4766 = vpack.c.bf16 %v4746, %v4745
      %v4767 = vpack.c.bf16 %v4748, %v4747
      %v4768 = vpack.c.bf16 %v4750, %v4749
      %v4769 = vpack.c.bf16 %v4752, %v4751
      %v4770 = vpack.c.bf16 %v4754, %v4753
      %v4771 = vperm.slane %v898, 3
      %v4772 = vperm.slane %v902, 3
      %v4773 = vunpack.c.l.bf16 %v4755
      %v4774 = vunpack.c.h.bf16 %v4755
      %v4775 = vunpack.c.l.bf16 %v4756
      %v4776 = vunpack.c.h.bf16 %v4756
      %v4777 = vunpack.c.l.bf16 %v4757
      %v4778 = vunpack.c.h.bf16 %v4757
      %v4779 = vunpack.c.l.bf16 %v4758
      %v4780 = vunpack.c.h.bf16 %v4758
      %v4781 = vunpack.c.l.bf16 %v4759
      %v4782 = vunpack.c.h.bf16 %v4759
      %v4783 = vunpack.c.l.bf16 %v4760
      %v4784 = vunpack.c.h.bf16 %v4760
      %v4785 = vunpack.c.l.bf16 %v4761
      %v4786 = vunpack.c.h.bf16 %v4761
      %v4787 = vunpack.c.l.bf16 %v4762
      %v4788 = vunpack.c.h.bf16 %v4762
      %v4789 = vunpack.c.l.bf16 %v4763
      %v4790 = vunpack.c.h.bf16 %v4763
      %v4791 = vunpack.c.l.bf16 %v4764
      %v4792 = vunpack.c.h.bf16 %v4764
      %v4793 = vunpack.c.l.bf16 %v4765
      %v4794 = vunpack.c.h.bf16 %v4765
      %v4795 = vunpack.c.l.bf16 %v4766
      %v4796 = vunpack.c.h.bf16 %v4766
      %v4797 = vunpack.c.l.bf16 %v4767
      %v4798 = vunpack.c.h.bf16 %v4767
      %v4799 = vunpack.c.l.bf16 %v4768
      %v4800 = vunpack.c.h.bf16 %v4768
      %v4801 = vunpack.c.l.bf16 %v4769
      %v4802 = vunpack.c.h.bf16 %v4769
      %v4803 = vunpack.c.l.bf16 %v4770
      %v4804 = vunpack.c.h.bf16 %v4770
      %v4805 = vunpack.c.l.bf16 %v4771
      %v4806 = vunpack.c.l.bf16 %v4772
      %v4807 = vmul.f32 %v4773, %v4805
      %v4808 = vmul.f32 %v4774, %v4806
      %v4809 = vmul.f32 %v4775, %v4805
      %v4810 = vmul.f32 %v4776, %v4806
      %v4811 = vmul.f32 %v4777, %v4805
      %v4812 = vmul.f32 %v4778, %v4806
      %v4813 = vmul.f32 %v4779, %v4805
      %v4814 = vmul.f32 %v4780, %v4806
      %v4815 = vmul.f32 %v4781, %v4805
      %v4816 = vmul.f32 %v4782, %v4806
      %v4817 = vmul.f32 %v4783, %v4805
      %v4818 = vmul.f32 %v4784, %v4806
      %v4819 = vmul.f32 %v4785, %v4805
      %v4820 = vmul.f32 %v4786, %v4806
      %v4821 = vmul.f32 %v4787, %v4805
      %v4822 = vmul.f32 %v4788, %v4806
      %v4823 = vmul.f32 %v4789, %v4805
      %v4824 = vmul.f32 %v4790, %v4806
      %v4825 = vmul.f32 %v4791, %v4805
      %v4826 = vmul.f32 %v4792, %v4806
      %v4827 = vmul.f32 %v4793, %v4805
      %v4828 = vmul.f32 %v4794, %v4806
      %v4829 = vmul.f32 %v4795, %v4805
      %v4830 = vmul.f32 %v4796, %v4806
      %v4831 = vmul.f32 %v4797, %v4805
      %v4832 = vmul.f32 %v4798, %v4806
      %v4833 = vmul.f32 %v4799, %v4805
      %v4834 = vmul.f32 %v4800, %v4806
      %v4835 = vmul.f32 %v4801, %v4805
      %v4836 = vmul.f32 %v4802, %v4806
      %v4837 = vmul.f32 %v4803, %v4805
      %v4838 = vmul.f32 %v4804, %v4806
      %v4839 = vpack.c.bf16 %v4808, %v4807
      %v4840 = vpack.c.bf16 %v4810, %v4809
      %v4841 = vpack.c.bf16 %v4812, %v4811
      %v4842 = vpack.c.bf16 %v4814, %v4813
      %v4843 = vpack.c.bf16 %v4816, %v4815
      %v4844 = vpack.c.bf16 %v4818, %v4817
      %v4845 = vpack.c.bf16 %v4820, %v4819
      %v4846 = vpack.c.bf16 %v4822, %v4821
      %v4847 = vpack.c.bf16 %v4824, %v4823
      %v4848 = vpack.c.bf16 %v4826, %v4825
      %v4849 = vpack.c.bf16 %v4828, %v4827
      %v4850 = vpack.c.bf16 %v4830, %v4829
      %v4851 = vpack.c.bf16 %v4832, %v4831
      %v4852 = vpack.c.bf16 %v4834, %v4833
      %v4853 = vpack.c.bf16 %v4836, %v4835
      %v4854 = vpack.c.bf16 %v4838, %v4837
      %4855 = vst [vmem:[#allocation2 + $0x380] sm:$0xff] %v4839
      %4856 = vst [vmem:[#allocation2 + $0x388] sm:$0xff] %v4840
      %4857 = vst [vmem:[#allocation2 + $0x390] sm:$0xff] %v4841
      %4858 = vst [vmem:[#allocation2 + $0x398] sm:$0xff] %v4842
      %4859 = vst [vmem:[#allocation2 + $0x3a0] sm:$0xff] %v4843
      %4860 = vst [vmem:[#allocation2 + $0x3a8] sm:$0xff] %v4844
      %4861 = vst [vmem:[#allocation2 + $0x3b0] sm:$0xff] %v4845
      %4862 = vst [vmem:[#allocation2 + $0x3b8] sm:$0xff] %v4846
      %4863 = vst [vmem:[#allocation2 + $0x3c0] sm:$0xff] %v4847
      %4864 = vst [vmem:[#allocation2 + $0x3c8] sm:$0xff] %v4848
      %4865 = vst [vmem:[#allocation2 + $0x3d0] sm:$0xff] %v4849
      %4866 = vst [vmem:[#allocation2 + $0x3d8] sm:$0xff] %v4850
      %4867 = vst [vmem:[#allocation2 + $0x3e0] sm:$0xff] %v4851
      %4868 = vst [vmem:[#allocation2 + $0x3e8] sm:$0xff] %v4852
      %4869 = vst [vmem:[#allocation2 + $0x3f0] sm:$0xff] %v4853
      %4870 = vst [vmem:[#allocation2 + $0x3f8] sm:$0xff] %v4854
      %v4871 = vld [vmem:[#allocation4 + $0x38] sm:$0xff]
      %v4872 = vld [vmem:[#allocation4 + $0x78] sm:$0xff]
      $region98: #{tpu_custom_call.1} parent=40
        #allocation67 [shape = 'u8[4096]{0}', space=vmem, size = 0x1000, scoped, tag = 'scoped memory for tpu_custom_call.1']
        %4873 = vst [vmem:[#allocation67] sm:$0xff] %v4871
        %v4874 = vld [vmem:[#allocation67] sm:$0x3]
        %v4875 = vunpack.c.0.f8e4m3b11 %v4874
        %v4876 = vunpack.c.1.f8e4m3b11 %v4874
        %v4877 = vunpack.c.2.f8e4m3b11 %v4874
        %v4878 = vunpack.c.3.f8e4m3b11 %v4874
        %v4879 = vand.u32 2147483647, %v4875
        %vm4880 = vcmp.gt.f32.partialorder %v4879, 29.0
        %vm4881 = vcmp.ne.f32.partialorder %v4875, %v4875
        %v4882 = vmul.f32 %v4875, 16.0
        %v4883 = vsel %vm4881, -0.0, %v4882
        %v4884 = vsel %vm4880, nan, %v4883
        %v4885 = vand.u32 2147483647, %v4876
        %vm4886 = vcmp.gt.f32.partialorder %v4885, 29.0
        %vm4887 = vcmp.ne.f32.partialorder %v4876, %v4876
        %v4888 = vmul.f32 %v4876, 16.0
        %v4889 = vsel %vm4887, -0.0, %v4888
        %v4890 = vsel %vm4886, nan, %v4889
        %v4891 = vand.u32 2147483647, %v4877
        %vm4892 = vcmp.gt.f32.partialorder %v4891, 29.0
        %vm4893 = vcmp.ne.f32.partialorder %v4877, %v4877
        %v4894 = vmul.f32 %v4877, 16.0
        %v4895 = vsel %vm4893, -0.0, %v4894
        %v4896 = vsel %vm4892, nan, %v4895
        %v4897 = vand.u32 2147483647, %v4878
        %vm4898 = vcmp.gt.f32.partialorder %v4897, 29.0
        %vm4899 = vcmp.ne.f32.partialorder %v4878, %v4878
        %v4900 = vmul.f32 %v4878, 16.0
        %v4901 = vsel %vm4899, -0.0, %v4900
        %v4902 = vsel %vm4898, nan, %v4901
      $region99: #{tpu_custom_call.1} parent=40
        #allocation68 [shape = 'u8[4096]{0}', space=vmem, size = 0x1000, scoped, tag = 'scoped memory for tpu_custom_call.1']
        %4903 = vst [vmem:[#allocation68] sm:$0xff] %v4871
        %s4904 = scalar_lea.vmem [#allocation68], 2
        %v4905 = vld [vmem:[%s4904] sm:$0x3]
        %v4906 = vunpack.c.0.f8e4m3b11 %v4905
        %v4907 = vunpack.c.1.f8e4m3b11 %v4905
        %v4908 = vunpack.c.2.f8e4m3b11 %v4905
        %v4909 = vunpack.c.3.f8e4m3b11 %v4905
        %v4910 = vand.u32 2147483647, %v4906
        %vm4911 = vcmp.gt.f32.partialorder %v4910, 29.0
        %vm4912 = vcmp.ne.f32.partialorder %v4906, %v4906
        %v4913 = vmul.f32 %v4906, 16.0
        %v4914 = vsel %vm4912, -0.0, %v4913
        %v4915 = vsel %vm4911, nan, %v4914
        %v4916 = vand.u32 2147483647, %v4907
        %vm4917 = vcmp.gt.f32.partialorder %v4916, 29.0
        %vm4918 = vcmp.ne.f32.partialorder %v4907, %v4907
        %v4919 = vmul.f32 %v4907, 16.0
        %v4920 = vsel %vm4918, -0.0, %v4919
        %v4921 = vsel %vm4917, nan, %v4920
        %v4922 = vand.u32 2147483647, %v4908
        %vm4923 = vcmp.gt.f32.partialorder %v4922, 29.0
        %vm4924 = vcmp.ne.f32.partialorder %v4908, %v4908
        %v4925 = vmul.f32 %v4908, 16.0
        %v4926 = vsel %vm4924, -0.0, %v4925
        %v4927 = vsel %vm4923, nan, %v4926
        %v4928 = vand.u32 2147483647, %v4909
        %vm4929 = vcmp.gt.f32.partialorder %v4928, 29.0
        %vm4930 = vcmp.ne.f32.partialorder %v4909, %v4909
        %v4931 = vmul.f32 %v4909, 16.0
        %v4932 = vsel %vm4930, -0.0, %v4931
        %v4933 = vsel %vm4929, nan, %v4932
      $region100: #{tpu_custom_call.1} parent=40
        #allocation69 [shape = 'u8[4096]{0}', space=vmem, size = 0x1000, scoped, tag = 'scoped memory for tpu_custom_call.1']
        %4934 = vst [vmem:[#allocation69] sm:$0xff] %v4871
        %s4935 = scalar_lea.vmem [#allocation69], 4
        %v4936 = vld [vmem:[%s4935] sm:$0x3]
        %v4937 = vunpack.c.0.f8e4m3b11 %v4936
        %v4938 = vunpack.c.1.f8e4m3b11 %v4936
        %v4939 = vunpack.c.2.f8e4m3b11 %v4936
        %v4940 = vunpack.c.3.f8e4m3b11 %v4936
        %v4941 = vand.u32 2147483647, %v4937
        %vm4942 = vcmp.gt.f32.partialorder %v4941, 29.0
        %vm4943 = vcmp.ne.f32.partialorder %v4937, %v4937
        %v4944 = vmul.f32 %v4937, 16.0
        %v4945 = vsel %vm4943, -0.0, %v4944
        %v4946 = vsel %vm4942, nan, %v4945
        %v4947 = vand.u32 2147483647, %v4938
        %vm4948 = vcmp.gt.f32.partialorder %v4947, 29.0
        %vm4949 = vcmp.ne.f32.partialorder %v4938, %v4938
        %v4950 = vmul.f32 %v4938, 16.0
        %v4951 = vsel %vm4949, -0.0, %v4950
        %v4952 = vsel %vm4948, nan, %v4951
        %v4953 = vand.u32 2147483647, %v4939
        %vm4954 = vcmp.gt.f32.partialorder %v4953, 29.0
        %vm4955 = vcmp.ne.f32.partialorder %v4939, %v4939
        %v4956 = vmul.f32 %v4939, 16.0
        %v4957 = vsel %vm4955, -0.0, %v4956
        %v4958 = vsel %vm4954, nan, %v4957
        %v4959 = vand.u32 2147483647, %v4940
        %vm4960 = vcmp.gt.f32.partialorder %v4959, 29.0
        %vm4961 = vcmp.ne.f32.partialorder %v4940, %v4940
        %v4962 = vmul.f32 %v4940, 16.0
        %v4963 = vsel %vm4961, -0.0, %v4962
        %v4964 = vsel %vm4960, nan, %v4963
      $region101: #{tpu_custom_call.1} parent=40
        #allocation70 [shape = 'u8[4096]{0}', space=vmem, size = 0x1000, scoped, tag = 'scoped memory for tpu_custom_call.1']
        %4965 = vst [vmem:[#allocation70] sm:$0xff] %v4871
        %s4966 = scalar_lea.vmem [#allocation70], 6
        %v4967 = vld [vmem:[%s4966] sm:$0x3]
        %v4968 = vunpack.c.0.f8e4m3b11 %v4967
        %v4969 = vunpack.c.1.f8e4m3b11 %v4967
        %v4970 = vunpack.c.2.f8e4m3b11 %v4967
        %v4971 = vunpack.c.3.f8e4m3b11 %v4967
        %v4972 = vand.u32 2147483647, %v4968
        %vm4973 = vcmp.gt.f32.partialorder %v4972, 29.0
        %vm4974 = vcmp.ne.f32.partialorder %v4968, %v4968
        %v4975 = vmul.f32 %v4968, 16.0
        %v4976 = vsel %vm4974, -0.0, %v4975
        %v4977 = vsel %vm4973, nan, %v4976
        %v4978 = vand.u32 2147483647, %v4969
        %vm4979 = vcmp.gt.f32.partialorder %v4978, 29.0
        %vm4980 = vcmp.ne.f32.partialorder %v4969, %v4969
        %v4981 = vmul.f32 %v4969, 16.0
        %v4982 = vsel %vm4980, -0.0, %v4981
        %v4983 = vsel %vm4979, nan, %v4982
        %v4984 = vand.u32 2147483647, %v4970
        %vm4985 = vcmp.gt.f32.partialorder %v4984, 29.0
        %vm4986 = vcmp.ne.f32.partialorder %v4970, %v4970
        %v4987 = vmul.f32 %v4970, 16.0
        %v4988 = vsel %vm4986, -0.0, %v4987
        %v4989 = vsel %vm4985, nan, %v4988
        %v4990 = vand.u32 2147483647, %v4971
        %vm4991 = vcmp.gt.f32.partialorder %v4990, 29.0
        %vm4992 = vcmp.ne.f32.partialorder %v4971, %v4971
        %v4993 = vmul.f32 %v4971, 16.0
        %v4994 = vsel %vm4992, -0.0, %v4993
        %v4995 = vsel %vm4991, nan, %v4994
      $region102: #{tpu_custom_call.1} parent=40
        #allocation71 [shape = 'u8[4096]{0}', space=vmem, size = 0x1000, scoped, tag = 'scoped memory for tpu_custom_call.1']
        %4996 = vst [vmem:[#allocation71] sm:$0xff] %v4872
        %v4997 = vld [vmem:[#allocation71] sm:$0x3]
        %v4998 = vunpack.c.0.f8e4m3b11 %v4997
        %v4999 = vunpack.c.1.f8e4m3b11 %v4997
        %v5000 = vunpack.c.2.f8e4m3b11 %v4997
        %v5001 = vunpack.c.3.f8e4m3b11 %v4997
        %v5002 = vand.u32 2147483647, %v4998
        %vm5003 = vcmp.gt.f32.partialorder %v5002, 29.0
        %vm5004 = vcmp.ne.f32.partialorder %v4998, %v4998
        %v5005 = vmul.f32 %v4998, 16.0
        %v5006 = vsel %vm5004, -0.0, %v5005
        %v5007 = vsel %vm5003, nan, %v5006
        %v5008 = vand.u32 2147483647, %v4999
        %vm5009 = vcmp.gt.f32.partialorder %v5008, 29.0
        %vm5010 = vcmp.ne.f32.partialorder %v4999, %v4999
        %v5011 = vmul.f32 %v4999, 16.0
        %v5012 = vsel %vm5010, -0.0, %v5011
        %v5013 = vsel %vm5009, nan, %v5012
        %v5014 = vand.u32 2147483647, %v5000
        %vm5015 = vcmp.gt.f32.partialorder %v5014, 29.0
        %vm5016 = vcmp.ne.f32.partialorder %v5000, %v5000
        %v5017 = vmul.f32 %v5000, 16.0
        %v5018 = vsel %vm5016, -0.0, %v5017
        %v5019 = vsel %vm5015, nan, %v5018
        %v5020 = vand.u32 2147483647, %v5001
        %vm5021 = vcmp.gt.f32.partialorder %v5020, 29.0
        %vm5022 = vcmp.ne.f32.partialorder %v5001, %v5001
        %v5023 = vmul.f32 %v5001, 16.0
        %v5024 = vsel %vm5022, -0.0, %v5023
        %v5025 = vsel %vm5021, nan, %v5024
      $region103: #{tpu_custom_call.1} parent=40
        #allocation72 [shape = 'u8[4096]{0}', space=vmem, size = 0x1000, scoped, tag = 'scoped memory for tpu_custom_call.1']
        %5026 = vst [vmem:[#allocation72] sm:$0xff] %v4872
        %s5027 = scalar_lea.vmem [#allocation72], 2
        %v5028 = vld [vmem:[%s5027] sm:$0x3]
        %v5029 = vunpack.c.0.f8e4m3b11 %v5028
        %v5030 = vunpack.c.1.f8e4m3b11 %v5028
        %v5031 = vunpack.c.2.f8e4m3b11 %v5028
        %v5032 = vunpack.c.3.f8e4m3b11 %v5028
        %v5033 = vand.u32 2147483647, %v5029
        %vm5034 = vcmp.gt.f32.partialorder %v5033, 29.0
        %vm5035 = vcmp.ne.f32.partialorder %v5029, %v5029
        %v5036 = vmul.f32 %v5029, 16.0
        %v5037 = vsel %vm5035, -0.0, %v5036
        %v5038 = vsel %vm5034, nan, %v5037
        %v5039 = vand.u32 2147483647, %v5030
        %vm5040 = vcmp.gt.f32.partialorder %v5039, 29.0
        %vm5041 = vcmp.ne.f32.partialorder %v5030, %v5030
        %v5042 = vmul.f32 %v5030, 16.0
        %v5043 = vsel %vm5041, -0.0, %v5042
        %v5044 = vsel %vm5040, nan, %v5043
        %v5045 = vand.u32 2147483647, %v5031
        %vm5046 = vcmp.gt.f32.partialorder %v5045, 29.0
        %vm5047 = vcmp.ne.f32.partialorder %v5031, %v5031
        %v5048 = vmul.f32 %v5031, 16.0
        %v5049 = vsel %vm5047, -0.0, %v5048
        %v5050 = vsel %vm5046, nan, %v5049
        %v5051 = vand.u32 2147483647, %v5032
        %vm5052 = vcmp.gt.f32.partialorder %v5051, 29.0
        %vm5053 = vcmp.ne.f32.partialorder %v5032, %v5032
        %v5054 = vmul.f32 %v5032, 16.0
        %v5055 = vsel %vm5053, -0.0, %v5054
        %v5056 = vsel %vm5052, nan, %v5055
      $region104: #{tpu_custom_call.1} parent=40
        #allocation73 [shape = 'u8[4096]{0}', space=vmem, size = 0x1000, scoped, tag = 'scoped memory for tpu_custom_call.1']
        %5057 = vst [vmem:[#allocation73] sm:$0xff] %v4872
        %s5058 = scalar_lea.vmem [#allocation73], 4
        %v5059 = vld [vmem:[%s5058] sm:$0x3]
        %v5060 = vunpack.c.0.f8e4m3b11 %v5059
        %v5061 = vunpack.c.1.f8e4m3b11 %v5059
        %v5062 = vunpack.c.2.f8e4m3b11 %v5059
        %v5063 = vunpack.c.3.f8e4m3b11 %v5059
        %v5064 = vand.u32 2147483647, %v5060
        %vm5065 = vcmp.gt.f32.partialorder %v5064, 29.0
        %vm5066 = vcmp.ne.f32.partialorder %v5060, %v5060
        %v5067 = vmul.f32 %v5060, 16.0
        %v5068 = vsel %vm5066, -0.0, %v5067
        %v5069 = vsel %vm5065, nan, %v5068
        %v5070 = vand.u32 2147483647, %v5061
        %vm5071 = vcmp.gt.f32.partialorder %v5070, 29.0
        %vm5072 = vcmp.ne.f32.partialorder %v5061, %v5061
        %v5073 = vmul.f32 %v5061, 16.0
        %v5074 = vsel %vm5072, -0.0, %v5073
        %v5075 = vsel %vm5071, nan, %v5074
        %v5076 = vand.u32 2147483647, %v5062
        %vm5077 = vcmp.gt.f32.partialorder %v5076, 29.0
        %vm5078 = vcmp.ne.f32.partialorder %v5062, %v5062
        %v5079 = vmul.f32 %v5062, 16.0
        %v5080 = vsel %vm5078, -0.0, %v5079
        %v5081 = vsel %vm5077, nan, %v5080
        %v5082 = vand.u32 2147483647, %v5063
        %vm5083 = vcmp.gt.f32.partialorder %v5082, 29.0
        %vm5084 = vcmp.ne.f32.partialorder %v5063, %v5063
        %v5085 = vmul.f32 %v5063, 16.0
        %v5086 = vsel %vm5084, -0.0, %v5085
        %v5087 = vsel %vm5083, nan, %v5086
      $region105: #{tpu_custom_call.1} parent=40
        #allocation74 [shape = 'u8[4096]{0}', space=vmem, size = 0x1000, scoped, tag = 'scoped memory for tpu_custom_call.1']
        %5088 = vst [vmem:[#allocation74] sm:$0xff] %v4872
        %s5089 = scalar_lea.vmem [#allocation74], 6
        %v5090 = vld [vmem:[%s5089] sm:$0x3]
        %v5091 = vunpack.c.0.f8e4m3b11 %v5090
        %v5092 = vunpack.c.1.f8e4m3b11 %v5090
        %v5093 = vunpack.c.2.f8e4m3b11 %v5090
        %v5094 = vunpack.c.3.f8e4m3b11 %v5090
        %v5095 = vand.u32 2147483647, %v5091
        %vm5096 = vcmp.gt.f32.partialorder %v5095, 29.0
        %vm5097 = vcmp.ne.f32.partialorder %v5091, %v5091
        %v5098 = vmul.f32 %v5091, 16.0
        %v5099 = vsel %vm5097, -0.0, %v5098
        %v5100 = vsel %vm5096, nan, %v5099
        %v5101 = vand.u32 2147483647, %v5092
        %vm5102 = vcmp.gt.f32.partialorder %v5101, 29.0
        %vm5103 = vcmp.ne.f32.partialorder %v5092, %v5092
        %v5104 = vmul.f32 %v5092, 16.0
        %v5105 = vsel %vm5103, -0.0, %v5104
        %v5106 = vsel %vm5102, nan, %v5105
        %v5107 = vand.u32 2147483647, %v5093
        %vm5108 = vcmp.gt.f32.partialorder %v5107, 29.0
        %vm5109 = vcmp.ne.f32.partialorder %v5093, %v5093
        %v5110 = vmul.f32 %v5093, 16.0
        %v5111 = vsel %vm5109, -0.0, %v5110
        %v5112 = vsel %vm5108, nan, %v5111
        %v5113 = vand.u32 2147483647, %v5094
        %vm5114 = vcmp.gt.f32.partialorder %v5113, 29.0
        %vm5115 = vcmp.ne.f32.partialorder %v5094, %v5094
        %v5116 = vmul.f32 %v5094, 16.0
        %v5117 = vsel %vm5115, -0.0, %v5116
        %v5118 = vsel %vm5114, nan, %v5117
      %v5119 = vpack.c.bf16 %v4915, %v4884
      %v5120 = vpack.c.bf16 %v4977, %v4946
      %v5121 = vpack.c.bf16 %v5038, %v5007
      %v5122 = vpack.c.bf16 %v5100, %v5069
      %v5123 = vld [vmem:[#allocation3] sm:$0xff]
      %v5124 = vld [vmem:[#allocation3 + $0x8] sm:$0xff]
      %v5125 = vld [vmem:[#allocation3 + $0x10] sm:$0xff]
      %v5126 = vld [vmem:[#allocation3 + $0x18] sm:$0xff]
      %v5127 = vld [vmem:[#allocation3 + $0x20] sm:$0xff]
      %v5128 = vld [vmem:[#allocation3 + $0x28] sm:$0xff]
      %v5129 = vld [vmem:[#allocation3 + $0x30] sm:$0xff]
      %v5130 = vld [vmem:[#allocation3 + $0x38] sm:$0xff]
      %v5131 = vld [vmem:[#allocation3 + $0x40] sm:$0xff]
      %v5132 = vld [vmem:[#allocation3 + $0x48] sm:$0xff]
      %v5133 = vld [vmem:[#allocation3 + $0x50] sm:$0xff]
      %v5134 = vld [vmem:[#allocation3 + $0x58] sm:$0xff]
      %v5135 = vld [vmem:[#allocation3 + $0x60] sm:$0xff]
      %v5136 = vld [vmem:[#allocation3 + $0x68] sm:$0xff]
      %v5137 = vld [vmem:[#allocation3 + $0x70] sm:$0xff]
      %v5138 = vld [vmem:[#allocation3 + $0x78] sm:$0xff]
      %v5155 = vunpack.c.l.b16 %v4839
      %v5156 = vunpack.c.h.b16 %v4839
      %v5157 = vunpack.c.l.b16 %v4840
      %v5158 = vunpack.c.h.b16 %v4840
      %v5159 = vunpack.c.l.b16 %v4841
      %v5160 = vunpack.c.h.b16 %v4841
      %v5161 = vunpack.c.l.b16 %v4842
      %v5162 = vunpack.c.h.b16 %v4842
      %v5163 = vunpack.c.l.b16 %v4843
      %v5164 = vunpack.c.h.b16 %v4843
      %v5165 = vunpack.c.l.b16 %v4844
      %v5166 = vunpack.c.h.b16 %v4844
      %v5167 = vunpack.c.l.b16 %v4845
      %v5168 = vunpack.c.h.b16 %v4845
      %v5169 = vunpack.c.l.b16 %v4846
      %v5170 = vunpack.c.h.b16 %v4846
      %v5171 = vunpack.c.l.b16 %v4847
      %v5172 = vunpack.c.h.b16 %v4847
      %v5173 = vunpack.c.l.b16 %v4848
      %v5174 = vunpack.c.h.b16 %v4848
      %v5175 = vunpack.c.l.b16 %v4849
      %v5176 = vunpack.c.h.b16 %v4849
      %v5177 = vunpack.c.l.b16 %v4850
      %v5178 = vunpack.c.h.b16 %v4850
      %v5179 = vunpack.c.l.b16 %v4851
      %v5180 = vunpack.c.h.b16 %v4851
      %v5181 = vunpack.c.l.b16 %v4852
      %v5182 = vunpack.c.h.b16 %v4852
      %v5183 = vunpack.c.l.b16 %v4853
      %v5184 = vunpack.c.h.b16 %v4853
      %v5185 = vunpack.c.l.b16 %v4854
      %v5186 = vunpack.c.h.b16 %v4854
      %v5187 = vpack.c.b16 %v5157, %v5155
      %v5188 = vpack.c.b16 %v5158, %v5156
      %v5189 = vpack.c.b16 %v5161, %v5159
      %v5190 = vpack.c.b16 %v5162, %v5160
      %v5191 = vpack.c.b16 %v5165, %v5163
      %v5192 = vpack.c.b16 %v5166, %v5164
      %v5193 = vpack.c.b16 %v5169, %v5167
      %v5194 = vpack.c.b16 %v5170, %v5168
      %v5195 = vpack.c.b16 %v5173, %v5171
      %v5196 = vpack.c.b16 %v5174, %v5172
      %v5197 = vpack.c.b16 %v5177, %v5175
      %v5198 = vpack.c.b16 %v5178, %v5176
      %v5199 = vpack.c.b16 %v5181, %v5179
      %v5200 = vpack.c.b16 %v5182, %v5180
      %v5201 = vpack.c.b16 %v5185, %v5183
      %v5202 = vpack.c.b16 %v5186, %v5184
      %5219 = vmatpush.bf16.msra.mxu0 %v5201
      %5220 = vmatpush.bf16.msra.mxu0 %v5199
      %5221 = vmatpush.bf16.msra.mxu0 %v5197
      %5222 = vmatpush.bf16.msra.mxu0 %v5195
      %5223 = vmatpush.bf16.msra.mxu0 %v5193
      %5224 = vmatpush.bf16.msra.mxu0 %v5191
      %5225 = vmatpush.bf16.msra.mxu0 %v5189
      %5226 = vmatpush.bf16.msra.mxu0 %v5187
      %5227 = vmatmul.bf16.gmra.mxu0 %v5119
      %v5228 = vpop.f32.mrf.mxu0
      %v5229 = vadd.f32 0.0, %v5228
      %v5230 = vpop.f32.mrf.mxu0
      %v5231 = vadd.f32 0.0, %v5230
      %5232 = vmatmul.bf16.gmra.mxu0 %v5120
      %v5233 = vpop.f32.mrf.mxu0
      %v5234 = vadd.f32 0.0, %v5233
      %v5235 = vpop.f32.mrf.mxu0
      %v5236 = vadd.f32 0.0, %v5235
      %5237 = vmatmul.bf16.gmra.mxu0 %v5121
      %v5238 = vpop.f32.mrf.mxu0
      %v5239 = vadd.f32 0.0, %v5238
      %v5240 = vpop.f32.mrf.mxu0
      %v5241 = vadd.f32 0.0, %v5240
      %5242 = vmatmul.bf16.gmra.mxu0 %v5122
      %v5243 = vpop.f32.mrf.mxu0
      %v5244 = vadd.f32 0.0, %v5243
      %v5245 = vpop.f32.mrf.mxu0
      %v5246 = vadd.f32 0.0, %v5245
      %5247 = vdwg.mxu0
      %5248 = vmatpush.bf16.msra.mxu0 %v5202
      %5249 = vmatpush.bf16.msra.mxu0 %v5200
      %5250 = vmatpush.bf16.msra.mxu0 %v5198
      %5251 = vmatpush.bf16.msra.mxu0 %v5196
      %5252 = vmatpush.bf16.msra.mxu0 %v5194
      %5253 = vmatpush.bf16.msra.mxu0 %v5192
      %5254 = vmatpush.bf16.msra.mxu0 %v5190
      %5255 = vmatpush.bf16.msra.mxu0 %v5188
      %5256 = vmatmul.bf16.gmra.mxu0 %v5119
      %v5257 = vpop.f32.mrf.mxu0
      %v5258 = vadd.f32 0.0, %v5257
      %v5259 = vpop.f32.mrf.mxu0
      %v5260 = vadd.f32 0.0, %v5259
      %5261 = vmatmul.bf16.gmra.mxu0 %v5120
      %v5262 = vpop.f32.mrf.mxu0
      %v5263 = vadd.f32 0.0, %v5262
      %v5264 = vpop.f32.mrf.mxu0
      %v5265 = vadd.f32 0.0, %v5264
      %5266 = vmatmul.bf16.gmra.mxu0 %v5121
      %v5267 = vpop.f32.mrf.mxu0
      %v5268 = vadd.f32 0.0, %v5267
      %v5269 = vpop.f32.mrf.mxu0
      %v5270 = vadd.f32 0.0, %v5269
      %5271 = vmatmul.bf16.gmra.mxu0 %v5122
      %v5272 = vpop.f32.mrf.mxu0
      %v5273 = vadd.f32 0.0, %v5272
      %v5274 = vpop.f32.mrf.mxu0
      %v5275 = vadd.f32 0.0, %v5274
      %5276 = vdwg.mxu0
      %v5277 = vadd.f32 %v5123, %v5229
      %v5278 = vadd.f32 %v5124, %v5258
      %v5279 = vadd.f32 %v5125, %v5231
      %v5280 = vadd.f32 %v5126, %v5260
      %v5281 = vadd.f32 %v5127, %v5234
      %v5282 = vadd.f32 %v5128, %v5263
      %v5283 = vadd.f32 %v5129, %v5236
      %v5284 = vadd.f32 %v5130, %v5265
      %v5285 = vadd.f32 %v5131, %v5239
      %v5286 = vadd.f32 %v5132, %v5268
      %v5287 = vadd.f32 %v5133, %v5241
      %v5288 = vadd.f32 %v5134, %v5270
      %v5289 = vadd.f32 %v5135, %v5244
      %v5290 = vadd.f32 %v5136, %v5273
      %v5291 = vadd.f32 %v5137, %v5246
      %v5292 = vadd.f32 %v5138, %v5275
      %5293 = vst [vmem:[#allocation3] sm:$0xff] %v5277
      %5294 = vst [vmem:[#allocation3 + $0x8] sm:$0xff] %v5278
      %5295 = vst [vmem:[#allocation3 + $0x10] sm:$0xff] %v5279
      %5296 = vst [vmem:[#allocation3 + $0x18] sm:$0xff] %v5280
      %5297 = vst [vmem:[#allocation3 + $0x20] sm:$0xff] %v5281
      %5298 = vst [vmem:[#allocation3 + $0x28] sm:$0xff] %v5282
      %5299 = vst [vmem:[#allocation3 + $0x30] sm:$0xff] %v5283
      %5300 = vst [vmem:[#allocation3 + $0x38] sm:$0xff] %v5284
      %5301 = vst [vmem:[#allocation3 + $0x40] sm:$0xff] %v5285
      %5302 = vst [vmem:[#allocation3 + $0x48] sm:$0xff] %v5286
      %5303 = vst [vmem:[#allocation3 + $0x50] sm:$0xff] %v5287
      %5304 = vst [vmem:[#allocation3 + $0x58] sm:$0xff] %v5288
      %5305 = vst [vmem:[#allocation3 + $0x60] sm:$0xff] %v5289
      %5306 = vst [vmem:[#allocation3 + $0x68] sm:$0xff] %v5290
      %5307 = vst [vmem:[#allocation3 + $0x70] sm:$0xff] %v5291
      %5308 = vst [vmem:[#allocation3 + $0x78] sm:$0xff] %v5292
    $region41: #{tpu_custom_call.1} parent=1 // pred_fallthru
      _
    %p5309 = scmp.gt.s32.totalorder 0, 0
    // Predicated region
    $region106: #{tpu_custom_call.1} parent=1 // pred_check
      %p5310 = pneg %p5309
    $region107: #{tpu_custom_call.1} parent=1 // pred_check_branch
      %5312 = sbr.rel (%p5310) target = $region109
    $region108: #{tpu_custom_call.1} parent=1 // pred_region
      %v5313 = vld [vmem:[#allocation4] sm:$0xff]
      %v5314 = vld [vmem:[#allocation4 + $0x8] sm:$0xff]
      %v5315 = vld [vmem:[#allocation4 + $0x10] sm:$0xff]
      %v5316 = vld [vmem:[#allocation4 + $0x18] sm:$0xff]
      %v5317 = vld [vmem:[#allocation4 + $0x20] sm:$0xff]
      %v5318 = vld [vmem:[#allocation4 + $0x28] sm:$0xff]
      %v5319 = vld [vmem:[#allocation4 + $0x30] sm:$0xff]
      %v5320 = vld [vmem:[#allocation4 + $0x38] sm:$0xff]
      %v5321 = vld [vmem:[#allocation4 + $0x40] sm:$0xff]
      %v5322 = vld [vmem:[#allocation4 + $0x48] sm:$0xff]
      %v5323 = vld [vmem:[#allocation4 + $0x50] sm:$0xff]
      %v5324 = vld [vmem:[#allocation4 + $0x58] sm:$0xff]
      %v5325 = vld [vmem:[#allocation4 + $0x60] sm:$0xff]
      %v5326 = vld [vmem:[#allocation4 + $0x68] sm:$0xff]
      %v5327 = vld [vmem:[#allocation4 + $0x70] sm:$0xff]
      %v5328 = vld [vmem:[#allocation4 + $0x78] sm:$0xff]
      $region110: #{tpu_custom_call.1} parent=108
        #allocation75 [shape = 'u8[4096]{0}', space=vmem, size = 0x1000, scoped, tag = 'scoped memory for tpu_custom_call.1']
        %5329 = vst [vmem:[#allocation75] sm:$0xff] %v5313
        %v5330 = vld [vmem:[#allocation75] sm:$0x3]
        %v5331 = vunpack.c.0.f8e4m3b11 %v5330
        %v5332 = vunpack.c.1.f8e4m3b11 %v5330
        %v5333 = vunpack.c.2.f8e4m3b11 %v5330
        %v5334 = vunpack.c.3.f8e4m3b11 %v5330
        %v5335 = vand.u32 2147483647, %v5331
        %vm5336 = vcmp.gt.f32.partialorder %v5335, 29.0
        %vm5337 = vcmp.ne.f32.partialorder %v5331, %v5331
        %v5338 = vmul.f32 %v5331, 16.0
        %v5339 = vsel %vm5337, -0.0, %v5338
        %v5340 = vsel %vm5336, nan, %v5339
        %v5341 = vand.u32 2147483647, %v5332
        %vm5342 = vcmp.gt.f32.partialorder %v5341, 29.0
        %vm5343 = vcmp.ne.f32.partialorder %v5332, %v5332
        %v5344 = vmul.f32 %v5332, 16.0
        %v5345 = vsel %vm5343, -0.0, %v5344
        %v5346 = vsel %vm5342, nan, %v5345
        %v5347 = vand.u32 2147483647, %v5333
        %vm5348 = vcmp.gt.f32.partialorder %v5347, 29.0
        %vm5349 = vcmp.ne.f32.partialorder %v5333, %v5333
        %v5350 = vmul.f32 %v5333, 16.0
        %v5351 = vsel %vm5349, -0.0, %v5350
        %v5352 = vsel %vm5348, nan, %v5351
        %v5353 = vand.u32 2147483647, %v5334
        %vm5354 = vcmp.gt.f32.partialorder %v5353, 29.0
        %vm5355 = vcmp.ne.f32.partialorder %v5334, %v5334
        %v5356 = vmul.f32 %v5334, 16.0
        %v5357 = vsel %vm5355, -0.0, %v5356
        %v5358 = vsel %vm5354, nan, %v5357
      $region111: #{tpu_custom_call.1} parent=108
        #allocation76 [shape = 'u8[4096]{0}', space=vmem, size = 0x1000, scoped, tag = 'scoped memory for tpu_custom_call.1']
        %5359 = vst [vmem:[#allocation76] sm:$0xff] %v5314
        %v5360 = vld [vmem:[#allocation76] sm:$0x3]
        %v5361 = vunpack.c.0.f8e4m3b11 %v5360
        %v5362 = vunpack.c.1.f8e4m3b11 %v5360
        %v5363 = vunpack.c.2.f8e4m3b11 %v5360
        %v5364 = vunpack.c.3.f8e4m3b11 %v5360
        %v5365 = vand.u32 2147483647, %v5361
        %vm5366 = vcmp.gt.f32.partialorder %v5365, 29.0
        %vm5367 = vcmp.ne.f32.partialorder %v5361, %v5361
        %v5368 = vmul.f32 %v5361, 16.0
        %v5369 = vsel %vm5367, -0.0, %v5368
        %v5370 = vsel %vm5366, nan, %v5369
        %v5371 = vand.u32 2147483647, %v5362
        %vm5372 = vcmp.gt.f32.partialorder %v5371, 29.0
        %vm5373 = vcmp.ne.f32.partialorder %v5362, %v5362
        %v5374 = vmul.f32 %v5362, 16.0
        %v5375 = vsel %vm5373, -0.0, %v5374
        %v5376 = vsel %vm5372, nan, %v5375
        %v5377 = vand.u32 2147483647, %v5363
        %vm5378 = vcmp.gt.f32.partialorder %v5377, 29.0
        %vm5379 = vcmp.ne.f32.partialorder %v5363, %v5363
        %v5380 = vmul.f32 %v5363, 16.0
        %v5381 = vsel %vm5379, -0.0, %v5380
        %v5382 = vsel %vm5378, nan, %v5381
        %v5383 = vand.u32 2147483647, %v5364
        %vm5384 = vcmp.gt.f32.partialorder %v5383, 29.0
        %vm5385 = vcmp.ne.f32.partialorder %v5364, %v5364
        %v5386 = vmul.f32 %v5364, 16.0
        %v5387 = vsel %vm5385, -0.0, %v5386
        %v5388 = vsel %vm5384, nan, %v5387
      $region112: #{tpu_custom_call.1} parent=108
        #allocation77 [shape = 'u8[4096]{0}', space=vmem, size = 0x1000, scoped, tag = 'scoped memory for tpu_custom_call.1']
        %5389 = vst [vmem:[#allocation77] sm:$0xff] %v5315
        %v5390 = vld [vmem:[#allocation77] sm:$0x3]
        %v5391 = vunpack.c.0.f8e4m3b11 %v5390
        %v5392 = vunpack.c.1.f8e4m3b11 %v5390
        %v5393 = vunpack.c.2.f8e4m3b11 %v5390
        %v5394 = vunpack.c.3.f8e4m3b11 %v5390
        %v5395 = vand.u32 2147483647, %v5391
        %vm5396 = vcmp.gt.f32.partialorder %v5395, 29.0
        %vm5397 = vcmp.ne.f32.partialorder %v5391, %v5391
        %v5398 = vmul.f32 %v5391, 16.0
        %v5399 = vsel %vm5397, -0.0, %v5398
        %v5400 = vsel %vm5396, nan, %v5399
        %v5401 = vand.u32 2147483647, %v5392
        %vm5402 = vcmp.gt.f32.partialorder %v5401, 29.0
        %vm5403 = vcmp.ne.f32.partialorder %v5392, %v5392
        %v5404 = vmul.f32 %v5392, 16.0
        %v5405 = vsel %vm5403, -0.0, %v5404
        %v5406 = vsel %vm5402, nan, %v5405
        %v5407 = vand.u32 2147483647, %v5393
        %vm5408 = vcmp.gt.f32.partialorder %v5407, 29.0
        %vm5409 = vcmp.ne.f32.partialorder %v5393, %v5393
        %v5410 = vmul.f32 %v5393, 16.0
        %v5411 = vsel %vm5409, -0.0, %v5410
        %v5412 = vsel %vm5408, nan, %v5411
        %v5413 = vand.u32 2147483647, %v5394
        %vm5414 = vcmp.gt.f32.partialorder %v5413, 29.0
        %vm5415 = vcmp.ne.f32.partialorder %v5394, %v5394
        %v5416 = vmul.f32 %v5394, 16.0
        %v5417 = vsel %vm5415, -0.0, %v5416
        %v5418 = vsel %vm5414, nan, %v5417
      $region113: #{tpu_custom_call.1} parent=108
        #allocation78 [shape = 'u8[4096]{0}', space=vmem, size = 0x1000, scoped, tag = 'scoped memory for tpu_custom_call.1']
        %5419 = vst [vmem:[#allocation78] sm:$0xff] %v5316
        %v5420 = vld [vmem:[#allocation78] sm:$0x3]
        %v5421 = vunpack.c.0.f8e4m3b11 %v5420
        %v5422 = vunpack.c.1.f8e4m3b11 %v5420
        %v5423 = vunpack.c.2.f8e4m3b11 %v5420
        %v5424 = vunpack.c.3.f8e4m3b11 %v5420
        %v5425 = vand.u32 2147483647, %v5421
        %vm5426 = vcmp.gt.f32.partialorder %v5425, 29.0
        %vm5427 = vcmp.ne.f32.partialorder %v5421, %v5421
        %v5428 = vmul.f32 %v5421, 16.0
        %v5429 = vsel %vm5427, -0.0, %v5428
        %v5430 = vsel %vm5426, nan, %v5429
        %v5431 = vand.u32 2147483647, %v5422
        %vm5432 = vcmp.gt.f32.partialorder %v5431, 29.0
        %vm5433 = vcmp.ne.f32.partialorder %v5422, %v5422
        %v5434 = vmul.f32 %v5422, 16.0
        %v5435 = vsel %vm5433, -0.0, %v5434
        %v5436 = vsel %vm5432, nan, %v5435
        %v5437 = vand.u32 2147483647, %v5423
        %vm5438 = vcmp.gt.f32.partialorder %v5437, 29.0
        %vm5439 = vcmp.ne.f32.partialorder %v5423, %v5423
        %v5440 = vmul.f32 %v5423, 16.0
        %v5441 = vsel %vm5439, -0.0, %v5440
        %v5442 = vsel %vm5438, nan, %v5441
        %v5443 = vand.u32 2147483647, %v5424
        %vm5444 = vcmp.gt.f32.partialorder %v5443, 29.0
        %vm5445 = vcmp.ne.f32.partialorder %v5424, %v5424
        %v5446 = vmul.f32 %v5424, 16.0
        %v5447 = vsel %vm5445, -0.0, %v5446
        %v5448 = vsel %vm5444, nan, %v5447
      $region114: #{tpu_custom_call.1} parent=108
        #allocation79 [shape = 'u8[4096]{0}', space=vmem, size = 0x1000, scoped, tag = 'scoped memory for tpu_custom_call.1']
        %5449 = vst [vmem:[#allocation79] sm:$0xff] %v5317
        %v5450 = vld [vmem:[#allocation79] sm:$0x3]
        %v5451 = vunpack.c.0.f8e4m3b11 %v5450
        %v5452 = vunpack.c.1.f8e4m3b11 %v5450
        %v5453 = vunpack.c.2.f8e4m3b11 %v5450
        %v5454 = vunpack.c.3.f8e4m3b11 %v5450
        %v5455 = vand.u32 2147483647, %v5451
        %vm5456 = vcmp.gt.f32.partialorder %v5455, 29.0
        %vm5457 = vcmp.ne.f32.partialorder %v5451, %v5451
        %v5458 = vmul.f32 %v5451, 16.0
        %v5459 = vsel %vm5457, -0.0, %v5458
        %v5460 = vsel %vm5456, nan, %v5459
        %v5461 = vand.u32 2147483647, %v5452
        %vm5462 = vcmp.gt.f32.partialorder %v5461, 29.0
        %vm5463 = vcmp.ne.f32.partialorder %v5452, %v5452
        %v5464 = vmul.f32 %v5452, 16.0
        %v5465 = vsel %vm5463, -0.0, %v5464
        %v5466 = vsel %vm5462, nan, %v5465
        %v5467 = vand.u32 2147483647, %v5453
        %vm5468 = vcmp.gt.f32.partialorder %v5467, 29.0
        %vm5469 = vcmp.ne.f32.partialorder %v5453, %v5453
        %v5470 = vmul.f32 %v5453, 16.0
        %v5471 = vsel %vm5469, -0.0, %v5470
        %v5472 = vsel %vm5468, nan, %v5471
        %v5473 = vand.u32 2147483647, %v5454
        %vm5474 = vcmp.gt.f32.partialorder %v5473, 29.0
        %vm5475 = vcmp.ne.f32.partialorder %v5454, %v5454
        %v5476 = vmul.f32 %v5454, 16.0
        %v5477 = vsel %vm5475, -0.0, %v5476
        %v5478 = vsel %vm5474, nan, %v5477
      $region115: #{tpu_custom_call.1} parent=108
        #allocation80 [shape = 'u8[4096]{0}', space=vmem, size = 0x1000, scoped, tag = 'scoped memory for tpu_custom_call.1']
        %5479 = vst [vmem:[#allocation80] sm:$0xff] %v5318
        %v5480 = vld [vmem:[#allocation80] sm:$0x3]
        %v5481 = vunpack.c.0.f8e4m3b11 %v5480
        %v5482 = vunpack.c.1.f8e4m3b11 %v5480
        %v5483 = vunpack.c.2.f8e4m3b11 %v5480
        %v5484 = vunpack.c.3.f8e4m3b11 %v5480
        %v5485 = vand.u32 2147483647, %v5481
        %vm5486 = vcmp.gt.f32.partialorder %v5485, 29.0
        %vm5487 = vcmp.ne.f32.partialorder %v5481, %v5481
        %v5488 = vmul.f32 %v5481, 16.0
        %v5489 = vsel %vm5487, -0.0, %v5488
        %v5490 = vsel %vm5486, nan, %v5489
        %v5491 = vand.u32 2147483647, %v5482
        %vm5492 = vcmp.gt.f32.partialorder %v5491, 29.0
        %vm5493 = vcmp.ne.f32.partialorder %v5482, %v5482
        %v5494 = vmul.f32 %v5482, 16.0
        %v5495 = vsel %vm5493, -0.0, %v5494
        %v5496 = vsel %vm5492, nan, %v5495
        %v5497 = vand.u32 2147483647, %v5483
        %vm5498 = vcmp.gt.f32.partialorder %v5497, 29.0
        %vm5499 = vcmp.ne.f32.partialorder %v5483, %v5483
        %v5500 = vmul.f32 %v5483, 16.0
        %v5501 = vsel %vm5499, -0.0, %v5500
        %v5502 = vsel %vm5498, nan, %v5501
        %v5503 = vand.u32 2147483647, %v5484
        %vm5504 = vcmp.gt.f32.partialorder %v5503, 29.0
        %vm5505 = vcmp.ne.f32.partialorder %v5484, %v5484
        %v5506 = vmul.f32 %v5484, 16.0
        %v5507 = vsel %vm5505, -0.0, %v5506
        %v5508 = vsel %vm5504, nan, %v5507
      $region116: #{tpu_custom_call.1} parent=108
        #allocation81 [shape = 'u8[4096]{0}', space=vmem, size = 0x1000, scoped, tag = 'scoped memory for tpu_custom_call.1']
        %5509 = vst [vmem:[#allocation81] sm:$0xff] %v5319
        %v5510 = vld [vmem:[#allocation81] sm:$0x3]
        %v5511 = vunpack.c.0.f8e4m3b11 %v5510
        %v5512 = vunpack.c.1.f8e4m3b11 %v5510
        %v5513 = vunpack.c.2.f8e4m3b11 %v5510
        %v5514 = vunpack.c.3.f8e4m3b11 %v5510
        %v5515 = vand.u32 2147483647, %v5511
        %vm5516 = vcmp.gt.f32.partialorder %v5515, 29.0
        %vm5517 = vcmp.ne.f32.partialorder %v5511, %v5511
        %v5518 = vmul.f32 %v5511, 16.0
        %v5519 = vsel %vm5517, -0.0, %v5518
        %v5520 = vsel %vm5516, nan, %v5519
        %v5521 = vand.u32 2147483647, %v5512
        %vm5522 = vcmp.gt.f32.partialorder %v5521, 29.0
        %vm5523 = vcmp.ne.f32.partialorder %v5512, %v5512
        %v5524 = vmul.f32 %v5512, 16.0
        %v5525 = vsel %vm5523, -0.0, %v5524
        %v5526 = vsel %vm5522, nan, %v5525
        %v5527 = vand.u32 2147483647, %v5513
        %vm5528 = vcmp.gt.f32.partialorder %v5527, 29.0
        %vm5529 = vcmp.ne.f32.partialorder %v5513, %v5513
        %v5530 = vmul.f32 %v5513, 16.0
        %v5531 = vsel %vm5529, -0.0, %v5530
        %v5532 = vsel %vm5528, nan, %v5531
        %v5533 = vand.u32 2147483647, %v5514
        %vm5534 = vcmp.gt.f32.partialorder %v5533, 29.0
        %vm5535 = vcmp.ne.f32.partialorder %v5514, %v5514
        %v5536 = vmul.f32 %v5514, 16.0
        %v5537 = vsel %vm5535, -0.0, %v5536
        %v5538 = vsel %vm5534, nan, %v5537
      $region117: #{tpu_custom_call.1} parent=108
        #allocation82 [shape = 'u8[4096]{0}', space=vmem, size = 0x1000, scoped, tag = 'scoped memory for tpu_custom_call.1']
        %5539 = vst [vmem:[#allocation82] sm:$0xff] %v5320
        %v5540 = vld [vmem:[#allocation82] sm:$0x3]
        %v5541 = vunpack.c.0.f8e4m3b11 %v5540
        %v5542 = vunpack.c.1.f8e4m3b11 %v5540
        %v5543 = vunpack.c.2.f8e4m3b11 %v5540
        %v5544 = vunpack.c.3.f8e4m3b11 %v5540
        %v5545 = vand.u32 2147483647, %v5541
        %vm5546 = vcmp.gt.f32.partialorder %v5545, 29.0
        %vm5547 = vcmp.ne.f32.partialorder %v5541, %v5541
        %v5548 = vmul.f32 %v5541, 16.0
        %v5549 = vsel %vm5547, -0.0, %v5548
        %v5550 = vsel %vm5546, nan, %v5549
        %v5551 = vand.u32 2147483647, %v5542
        %vm5552 = vcmp.gt.f32.partialorder %v5551, 29.0
        %vm5553 = vcmp.ne.f32.partialorder %v5542, %v5542
        %v5554 = vmul.f32 %v5542, 16.0
        %v5555 = vsel %vm5553, -0.0, %v5554
        %v5556 = vsel %vm5552, nan, %v5555
        %v5557 = vand.u32 2147483647, %v5543
        %vm5558 = vcmp.gt.f32.partialorder %v5557, 29.0
        %vm5559 = vcmp.ne.f32.partialorder %v5543, %v5543
        %v5560 = vmul.f32 %v5543, 16.0
        %v5561 = vsel %vm5559, -0.0, %v5560
        %v5562 = vsel %vm5558, nan, %v5561
        %v5563 = vand.u32 2147483647, %v5544
        %vm5564 = vcmp.gt.f32.partialorder %v5563, 29.0
        %vm5565 = vcmp.ne.f32.partialorder %v5544, %v5544
        %v5566 = vmul.f32 %v5544, 16.0
        %v5567 = vsel %vm5565, -0.0, %v5566
        %v5568 = vsel %vm5564, nan, %v5567
      $region118: #{tpu_custom_call.1} parent=108
        #allocation83 [shape = 'u8[4096]{0}', space=vmem, size = 0x1000, scoped, tag = 'scoped memory for tpu_custom_call.1']
        %5569 = vst [vmem:[#allocation83] sm:$0xff] %v5313
        %s5570 = scalar_lea.vmem [#allocation83], 2
        %v5571 = vld [vmem:[%s5570] sm:$0x3]
        %v5572 = vunpack.c.0.f8e4m3b11 %v5571
        %v5573 = vunpack.c.1.f8e4m3b11 %v5571
        %v5574 = vunpack.c.2.f8e4m3b11 %v5571
        %v5575 = vunpack.c.3.f8e4m3b11 %v5571
        %v5576 = vand.u32 2147483647, %v5572
        %vm5577 = vcmp.gt.f32.partialorder %v5576, 29.0
        %vm5578 = vcmp.ne.f32.partialorder %v5572, %v5572
        %v5579 = vmul.f32 %v5572, 16.0
        %v5580 = vsel %vm5578, -0.0, %v5579
        %v5581 = vsel %vm5577, nan, %v5580
        %v5582 = vand.u32 2147483647, %v5573
        %vm5583 = vcmp.gt.f32.partialorder %v5582, 29.0
        %vm5584 = vcmp.ne.f32.partialorder %v5573, %v5573
        %v5585 = vmul.f32 %v5573, 16.0
        %v5586 = vsel %vm5584, -0.0, %v5585
        %v5587 = vsel %vm5583, nan, %v5586
        %v5588 = vand.u32 2147483647, %v5574
        %vm5589 = vcmp.gt.f32.partialorder %v5588, 29.0
        %vm5590 = vcmp.ne.f32.partialorder %v5574, %v5574
        %v5591 = vmul.f32 %v5574, 16.0
        %v5592 = vsel %vm5590, -0.0, %v5591
        %v5593 = vsel %vm5589, nan, %v5592
        %v5594 = vand.u32 2147483647, %v5575
        %vm5595 = vcmp.gt.f32.partialorder %v5594, 29.0
        %vm5596 = vcmp.ne.f32.partialorder %v5575, %v5575
        %v5597 = vmul.f32 %v5575, 16.0
        %v5598 = vsel %vm5596, -0.0, %v5597
        %v5599 = vsel %vm5595, nan, %v5598
      $region119: #{tpu_custom_call.1} parent=108
        #allocation84 [shape = 'u8[4096]{0}', space=vmem, size = 0x1000, scoped, tag = 'scoped memory for tpu_custom_call.1']
        %5600 = vst [vmem:[#allocation84] sm:$0xff] %v5314
        %s5601 = scalar_lea.vmem [#allocation84], 2
        %v5602 = vld [vmem:[%s5601] sm:$0x3]
        %v5603 = vunpack.c.0.f8e4m3b11 %v5602
        %v5604 = vunpack.c.1.f8e4m3b11 %v5602
        %v5605 = vunpack.c.2.f8e4m3b11 %v5602
        %v5606 = vunpack.c.3.f8e4m3b11 %v5602
        %v5607 = vand.u32 2147483647, %v5603
        %vm5608 = vcmp.gt.f32.partialorder %v5607, 29.0
        %vm5609 = vcmp.ne.f32.partialorder %v5603, %v5603
        %v5610 = vmul.f32 %v5603, 16.0
        %v5611 = vsel %vm5609, -0.0, %v5610
        %v5612 = vsel %vm5608, nan, %v5611
        %v5613 = vand.u32 2147483647, %v5604
        %vm5614 = vcmp.gt.f32.partialorder %v5613, 29.0
        %vm5615 = vcmp.ne.f32.partialorder %v5604, %v5604
        %v5616 = vmul.f32 %v5604, 16.0
        %v5617 = vsel %vm5615, -0.0, %v5616
        %v5618 = vsel %vm5614, nan, %v5617
        %v5619 = vand.u32 2147483647, %v5605
        %vm5620 = vcmp.gt.f32.partialorder %v5619, 29.0
        %vm5621 = vcmp.ne.f32.partialorder %v5605, %v5605
        %v5622 = vmul.f32 %v5605, 16.0
        %v5623 = vsel %vm5621, -0.0, %v5622
        %v5624 = vsel %vm5620, nan, %v5623
        %v5625 = vand.u32 2147483647, %v5606
        %vm5626 = vcmp.gt.f32.partialorder %v5625, 29.0
        %vm5627 = vcmp.ne.f32.partialorder %v5606, %v5606
        %v5628 = vmul.f32 %v5606, 16.0
        %v5629 = vsel %vm5627, -0.0, %v5628
        %v5630 = vsel %vm5626, nan, %v5629
      $region120: #{tpu_custom_call.1} parent=108
        #allocation85 [shape = 'u8[4096]{0}', space=vmem, size = 0x1000, scoped, tag = 'scoped memory for tpu_custom_call.1']
        %5631 = vst [vmem:[#allocation85] sm:$0xff] %v5315
        %s5632 = scalar_lea.vmem [#allocation85], 2
        %v5633 = vld [vmem:[%s5632] sm:$0x3]
        %v5634 = vunpack.c.0.f8e4m3b11 %v5633
        %v5635 = vunpack.c.1.f8e4m3b11 %v5633
        %v5636 = vunpack.c.2.f8e4m3b11 %v5633
        %v5637 = vunpack.c.3.f8e4m3b11 %v5633
        %v5638 = vand.u32 2147483647, %v5634
        %vm5639 = vcmp.gt.f32.partialorder %v5638, 29.0
        %vm5640 = vcmp.ne.f32.partialorder %v5634, %v5634
        %v5641 = vmul.f32 %v5634, 16.0
        %v5642 = vsel %vm5640, -0.0, %v5641
        %v5643 = vsel %vm5639, nan, %v5642
        %v5644 = vand.u32 2147483647, %v5635
        %vm5645 = vcmp.gt.f32.partialorder %v5644, 29.0
        %vm5646 = vcmp.ne.f32.partialorder %v5635, %v5635
        %v5647 = vmul.f32 %v5635, 16.0
        %v5648 = vsel %vm5646, -0.0, %v5647
        %v5649 = vsel %vm5645, nan, %v5648
        %v5650 = vand.u32 2147483647, %v5636
        %vm5651 = vcmp.gt.f32.partialorder %v5650, 29.0
        %vm5652 = vcmp.ne.f32.partialorder %v5636, %v5636
        %v5653 = vmul.f32 %v5636, 16.0
        %v5654 = vsel %vm5652, -0.0, %v5653
        %v5655 = vsel %vm5651, nan, %v5654
        %v5656 = vand.u32 2147483647, %v5637
        %vm5657 = vcmp.gt.f32.partialorder %v5656, 29.0
        %vm5658 = vcmp.ne.f32.partialorder %v5637, %v5637
        %v5659 = vmul.f32 %v5637, 16.0
        %v5660 = vsel %vm5658, -0.0, %v5659
        %v5661 = vsel %vm5657, nan, %v5660
      $region121: #{tpu_custom_call.1} parent=108
        #allocation86 [shape = 'u8[4096]{0}', space=vmem, size = 0x1000, scoped, tag = 'scoped memory for tpu_custom_call.1']
        %5662 = vst [vmem:[#allocation86] sm:$0xff] %v5316
        %s5663 = scalar_lea.vmem [#allocation86], 2
        %v5664 = vld [vmem:[%s5663] sm:$0x3]
        %v5665 = vunpack.c.0.f8e4m3b11 %v5664
        %v5666 = vunpack.c.1.f8e4m3b11 %v5664
        %v5667 = vunpack.c.2.f8e4m3b11 %v5664
        %v5668 = vunpack.c.3.f8e4m3b11 %v5664
        %v5669 = vand.u32 2147483647, %v5665
        %vm5670 = vcmp.gt.f32.partialorder %v5669, 29.0
        %vm5671 = vcmp.ne.f32.partialorder %v5665, %v5665
        %v5672 = vmul.f32 %v5665, 16.0
        %v5673 = vsel %vm5671, -0.0, %v5672
        %v5674 = vsel %vm5670, nan, %v5673
        %v5675 = vand.u32 2147483647, %v5666
        %vm5676 = vcmp.gt.f32.partialorder %v5675, 29.0
        %vm5677 = vcmp.ne.f32.partialorder %v5666, %v5666
        %v5678 = vmul.f32 %v5666, 16.0
        %v5679 = vsel %vm5677, -0.0, %v5678
        %v5680 = vsel %vm5676, nan, %v5679
        %v5681 = vand.u32 2147483647, %v5667
        %vm5682 = vcmp.gt.f32.partialorder %v5681, 29.0
        %vm5683 = vcmp.ne.f32.partialorder %v5667, %v5667
        %v5684 = vmul.f32 %v5667, 16.0
        %v5685 = vsel %vm5683, -0.0, %v5684
        %v5686 = vsel %vm5682, nan, %v5685
        %v5687 = vand.u32 2147483647, %v5668
        %vm5688 = vcmp.gt.f32.partialorder %v5687, 29.0
        %vm5689 = vcmp.ne.f32.partialorder %v5668, %v5668
        %v5690 = vmul.f32 %v5668, 16.0
        %v5691 = vsel %vm5689, -0.0, %v5690
        %v5692 = vsel %vm5688, nan, %v5691
      $region122: #{tpu_custom_call.1} parent=108
        #allocation87 [shape = 'u8[4096]{0}', space=vmem, size = 0x1000, scoped, tag = 'scoped memory for tpu_custom_call.1']
        %5693 = vst [vmem:[#allocation87] sm:$0xff] %v5317
        %s5694 = scalar_lea.vmem [#allocation87], 2
        %v5695 = vld [vmem:[%s5694] sm:$0x3]
        %v5696 = vunpack.c.0.f8e4m3b11 %v5695
        %v5697 = vunpack.c.1.f8e4m3b11 %v5695
        %v5698 = vunpack.c.2.f8e4m3b11 %v5695
        %v5699 = vunpack.c.3.f8e4m3b11 %v5695
        %v5700 = vand.u32 2147483647, %v5696
        %vm5701 = vcmp.gt.f32.partialorder %v5700, 29.0
        %vm5702 = vcmp.ne.f32.partialorder %v5696, %v5696
        %v5703 = vmul.f32 %v5696, 16.0
        %v5704 = vsel %vm5702, -0.0, %v5703
        %v5705 = vsel %vm5701, nan, %v5704
        %v5706 = vand.u32 2147483647, %v5697
        %vm5707 = vcmp.gt.f32.partialorder %v5706, 29.0
        %vm5708 = vcmp.ne.f32.partialorder %v5697, %v5697
        %v5709 = vmul.f32 %v5697, 16.0
        %v5710 = vsel %vm5708, -0.0, %v5709
        %v5711 = vsel %vm5707, nan, %v5710
        %v5712 = vand.u32 2147483647, %v5698
        %vm5713 = vcmp.gt.f32.partialorder %v5712, 29.0
        %vm5714 = vcmp.ne.f32.partialorder %v5698, %v5698
        %v5715 = vmul.f32 %v5698, 16.0
        %v5716 = vsel %vm5714, -0.0, %v5715
        %v5717 = vsel %vm5713, nan, %v5716
        %v5718 = vand.u32 2147483647, %v5699
        %vm5719 = vcmp.gt.f32.partialorder %v5718, 29.0
        %vm5720 = vcmp.ne.f32.partialorder %v5699, %v5699
        %v5721 = vmul.f32 %v5699, 16.0
        %v5722 = vsel %vm5720, -0.0, %v5721
        %v5723 = vsel %vm5719, nan, %v5722
      $region123: #{tpu_custom_call.1} parent=108
        #allocation88 [shape = 'u8[4096]{0}', space=vmem, size = 0x1000, scoped, tag = 'scoped memory for tpu_custom_call.1']
        %5724 = vst [vmem:[#allocation88] sm:$0xff] %v5318
        %s5725 = scalar_lea.vmem [#allocation88], 2
        %v5726 = vld [vmem:[%s5725] sm:$0x3]
        %v5727 = vunpack.c.0.f8e4m3b11 %v5726
        %v5728 = vunpack.c.1.f8e4m3b11 %v5726
        %v5729 = vunpack.c.2.f8e4m3b11 %v5726
        %v5730 = vunpack.c.3.f8e4m3b11 %v5726
        %v5731 = vand.u32 2147483647, %v5727
        %vm5732 = vcmp.gt.f32.partialorder %v5731, 29.0
        %vm5733 = vcmp.ne.f32.partialorder %v5727, %v5727
        %v5734 = vmul.f32 %v5727, 16.0
        %v5735 = vsel %vm5733, -0.0, %v5734
        %v5736 = vsel %vm5732, nan, %v5735
        %v5737 = vand.u32 2147483647, %v5728
        %vm5738 = vcmp.gt.f32.partialorder %v5737, 29.0
        %vm5739 = vcmp.ne.f32.partialorder %v5728, %v5728
        %v5740 = vmul.f32 %v5728, 16.0
        %v5741 = vsel %vm5739, -0.0, %v5740
        %v5742 = vsel %vm5738, nan, %v5741
        %v5743 = vand.u32 2147483647, %v5729
        %vm5744 = vcmp.gt.f32.partialorder %v5743, 29.0
        %vm5745 = vcmp.ne.f32.partialorder %v5729, %v5729
        %v5746 = vmul.f32 %v5729, 16.0
        %v5747 = vsel %vm5745, -0.0, %v5746
        %v5748 = vsel %vm5744, nan, %v5747
        %v5749 = vand.u32 2147483647, %v5730
        %vm5750 = vcmp.gt.f32.partialorder %v5749, 29.0
        %vm5751 = vcmp.ne.f32.partialorder %v5730, %v5730
        %v5752 = vmul.f32 %v5730, 16.0
        %v5753 = vsel %vm5751, -0.0, %v5752
        %v5754 = vsel %vm5750, nan, %v5753
      $region124: #{tpu_custom_call.1} parent=108
        #allocation89 [shape = 'u8[4096]{0}', space=vmem, size = 0x1000, scoped, tag = 'scoped memory for tpu_custom_call.1']
        %5755 = vst [vmem:[#allocation89] sm:$0xff] %v5319
        %s5756 = scalar_lea.vmem [#allocation89], 2
        %v5757 = vld [vmem:[%s5756] sm:$0x3]
        %v5758 = vunpack.c.0.f8e4m3b11 %v5757
        %v5759 = vunpack.c.1.f8e4m3b11 %v5757
        %v5760 = vunpack.c.2.f8e4m3b11 %v5757
        %v5761 = vunpack.c.3.f8e4m3b11 %v5757
        %v5762 = vand.u32 2147483647, %v5758
        %vm5763 = vcmp.gt.f32.partialorder %v5762, 29.0
        %vm5764 = vcmp.ne.f32.partialorder %v5758, %v5758
        %v5765 = vmul.f32 %v5758, 16.0
        %v5766 = vsel %vm5764, -0.0, %v5765
        %v5767 = vsel %vm5763, nan, %v5766
        %v5768 = vand.u32 2147483647, %v5759
        %vm5769 = vcmp.gt.f32.partialorder %v5768, 29.0
        %vm5770 = vcmp.ne.f32.partialorder %v5759, %v5759
        %v5771 = vmul.f32 %v5759, 16.0
        %v5772 = vsel %vm5770, -0.0, %v5771
        %v5773 = vsel %vm5769, nan, %v5772
        %v5774 = vand.u32 2147483647, %v5760
        %vm5775 = vcmp.gt.f32.partialorder %v5774, 29.0
        %vm5776 = vcmp.ne.f32.partialorder %v5760, %v5760
        %v5777 = vmul.f32 %v5760, 16.0
        %v5778 = vsel %vm5776, -0.0, %v5777
        %v5779 = vsel %vm5775, nan, %v5778
        %v5780 = vand.u32 2147483647, %v5761
        %vm5781 = vcmp.gt.f32.partialorder %v5780, 29.0
        %vm5782 = vcmp.ne.f32.partialorder %v5761, %v5761
        %v5783 = vmul.f32 %v5761, 16.0
        %v5784 = vsel %vm5782, -0.0, %v5783
        %v5785 = vsel %vm5781, nan, %v5784
      $region125: #{tpu_custom_call.1} parent=108
        #allocation90 [shape = 'u8[4096]{0}', space=vmem, size = 0x1000, scoped, tag = 'scoped memory for tpu_custom_call.1']
        %5786 = vst [vmem:[#allocation90] sm:$0xff] %v5320
        %s5787 = scalar_lea.vmem [#allocation90], 2
        %v5788 = vld [vmem:[%s5787] sm:$0x3]
        %v5789 = vunpack.c.0.f8e4m3b11 %v5788
        %v5790 = vunpack.c.1.f8e4m3b11 %v5788
        %v5791 = vunpack.c.2.f8e4m3b11 %v5788
        %v5792 = vunpack.c.3.f8e4m3b11 %v5788
        %v5793 = vand.u32 2147483647, %v5789
        %vm5794 = vcmp.gt.f32.partialorder %v5793, 29.0
        %vm5795 = vcmp.ne.f32.partialorder %v5789, %v5789
        %v5796 = vmul.f32 %v5789, 16.0
        %v5797 = vsel %vm5795, -0.0, %v5796
        %v5798 = vsel %vm5794, nan, %v5797
        %v5799 = vand.u32 2147483647, %v5790
        %vm5800 = vcmp.gt.f32.partialorder %v5799, 29.0
        %vm5801 = vcmp.ne.f32.partialorder %v5790, %v5790
        %v5802 = vmul.f32 %v5790, 16.0
        %v5803 = vsel %vm5801, -0.0, %v5802
        %v5804 = vsel %vm5800, nan, %v5803
        %v5805 = vand.u32 2147483647, %v5791
        %vm5806 = vcmp.gt.f32.partialorder %v5805, 29.0
        %vm5807 = vcmp.ne.f32.partialorder %v5791, %v5791
        %v5808 = vmul.f32 %v5791, 16.0
        %v5809 = vsel %vm5807, -0.0, %v5808
        %v5810 = vsel %vm5806, nan, %v5809
        %v5811 = vand.u32 2147483647, %v5792
        %vm5812 = vcmp.gt.f32.partialorder %v5811, 29.0
        %vm5813 = vcmp.ne.f32.partialorder %v5792, %v5792
        %v5814 = vmul.f32 %v5792, 16.0
        %v5815 = vsel %vm5813, -0.0, %v5814
        %v5816 = vsel %vm5812, nan, %v5815
      $region126: #{tpu_custom_call.1} parent=108
        #allocation91 [shape = 'u8[4096]{0}', space=vmem, size = 0x1000, scoped, tag = 'scoped memory for tpu_custom_call.1']
        %5817 = vst [vmem:[#allocation91] sm:$0xff] %v5313
        %s5818 = scalar_lea.vmem [#allocation91], 4
        %v5819 = vld [vmem:[%s5818] sm:$0x3]
        %v5820 = vunpack.c.0.f8e4m3b11 %v5819
        %v5821 = vunpack.c.1.f8e4m3b11 %v5819
        %v5822 = vunpack.c.2.f8e4m3b11 %v5819
        %v5823 = vunpack.c.3.f8e4m3b11 %v5819
        %v5824 = vand.u32 2147483647, %v5820
        %vm5825 = vcmp.gt.f32.partialorder %v5824, 29.0
        %vm5826 = vcmp.ne.f32.partialorder %v5820, %v5820
        %v5827 = vmul.f32 %v5820, 16.0
        %v5828 = vsel %vm5826, -0.0, %v5827
        %v5829 = vsel %vm5825, nan, %v5828
        %v5830 = vand.u32 2147483647, %v5821
        %vm5831 = vcmp.gt.f32.partialorder %v5830, 29.0
        %vm5832 = vcmp.ne.f32.partialorder %v5821, %v5821
        %v5833 = vmul.f32 %v5821, 16.0
        %v5834 = vsel %vm5832, -0.0, %v5833
        %v5835 = vsel %vm5831, nan, %v5834
        %v5836 = vand.u32 2147483647, %v5822
        %vm5837 = vcmp.gt.f32.partialorder %v5836, 29.0
        %vm5838 = vcmp.ne.f32.partialorder %v5822, %v5822
        %v5839 = vmul.f32 %v5822, 16.0
        %v5840 = vsel %vm5838, -0.0, %v5839
        %v5841 = vsel %vm5837, nan, %v5840
        %v5842 = vand.u32 2147483647, %v5823
        %vm5843 = vcmp.gt.f32.partialorder %v5842, 29.0
        %vm5844 = vcmp.ne.f32.partialorder %v5823, %v5823
        %v5845 = vmul.f32 %v5823, 16.0
        %v5846 = vsel %vm5844, -0.0, %v5845
        %v5847 = vsel %vm5843, nan, %v5846
      $region127: #{tpu_custom_call.1} parent=108
        #allocation92 [shape = 'u8[4096]{0}', space=vmem, size = 0x1000, scoped, tag = 'scoped memory for tpu_custom_call.1']
        %5848 = vst [vmem:[#allocation92] sm:$0xff] %v5314
        %s5849 = scalar_lea.vmem [#allocation92], 4
        %v5850 = vld [vmem:[%s5849] sm:$0x3]
        %v5851 = vunpack.c.0.f8e4m3b11 %v5850
        %v5852 = vunpack.c.1.f8e4m3b11 %v5850
        %v5853 = vunpack.c.2.f8e4m3b11 %v5850
        %v5854 = vunpack.c.3.f8e4m3b11 %v5850
        %v5855 = vand.u32 2147483647, %v5851
        %vm5856 = vcmp.gt.f32.partialorder %v5855, 29.0
        %vm5857 = vcmp.ne.f32.partialorder %v5851, %v5851
        %v5858 = vmul.f32 %v5851, 16.0
        %v5859 = vsel %vm5857, -0.0, %v5858
        %v5860 = vsel %vm5856, nan, %v5859
        %v5861 = vand.u32 2147483647, %v5852
        %vm5862 = vcmp.gt.f32.partialorder %v5861, 29.0
        %vm5863 = vcmp.ne.f32.partialorder %v5852, %v5852
        %v5864 = vmul.f32 %v5852, 16.0
        %v5865 = vsel %vm5863, -0.0, %v5864
        %v5866 = vsel %vm5862, nan, %v5865
        %v5867 = vand.u32 2147483647, %v5853
        %vm5868 = vcmp.gt.f32.partialorder %v5867, 29.0
        %vm5869 = vcmp.ne.f32.partialorder %v5853, %v5853
        %v5870 = vmul.f32 %v5853, 16.0
        %v5871 = vsel %vm5869, -0.0, %v5870
        %v5872 = vsel %vm5868, nan, %v5871
        %v5873 = vand.u32 2147483647, %v5854
        %vm5874 = vcmp.gt.f32.partialorder %v5873, 29.0
        %vm5875 = vcmp.ne.f32.partialorder %v5854, %v5854
        %v5876 = vmul.f32 %v5854, 16.0
        %v5877 = vsel %vm5875, -0.0, %v5876
        %v5878 = vsel %vm5874, nan, %v5877
      $region128: #{tpu_custom_call.1} parent=108
        #allocation93 [shape = 'u8[4096]{0}', space=vmem, size = 0x1000, scoped, tag = 'scoped memory for tpu_custom_call.1']
        %5879 = vst [vmem:[#allocation93] sm:$0xff] %v5315
        %s5880 = scalar_lea.vmem [#allocation93], 4
        %v5881 = vld [vmem:[%s5880] sm:$0x3]
        %v5882 = vunpack.c.0.f8e4m3b11 %v5881
        %v5883 = vunpack.c.1.f8e4m3b11 %v5881
        %v5884 = vunpack.c.2.f8e4m3b11 %v5881
        %v5885 = vunpack.c.3.f8e4m3b11 %v5881
        %v5886 = vand.u32 2147483647, %v5882
        %vm5887 = vcmp.gt.f32.partialorder %v5886, 29.0
        %vm5888 = vcmp.ne.f32.partialorder %v5882, %v5882
        %v5889 = vmul.f32 %v5882, 16.0
        %v5890 = vsel %vm5888, -0.0, %v5889
        %v5891 = vsel %vm5887, nan, %v5890
        %v5892 = vand.u32 2147483647, %v5883
        %vm5893 = vcmp.gt.f32.partialorder %v5892, 29.0
        %vm5894 = vcmp.ne.f32.partialorder %v5883, %v5883
        %v5895 = vmul.f32 %v5883, 16.0
        %v5896 = vsel %vm5894, -0.0, %v5895
        %v5897 = vsel %vm5893, nan, %v5896
        %v5898 = vand.u32 2147483647, %v5884
        %vm5899 = vcmp.gt.f32.partialorder %v5898, 29.0
        %vm5900 = vcmp.ne.f32.partialorder %v5884, %v5884
        %v5901 = vmul.f32 %v5884, 16.0
        %v5902 = vsel %vm5900, -0.0, %v5901
        %v5903 = vsel %vm5899, nan, %v5902
        %v5904 = vand.u32 2147483647, %v5885
        %vm5905 = vcmp.gt.f32.partialorder %v5904, 29.0
        %vm5906 = vcmp.ne.f32.partialorder %v5885, %v5885
        %v5907 = vmul.f32 %v5885, 16.0
        %v5908 = vsel %vm5906, -0.0, %v5907
        %v5909 = vsel %vm5905, nan, %v5908
      $region129: #{tpu_custom_call.1} parent=108
        #allocation94 [shape = 'u8[4096]{0}', space=vmem, size = 0x1000, scoped, tag = 'scoped memory for tpu_custom_call.1']
        %5910 = vst [vmem:[#allocation94] sm:$0xff] %v5316
        %s5911 = scalar_lea.vmem [#allocation94], 4
        %v5912 = vld [vmem:[%s5911] sm:$0x3]
        %v5913 = vunpack.c.0.f8e4m3b11 %v5912
        %v5914 = vunpack.c.1.f8e4m3b11 %v5912
        %v5915 = vunpack.c.2.f8e4m3b11 %v5912
        %v5916 = vunpack.c.3.f8e4m3b11 %v5912
        %v5917 = vand.u32 2147483647, %v5913
        %vm5918 = vcmp.gt.f32.partialorder %v5917, 29.0
        %vm5919 = vcmp.ne.f32.partialorder %v5913, %v5913
        %v5920 = vmul.f32 %v5913, 16.0
        %v5921 = vsel %vm5919, -0.0, %v5920
        %v5922 = vsel %vm5918, nan, %v5921
        %v5923 = vand.u32 2147483647, %v5914
        %vm5924 = vcmp.gt.f32.partialorder %v5923, 29.0
        %vm5925 = vcmp.ne.f32.partialorder %v5914, %v5914
        %v5926 = vmul.f32 %v5914, 16.0
        %v5927 = vsel %vm5925, -0.0, %v5926
        %v5928 = vsel %vm5924, nan, %v5927
        %v5929 = vand.u32 2147483647, %v5915
        %vm5930 = vcmp.gt.f32.partialorder %v5929, 29.0
        %vm5931 = vcmp.ne.f32.partialorder %v5915, %v5915
        %v5932 = vmul.f32 %v5915, 16.0
        %v5933 = vsel %vm5931, -0.0, %v5932
        %v5934 = vsel %vm5930, nan, %v5933
        %v5935 = vand.u32 2147483647, %v5916
        %vm5936 = vcmp.gt.f32.partialorder %v5935, 29.0
        %vm5937 = vcmp.ne.f32.partialorder %v5916, %v5916
        %v5938 = vmul.f32 %v5916, 16.0
        %v5939 = vsel %vm5937, -0.0, %v5938
        %v5940 = vsel %vm5936, nan, %v5939
      $region130: #{tpu_custom_call.1} parent=108
        #allocation95 [shape = 'u8[4096]{0}', space=vmem, size = 0x1000, scoped, tag = 'scoped memory for tpu_custom_call.1']
        %5941 = vst [vmem:[#allocation95] sm:$0xff] %v5317
        %s5942 = scalar_lea.vmem [#allocation95], 4
        %v5943 = vld [vmem:[%s5942] sm:$0x3]
        %v5944 = vunpack.c.0.f8e4m3b11 %v5943
        %v5945 = vunpack.c.1.f8e4m3b11 %v5943
        %v5946 = vunpack.c.2.f8e4m3b11 %v5943
        %v5947 = vunpack.c.3.f8e4m3b11 %v5943
        %v5948 = vand.u32 2147483647, %v5944
        %vm5949 = vcmp.gt.f32.partialorder %v5948, 29.0
        %vm5950 = vcmp.ne.f32.partialorder %v5944, %v5944
        %v5951 = vmul.f32 %v5944, 16.0
        %v5952 = vsel %vm5950, -0.0, %v5951
        %v5953 = vsel %vm5949, nan, %v5952
        %v5954 = vand.u32 2147483647, %v5945
        %vm5955 = vcmp.gt.f32.partialorder %v5954, 29.0
        %vm5956 = vcmp.ne.f32.partialorder %v5945, %v5945
        %v5957 = vmul.f32 %v5945, 16.0
        %v5958 = vsel %vm5956, -0.0, %v5957
        %v5959 = vsel %vm5955, nan, %v5958
        %v5960 = vand.u32 2147483647, %v5946
        %vm5961 = vcmp.gt.f32.partialorder %v5960, 29.0
        %vm5962 = vcmp.ne.f32.partialorder %v5946, %v5946
        %v5963 = vmul.f32 %v5946, 16.0
        %v5964 = vsel %vm5962, -0.0, %v5963
        %v5965 = vsel %vm5961, nan, %v5964
        %v5966 = vand.u32 2147483647, %v5947
        %vm5967 = vcmp.gt.f32.partialorder %v5966, 29.0
        %vm5968 = vcmp.ne.f32.partialorder %v5947, %v5947
        %v5969 = vmul.f32 %v5947, 16.0
        %v5970 = vsel %vm5968, -0.0, %v5969
        %v5971 = vsel %vm5967, nan, %v5970
      $region131: #{tpu_custom_call.1} parent=108
        #allocation96 [shape = 'u8[4096]{0}', space=vmem, size = 0x1000, scoped, tag = 'scoped memory for tpu_custom_call.1']
        %5972 = vst [vmem:[#allocation96] sm:$0xff] %v5318
        %s5973 = scalar_lea.vmem [#allocation96], 4
        %v5974 = vld [vmem:[%s5973] sm:$0x3]
        %v5975 = vunpack.c.0.f8e4m3b11 %v5974
        %v5976 = vunpack.c.1.f8e4m3b11 %v5974
        %v5977 = vunpack.c.2.f8e4m3b11 %v5974
        %v5978 = vunpack.c.3.f8e4m3b11 %v5974
        %v5979 = vand.u32 2147483647, %v5975
        %vm5980 = vcmp.gt.f32.partialorder %v5979, 29.0
        %vm5981 = vcmp.ne.f32.partialorder %v5975, %v5975
        %v5982 = vmul.f32 %v5975, 16.0
        %v5983 = vsel %vm5981, -0.0, %v5982
        %v5984 = vsel %vm5980, nan, %v5983
        %v5985 = vand.u32 2147483647, %v5976
        %vm5986 = vcmp.gt.f32.partialorder %v5985, 29.0
        %vm5987 = vcmp.ne.f32.partialorder %v5976, %v5976
        %v5988 = vmul.f32 %v5976, 16.0
        %v5989 = vsel %vm5987, -0.0, %v5988
        %v5990 = vsel %vm5986, nan, %v5989
        %v5991 = vand.u32 2147483647, %v5977
        %vm5992 = vcmp.gt.f32.partialorder %v5991, 29.0
        %vm5993 = vcmp.ne.f32.partialorder %v5977, %v5977
        %v5994 = vmul.f32 %v5977, 16.0
        %v5995 = vsel %vm5993, -0.0, %v5994
        %v5996 = vsel %vm5992, nan, %v5995
        %v5997 = vand.u32 2147483647, %v5978
        %vm5998 = vcmp.gt.f32.partialorder %v5997, 29.0
        %vm5999 = vcmp.ne.f32.partialorder %v5978, %v5978
        %v6000 = vmul.f32 %v5978, 16.0
        %v6001 = vsel %vm5999, -0.0, %v6000
        %v6002 = vsel %vm5998, nan, %v6001
      $region132: #{tpu_custom_call.1} parent=108
        #allocation97 [shape = 'u8[4096]{0}', space=vmem, size = 0x1000, scoped, tag = 'scoped memory for tpu_custom_call.1']
        %6003 = vst [vmem:[#allocation97] sm:$0xff] %v5319
        %s6004 = scalar_lea.vmem [#allocation97], 4
        %v6005 = vld [vmem:[%s6004] sm:$0x3]
        %v6006 = vunpack.c.0.f8e4m3b11 %v6005
        %v6007 = vunpack.c.1.f8e4m3b11 %v6005
        %v6008 = vunpack.c.2.f8e4m3b11 %v6005
        %v6009 = vunpack.c.3.f8e4m3b11 %v6005
        %v6010 = vand.u32 2147483647, %v6006
        %vm6011 = vcmp.gt.f32.partialorder %v6010, 29.0
        %vm6012 = vcmp.ne.f32.partialorder %v6006, %v6006
        %v6013 = vmul.f32 %v6006, 16.0
        %v6014 = vsel %vm6012, -0.0, %v6013
        %v6015 = vsel %vm6011, nan, %v6014
        %v6016 = vand.u32 2147483647, %v6007
        %vm6017 = vcmp.gt.f32.partialorder %v6016, 29.0
        %vm6018 = vcmp.ne.f32.partialorder %v6007, %v6007
        %v6019 = vmul.f32 %v6007, 16.0
        %v6020 = vsel %vm6018, -0.0, %v6019
        %v6021 = vsel %vm6017, nan, %v6020
        %v6022 = vand.u32 2147483647, %v6008
        %vm6023 = vcmp.gt.f32.partialorder %v6022, 29.0
        %vm6024 = vcmp.ne.f32.partialorder %v6008, %v6008
        %v6025 = vmul.f32 %v6008, 16.0
        %v6026 = vsel %vm6024, -0.0, %v6025
        %v6027 = vsel %vm6023, nan, %v6026
        %v6028 = vand.u32 2147483647, %v6009
        %vm6029 = vcmp.gt.f32.partialorder %v6028, 29.0
        %vm6030 = vcmp.ne.f32.partialorder %v6009, %v6009
        %v6031 = vmul.f32 %v6009, 16.0
        %v6032 = vsel %vm6030, -0.0, %v6031
        %v6033 = vsel %vm6029, nan, %v6032
      $region133: #{tpu_custom_call.1} parent=108
        #allocation98 [shape = 'u8[4096]{0}', space=vmem, size = 0x1000, scoped, tag = 'scoped memory for tpu_custom_call.1']
        %6034 = vst [vmem:[#allocation98] sm:$0xff] %v5320
        %s6035 = scalar_lea.vmem [#allocation98], 4
        %v6036 = vld [vmem:[%s6035] sm:$0x3]
        %v6037 = vunpack.c.0.f8e4m3b11 %v6036
        %v6038 = vunpack.c.1.f8e4m3b11 %v6036
        %v6039 = vunpack.c.2.f8e4m3b11 %v6036
        %v6040 = vunpack.c.3.f8e4m3b11 %v6036
        %v6041 = vand.u32 2147483647, %v6037
        %vm6042 = vcmp.gt.f32.partialorder %v6041, 29.0
        %vm6043 = vcmp.ne.f32.partialorder %v6037, %v6037
        %v6044 = vmul.f32 %v6037, 16.0
        %v6045 = vsel %vm6043, -0.0, %v6044
        %v6046 = vsel %vm6042, nan, %v6045
        %v6047 = vand.u32 2147483647, %v6038
        %vm6048 = vcmp.gt.f32.partialorder %v6047, 29.0
        %vm6049 = vcmp.ne.f32.partialorder %v6038, %v6038
        %v6050 = vmul.f32 %v6038, 16.0
        %v6051 = vsel %vm6049, -0.0, %v6050
        %v6052 = vsel %vm6048, nan, %v6051
        %v6053 = vand.u32 2147483647, %v6039
        %vm6054 = vcmp.gt.f32.partialorder %v6053, 29.0
        %vm6055 = vcmp.ne.f32.partialorder %v6039, %v6039
        %v6056 = vmul.f32 %v6039, 16.0
        %v6057 = vsel %vm6055, -0.0, %v6056
        %v6058 = vsel %vm6054, nan, %v6057
        %v6059 = vand.u32 2147483647, %v6040
        %vm6060 = vcmp.gt.f32.partialorder %v6059, 29.0
        %vm6061 = vcmp.ne.f32.partialorder %v6040, %v6040
        %v6062 = vmul.f32 %v6040, 16.0
        %v6063 = vsel %vm6061, -0.0, %v6062
        %v6064 = vsel %vm6060, nan, %v6063
      $region134: #{tpu_custom_call.1} parent=108
        #allocation99 [shape = 'u8[4096]{0}', space=vmem, size = 0x1000, scoped, tag = 'scoped memory for tpu_custom_call.1']
        %6065 = vst [vmem:[#allocation99] sm:$0xff] %v5313
        %s6066 = scalar_lea.vmem [#allocation99], 6
        %v6067 = vld [vmem:[%s6066] sm:$0x3]
        %v6068 = vunpack.c.0.f8e4m3b11 %v6067
        %v6069 = vunpack.c.1.f8e4m3b11 %v6067
        %v6070 = vunpack.c.2.f8e4m3b11 %v6067
        %v6071 = vunpack.c.3.f8e4m3b11 %v6067
        %v6072 = vand.u32 2147483647, %v6068
        %vm6073 = vcmp.gt.f32.partialorder %v6072, 29.0
        %vm6074 = vcmp.ne.f32.partialorder %v6068, %v6068
        %v6075 = vmul.f32 %v6068, 16.0
        %v6076 = vsel %vm6074, -0.0, %v6075
        %v6077 = vsel %vm6073, nan, %v6076
        %v6078 = vand.u32 2147483647, %v6069
        %vm6079 = vcmp.gt.f32.partialorder %v6078, 29.0
        %vm6080 = vcmp.ne.f32.partialorder %v6069, %v6069
        %v6081 = vmul.f32 %v6069, 16.0
        %v6082 = vsel %vm6080, -0.0, %v6081
        %v6083 = vsel %vm6079, nan, %v6082
        %v6084 = vand.u32 2147483647, %v6070
        %vm6085 = vcmp.gt.f32.partialorder %v6084, 29.0
        %vm6086 = vcmp.ne.f32.partialorder %v6070, %v6070
        %v6087 = vmul.f32 %v6070, 16.0
        %v6088 = vsel %vm6086, -0.0, %v6087
        %v6089 = vsel %vm6085, nan, %v6088
        %v6090 = vand.u32 2147483647, %v6071
        %vm6091 = vcmp.gt.f32.partialorder %v6090, 29.0
        %vm6092 = vcmp.ne.f32.partialorder %v6071, %v6071
        %v6093 = vmul.f32 %v6071, 16.0
        %v6094 = vsel %vm6092, -0.0, %v6093
        %v6095 = vsel %vm6091, nan, %v6094
      $region135: #{tpu_custom_call.1} parent=108
        #allocation100 [shape = 'u8[4096]{0}', space=vmem, size = 0x1000, scoped, tag = 'scoped memory for tpu_custom_call.1']
        %6096 = vst [vmem:[#allocation100] sm:$0xff] %v5314
        %s6097 = scalar_lea.vmem [#allocation100], 6
        %v6098 = vld [vmem:[%s6097] sm:$0x3]
        %v6099 = vunpack.c.0.f8e4m3b11 %v6098
        %v6100 = vunpack.c.1.f8e4m3b11 %v6098
        %v6101 = vunpack.c.2.f8e4m3b11 %v6098
        %v6102 = vunpack.c.3.f8e4m3b11 %v6098
        %v6103 = vand.u32 2147483647, %v6099
        %vm6104 = vcmp.gt.f32.partialorder %v6103, 29.0
        %vm6105 = vcmp.ne.f32.partialorder %v6099, %v6099
        %v6106 = vmul.f32 %v6099, 16.0
        %v6107 = vsel %vm6105, -0.0, %v6106
        %v6108 = vsel %vm6104, nan, %v6107
        %v6109 = vand.u32 2147483647, %v6100
        %vm6110 = vcmp.gt.f32.partialorder %v6109, 29.0
        %vm6111 = vcmp.ne.f32.partialorder %v6100, %v6100
        %v6112 = vmul.f32 %v6100, 16.0
        %v6113 = vsel %vm6111, -0.0, %v6112
        %v6114 = vsel %vm6110, nan, %v6113
        %v6115 = vand.u32 2147483647, %v6101
        %vm6116 = vcmp.gt.f32.partialorder %v6115, 29.0
        %vm6117 = vcmp.ne.f32.partialorder %v6101, %v6101
        %v6118 = vmul.f32 %v6101, 16.0
        %v6119 = vsel %vm6117, -0.0, %v6118
        %v6120 = vsel %vm6116, nan, %v6119
        %v6121 = vand.u32 2147483647, %v6102
        %vm6122 = vcmp.gt.f32.partialorder %v6121, 29.0
        %vm6123 = vcmp.ne.f32.partialorder %v6102, %v6102
        %v6124 = vmul.f32 %v6102, 16.0
        %v6125 = vsel %vm6123, -0.0, %v6124
        %v6126 = vsel %vm6122, nan, %v6125
      $region136: #{tpu_custom_call.1} parent=108
        #allocation101 [shape = 'u8[4096]{0}', space=vmem, size = 0x1000, scoped, tag = 'scoped memory for tpu_custom_call.1']
        %6127 = vst [vmem:[#allocation101] sm:$0xff] %v5315
        %s6128 = scalar_lea.vmem [#allocation101], 6
        %v6129 = vld [vmem:[%s6128] sm:$0x3]
        %v6130 = vunpack.c.0.f8e4m3b11 %v6129
        %v6131 = vunpack.c.1.f8e4m3b11 %v6129
        %v6132 = vunpack.c.2.f8e4m3b11 %v6129
        %v6133 = vunpack.c.3.f8e4m3b11 %v6129
        %v6134 = vand.u32 2147483647, %v6130
        %vm6135 = vcmp.gt.f32.partialorder %v6134, 29.0
        %vm6136 = vcmp.ne.f32.partialorder %v6130, %v6130
        %v6137 = vmul.f32 %v6130, 16.0
        %v6138 = vsel %vm6136, -0.0, %v6137
        %v6139 = vsel %vm6135, nan, %v6138
        %v6140 = vand.u32 2147483647, %v6131
        %vm6141 = vcmp.gt.f32.partialorder %v6140, 29.0
        %vm6142 = vcmp.ne.f32.partialorder %v6131, %v6131
        %v6143 = vmul.f32 %v6131, 16.0
        %v6144 = vsel %vm6142, -0.0, %v6143
        %v6145 = vsel %vm6141, nan, %v6144
        %v6146 = vand.u32 2147483647, %v6132
        %vm6147 = vcmp.gt.f32.partialorder %v6146, 29.0
        %vm6148 = vcmp.ne.f32.partialorder %v6132, %v6132
        %v6149 = vmul.f32 %v6132, 16.0
        %v6150 = vsel %vm6148, -0.0, %v6149
        %v6151 = vsel %vm6147, nan, %v6150
        %v6152 = vand.u32 2147483647, %v6133
        %vm6153 = vcmp.gt.f32.partialorder %v6152, 29.0
        %vm6154 = vcmp.ne.f32.partialorder %v6133, %v6133
        %v6155 = vmul.f32 %v6133, 16.0
        %v6156 = vsel %vm6154, -0.0, %v6155
        %v6157 = vsel %vm6153, nan, %v6156
      $region137: #{tpu_custom_call.1} parent=108
        #allocation102 [shape = 'u8[4096]{0}', space=vmem, size = 0x1000, scoped, tag = 'scoped memory for tpu_custom_call.1']
        %6158 = vst [vmem:[#allocation102] sm:$0xff] %v5316
        %s6159 = scalar_lea.vmem [#allocation102], 6
        %v6160 = vld [vmem:[%s6159] sm:$0x3]
        %v6161 = vunpack.c.0.f8e4m3b11 %v6160
        %v6162 = vunpack.c.1.f8e4m3b11 %v6160
        %v6163 = vunpack.c.2.f8e4m3b11 %v6160
        %v6164 = vunpack.c.3.f8e4m3b11 %v6160
        %v6165 = vand.u32 2147483647, %v6161
        %vm6166 = vcmp.gt.f32.partialorder %v6165, 29.0
        %vm6167 = vcmp.ne.f32.partialorder %v6161, %v6161
        %v6168 = vmul.f32 %v6161, 16.0
        %v6169 = vsel %vm6167, -0.0, %v6168
        %v6170 = vsel %vm6166, nan, %v6169
        %v6171 = vand.u32 2147483647, %v6162
        %vm6172 = vcmp.gt.f32.partialorder %v6171, 29.0
        %vm6173 = vcmp.ne.f32.partialorder %v6162, %v6162
        %v6174 = vmul.f32 %v6162, 16.0
        %v6175 = vsel %vm6173, -0.0, %v6174
        %v6176 = vsel %vm6172, nan, %v6175
        %v6177 = vand.u32 2147483647, %v6163
        %vm6178 = vcmp.gt.f32.partialorder %v6177, 29.0
        %vm6179 = vcmp.ne.f32.partialorder %v6163, %v6163
        %v6180 = vmul.f32 %v6163, 16.0
        %v6181 = vsel %vm6179, -0.0, %v6180
        %v6182 = vsel %vm6178, nan, %v6181
        %v6183 = vand.u32 2147483647, %v6164
        %vm6184 = vcmp.gt.f32.partialorder %v6183, 29.0
        %vm6185 = vcmp.ne.f32.partialorder %v6164, %v6164
        %v6186 = vmul.f32 %v6164, 16.0
        %v6187 = vsel %vm6185, -0.0, %v6186
        %v6188 = vsel %vm6184, nan, %v6187
      $region138: #{tpu_custom_call.1} parent=108
        #allocation103 [shape = 'u8[4096]{0}', space=vmem, size = 0x1000, scoped, tag = 'scoped memory for tpu_custom_call.1']
        %6189 = vst [vmem:[#allocation103] sm:$0xff] %v5317
        %s6190 = scalar_lea.vmem [#allocation103], 6
        %v6191 = vld [vmem:[%s6190] sm:$0x3]
        %v6192 = vunpack.c.0.f8e4m3b11 %v6191
        %v6193 = vunpack.c.1.f8e4m3b11 %v6191
        %v6194 = vunpack.c.2.f8e4m3b11 %v6191
        %v6195 = vunpack.c.3.f8e4m3b11 %v6191
        %v6196 = vand.u32 2147483647, %v6192
        %vm6197 = vcmp.gt.f32.partialorder %v6196, 29.0
        %vm6198 = vcmp.ne.f32.partialorder %v6192, %v6192
        %v6199 = vmul.f32 %v6192, 16.0
        %v6200 = vsel %vm6198, -0.0, %v6199
        %v6201 = vsel %vm6197, nan, %v6200
        %v6202 = vand.u32 2147483647, %v6193
        %vm6203 = vcmp.gt.f32.partialorder %v6202, 29.0
        %vm6204 = vcmp.ne.f32.partialorder %v6193, %v6193
        %v6205 = vmul.f32 %v6193, 16.0
        %v6206 = vsel %vm6204, -0.0, %v6205
        %v6207 = vsel %vm6203, nan, %v6206
        %v6208 = vand.u32 2147483647, %v6194
        %vm6209 = vcmp.gt.f32.partialorder %v6208, 29.0
        %vm6210 = vcmp.ne.f32.partialorder %v6194, %v6194
        %v6211 = vmul.f32 %v6194, 16.0
        %v6212 = vsel %vm6210, -0.0, %v6211
        %v6213 = vsel %vm6209, nan, %v6212
        %v6214 = vand.u32 2147483647, %v6195
        %vm6215 = vcmp.gt.f32.partialorder %v6214, 29.0
        %vm6216 = vcmp.ne.f32.partialorder %v6195, %v6195
        %v6217 = vmul.f32 %v6195, 16.0
        %v6218 = vsel %vm6216, -0.0, %v6217
        %v6219 = vsel %vm6215, nan, %v6218
      $region139: #{tpu_custom_call.1} parent=108
        #allocation104 [shape = 'u8[4096]{0}', space=vmem, size = 0x1000, scoped, tag = 'scoped memory for tpu_custom_call.1']
        %6220 = vst [vmem:[#allocation104] sm:$0xff] %v5318
        %s6221 = scalar_lea.vmem [#allocation104], 6
        %v6222 = vld [vmem:[%s6221] sm:$0x3]
        %v6223 = vunpack.c.0.f8e4m3b11 %v6222
        %v6224 = vunpack.c.1.f8e4m3b11 %v6222
        %v6225 = vunpack.c.2.f8e4m3b11 %v6222
        %v6226 = vunpack.c.3.f8e4m3b11 %v6222
        %v6227 = vand.u32 2147483647, %v6223
        %vm6228 = vcmp.gt.f32.partialorder %v6227, 29.0
        %vm6229 = vcmp.ne.f32.partialorder %v6223, %v6223
        %v6230 = vmul.f32 %v6223, 16.0
        %v6231 = vsel %vm6229, -0.0, %v6230
        %v6232 = vsel %vm6228, nan, %v6231
        %v6233 = vand.u32 2147483647, %v6224
        %vm6234 = vcmp.gt.f32.partialorder %v6233, 29.0
        %vm6235 = vcmp.ne.f32.partialorder %v6224, %v6224
        %v6236 = vmul.f32 %v6224, 16.0
        %v6237 = vsel %vm6235, -0.0, %v6236
        %v6238 = vsel %vm6234, nan, %v6237
        %v6239 = vand.u32 2147483647, %v6225
        %vm6240 = vcmp.gt.f32.partialorder %v6239, 29.0
        %vm6241 = vcmp.ne.f32.partialorder %v6225, %v6225
        %v6242 = vmul.f32 %v6225, 16.0
        %v6243 = vsel %vm6241, -0.0, %v6242
        %v6244 = vsel %vm6240, nan, %v6243
        %v6245 = vand.u32 2147483647, %v6226
        %vm6246 = vcmp.gt.f32.partialorder %v6245, 29.0
        %vm6247 = vcmp.ne.f32.partialorder %v6226, %v6226
        %v6248 = vmul.f32 %v6226, 16.0
        %v6249 = vsel %vm6247, -0.0, %v6248
        %v6250 = vsel %vm6246, nan, %v6249
      $region140: #{tpu_custom_call.1} parent=108
        #allocation105 [shape = 'u8[4096]{0}', space=vmem, size = 0x1000, scoped, tag = 'scoped memory for tpu_custom_call.1']
        %6251 = vst [vmem:[#allocation105] sm:$0xff] %v5319
        %s6252 = scalar_lea.vmem [#allocation105], 6
        %v6253 = vld [vmem:[%s6252] sm:$0x3]
        %v6254 = vunpack.c.0.f8e4m3b11 %v6253
        %v6255 = vunpack.c.1.f8e4m3b11 %v6253
        %v6256 = vunpack.c.2.f8e4m3b11 %v6253
        %v6257 = vunpack.c.3.f8e4m3b11 %v6253
        %v6258 = vand.u32 2147483647, %v6254
        %vm6259 = vcmp.gt.f32.partialorder %v6258, 29.0
        %vm6260 = vcmp.ne.f32.partialorder %v6254, %v6254
        %v6261 = vmul.f32 %v6254, 16.0
        %v6262 = vsel %vm6260, -0.0, %v6261
        %v6263 = vsel %vm6259, nan, %v6262
        %v6264 = vand.u32 2147483647, %v6255
        %vm6265 = vcmp.gt.f32.partialorder %v6264, 29.0
        %vm6266 = vcmp.ne.f32.partialorder %v6255, %v6255
        %v6267 = vmul.f32 %v6255, 16.0
        %v6268 = vsel %vm6266, -0.0, %v6267
        %v6269 = vsel %vm6265, nan, %v6268
        %v6270 = vand.u32 2147483647, %v6256
        %vm6271 = vcmp.gt.f32.partialorder %v6270, 29.0
        %vm6272 = vcmp.ne.f32.partialorder %v6256, %v6256
        %v6273 = vmul.f32 %v6256, 16.0
        %v6274 = vsel %vm6272, -0.0, %v6273
        %v6275 = vsel %vm6271, nan, %v6274
        %v6276 = vand.u32 2147483647, %v6257
        %vm6277 = vcmp.gt.f32.partialorder %v6276, 29.0
        %vm6278 = vcmp.ne.f32.partialorder %v6257, %v6257
        %v6279 = vmul.f32 %v6257, 16.0
        %v6280 = vsel %vm6278, -0.0, %v6279
        %v6281 = vsel %vm6277, nan, %v6280
      $region141: #{tpu_custom_call.1} parent=108
        #allocation106 [shape = 'u8[4096]{0}', space=vmem, size = 0x1000, scoped, tag = 'scoped memory for tpu_custom_call.1']
        %6282 = vst [vmem:[#allocation106] sm:$0xff] %v5320
        %s6283 = scalar_lea.vmem [#allocation106], 6
        %v6284 = vld [vmem:[%s6283] sm:$0x3]
        %v6285 = vunpack.c.0.f8e4m3b11 %v6284
        %v6286 = vunpack.c.1.f8e4m3b11 %v6284
        %v6287 = vunpack.c.2.f8e4m3b11 %v6284
        %v6288 = vunpack.c.3.f8e4m3b11 %v6284
        %v6289 = vand.u32 2147483647, %v6285
        %vm6290 = vcmp.gt.f32.partialorder %v6289, 29.0
        %vm6291 = vcmp.ne.f32.partialorder %v6285, %v6285
        %v6292 = vmul.f32 %v6285, 16.0
        %v6293 = vsel %vm6291, -0.0, %v6292
        %v6294 = vsel %vm6290, nan, %v6293
        %v6295 = vand.u32 2147483647, %v6286
        %vm6296 = vcmp.gt.f32.partialorder %v6295, 29.0
        %vm6297 = vcmp.ne.f32.partialorder %v6286, %v6286
        %v6298 = vmul.f32 %v6286, 16.0
        %v6299 = vsel %vm6297, -0.0, %v6298
        %v6300 = vsel %vm6296, nan, %v6299
        %v6301 = vand.u32 2147483647, %v6287
        %vm6302 = vcmp.gt.f32.partialorder %v6301, 29.0
        %vm6303 = vcmp.ne.f32.partialorder %v6287, %v6287
        %v6304 = vmul.f32 %v6287, 16.0
        %v6305 = vsel %vm6303, -0.0, %v6304
        %v6306 = vsel %vm6302, nan, %v6305
        %v6307 = vand.u32 2147483647, %v6288
        %vm6308 = vcmp.gt.f32.partialorder %v6307, 29.0
        %vm6309 = vcmp.ne.f32.partialorder %v6288, %v6288
        %v6310 = vmul.f32 %v6288, 16.0
        %v6311 = vsel %vm6309, -0.0, %v6310
        %v6312 = vsel %vm6308, nan, %v6311
      $region142: #{tpu_custom_call.1} parent=108
        #allocation107 [shape = 'u8[4096]{0}', space=vmem, size = 0x1000, scoped, tag = 'scoped memory for tpu_custom_call.1']
        %6313 = vst [vmem:[#allocation107] sm:$0xff] %v5321
        %v6314 = vld [vmem:[#allocation107] sm:$0x3]
        %v6315 = vunpack.c.0.f8e4m3b11 %v6314
        %v6316 = vunpack.c.1.f8e4m3b11 %v6314
        %v6317 = vunpack.c.2.f8e4m3b11 %v6314
        %v6318 = vunpack.c.3.f8e4m3b11 %v6314
        %v6319 = vand.u32 2147483647, %v6315
        %vm6320 = vcmp.gt.f32.partialorder %v6319, 29.0
        %vm6321 = vcmp.ne.f32.partialorder %v6315, %v6315
        %v6322 = vmul.f32 %v6315, 16.0
        %v6323 = vsel %vm6321, -0.0, %v6322
        %v6324 = vsel %vm6320, nan, %v6323
        %v6325 = vand.u32 2147483647, %v6316
        %vm6326 = vcmp.gt.f32.partialorder %v6325, 29.0
        %vm6327 = vcmp.ne.f32.partialorder %v6316, %v6316
        %v6328 = vmul.f32 %v6316, 16.0
        %v6329 = vsel %vm6327, -0.0, %v6328
        %v6330 = vsel %vm6326, nan, %v6329
        %v6331 = vand.u32 2147483647, %v6317
        %vm6332 = vcmp.gt.f32.partialorder %v6331, 29.0
        %vm6333 = vcmp.ne.f32.partialorder %v6317, %v6317
        %v6334 = vmul.f32 %v6317, 16.0
        %v6335 = vsel %vm6333, -0.0, %v6334
        %v6336 = vsel %vm6332, nan, %v6335
        %v6337 = vand.u32 2147483647, %v6318
        %vm6338 = vcmp.gt.f32.partialorder %v6337, 29.0
        %vm6339 = vcmp.ne.f32.partialorder %v6318, %v6318
        %v6340 = vmul.f32 %v6318, 16.0
        %v6341 = vsel %vm6339, -0.0, %v6340
        %v6342 = vsel %vm6338, nan, %v6341
      $region143: #{tpu_custom_call.1} parent=108
        #allocation108 [shape = 'u8[4096]{0}', space=vmem, size = 0x1000, scoped, tag = 'scoped memory for tpu_custom_call.1']
        %6343 = vst [vmem:[#allocation108] sm:$0xff] %v5322
        %v6344 = vld [vmem:[#allocation108] sm:$0x3]
        %v6345 = vunpack.c.0.f8e4m3b11 %v6344
        %v6346 = vunpack.c.1.f8e4m3b11 %v6344
        %v6347 = vunpack.c.2.f8e4m3b11 %v6344
        %v6348 = vunpack.c.3.f8e4m3b11 %v6344
        %v6349 = vand.u32 2147483647, %v6345
        %vm6350 = vcmp.gt.f32.partialorder %v6349, 29.0
        %vm6351 = vcmp.ne.f32.partialorder %v6345, %v6345
        %v6352 = vmul.f32 %v6345, 16.0
        %v6353 = vsel %vm6351, -0.0, %v6352
        %v6354 = vsel %vm6350, nan, %v6353
        %v6355 = vand.u32 2147483647, %v6346
        %vm6356 = vcmp.gt.f32.partialorder %v6355, 29.0
        %vm6357 = vcmp.ne.f32.partialorder %v6346, %v6346
        %v6358 = vmul.f32 %v6346, 16.0
        %v6359 = vsel %vm6357, -0.0, %v6358
        %v6360 = vsel %vm6356, nan, %v6359
        %v6361 = vand.u32 2147483647, %v6347
        %vm6362 = vcmp.gt.f32.partialorder %v6361, 29.0
        %vm6363 = vcmp.ne.f32.partialorder %v6347, %v6347
        %v6364 = vmul.f32 %v6347, 16.0
        %v6365 = vsel %vm6363, -0.0, %v6364
        %v6366 = vsel %vm6362, nan, %v6365
        %v6367 = vand.u32 2147483647, %v6348
        %vm6368 = vcmp.gt.f32.partialorder %v6367, 29.0
        %vm6369 = vcmp.ne.f32.partialorder %v6348, %v6348
        %v6370 = vmul.f32 %v6348, 16.0
        %v6371 = vsel %vm6369, -0.0, %v6370
        %v6372 = vsel %vm6368, nan, %v6371
      $region144: #{tpu_custom_call.1} parent=108
        #allocation109 [shape = 'u8[4096]{0}', space=vmem, size = 0x1000, scoped, tag = 'scoped memory for tpu_custom_call.1']
        %6373 = vst [vmem:[#allocation109] sm:$0xff] %v5323
        %v6374 = vld [vmem:[#allocation109] sm:$0x3]
        %v6375 = vunpack.c.0.f8e4m3b11 %v6374
        %v6376 = vunpack.c.1.f8e4m3b11 %v6374
        %v6377 = vunpack.c.2.f8e4m3b11 %v6374
        %v6378 = vunpack.c.3.f8e4m3b11 %v6374
        %v6379 = vand.u32 2147483647, %v6375
        %vm6380 = vcmp.gt.f32.partialorder %v6379, 29.0
        %vm6381 = vcmp.ne.f32.partialorder %v6375, %v6375
        %v6382 = vmul.f32 %v6375, 16.0
        %v6383 = vsel %vm6381, -0.0, %v6382
        %v6384 = vsel %vm6380, nan, %v6383
        %v6385 = vand.u32 2147483647, %v6376
        %vm6386 = vcmp.gt.f32.partialorder %v6385, 29.0
        %vm6387 = vcmp.ne.f32.partialorder %v6376, %v6376
        %v6388 = vmul.f32 %v6376, 16.0
        %v6389 = vsel %vm6387, -0.0, %v6388
        %v6390 = vsel %vm6386, nan, %v6389
        %v6391 = vand.u32 2147483647, %v6377
        %vm6392 = vcmp.gt.f32.partialorder %v6391, 29.0
        %vm6393 = vcmp.ne.f32.partialorder %v6377, %v6377
        %v6394 = vmul.f32 %v6377, 16.0
        %v6395 = vsel %vm6393, -0.0, %v6394
        %v6396 = vsel %vm6392, nan, %v6395
        %v6397 = vand.u32 2147483647, %v6378
        %vm6398 = vcmp.gt.f32.partialorder %v6397, 29.0
        %vm6399 = vcmp.ne.f32.partialorder %v6378, %v6378
        %v6400 = vmul.f32 %v6378, 16.0
        %v6401 = vsel %vm6399, -0.0, %v6400
        %v6402 = vsel %vm6398, nan, %v6401
      $region145: #{tpu_custom_call.1} parent=108
        #allocation110 [shape = 'u8[4096]{0}', space=vmem, size = 0x1000, scoped, tag = 'scoped memory for tpu_custom_call.1']
        %6403 = vst [vmem:[#allocation110] sm:$0xff] %v5324
        %v6404 = vld [vmem:[#allocation110] sm:$0x3]
        %v6405 = vunpack.c.0.f8e4m3b11 %v6404
        %v6406 = vunpack.c.1.f8e4m3b11 %v6404
        %v6407 = vunpack.c.2.f8e4m3b11 %v6404
        %v6408 = vunpack.c.3.f8e4m3b11 %v6404
        %v6409 = vand.u32 2147483647, %v6405
        %vm6410 = vcmp.gt.f32.partialorder %v6409, 29.0
        %vm6411 = vcmp.ne.f32.partialorder %v6405, %v6405
        %v6412 = vmul.f32 %v6405, 16.0
        %v6413 = vsel %vm6411, -0.0, %v6412
        %v6414 = vsel %vm6410, nan, %v6413
        %v6415 = vand.u32 2147483647, %v6406
        %vm6416 = vcmp.gt.f32.partialorder %v6415, 29.0
        %vm6417 = vcmp.ne.f32.partialorder %v6406, %v6406
        %v6418 = vmul.f32 %v6406, 16.0
        %v6419 = vsel %vm6417, -0.0, %v6418
        %v6420 = vsel %vm6416, nan, %v6419
        %v6421 = vand.u32 2147483647, %v6407
        %vm6422 = vcmp.gt.f32.partialorder %v6421, 29.0
        %vm6423 = vcmp.ne.f32.partialorder %v6407, %v6407
        %v6424 = vmul.f32 %v6407, 16.0
        %v6425 = vsel %vm6423, -0.0, %v6424
        %v6426 = vsel %vm6422, nan, %v6425
        %v6427 = vand.u32 2147483647, %v6408
        %vm6428 = vcmp.gt.f32.partialorder %v6427, 29.0
        %vm6429 = vcmp.ne.f32.partialorder %v6408, %v6408
        %v6430 = vmul.f32 %v6408, 16.0
        %v6431 = vsel %vm6429, -0.0, %v6430
        %v6432 = vsel %vm6428, nan, %v6431
      $region146: #{tpu_custom_call.1} parent=108
        #allocation111 [shape = 'u8[4096]{0}', space=vmem, size = 0x1000, scoped, tag = 'scoped memory for tpu_custom_call.1']
        %6433 = vst [vmem:[#allocation111] sm:$0xff] %v5325
        %v6434 = vld [vmem:[#allocation111] sm:$0x3]
        %v6435 = vunpack.c.0.f8e4m3b11 %v6434
        %v6436 = vunpack.c.1.f8e4m3b11 %v6434
        %v6437 = vunpack.c.2.f8e4m3b11 %v6434
        %v6438 = vunpack.c.3.f8e4m3b11 %v6434
        %v6439 = vand.u32 2147483647, %v6435
        %vm6440 = vcmp.gt.f32.partialorder %v6439, 29.0
        %vm6441 = vcmp.ne.f32.partialorder %v6435, %v6435
        %v6442 = vmul.f32 %v6435, 16.0
        %v6443 = vsel %vm6441, -0.0, %v6442
        %v6444 = vsel %vm6440, nan, %v6443
        %v6445 = vand.u32 2147483647, %v6436
        %vm6446 = vcmp.gt.f32.partialorder %v6445, 29.0
        %vm6447 = vcmp.ne.f32.partialorder %v6436, %v6436
        %v6448 = vmul.f32 %v6436, 16.0
        %v6449 = vsel %vm6447, -0.0, %v6448
        %v6450 = vsel %vm6446, nan, %v6449
        %v6451 = vand.u32 2147483647, %v6437
        %vm6452 = vcmp.gt.f32.partialorder %v6451, 29.0
        %vm6453 = vcmp.ne.f32.partialorder %v6437, %v6437
        %v6454 = vmul.f32 %v6437, 16.0
        %v6455 = vsel %vm6453, -0.0, %v6454
        %v6456 = vsel %vm6452, nan, %v6455
        %v6457 = vand.u32 2147483647, %v6438
        %vm6458 = vcmp.gt.f32.partialorder %v6457, 29.0
        %vm6459 = vcmp.ne.f32.partialorder %v6438, %v6438
        %v6460 = vmul.f32 %v6438, 16.0
        %v6461 = vsel %vm6459, -0.0, %v6460
        %v6462 = vsel %vm6458, nan, %v6461
      $region147: #{tpu_custom_call.1} parent=108
        #allocation112 [shape = 'u8[4096]{0}', space=vmem, size = 0x1000, scoped, tag = 'scoped memory for tpu_custom_call.1']
        %6463 = vst [vmem:[#allocation112] sm:$0xff] %v5326
        %v6464 = vld [vmem:[#allocation112] sm:$0x3]
        %v6465 = vunpack.c.0.f8e4m3b11 %v6464
        %v6466 = vunpack.c.1.f8e4m3b11 %v6464
        %v6467 = vunpack.c.2.f8e4m3b11 %v6464
        %v6468 = vunpack.c.3.f8e4m3b11 %v6464
        %v6469 = vand.u32 2147483647, %v6465
        %vm6470 = vcmp.gt.f32.partialorder %v6469, 29.0
        %vm6471 = vcmp.ne.f32.partialorder %v6465, %v6465
        %v6472 = vmul.f32 %v6465, 16.0
        %v6473 = vsel %vm6471, -0.0, %v6472
        %v6474 = vsel %vm6470, nan, %v6473
        %v6475 = vand.u32 2147483647, %v6466
        %vm6476 = vcmp.gt.f32.partialorder %v6475, 29.0
        %vm6477 = vcmp.ne.f32.partialorder %v6466, %v6466
        %v6478 = vmul.f32 %v6466, 16.0
        %v6479 = vsel %vm6477, -0.0, %v6478
        %v6480 = vsel %vm6476, nan, %v6479
        %v6481 = vand.u32 2147483647, %v6467
        %vm6482 = vcmp.gt.f32.partialorder %v6481, 29.0
        %vm6483 = vcmp.ne.f32.partialorder %v6467, %v6467
        %v6484 = vmul.f32 %v6467, 16.0
        %v6485 = vsel %vm6483, -0.0, %v6484
        %v6486 = vsel %vm6482, nan, %v6485
        %v6487 = vand.u32 2147483647, %v6468
        %vm6488 = vcmp.gt.f32.partialorder %v6487, 29.0
        %vm6489 = vcmp.ne.f32.partialorder %v6468, %v6468
        %v6490 = vmul.f32 %v6468, 16.0
        %v6491 = vsel %vm6489, -0.0, %v6490
        %v6492 = vsel %vm6488, nan, %v6491
      $region148: #{tpu_custom_call.1} parent=108
        #allocation113 [shape = 'u8[4096]{0}', space=vmem, size = 0x1000, scoped, tag = 'scoped memory for tpu_custom_call.1']
        %6493 = vst [vmem:[#allocation113] sm:$0xff] %v5327
        %v6494 = vld [vmem:[#allocation113] sm:$0x3]
        %v6495 = vunpack.c.0.f8e4m3b11 %v6494
        %v6496 = vunpack.c.1.f8e4m3b11 %v6494
        %v6497 = vunpack.c.2.f8e4m3b11 %v6494
        %v6498 = vunpack.c.3.f8e4m3b11 %v6494
        %v6499 = vand.u32 2147483647, %v6495
        %vm6500 = vcmp.gt.f32.partialorder %v6499, 29.0
        %vm6501 = vcmp.ne.f32.partialorder %v6495, %v6495
        %v6502 = vmul.f32 %v6495, 16.0
        %v6503 = vsel %vm6501, -0.0, %v6502
        %v6504 = vsel %vm6500, nan, %v6503
        %v6505 = vand.u32 2147483647, %v6496
        %vm6506 = vcmp.gt.f32.partialorder %v6505, 29.0
        %vm6507 = vcmp.ne.f32.partialorder %v6496, %v6496
        %v6508 = vmul.f32 %v6496, 16.0
        %v6509 = vsel %vm6507, -0.0, %v6508
        %v6510 = vsel %vm6506, nan, %v6509
        %v6511 = vand.u32 2147483647, %v6497
        %vm6512 = vcmp.gt.f32.partialorder %v6511, 29.0
        %vm6513 = vcmp.ne.f32.partialorder %v6497, %v6497
        %v6514 = vmul.f32 %v6497, 16.0
        %v6515 = vsel %vm6513, -0.0, %v6514
        %v6516 = vsel %vm6512, nan, %v6515
        %v6517 = vand.u32 2147483647, %v6498
        %vm6518 = vcmp.gt.f32.partialorder %v6517, 29.0
        %vm6519 = vcmp.ne.f32.partialorder %v6498, %v6498
        %v6520 = vmul.f32 %v6498, 16.0
        %v6521 = vsel %vm6519, -0.0, %v6520
        %v6522 = vsel %vm6518, nan, %v6521
      $region149: #{tpu_custom_call.1} parent=108
        #allocation114 [shape = 'u8[4096]{0}', space=vmem, size = 0x1000, scoped, tag = 'scoped memory for tpu_custom_call.1']
        %6523 = vst [vmem:[#allocation114] sm:$0xff] %v5328
        %v6524 = vld [vmem:[#allocation114] sm:$0x3]
        %v6525 = vunpack.c.0.f8e4m3b11 %v6524
        %v6526 = vunpack.c.1.f8e4m3b11 %v6524
        %v6527 = vunpack.c.2.f8e4m3b11 %v6524
        %v6528 = vunpack.c.3.f8e4m3b11 %v6524
        %v6529 = vand.u32 2147483647, %v6525
        %vm6530 = vcmp.gt.f32.partialorder %v6529, 29.0
        %vm6531 = vcmp.ne.f32.partialorder %v6525, %v6525
        %v6532 = vmul.f32 %v6525, 16.0
        %v6533 = vsel %vm6531, -0.0, %v6532
        %v6534 = vsel %vm6530, nan, %v6533
        %v6535 = vand.u32 2147483647, %v6526
        %vm6536 = vcmp.gt.f32.partialorder %v6535, 29.0
        %vm6537 = vcmp.ne.f32.partialorder %v6526, %v6526
        %v6538 = vmul.f32 %v6526, 16.0
        %v6539 = vsel %vm6537, -0.0, %v6538
        %v6540 = vsel %vm6536, nan, %v6539
        %v6541 = vand.u32 2147483647, %v6527
        %vm6542 = vcmp.gt.f32.partialorder %v6541, 29.0
        %vm6543 = vcmp.ne.f32.partialorder %v6527, %v6527
        %v6544 = vmul.f32 %v6527, 16.0
        %v6545 = vsel %vm6543, -0.0, %v6544
        %v6546 = vsel %vm6542, nan, %v6545
        %v6547 = vand.u32 2147483647, %v6528
        %vm6548 = vcmp.gt.f32.partialorder %v6547, 29.0
        %vm6549 = vcmp.ne.f32.partialorder %v6528, %v6528
        %v6550 = vmul.f32 %v6528, 16.0
        %v6551 = vsel %vm6549, -0.0, %v6550
        %v6552 = vsel %vm6548, nan, %v6551
      $region150: #{tpu_custom_call.1} parent=108
        #allocation115 [shape = 'u8[4096]{0}', space=vmem, size = 0x1000, scoped, tag = 'scoped memory for tpu_custom_call.1']
        %6553 = vst [vmem:[#allocation115] sm:$0xff] %v5321
        %s6554 = scalar_lea.vmem [#allocation115], 2
        %v6555 = vld [vmem:[%s6554] sm:$0x3]
        %v6556 = vunpack.c.0.f8e4m3b11 %v6555
        %v6557 = vunpack.c.1.f8e4m3b11 %v6555
        %v6558 = vunpack.c.2.f8e4m3b11 %v6555
        %v6559 = vunpack.c.3.f8e4m3b11 %v6555
        %v6560 = vand.u32 2147483647, %v6556
        %vm6561 = vcmp.gt.f32.partialorder %v6560, 29.0
        %vm6562 = vcmp.ne.f32.partialorder %v6556, %v6556
        %v6563 = vmul.f32 %v6556, 16.0
        %v6564 = vsel %vm6562, -0.0, %v6563
        %v6565 = vsel %vm6561, nan, %v6564
        %v6566 = vand.u32 2147483647, %v6557
        %vm6567 = vcmp.gt.f32.partialorder %v6566, 29.0
        %vm6568 = vcmp.ne.f32.partialorder %v6557, %v6557
        %v6569 = vmul.f32 %v6557, 16.0
        %v6570 = vsel %vm6568, -0.0, %v6569
        %v6571 = vsel %vm6567, nan, %v6570
        %v6572 = vand.u32 2147483647, %v6558
        %vm6573 = vcmp.gt.f32.partialorder %v6572, 29.0
        %vm6574 = vcmp.ne.f32.partialorder %v6558, %v6558
        %v6575 = vmul.f32 %v6558, 16.0
        %v6576 = vsel %vm6574, -0.0, %v6575
        %v6577 = vsel %vm6573, nan, %v6576
        %v6578 = vand.u32 2147483647, %v6559
        %vm6579 = vcmp.gt.f32.partialorder %v6578, 29.0
        %vm6580 = vcmp.ne.f32.partialorder %v6559, %v6559
        %v6581 = vmul.f32 %v6559, 16.0
        %v6582 = vsel %vm6580, -0.0, %v6581
        %v6583 = vsel %vm6579, nan, %v6582
      $region151: #{tpu_custom_call.1} parent=108
        #allocation116 [shape = 'u8[4096]{0}', space=vmem, size = 0x1000, scoped, tag = 'scoped memory for tpu_custom_call.1']
        %6584 = vst [vmem:[#allocation116] sm:$0xff] %v5322
        %s6585 = scalar_lea.vmem [#allocation116], 2
        %v6586 = vld [vmem:[%s6585] sm:$0x3]
        %v6587 = vunpack.c.0.f8e4m3b11 %v6586
        %v6588 = vunpack.c.1.f8e4m3b11 %v6586
        %v6589 = vunpack.c.2.f8e4m3b11 %v6586
        %v6590 = vunpack.c.3.f8e4m3b11 %v6586
        %v6591 = vand.u32 2147483647, %v6587
        %vm6592 = vcmp.gt.f32.partialorder %v6591, 29.0
        %vm6593 = vcmp.ne.f32.partialorder %v6587, %v6587
        %v6594 = vmul.f32 %v6587, 16.0
        %v6595 = vsel %vm6593, -0.0, %v6594
        %v6596 = vsel %vm6592, nan, %v6595
        %v6597 = vand.u32 2147483647, %v6588
        %vm6598 = vcmp.gt.f32.partialorder %v6597, 29.0
        %vm6599 = vcmp.ne.f32.partialorder %v6588, %v6588
        %v6600 = vmul.f32 %v6588, 16.0
        %v6601 = vsel %vm6599, -0.0, %v6600
        %v6602 = vsel %vm6598, nan, %v6601
        %v6603 = vand.u32 2147483647, %v6589
        %vm6604 = vcmp.gt.f32.partialorder %v6603, 29.0
        %vm6605 = vcmp.ne.f32.partialorder %v6589, %v6589
        %v6606 = vmul.f32 %v6589, 16.0
        %v6607 = vsel %vm6605, -0.0, %v6606
        %v6608 = vsel %vm6604, nan, %v6607
        %v6609 = vand.u32 2147483647, %v6590
        %vm6610 = vcmp.gt.f32.partialorder %v6609, 29.0
        %vm6611 = vcmp.ne.f32.partialorder %v6590, %v6590
        %v6612 = vmul.f32 %v6590, 16.0
        %v6613 = vsel %vm6611, -0.0, %v6612
        %v6614 = vsel %vm6610, nan, %v6613
      $region152: #{tpu_custom_call.1} parent=108
        #allocation117 [shape = 'u8[4096]{0}', space=vmem, size = 0x1000, scoped, tag = 'scoped memory for tpu_custom_call.1']
        %6615 = vst [vmem:[#allocation117] sm:$0xff] %v5323
        %s6616 = scalar_lea.vmem [#allocation117], 2
        %v6617 = vld [vmem:[%s6616] sm:$0x3]
        %v6618 = vunpack.c.0.f8e4m3b11 %v6617
        %v6619 = vunpack.c.1.f8e4m3b11 %v6617
        %v6620 = vunpack.c.2.f8e4m3b11 %v6617
        %v6621 = vunpack.c.3.f8e4m3b11 %v6617
        %v6622 = vand.u32 2147483647, %v6618
        %vm6623 = vcmp.gt.f32.partialorder %v6622, 29.0
        %vm6624 = vcmp.ne.f32.partialorder %v6618, %v6618
        %v6625 = vmul.f32 %v6618, 16.0
        %v6626 = vsel %vm6624, -0.0, %v6625
        %v6627 = vsel %vm6623, nan, %v6626
        %v6628 = vand.u32 2147483647, %v6619
        %vm6629 = vcmp.gt.f32.partialorder %v6628, 29.0
        %vm6630 = vcmp.ne.f32.partialorder %v6619, %v6619
        %v6631 = vmul.f32 %v6619, 16.0
        %v6632 = vsel %vm6630, -0.0, %v6631
        %v6633 = vsel %vm6629, nan, %v6632
        %v6634 = vand.u32 2147483647, %v6620
        %vm6635 = vcmp.gt.f32.partialorder %v6634, 29.0
        %vm6636 = vcmp.ne.f32.partialorder %v6620, %v6620
        %v6637 = vmul.f32 %v6620, 16.0
        %v6638 = vsel %vm6636, -0.0, %v6637
        %v6639 = vsel %vm6635, nan, %v6638
        %v6640 = vand.u32 2147483647, %v6621
        %vm6641 = vcmp.gt.f32.partialorder %v6640, 29.0
        %vm6642 = vcmp.ne.f32.partialorder %v6621, %v6621
        %v6643 = vmul.f32 %v6621, 16.0
        %v6644 = vsel %vm6642, -0.0, %v6643
        %v6645 = vsel %vm6641, nan, %v6644
      $region153: #{tpu_custom_call.1} parent=108
        #allocation118 [shape = 'u8[4096]{0}', space=vmem, size = 0x1000, scoped, tag = 'scoped memory for tpu_custom_call.1']
        %6646 = vst [vmem:[#allocation118] sm:$0xff] %v5324
        %s6647 = scalar_lea.vmem [#allocation118], 2
        %v6648 = vld [vmem:[%s6647] sm:$0x3]
        %v6649 = vunpack.c.0.f8e4m3b11 %v6648
        %v6650 = vunpack.c.1.f8e4m3b11 %v6648
        %v6651 = vunpack.c.2.f8e4m3b11 %v6648
        %v6652 = vunpack.c.3.f8e4m3b11 %v6648
        %v6653 = vand.u32 2147483647, %v6649
        %vm6654 = vcmp.gt.f32.partialorder %v6653, 29.0
        %vm6655 = vcmp.ne.f32.partialorder %v6649, %v6649
        %v6656 = vmul.f32 %v6649, 16.0
        %v6657 = vsel %vm6655, -0.0, %v6656
        %v6658 = vsel %vm6654, nan, %v6657
        %v6659 = vand.u32 2147483647, %v6650
        %vm6660 = vcmp.gt.f32.partialorder %v6659, 29.0
        %vm6661 = vcmp.ne.f32.partialorder %v6650, %v6650
        %v6662 = vmul.f32 %v6650, 16.0
        %v6663 = vsel %vm6661, -0.0, %v6662
        %v6664 = vsel %vm6660, nan, %v6663
        %v6665 = vand.u32 2147483647, %v6651
        %vm6666 = vcmp.gt.f32.partialorder %v6665, 29.0
        %vm6667 = vcmp.ne.f32.partialorder %v6651, %v6651
        %v6668 = vmul.f32 %v6651, 16.0
        %v6669 = vsel %vm6667, -0.0, %v6668
        %v6670 = vsel %vm6666, nan, %v6669
        %v6671 = vand.u32 2147483647, %v6652
        %vm6672 = vcmp.gt.f32.partialorder %v6671, 29.0
        %vm6673 = vcmp.ne.f32.partialorder %v6652, %v6652
        %v6674 = vmul.f32 %v6652, 16.0
        %v6675 = vsel %vm6673, -0.0, %v6674
        %v6676 = vsel %vm6672, nan, %v6675
      $region154: #{tpu_custom_call.1} parent=108
        #allocation119 [shape = 'u8[4096]{0}', space=vmem, size = 0x1000, scoped, tag = 'scoped memory for tpu_custom_call.1']
        %6677 = vst [vmem:[#allocation119] sm:$0xff] %v5325
        %s6678 = scalar_lea.vmem [#allocation119], 2
        %v6679 = vld [vmem:[%s6678] sm:$0x3]
        %v6680 = vunpack.c.0.f8e4m3b11 %v6679
        %v6681 = vunpack.c.1.f8e4m3b11 %v6679
        %v6682 = vunpack.c.2.f8e4m3b11 %v6679
        %v6683 = vunpack.c.3.f8e4m3b11 %v6679
        %v6684 = vand.u32 2147483647, %v6680
        %vm6685 = vcmp.gt.f32.partialorder %v6684, 29.0
        %vm6686 = vcmp.ne.f32.partialorder %v6680, %v6680
        %v6687 = vmul.f32 %v6680, 16.0
        %v6688 = vsel %vm6686, -0.0, %v6687
        %v6689 = vsel %vm6685, nan, %v6688
        %v6690 = vand.u32 2147483647, %v6681
        %vm6691 = vcmp.gt.f32.partialorder %v6690, 29.0
        %vm6692 = vcmp.ne.f32.partialorder %v6681, %v6681
        %v6693 = vmul.f32 %v6681, 16.0
        %v6694 = vsel %vm6692, -0.0, %v6693
        %v6695 = vsel %vm6691, nan, %v6694
        %v6696 = vand.u32 2147483647, %v6682
        %vm6697 = vcmp.gt.f32.partialorder %v6696, 29.0
        %vm6698 = vcmp.ne.f32.partialorder %v6682, %v6682
        %v6699 = vmul.f32 %v6682, 16.0
        %v6700 = vsel %vm6698, -0.0, %v6699
        %v6701 = vsel %vm6697, nan, %v6700
        %v6702 = vand.u32 2147483647, %v6683
        %vm6703 = vcmp.gt.f32.partialorder %v6702, 29.0
        %vm6704 = vcmp.ne.f32.partialorder %v6683, %v6683
        %v6705 = vmul.f32 %v6683, 16.0
        %v6706 = vsel %vm6704, -0.0, %v6705
        %v6707 = vsel %vm6703, nan, %v6706
      $region155: #{tpu_custom_call.1} parent=108
        #allocation120 [shape = 'u8[4096]{0}', space=vmem, size = 0x1000, scoped, tag = 'scoped memory for tpu_custom_call.1']
        %6708 = vst [vmem:[#allocation120] sm:$0xff] %v5326
        %s6709 = scalar_lea.vmem [#allocation120], 2
        %v6710 = vld [vmem:[%s6709] sm:$0x3]
        %v6711 = vunpack.c.0.f8e4m3b11 %v6710
        %v6712 = vunpack.c.1.f8e4m3b11 %v6710
        %v6713 = vunpack.c.2.f8e4m3b11 %v6710
        %v6714 = vunpack.c.3.f8e4m3b11 %v6710
        %v6715 = vand.u32 2147483647, %v6711
        %vm6716 = vcmp.gt.f32.partialorder %v6715, 29.0
        %vm6717 = vcmp.ne.f32.partialorder %v6711, %v6711
        %v6718 = vmul.f32 %v6711, 16.0
        %v6719 = vsel %vm6717, -0.0, %v6718
        %v6720 = vsel %vm6716, nan, %v6719
        %v6721 = vand.u32 2147483647, %v6712
        %vm6722 = vcmp.gt.f32.partialorder %v6721, 29.0
        %vm6723 = vcmp.ne.f32.partialorder %v6712, %v6712
        %v6724 = vmul.f32 %v6712, 16.0
        %v6725 = vsel %vm6723, -0.0, %v6724
        %v6726 = vsel %vm6722, nan, %v6725
        %v6727 = vand.u32 2147483647, %v6713
        %vm6728 = vcmp.gt.f32.partialorder %v6727, 29.0
        %vm6729 = vcmp.ne.f32.partialorder %v6713, %v6713
        %v6730 = vmul.f32 %v6713, 16.0
        %v6731 = vsel %vm6729, -0.0, %v6730
        %v6732 = vsel %vm6728, nan, %v6731
        %v6733 = vand.u32 2147483647, %v6714
        %vm6734 = vcmp.gt.f32.partialorder %v6733, 29.0
        %vm6735 = vcmp.ne.f32.partialorder %v6714, %v6714
        %v6736 = vmul.f32 %v6714, 16.0
        %v6737 = vsel %vm6735, -0.0, %v6736
        %v6738 = vsel %vm6734, nan, %v6737
      $region156: #{tpu_custom_call.1} parent=108
        #allocation121 [shape = 'u8[4096]{0}', space=vmem, size = 0x1000, scoped, tag = 'scoped memory for tpu_custom_call.1']
        %6739 = vst [vmem:[#allocation121] sm:$0xff] %v5327
        %s6740 = scalar_lea.vmem [#allocation121], 2
        %v6741 = vld [vmem:[%s6740] sm:$0x3]
        %v6742 = vunpack.c.0.f8e4m3b11 %v6741
        %v6743 = vunpack.c.1.f8e4m3b11 %v6741
        %v6744 = vunpack.c.2.f8e4m3b11 %v6741
        %v6745 = vunpack.c.3.f8e4m3b11 %v6741
        %v6746 = vand.u32 2147483647, %v6742
        %vm6747 = vcmp.gt.f32.partialorder %v6746, 29.0
        %vm6748 = vcmp.ne.f32.partialorder %v6742, %v6742
        %v6749 = vmul.f32 %v6742, 16.0
        %v6750 = vsel %vm6748, -0.0, %v6749
        %v6751 = vsel %vm6747, nan, %v6750
        %v6752 = vand.u32 2147483647, %v6743
        %vm6753 = vcmp.gt.f32.partialorder %v6752, 29.0
        %vm6754 = vcmp.ne.f32.partialorder %v6743, %v6743
        %v6755 = vmul.f32 %v6743, 16.0
        %v6756 = vsel %vm6754, -0.0, %v6755
        %v6757 = vsel %vm6753, nan, %v6756
        %v6758 = vand.u32 2147483647, %v6744
        %vm6759 = vcmp.gt.f32.partialorder %v6758, 29.0
        %vm6760 = vcmp.ne.f32.partialorder %v6744, %v6744
        %v6761 = vmul.f32 %v6744, 16.0
        %v6762 = vsel %vm6760, -0.0, %v6761
        %v6763 = vsel %vm6759, nan, %v6762
        %v6764 = vand.u32 2147483647, %v6745
        %vm6765 = vcmp.gt.f32.partialorder %v6764, 29.0
        %vm6766 = vcmp.ne.f32.partialorder %v6745, %v6745
        %v6767 = vmul.f32 %v6745, 16.0
        %v6768 = vsel %vm6766, -0.0, %v6767
        %v6769 = vsel %vm6765, nan, %v6768
      $region157: #{tpu_custom_call.1} parent=108
        #allocation122 [shape = 'u8[4096]{0}', space=vmem, size = 0x1000, scoped, tag = 'scoped memory for tpu_custom_call.1']
        %6770 = vst [vmem:[#allocation122] sm:$0xff] %v5328
        %s6771 = scalar_lea.vmem [#allocation122], 2
        %v6772 = vld [vmem:[%s6771] sm:$0x3]
        %v6773 = vunpack.c.0.f8e4m3b11 %v6772
        %v6774 = vunpack.c.1.f8e4m3b11 %v6772
        %v6775 = vunpack.c.2.f8e4m3b11 %v6772
        %v6776 = vunpack.c.3.f8e4m3b11 %v6772
        %v6777 = vand.u32 2147483647, %v6773
        %vm6778 = vcmp.gt.f32.partialorder %v6777, 29.0
        %vm6779 = vcmp.ne.f32.partialorder %v6773, %v6773
        %v6780 = vmul.f32 %v6773, 16.0
        %v6781 = vsel %vm6779, -0.0, %v6780
        %v6782 = vsel %vm6778, nan, %v6781
        %v6783 = vand.u32 2147483647, %v6774
        %vm6784 = vcmp.gt.f32.partialorder %v6783, 29.0
        %vm6785 = vcmp.ne.f32.partialorder %v6774, %v6774
        %v6786 = vmul.f32 %v6774, 16.0
        %v6787 = vsel %vm6785, -0.0, %v6786
        %v6788 = vsel %vm6784, nan, %v6787
        %v6789 = vand.u32 2147483647, %v6775
        %vm6790 = vcmp.gt.f32.partialorder %v6789, 29.0
        %vm6791 = vcmp.ne.f32.partialorder %v6775, %v6775
        %v6792 = vmul.f32 %v6775, 16.0
        %v6793 = vsel %vm6791, -0.0, %v6792
        %v6794 = vsel %vm6790, nan, %v6793
        %v6795 = vand.u32 2147483647, %v6776
        %vm6796 = vcmp.gt.f32.partialorder %v6795, 29.0
        %vm6797 = vcmp.ne.f32.partialorder %v6776, %v6776
        %v6798 = vmul.f32 %v6776, 16.0
        %v6799 = vsel %vm6797, -0.0, %v6798
        %v6800 = vsel %vm6796, nan, %v6799
      $region158: #{tpu_custom_call.1} parent=108
        #allocation123 [shape = 'u8[4096]{0}', space=vmem, size = 0x1000, scoped, tag = 'scoped memory for tpu_custom_call.1']
        %6801 = vst [vmem:[#allocation123] sm:$0xff] %v5321
        %s6802 = scalar_lea.vmem [#allocation123], 4
        %v6803 = vld [vmem:[%s6802] sm:$0x3]
        %v6804 = vunpack.c.0.f8e4m3b11 %v6803
        %v6805 = vunpack.c.1.f8e4m3b11 %v6803
        %v6806 = vunpack.c.2.f8e4m3b11 %v6803
        %v6807 = vunpack.c.3.f8e4m3b11 %v6803
        %v6808 = vand.u32 2147483647, %v6804
        %vm6809 = vcmp.gt.f32.partialorder %v6808, 29.0
        %vm6810 = vcmp.ne.f32.partialorder %v6804, %v6804
        %v6811 = vmul.f32 %v6804, 16.0
        %v6812 = vsel %vm6810, -0.0, %v6811
        %v6813 = vsel %vm6809, nan, %v6812
        %v6814 = vand.u32 2147483647, %v6805
        %vm6815 = vcmp.gt.f32.partialorder %v6814, 29.0
        %vm6816 = vcmp.ne.f32.partialorder %v6805, %v6805
        %v6817 = vmul.f32 %v6805, 16.0
        %v6818 = vsel %vm6816, -0.0, %v6817
        %v6819 = vsel %vm6815, nan, %v6818
        %v6820 = vand.u32 2147483647, %v6806
        %vm6821 = vcmp.gt.f32.partialorder %v6820, 29.0
        %vm6822 = vcmp.ne.f32.partialorder %v6806, %v6806
        %v6823 = vmul.f32 %v6806, 16.0
        %v6824 = vsel %vm6822, -0.0, %v6823
        %v6825 = vsel %vm6821, nan, %v6824
        %v6826 = vand.u32 2147483647, %v6807
        %vm6827 = vcmp.gt.f32.partialorder %v6826, 29.0
        %vm6828 = vcmp.ne.f32.partialorder %v6807, %v6807
        %v6829 = vmul.f32 %v6807, 16.0
        %v6830 = vsel %vm6828, -0.0, %v6829
        %v6831 = vsel %vm6827, nan, %v6830
      $region159: #{tpu_custom_call.1} parent=108
        #allocation124 [shape = 'u8[4096]{0}', space=vmem, size = 0x1000, scoped, tag = 'scoped memory for tpu_custom_call.1']
        %6832 = vst [vmem:[#allocation124] sm:$0xff] %v5322
        %s6833 = scalar_lea.vmem [#allocation124], 4
        %v6834 = vld [vmem:[%s6833] sm:$0x3]
        %v6835 = vunpack.c.0.f8e4m3b11 %v6834
        %v6836 = vunpack.c.1.f8e4m3b11 %v6834
        %v6837 = vunpack.c.2.f8e4m3b11 %v6834
        %v6838 = vunpack.c.3.f8e4m3b11 %v6834
        %v6839 = vand.u32 2147483647, %v6835
        %vm6840 = vcmp.gt.f32.partialorder %v6839, 29.0
        %vm6841 = vcmp.ne.f32.partialorder %v6835, %v6835
        %v6842 = vmul.f32 %v6835, 16.0
        %v6843 = vsel %vm6841, -0.0, %v6842
        %v6844 = vsel %vm6840, nan, %v6843
        %v6845 = vand.u32 2147483647, %v6836
        %vm6846 = vcmp.gt.f32.partialorder %v6845, 29.0
        %vm6847 = vcmp.ne.f32.partialorder %v6836, %v6836
        %v6848 = vmul.f32 %v6836, 16.0
        %v6849 = vsel %vm6847, -0.0, %v6848
        %v6850 = vsel %vm6846, nan, %v6849
        %v6851 = vand.u32 2147483647, %v6837
        %vm6852 = vcmp.gt.f32.partialorder %v6851, 29.0
        %vm6853 = vcmp.ne.f32.partialorder %v6837, %v6837
        %v6854 = vmul.f32 %v6837, 16.0
        %v6855 = vsel %vm6853, -0.0, %v6854
        %v6856 = vsel %vm6852, nan, %v6855
        %v6857 = vand.u32 2147483647, %v6838
        %vm6858 = vcmp.gt.f32.partialorder %v6857, 29.0
        %vm6859 = vcmp.ne.f32.partialorder %v6838, %v6838
        %v6860 = vmul.f32 %v6838, 16.0
        %v6861 = vsel %vm6859, -0.0, %v6860
        %v6862 = vsel %vm6858, nan, %v6861
      $region160: #{tpu_custom_call.1} parent=108
        #allocation125 [shape = 'u8[4096]{0}', space=vmem, size = 0x1000, scoped, tag = 'scoped memory for tpu_custom_call.1']
        %6863 = vst [vmem:[#allocation125] sm:$0xff] %v5323
        %s6864 = scalar_lea.vmem [#allocation125], 4
        %v6865 = vld [vmem:[%s6864] sm:$0x3]
        %v6866 = vunpack.c.0.f8e4m3b11 %v6865
        %v6867 = vunpack.c.1.f8e4m3b11 %v6865
        %v6868 = vunpack.c.2.f8e4m3b11 %v6865
        %v6869 = vunpack.c.3.f8e4m3b11 %v6865
        %v6870 = vand.u32 2147483647, %v6866
        %vm6871 = vcmp.gt.f32.partialorder %v6870, 29.0
        %vm6872 = vcmp.ne.f32.partialorder %v6866, %v6866
        %v6873 = vmul.f32 %v6866, 16.0
        %v6874 = vsel %vm6872, -0.0, %v6873
        %v6875 = vsel %vm6871, nan, %v6874
        %v6876 = vand.u32 2147483647, %v6867
        %vm6877 = vcmp.gt.f32.partialorder %v6876, 29.0
        %vm6878 = vcmp.ne.f32.partialorder %v6867, %v6867
        %v6879 = vmul.f32 %v6867, 16.0
        %v6880 = vsel %vm6878, -0.0, %v6879
        %v6881 = vsel %vm6877, nan, %v6880
        %v6882 = vand.u32 2147483647, %v6868
        %vm6883 = vcmp.gt.f32.partialorder %v6882, 29.0
        %vm6884 = vcmp.ne.f32.partialorder %v6868, %v6868
        %v6885 = vmul.f32 %v6868, 16.0
        %v6886 = vsel %vm6884, -0.0, %v6885
        %v6887 = vsel %vm6883, nan, %v6886
        %v6888 = vand.u32 2147483647, %v6869
        %vm6889 = vcmp.gt.f32.partialorder %v6888, 29.0
        %vm6890 = vcmp.ne.f32.partialorder %v6869, %v6869
        %v6891 = vmul.f32 %v6869, 16.0
        %v6892 = vsel %vm6890, -0.0, %v6891
        %v6893 = vsel %vm6889, nan, %v6892
      $region161: #{tpu_custom_call.1} parent=108
        #allocation126 [shape = 'u8[4096]{0}', space=vmem, size = 0x1000, scoped, tag = 'scoped memory for tpu_custom_call.1']
        %6894 = vst [vmem:[#allocation126] sm:$0xff] %v5324
        %s6895 = scalar_lea.vmem [#allocation126], 4
        %v6896 = vld [vmem:[%s6895] sm:$0x3]
        %v6897 = vunpack.c.0.f8e4m3b11 %v6896
        %v6898 = vunpack.c.1.f8e4m3b11 %v6896
        %v6899 = vunpack.c.2.f8e4m3b11 %v6896
        %v6900 = vunpack.c.3.f8e4m3b11 %v6896
        %v6901 = vand.u32 2147483647, %v6897
        %vm6902 = vcmp.gt.f32.partialorder %v6901, 29.0
        %vm6903 = vcmp.ne.f32.partialorder %v6897, %v6897
        %v6904 = vmul.f32 %v6897, 16.0
        %v6905 = vsel %vm6903, -0.0, %v6904
        %v6906 = vsel %vm6902, nan, %v6905
        %v6907 = vand.u32 2147483647, %v6898
        %vm6908 = vcmp.gt.f32.partialorder %v6907, 29.0
        %vm6909 = vcmp.ne.f32.partialorder %v6898, %v6898
        %v6910 = vmul.f32 %v6898, 16.0
        %v6911 = vsel %vm6909, -0.0, %v6910
        %v6912 = vsel %vm6908, nan, %v6911
        %v6913 = vand.u32 2147483647, %v6899
        %vm6914 = vcmp.gt.f32.partialorder %v6913, 29.0
        %vm6915 = vcmp.ne.f32.partialorder %v6899, %v6899
        %v6916 = vmul.f32 %v6899, 16.0
        %v6917 = vsel %vm6915, -0.0, %v6916
        %v6918 = vsel %vm6914, nan, %v6917
        %v6919 = vand.u32 2147483647, %v6900
        %vm6920 = vcmp.gt.f32.partialorder %v6919, 29.0
        %vm6921 = vcmp.ne.f32.partialorder %v6900, %v6900
        %v6922 = vmul.f32 %v6900, 16.0
        %v6923 = vsel %vm6921, -0.0, %v6922
        %v6924 = vsel %vm6920, nan, %v6923
      $region162: #{tpu_custom_call.1} parent=108
        #allocation127 [shape = 'u8[4096]{0}', space=vmem, size = 0x1000, scoped, tag = 'scoped memory for tpu_custom_call.1']
        %6925 = vst [vmem:[#allocation127] sm:$0xff] %v5325
        %s6926 = scalar_lea.vmem [#allocation127], 4
        %v6927 = vld [vmem:[%s6926] sm:$0x3]
        %v6928 = vunpack.c.0.f8e4m3b11 %v6927
        %v6929 = vunpack.c.1.f8e4m3b11 %v6927
        %v6930 = vunpack.c.2.f8e4m3b11 %v6927
        %v6931 = vunpack.c.3.f8e4m3b11 %v6927
        %v6932 = vand.u32 2147483647, %v6928
        %vm6933 = vcmp.gt.f32.partialorder %v6932, 29.0
        %vm6934 = vcmp.ne.f32.partialorder %v6928, %v6928
        %v6935 = vmul.f32 %v6928, 16.0
        %v6936 = vsel %vm6934, -0.0, %v6935
        %v6937 = vsel %vm6933, nan, %v6936
        %v6938 = vand.u32 2147483647, %v6929
        %vm6939 = vcmp.gt.f32.partialorder %v6938, 29.0
        %vm6940 = vcmp.ne.f32.partialorder %v6929, %v6929
        %v6941 = vmul.f32 %v6929, 16.0
        %v6942 = vsel %vm6940, -0.0, %v6941
        %v6943 = vsel %vm6939, nan, %v6942
        %v6944 = vand.u32 2147483647, %v6930
        %vm6945 = vcmp.gt.f32.partialorder %v6944, 29.0
        %vm6946 = vcmp.ne.f32.partialorder %v6930, %v6930
        %v6947 = vmul.f32 %v6930, 16.0
        %v6948 = vsel %vm6946, -0.0, %v6947
        %v6949 = vsel %vm6945, nan, %v6948
        %v6950 = vand.u32 2147483647, %v6931
        %vm6951 = vcmp.gt.f32.partialorder %v6950, 29.0
        %vm6952 = vcmp.ne.f32.partialorder %v6931, %v6931
        %v6953 = vmul.f32 %v6931, 16.0
        %v6954 = vsel %vm6952, -0.0, %v6953
        %v6955 = vsel %vm6951, nan, %v6954
      $region163: #{tpu_custom_call.1} parent=108
        #allocation128 [shape = 'u8[4096]{0}', space=vmem, size = 0x1000, scoped, tag = 'scoped memory for tpu_custom_call.1']
        %6956 = vst [vmem:[#allocation128] sm:$0xff] %v5326
        %s6957 = scalar_lea.vmem [#allocation128], 4
        %v6958 = vld [vmem:[%s6957] sm:$0x3]
        %v6959 = vunpack.c.0.f8e4m3b11 %v6958
        %v6960 = vunpack.c.1.f8e4m3b11 %v6958
        %v6961 = vunpack.c.2.f8e4m3b11 %v6958
        %v6962 = vunpack.c.3.f8e4m3b11 %v6958
        %v6963 = vand.u32 2147483647, %v6959
        %vm6964 = vcmp.gt.f32.partialorder %v6963, 29.0
        %vm6965 = vcmp.ne.f32.partialorder %v6959, %v6959
        %v6966 = vmul.f32 %v6959, 16.0
        %v6967 = vsel %vm6965, -0.0, %v6966
        %v6968 = vsel %vm6964, nan, %v6967
        %v6969 = vand.u32 2147483647, %v6960
        %vm6970 = vcmp.gt.f32.partialorder %v6969, 29.0
        %vm6971 = vcmp.ne.f32.partialorder %v6960, %v6960
        %v6972 = vmul.f32 %v6960, 16.0
        %v6973 = vsel %vm6971, -0.0, %v6972
        %v6974 = vsel %vm6970, nan, %v6973
        %v6975 = vand.u32 2147483647, %v6961
        %vm6976 = vcmp.gt.f32.partialorder %v6975, 29.0
        %vm6977 = vcmp.ne.f32.partialorder %v6961, %v6961
        %v6978 = vmul.f32 %v6961, 16.0
        %v6979 = vsel %vm6977, -0.0, %v6978
        %v6980 = vsel %vm6976, nan, %v6979
        %v6981 = vand.u32 2147483647, %v6962
        %vm6982 = vcmp.gt.f32.partialorder %v6981, 29.0
        %vm6983 = vcmp.ne.f32.partialorder %v6962, %v6962
        %v6984 = vmul.f32 %v6962, 16.0
        %v6985 = vsel %vm6983, -0.0, %v6984
        %v6986 = vsel %vm6982, nan, %v6985
      $region164: #{tpu_custom_call.1} parent=108
        #allocation129 [shape = 'u8[4096]{0}', space=vmem, size = 0x1000, scoped, tag = 'scoped memory for tpu_custom_call.1']
        %6987 = vst [vmem:[#allocation129] sm:$0xff] %v5327
        %s6988 = scalar_lea.vmem [#allocation129], 4
        %v6989 = vld [vmem:[%s6988] sm:$0x3]
        %v6990 = vunpack.c.0.f8e4m3b11 %v6989
        %v6991 = vunpack.c.1.f8e4m3b11 %v6989
        %v6992 = vunpack.c.2.f8e4m3b11 %v6989
        %v6993 = vunpack.c.3.f8e4m3b11 %v6989
        %v6994 = vand.u32 2147483647, %v6990
        %vm6995 = vcmp.gt.f32.partialorder %v6994, 29.0
        %vm6996 = vcmp.ne.f32.partialorder %v6990, %v6990
        %v6997 = vmul.f32 %v6990, 16.0
        %v6998 = vsel %vm6996, -0.0, %v6997
        %v6999 = vsel %vm6995, nan, %v6998
        %v7000 = vand.u32 2147483647, %v6991
        %vm7001 = vcmp.gt.f32.partialorder %v7000, 29.0
        %vm7002 = vcmp.ne.f32.partialorder %v6991, %v6991
        %v7003 = vmul.f32 %v6991, 16.0
        %v7004 = vsel %vm7002, -0.0, %v7003
        %v7005 = vsel %vm7001, nan, %v7004
        %v7006 = vand.u32 2147483647, %v6992
        %vm7007 = vcmp.gt.f32.partialorder %v7006, 29.0
        %vm7008 = vcmp.ne.f32.partialorder %v6992, %v6992
        %v7009 = vmul.f32 %v6992, 16.0
        %v7010 = vsel %vm7008, -0.0, %v7009
        %v7011 = vsel %vm7007, nan, %v7010
        %v7012 = vand.u32 2147483647, %v6993
        %vm7013 = vcmp.gt.f32.partialorder %v7012, 29.0
        %vm7014 = vcmp.ne.f32.partialorder %v6993, %v6993
        %v7015 = vmul.f32 %v6993, 16.0
        %v7016 = vsel %vm7014, -0.0, %v7015
        %v7017 = vsel %vm7013, nan, %v7016
      $region165: #{tpu_custom_call.1} parent=108
        #allocation130 [shape = 'u8[4096]{0}', space=vmem, size = 0x1000, scoped, tag = 'scoped memory for tpu_custom_call.1']
        %7018 = vst [vmem:[#allocation130] sm:$0xff] %v5328
        %s7019 = scalar_lea.vmem [#allocation130], 4
        %v7020 = vld [vmem:[%s7019] sm:$0x3]
        %v7021 = vunpack.c.0.f8e4m3b11 %v7020
        %v7022 = vunpack.c.1.f8e4m3b11 %v7020
        %v7023 = vunpack.c.2.f8e4m3b11 %v7020
        %v7024 = vunpack.c.3.f8e4m3b11 %v7020
        %v7025 = vand.u32 2147483647, %v7021
        %vm7026 = vcmp.gt.f32.partialorder %v7025, 29.0
        %vm7027 = vcmp.ne.f32.partialorder %v7021, %v7021
        %v7028 = vmul.f32 %v7021, 16.0
        %v7029 = vsel %vm7027, -0.0, %v7028
        %v7030 = vsel %vm7026, nan, %v7029
        %v7031 = vand.u32 2147483647, %v7022
        %vm7032 = vcmp.gt.f32.partialorder %v7031, 29.0
        %vm7033 = vcmp.ne.f32.partialorder %v7022, %v7022
        %v7034 = vmul.f32 %v7022, 16.0
        %v7035 = vsel %vm7033, -0.0, %v7034
        %v7036 = vsel %vm7032, nan, %v7035
        %v7037 = vand.u32 2147483647, %v7023
        %vm7038 = vcmp.gt.f32.partialorder %v7037, 29.0
        %vm7039 = vcmp.ne.f32.partialorder %v7023, %v7023
        %v7040 = vmul.f32 %v7023, 16.0
        %v7041 = vsel %vm7039, -0.0, %v7040
        %v7042 = vsel %vm7038, nan, %v7041
        %v7043 = vand.u32 2147483647, %v7024
        %vm7044 = vcmp.gt.f32.partialorder %v7043, 29.0
        %vm7045 = vcmp.ne.f32.partialorder %v7024, %v7024
        %v7046 = vmul.f32 %v7024, 16.0
        %v7047 = vsel %vm7045, -0.0, %v7046
        %v7048 = vsel %vm7044, nan, %v7047
      $region166: #{tpu_custom_call.1} parent=108
        #allocation131 [shape = 'u8[4096]{0}', space=vmem, size = 0x1000, scoped, tag = 'scoped memory for tpu_custom_call.1']
        %7049 = vst [vmem:[#allocation131] sm:$0xff] %v5321
        %s7050 = scalar_lea.vmem [#allocation131], 6
        %v7051 = vld [vmem:[%s7050] sm:$0x3]
        %v7052 = vunpack.c.0.f8e4m3b11 %v7051
        %v7053 = vunpack.c.1.f8e4m3b11 %v7051
        %v7054 = vunpack.c.2.f8e4m3b11 %v7051
        %v7055 = vunpack.c.3.f8e4m3b11 %v7051
        %v7056 = vand.u32 2147483647, %v7052
        %vm7057 = vcmp.gt.f32.partialorder %v7056, 29.0
        %vm7058 = vcmp.ne.f32.partialorder %v7052, %v7052
        %v7059 = vmul.f32 %v7052, 16.0
        %v7060 = vsel %vm7058, -0.0, %v7059
        %v7061 = vsel %vm7057, nan, %v7060
        %v7062 = vand.u32 2147483647, %v7053
        %vm7063 = vcmp.gt.f32.partialorder %v7062, 29.0
        %vm7064 = vcmp.ne.f32.partialorder %v7053, %v7053
        %v7065 = vmul.f32 %v7053, 16.0
        %v7066 = vsel %vm7064, -0.0, %v7065
        %v7067 = vsel %vm7063, nan, %v7066
        %v7068 = vand.u32 2147483647, %v7054
        %vm7069 = vcmp.gt.f32.partialorder %v7068, 29.0
        %vm7070 = vcmp.ne.f32.partialorder %v7054, %v7054
        %v7071 = vmul.f32 %v7054, 16.0
        %v7072 = vsel %vm7070, -0.0, %v7071
        %v7073 = vsel %vm7069, nan, %v7072
        %v7074 = vand.u32 2147483647, %v7055
        %vm7075 = vcmp.gt.f32.partialorder %v7074, 29.0
        %vm7076 = vcmp.ne.f32.partialorder %v7055, %v7055
        %v7077 = vmul.f32 %v7055, 16.0
        %v7078 = vsel %vm7076, -0.0, %v7077
        %v7079 = vsel %vm7075, nan, %v7078
      $region167: #{tpu_custom_call.1} parent=108
        #allocation132 [shape = 'u8[4096]{0}', space=vmem, size = 0x1000, scoped, tag = 'scoped memory for tpu_custom_call.1']
        %7080 = vst [vmem:[#allocation132] sm:$0xff] %v5322
        %s7081 = scalar_lea.vmem [#allocation132], 6
        %v7082 = vld [vmem:[%s7081] sm:$0x3]
        %v7083 = vunpack.c.0.f8e4m3b11 %v7082
        %v7084 = vunpack.c.1.f8e4m3b11 %v7082
        %v7085 = vunpack.c.2.f8e4m3b11 %v7082
        %v7086 = vunpack.c.3.f8e4m3b11 %v7082
        %v7087 = vand.u32 2147483647, %v7083
        %vm7088 = vcmp.gt.f32.partialorder %v7087, 29.0
        %vm7089 = vcmp.ne.f32.partialorder %v7083, %v7083
        %v7090 = vmul.f32 %v7083, 16.0
        %v7091 = vsel %vm7089, -0.0, %v7090
        %v7092 = vsel %vm7088, nan, %v7091
        %v7093 = vand.u32 2147483647, %v7084
        %vm7094 = vcmp.gt.f32.partialorder %v7093, 29.0
        %vm7095 = vcmp.ne.f32.partialorder %v7084, %v7084
        %v7096 = vmul.f32 %v7084, 16.0
        %v7097 = vsel %vm7095, -0.0, %v7096
        %v7098 = vsel %vm7094, nan, %v7097
        %v7099 = vand.u32 2147483647, %v7085
        %vm7100 = vcmp.gt.f32.partialorder %v7099, 29.0
        %vm7101 = vcmp.ne.f32.partialorder %v7085, %v7085
        %v7102 = vmul.f32 %v7085, 16.0
        %v7103 = vsel %vm7101, -0.0, %v7102
        %v7104 = vsel %vm7100, nan, %v7103
        %v7105 = vand.u32 2147483647, %v7086
        %vm7106 = vcmp.gt.f32.partialorder %v7105, 29.0
        %vm7107 = vcmp.ne.f32.partialorder %v7086, %v7086
        %v7108 = vmul.f32 %v7086, 16.0
        %v7109 = vsel %vm7107, -0.0, %v7108
        %v7110 = vsel %vm7106, nan, %v7109
      $region168: #{tpu_custom_call.1} parent=108
        #allocation133 [shape = 'u8[4096]{0}', space=vmem, size = 0x1000, scoped, tag = 'scoped memory for tpu_custom_call.1']
        %7111 = vst [vmem:[#allocation133] sm:$0xff] %v5323
        %s7112 = scalar_lea.vmem [#allocation133], 6
        %v7113 = vld [vmem:[%s7112] sm:$0x3]
        %v7114 = vunpack.c.0.f8e4m3b11 %v7113
        %v7115 = vunpack.c.1.f8e4m3b11 %v7113
        %v7116 = vunpack.c.2.f8e4m3b11 %v7113
        %v7117 = vunpack.c.3.f8e4m3b11 %v7113
        %v7118 = vand.u32 2147483647, %v7114
        %vm7119 = vcmp.gt.f32.partialorder %v7118, 29.0
        %vm7120 = vcmp.ne.f32.partialorder %v7114, %v7114
        %v7121 = vmul.f32 %v7114, 16.0
        %v7122 = vsel %vm7120, -0.0, %v7121
        %v7123 = vsel %vm7119, nan, %v7122
        %v7124 = vand.u32 2147483647, %v7115
        %vm7125 = vcmp.gt.f32.partialorder %v7124, 29.0
        %vm7126 = vcmp.ne.f32.partialorder %v7115, %v7115
        %v7127 = vmul.f32 %v7115, 16.0
        %v7128 = vsel %vm7126, -0.0, %v7127
        %v7129 = vsel %vm7125, nan, %v7128
        %v7130 = vand.u32 2147483647, %v7116
        %vm7131 = vcmp.gt.f32.partialorder %v7130, 29.0
        %vm7132 = vcmp.ne.f32.partialorder %v7116, %v7116
        %v7133 = vmul.f32 %v7116, 16.0
        %v7134 = vsel %vm7132, -0.0, %v7133
        %v7135 = vsel %vm7131, nan, %v7134
        %v7136 = vand.u32 2147483647, %v7117
        %vm7137 = vcmp.gt.f32.partialorder %v7136, 29.0
        %vm7138 = vcmp.ne.f32.partialorder %v7117, %v7117
        %v7139 = vmul.f32 %v7117, 16.0
        %v7140 = vsel %vm7138, -0.0, %v7139
        %v7141 = vsel %vm7137, nan, %v7140
      $region169: #{tpu_custom_call.1} parent=108
        #allocation134 [shape = 'u8[4096]{0}', space=vmem, size = 0x1000, scoped, tag = 'scoped memory for tpu_custom_call.1']
        %7142 = vst [vmem:[#allocation134] sm:$0xff] %v5324
        %s7143 = scalar_lea.vmem [#allocation134], 6
        %v7144 = vld [vmem:[%s7143] sm:$0x3]
        %v7145 = vunpack.c.0.f8e4m3b11 %v7144
        %v7146 = vunpack.c.1.f8e4m3b11 %v7144
        %v7147 = vunpack.c.2.f8e4m3b11 %v7144
        %v7148 = vunpack.c.3.f8e4m3b11 %v7144
        %v7149 = vand.u32 2147483647, %v7145
        %vm7150 = vcmp.gt.f32.partialorder %v7149, 29.0
        %vm7151 = vcmp.ne.f32.partialorder %v7145, %v7145
        %v7152 = vmul.f32 %v7145, 16.0
        %v7153 = vsel %vm7151, -0.0, %v7152
        %v7154 = vsel %vm7150, nan, %v7153
        %v7155 = vand.u32 2147483647, %v7146
        %vm7156 = vcmp.gt.f32.partialorder %v7155, 29.0
        %vm7157 = vcmp.ne.f32.partialorder %v7146, %v7146
        %v7158 = vmul.f32 %v7146, 16.0
        %v7159 = vsel %vm7157, -0.0, %v7158
        %v7160 = vsel %vm7156, nan, %v7159
        %v7161 = vand.u32 2147483647, %v7147
        %vm7162 = vcmp.gt.f32.partialorder %v7161, 29.0
        %vm7163 = vcmp.ne.f32.partialorder %v7147, %v7147
        %v7164 = vmul.f32 %v7147, 16.0
        %v7165 = vsel %vm7163, -0.0, %v7164
        %v7166 = vsel %vm7162, nan, %v7165
        %v7167 = vand.u32 2147483647, %v7148
        %vm7168 = vcmp.gt.f32.partialorder %v7167, 29.0
        %vm7169 = vcmp.ne.f32.partialorder %v7148, %v7148
        %v7170 = vmul.f32 %v7148, 16.0
        %v7171 = vsel %vm7169, -0.0, %v7170
        %v7172 = vsel %vm7168, nan, %v7171
      $region170: #{tpu_custom_call.1} parent=108
        #allocation135 [shape = 'u8[4096]{0}', space=vmem, size = 0x1000, scoped, tag = 'scoped memory for tpu_custom_call.1']
        %7173 = vst [vmem:[#allocation135] sm:$0xff] %v5325
        %s7174 = scalar_lea.vmem [#allocation135], 6
        %v7175 = vld [vmem:[%s7174] sm:$0x3]
        %v7176 = vunpack.c.0.f8e4m3b11 %v7175
        %v7177 = vunpack.c.1.f8e4m3b11 %v7175
        %v7178 = vunpack.c.2.f8e4m3b11 %v7175
        %v7179 = vunpack.c.3.f8e4m3b11 %v7175
        %v7180 = vand.u32 2147483647, %v7176
        %vm7181 = vcmp.gt.f32.partialorder %v7180, 29.0
        %vm7182 = vcmp.ne.f32.partialorder %v7176, %v7176
        %v7183 = vmul.f32 %v7176, 16.0
        %v7184 = vsel %vm7182, -0.0, %v7183
        %v7185 = vsel %vm7181, nan, %v7184
        %v7186 = vand.u32 2147483647, %v7177
        %vm7187 = vcmp.gt.f32.partialorder %v7186, 29.0
        %vm7188 = vcmp.ne.f32.partialorder %v7177, %v7177
        %v7189 = vmul.f32 %v7177, 16.0
        %v7190 = vsel %vm7188, -0.0, %v7189
        %v7191 = vsel %vm7187, nan, %v7190
        %v7192 = vand.u32 2147483647, %v7178
        %vm7193 = vcmp.gt.f32.partialorder %v7192, 29.0
        %vm7194 = vcmp.ne.f32.partialorder %v7178, %v7178
        %v7195 = vmul.f32 %v7178, 16.0
        %v7196 = vsel %vm7194, -0.0, %v7195
        %v7197 = vsel %vm7193, nan, %v7196
        %v7198 = vand.u32 2147483647, %v7179
        %vm7199 = vcmp.gt.f32.partialorder %v7198, 29.0
        %vm7200 = vcmp.ne.f32.partialorder %v7179, %v7179
        %v7201 = vmul.f32 %v7179, 16.0
        %v7202 = vsel %vm7200, -0.0, %v7201
        %v7203 = vsel %vm7199, nan, %v7202
      $region171: #{tpu_custom_call.1} parent=108
        #allocation136 [shape = 'u8[4096]{0}', space=vmem, size = 0x1000, scoped, tag = 'scoped memory for tpu_custom_call.1']
        %7204 = vst [vmem:[#allocation136] sm:$0xff] %v5326
        %s7205 = scalar_lea.vmem [#allocation136], 6
        %v7206 = vld [vmem:[%s7205] sm:$0x3]
        %v7207 = vunpack.c.0.f8e4m3b11 %v7206
        %v7208 = vunpack.c.1.f8e4m3b11 %v7206
        %v7209 = vunpack.c.2.f8e4m3b11 %v7206
        %v7210 = vunpack.c.3.f8e4m3b11 %v7206
        %v7211 = vand.u32 2147483647, %v7207
        %vm7212 = vcmp.gt.f32.partialorder %v7211, 29.0
        %vm7213 = vcmp.ne.f32.partialorder %v7207, %v7207
        %v7214 = vmul.f32 %v7207, 16.0
        %v7215 = vsel %vm7213, -0.0, %v7214
        %v7216 = vsel %vm7212, nan, %v7215
        %v7217 = vand.u32 2147483647, %v7208
        %vm7218 = vcmp.gt.f32.partialorder %v7217, 29.0
        %vm7219 = vcmp.ne.f32.partialorder %v7208, %v7208
        %v7220 = vmul.f32 %v7208, 16.0
        %v7221 = vsel %vm7219, -0.0, %v7220
        %v7222 = vsel %vm7218, nan, %v7221
        %v7223 = vand.u32 2147483647, %v7209
        %vm7224 = vcmp.gt.f32.partialorder %v7223, 29.0
        %vm7225 = vcmp.ne.f32.partialorder %v7209, %v7209
        %v7226 = vmul.f32 %v7209, 16.0
        %v7227 = vsel %vm7225, -0.0, %v7226
        %v7228 = vsel %vm7224, nan, %v7227
        %v7229 = vand.u32 2147483647, %v7210
        %vm7230 = vcmp.gt.f32.partialorder %v7229, 29.0
        %vm7231 = vcmp.ne.f32.partialorder %v7210, %v7210
        %v7232 = vmul.f32 %v7210, 16.0
        %v7233 = vsel %vm7231, -0.0, %v7232
        %v7234 = vsel %vm7230, nan, %v7233
      $region172: #{tpu_custom_call.1} parent=108
        #allocation137 [shape = 'u8[4096]{0}', space=vmem, size = 0x1000, scoped, tag = 'scoped memory for tpu_custom_call.1']
        %7235 = vst [vmem:[#allocation137] sm:$0xff] %v5327
        %s7236 = scalar_lea.vmem [#allocation137], 6
        %v7237 = vld [vmem:[%s7236] sm:$0x3]
        %v7238 = vunpack.c.0.f8e4m3b11 %v7237
        %v7239 = vunpack.c.1.f8e4m3b11 %v7237
        %v7240 = vunpack.c.2.f8e4m3b11 %v7237
        %v7241 = vunpack.c.3.f8e4m3b11 %v7237
        %v7242 = vand.u32 2147483647, %v7238
        %vm7243 = vcmp.gt.f32.partialorder %v7242, 29.0
        %vm7244 = vcmp.ne.f32.partialorder %v7238, %v7238
        %v7245 = vmul.f32 %v7238, 16.0
        %v7246 = vsel %vm7244, -0.0, %v7245
        %v7247 = vsel %vm7243, nan, %v7246
        %v7248 = vand.u32 2147483647, %v7239
        %vm7249 = vcmp.gt.f32.partialorder %v7248, 29.0
        %vm7250 = vcmp.ne.f32.partialorder %v7239, %v7239
        %v7251 = vmul.f32 %v7239, 16.0
        %v7252 = vsel %vm7250, -0.0, %v7251
        %v7253 = vsel %vm7249, nan, %v7252
        %v7254 = vand.u32 2147483647, %v7240
        %vm7255 = vcmp.gt.f32.partialorder %v7254, 29.0
        %vm7256 = vcmp.ne.f32.partialorder %v7240, %v7240
        %v7257 = vmul.f32 %v7240, 16.0
        %v7258 = vsel %vm7256, -0.0, %v7257
        %v7259 = vsel %vm7255, nan, %v7258
        %v7260 = vand.u32 2147483647, %v7241
        %vm7261 = vcmp.gt.f32.partialorder %v7260, 29.0
        %vm7262 = vcmp.ne.f32.partialorder %v7241, %v7241
        %v7263 = vmul.f32 %v7241, 16.0
        %v7264 = vsel %vm7262, -0.0, %v7263
        %v7265 = vsel %vm7261, nan, %v7264
      $region173: #{tpu_custom_call.1} parent=108
        #allocation138 [shape = 'u8[4096]{0}', space=vmem, size = 0x1000, scoped, tag = 'scoped memory for tpu_custom_call.1']
        %7266 = vst [vmem:[#allocation138] sm:$0xff] %v5328
        %s7267 = scalar_lea.vmem [#allocation138], 6
        %v7268 = vld [vmem:[%s7267] sm:$0x3]
        %v7269 = vunpack.c.0.f8e4m3b11 %v7268
        %v7270 = vunpack.c.1.f8e4m3b11 %v7268
        %v7271 = vunpack.c.2.f8e4m3b11 %v7268
        %v7272 = vunpack.c.3.f8e4m3b11 %v7268
        %v7273 = vand.u32 2147483647, %v7269
        %vm7274 = vcmp.gt.f32.partialorder %v7273, 29.0
        %vm7275 = vcmp.ne.f32.partialorder %v7269, %v7269
        %v7276 = vmul.f32 %v7269, 16.0
        %v7277 = vsel %vm7275, -0.0, %v7276
        %v7278 = vsel %vm7274, nan, %v7277
        %v7279 = vand.u32 2147483647, %v7270
        %vm7280 = vcmp.gt.f32.partialorder %v7279, 29.0
        %vm7281 = vcmp.ne.f32.partialorder %v7270, %v7270
        %v7282 = vmul.f32 %v7270, 16.0
        %v7283 = vsel %vm7281, -0.0, %v7282
        %v7284 = vsel %vm7280, nan, %v7283
        %v7285 = vand.u32 2147483647, %v7271
        %vm7286 = vcmp.gt.f32.partialorder %v7285, 29.0
        %vm7287 = vcmp.ne.f32.partialorder %v7271, %v7271
        %v7288 = vmul.f32 %v7271, 16.0
        %v7289 = vsel %vm7287, -0.0, %v7288
        %v7290 = vsel %vm7286, nan, %v7289
        %v7291 = vand.u32 2147483647, %v7272
        %vm7292 = vcmp.gt.f32.partialorder %v7291, 29.0
        %vm7293 = vcmp.ne.f32.partialorder %v7272, %v7272
        %v7294 = vmul.f32 %v7272, 16.0
        %v7295 = vsel %vm7293, -0.0, %v7294
        %v7296 = vsel %vm7292, nan, %v7295
      %v7297 = vpack.c.bf16 %v5581, %v5340
      %v7298 = vpack.c.bf16 %v5612, %v5370
      %v7299 = vpack.c.bf16 %v5643, %v5400
      %v7300 = vpack.c.bf16 %v5674, %v5430
      %v7301 = vpack.c.bf16 %v5705, %v5460
      %v7302 = vpack.c.bf16 %v5736, %v5490
      %v7303 = vpack.c.bf16 %v5767, %v5520
      %v7304 = vpack.c.bf16 %v5798, %v5550
      %v7305 = vpack.c.bf16 %v6077, %v5829
      %v7306 = vpack.c.bf16 %v6108, %v5860
      %v7307 = vpack.c.bf16 %v6139, %v5891
      %v7308 = vpack.c.bf16 %v6170, %v5922
      %v7309 = vpack.c.bf16 %v6201, %v5953
      %v7310 = vpack.c.bf16 %v6232, %v5984
      %v7311 = vpack.c.bf16 %v6263, %v6015
      %v7312 = vpack.c.bf16 %v6294, %v6046
      %v7313 = vpack.c.bf16 %v6565, %v6324
      %v7314 = vpack.c.bf16 %v6596, %v6354
      %v7315 = vpack.c.bf16 %v6627, %v6384
      %v7316 = vpack.c.bf16 %v6658, %v6414
      %v7317 = vpack.c.bf16 %v6689, %v6444
      %v7318 = vpack.c.bf16 %v6720, %v6474
      %v7319 = vpack.c.bf16 %v6751, %v6504
      %v7320 = vpack.c.bf16 %v6782, %v6534
      %v7321 = vpack.c.bf16 %v7061, %v6813
      %v7322 = vpack.c.bf16 %v7092, %v6844
      %v7323 = vpack.c.bf16 %v7123, %v6875
      %v7324 = vpack.c.bf16 %v7154, %v6906
      %v7325 = vpack.c.bf16 %v7185, %v6937
      %v7326 = vpack.c.bf16 %v7216, %v6968
      %v7327 = vpack.c.bf16 %v7247, %v6999
      %v7328 = vpack.c.bf16 %v7278, %v7030
      %v7329 = vld [vmem:[#allocation2] sm:$0xff]
      %v7330 = vld [vmem:[#allocation2 + $0x8] sm:$0xff]
      %v7331 = vld [vmem:[#allocation2 + $0x10] sm:$0xff]
      %v7332 = vld [vmem:[#allocation2 + $0x18] sm:$0xff]
      %v7333 = vld [vmem:[#allocation2 + $0x20] sm:$0xff]
      %v7334 = vld [vmem:[#allocation2 + $0x28] sm:$0xff]
      %v7335 = vld [vmem:[#allocation2 + $0x30] sm:$0xff]
      %v7336 = vld [vmem:[#allocation2 + $0x38] sm:$0xff]
      %v7337 = vld [vmem:[#allocation2 + $0x40] sm:$0xff]
      %v7338 = vld [vmem:[#allocation2 + $0x48] sm:$0xff]
      %v7339 = vld [vmem:[#allocation2 + $0x50] sm:$0xff]
      %v7340 = vld [vmem:[#allocation2 + $0x58] sm:$0xff]
      %v7341 = vld [vmem:[#allocation2 + $0x60] sm:$0xff]
      %v7342 = vld [vmem:[#allocation2 + $0x68] sm:$0xff]
      %v7343 = vld [vmem:[#allocation2 + $0x70] sm:$0xff]
      %v7344 = vld [vmem:[#allocation2 + $0x78] sm:$0xff]
      %v7345 = vld [vmem:[#allocation2 + $0x80] sm:$0xff]
      %v7346 = vld [vmem:[#allocation2 + $0x88] sm:$0xff]
      %v7347 = vld [vmem:[#allocation2 + $0x90] sm:$0xff]
      %v7348 = vld [vmem:[#allocation2 + $0x98] sm:$0xff]
      %v7349 = vld [vmem:[#allocation2 + $0xa0] sm:$0xff]
      %v7350 = vld [vmem:[#allocation2 + $0xa8] sm:$0xff]
      %v7351 = vld [vmem:[#allocation2 + $0xb0] sm:$0xff]
      %v7352 = vld [vmem:[#allocation2 + $0xb8] sm:$0xff]
      %v7353 = vld [vmem:[#allocation2 + $0xc0] sm:$0xff]
      %v7354 = vld [vmem:[#allocation2 + $0xc8] sm:$0xff]
      %v7355 = vld [vmem:[#allocation2 + $0xd0] sm:$0xff]
      %v7356 = vld [vmem:[#allocation2 + $0xd8] sm:$0xff]
      %v7357 = vld [vmem:[#allocation2 + $0xe0] sm:$0xff]
      %v7358 = vld [vmem:[#allocation2 + $0xe8] sm:$0xff]
      %v7359 = vld [vmem:[#allocation2 + $0xf0] sm:$0xff]
      %v7360 = vld [vmem:[#allocation2 + $0xf8] sm:$0xff]
      %v7361 = vld [vmem:[#allocation2 + $0x100] sm:$0xff]
      %v7362 = vld [vmem:[#allocation2 + $0x108] sm:$0xff]
      %v7363 = vld [vmem:[#allocation2 + $0x110] sm:$0xff]
      %v7364 = vld [vmem:[#allocation2 + $0x118] sm:$0xff]
      %v7365 = vld [vmem:[#allocation2 + $0x120] sm:$0xff]
      %v7366 = vld [vmem:[#allocation2 + $0x128] sm:$0xff]
      %v7367 = vld [vmem:[#allocation2 + $0x130] sm:$0xff]
      %v7368 = vld [vmem:[#allocation2 + $0x138] sm:$0xff]
      %v7369 = vld [vmem:[#allocation2 + $0x140] sm:$0xff]
      %v7370 = vld [vmem:[#allocation2 + $0x148] sm:$0xff]
      %v7371 = vld [vmem:[#allocation2 + $0x150] sm:$0xff]
      %v7372 = vld [vmem:[#allocation2 + $0x158] sm:$0xff]
      %v7373 = vld [vmem:[#allocation2 + $0x160] sm:$0xff]
      %v7374 = vld [vmem:[#allocation2 + $0x168] sm:$0xff]
      %v7375 = vld [vmem:[#allocation2 + $0x170] sm:$0xff]
      %v7376 = vld [vmem:[#allocation2 + $0x178] sm:$0xff]
      %v7377 = vld [vmem:[#allocation2 + $0x180] sm:$0xff]
      %v7378 = vld [vmem:[#allocation2 + $0x188] sm:$0xff]
      %v7379 = vld [vmem:[#allocation2 + $0x190] sm:$0xff]
      %v7380 = vld [vmem:[#allocation2 + $0x198] sm:$0xff]
      %v7381 = vld [vmem:[#allocation2 + $0x1a0] sm:$0xff]
      %v7382 = vld [vmem:[#allocation2 + $0x1a8] sm:$0xff]
      %v7383 = vld [vmem:[#allocation2 + $0x1b0] sm:$0xff]
      %v7384 = vld [vmem:[#allocation2 + $0x1b8] sm:$0xff]
      %v7385 = vld [vmem:[#allocation2 + $0x1c0] sm:$0xff]
      %v7386 = vld [vmem:[#allocation2 + $0x1c8] sm:$0xff]
      %v7387 = vld [vmem:[#allocation2 + $0x1d0] sm:$0xff]
      %v7388 = vld [vmem:[#allocation2 + $0x1d8] sm:$0xff]
      %v7389 = vld [vmem:[#allocation2 + $0x1e0] sm:$0xff]
      %v7390 = vld [vmem:[#allocation2 + $0x1e8] sm:$0xff]
      %v7391 = vld [vmem:[#allocation2 + $0x1f0] sm:$0xff]
      %v7392 = vld [vmem:[#allocation2 + $0x1f8] sm:$0xff]
      %v7393 = vld [vmem:[#allocation2 + $0x200] sm:$0xff]
      %v7394 = vld [vmem:[#allocation2 + $0x208] sm:$0xff]
      %v7395 = vld [vmem:[#allocation2 + $0x210] sm:$0xff]
      %v7396 = vld [vmem:[#allocation2 + $0x218] sm:$0xff]
      %v7397 = vld [vmem:[#allocation2 + $0x220] sm:$0xff]
      %v7398 = vld [vmem:[#allocation2 + $0x228] sm:$0xff]
      %v7399 = vld [vmem:[#allocation2 + $0x230] sm:$0xff]
      %v7400 = vld [vmem:[#allocation2 + $0x238] sm:$0xff]
      %v7401 = vld [vmem:[#allocation2 + $0x240] sm:$0xff]
      %v7402 = vld [vmem:[#allocation2 + $0x248] sm:$0xff]
      %v7403 = vld [vmem:[#allocation2 + $0x250] sm:$0xff]
      %v7404 = vld [vmem:[#allocation2 + $0x258] sm:$0xff]
      %v7405 = vld [vmem:[#allocation2 + $0x260] sm:$0xff]
      %v7406 = vld [vmem:[#allocation2 + $0x268] sm:$0xff]
      %v7407 = vld [vmem:[#allocation2 + $0x270] sm:$0xff]
      %v7408 = vld [vmem:[#allocation2 + $0x278] sm:$0xff]
      %v7409 = vld [vmem:[#allocation2 + $0x280] sm:$0xff]
      %v7410 = vld [vmem:[#allocation2 + $0x288] sm:$0xff]
      %v7411 = vld [vmem:[#allocation2 + $0x290] sm:$0xff]
      %v7412 = vld [vmem:[#allocation2 + $0x298] sm:$0xff]
      %v7413 = vld [vmem:[#allocation2 + $0x2a0] sm:$0xff]
      %v7414 = vld [vmem:[#allocation2 + $0x2a8] sm:$0xff]
      %v7415 = vld [vmem:[#allocation2 + $0x2b0] sm:$0xff]
      %v7416 = vld [vmem:[#allocation2 + $0x2b8] sm:$0xff]
      %v7417 = vld [vmem:[#allocation2 + $0x2c0] sm:$0xff]
      %v7418 = vld [vmem:[#allocation2 + $0x2c8] sm:$0xff]
      %v7419 = vld [vmem:[#allocation2 + $0x2d0] sm:$0xff]
      %v7420 = vld [vmem:[#allocation2 + $0x2d8] sm:$0xff]
      %v7421 = vld [vmem:[#allocation2 + $0x2e0] sm:$0xff]
      %v7422 = vld [vmem:[#allocation2 + $0x2e8] sm:$0xff]
      %v7423 = vld [vmem:[#allocation2 + $0x2f0] sm:$0xff]
      %v7424 = vld [vmem:[#allocation2 + $0x2f8] sm:$0xff]
      %v7425 = vld [vmem:[#allocation2 + $0x300] sm:$0xff]
      %v7426 = vld [vmem:[#allocation2 + $0x308] sm:$0xff]
      %v7427 = vld [vmem:[#allocation2 + $0x310] sm:$0xff]
      %v7428 = vld [vmem:[#allocation2 + $0x318] sm:$0xff]
      %v7429 = vld [vmem:[#allocation2 + $0x320] sm:$0xff]
      %v7430 = vld [vmem:[#allocation2 + $0x328] sm:$0xff]
      %v7431 = vld [vmem:[#allocation2 + $0x330] sm:$0xff]
      %v7432 = vld [vmem:[#allocation2 + $0x338] sm:$0xff]
      %v7433 = vld [vmem:[#allocation2 + $0x340] sm:$0xff]
      %v7434 = vld [vmem:[#allocation2 + $0x348] sm:$0xff]
      %v7435 = vld [vmem:[#allocation2 + $0x350] sm:$0xff]
      %v7436 = vld [vmem:[#allocation2 + $0x358] sm:$0xff]
      %v7437 = vld [vmem:[#allocation2 + $0x360] sm:$0xff]
      %v7438 = vld [vmem:[#allocation2 + $0x368] sm:$0xff]
      %v7439 = vld [vmem:[#allocation2 + $0x370] sm:$0xff]
      %v7440 = vld [vmem:[#allocation2 + $0x378] sm:$0xff]
      %v7441 = vld [vmem:[#allocation2 + $0x380] sm:$0xff]
      %v7442 = vld [vmem:[#allocation2 + $0x388] sm:$0xff]
      %v7443 = vld [vmem:[#allocation2 + $0x390] sm:$0xff]
      %v7444 = vld [vmem:[#allocation2 + $0x398] sm:$0xff]
      %v7445 = vld [vmem:[#allocation2 + $0x3a0] sm:$0xff]
      %v7446 = vld [vmem:[#allocation2 + $0x3a8] sm:$0xff]
      %v7447 = vld [vmem:[#allocation2 + $0x3b0] sm:$0xff]
      %v7448 = vld [vmem:[#allocation2 + $0x3b8] sm:$0xff]
      %v7449 = vld [vmem:[#allocation2 + $0x3c0] sm:$0xff]
      %v7450 = vld [vmem:[#allocation2 + $0x3c8] sm:$0xff]
      %v7451 = vld [vmem:[#allocation2 + $0x3d0] sm:$0xff]
      %v7452 = vld [vmem:[#allocation2 + $0x3d8] sm:$0xff]
      %v7453 = vld [vmem:[#allocation2 + $0x3e0] sm:$0xff]
      %v7454 = vld [vmem:[#allocation2 + $0x3e8] sm:$0xff]
      %v7455 = vld [vmem:[#allocation2 + $0x3f0] sm:$0xff]
      %v7456 = vld [vmem:[#allocation2 + $0x3f8] sm:$0xff]
      %v7585 = vunpack.c.l.b16 %v7329
      %v7586 = vunpack.c.h.b16 %v7329
      %v7587 = vunpack.c.l.b16 %v7330
      %v7588 = vunpack.c.h.b16 %v7330
      %v7589 = vunpack.c.l.b16 %v7331
      %v7590 = vunpack.c.h.b16 %v7331
      %v7591 = vunpack.c.l.b16 %v7332
      %v7592 = vunpack.c.h.b16 %v7332
      %v7593 = vunpack.c.l.b16 %v7333
      %v7594 = vunpack.c.h.b16 %v7333
      %v7595 = vunpack.c.l.b16 %v7334
      %v7596 = vunpack.c.h.b16 %v7334
      %v7597 = vunpack.c.l.b16 %v7335
      %v7598 = vunpack.c.h.b16 %v7335
      %v7599 = vunpack.c.l.b16 %v7336
      %v7600 = vunpack.c.h.b16 %v7336
      %v7601 = vunpack.c.l.b16 %v7337
      %v7602 = vunpack.c.h.b16 %v7337
      %v7603 = vunpack.c.l.b16 %v7338
      %v7604 = vunpack.c.h.b16 %v7338
      %v7605 = vunpack.c.l.b16 %v7339
      %v7606 = vunpack.c.h.b16 %v7339
      %v7607 = vunpack.c.l.b16 %v7340
      %v7608 = vunpack.c.h.b16 %v7340
      %v7609 = vunpack.c.l.b16 %v7341
      %v7610 = vunpack.c.h.b16 %v7341
      %v7611 = vunpack.c.l.b16 %v7342
      %v7612 = vunpack.c.h.b16 %v7342
      %v7613 = vunpack.c.l.b16 %v7343
      %v7614 = vunpack.c.h.b16 %v7343
      %v7615 = vunpack.c.l.b16 %v7344
      %v7616 = vunpack.c.h.b16 %v7344
      %v7617 = vunpack.c.l.b16 %v7345
      %v7618 = vunpack.c.h.b16 %v7345
      %v7619 = vunpack.c.l.b16 %v7346
      %v7620 = vunpack.c.h.b16 %v7346
      %v7621 = vunpack.c.l.b16 %v7347
      %v7622 = vunpack.c.h.b16 %v7347
      %v7623 = vunpack.c.l.b16 %v7348
      %v7624 = vunpack.c.h.b16 %v7348
      %v7625 = vunpack.c.l.b16 %v7349
      %v7626 = vunpack.c.h.b16 %v7349
      %v7627 = vunpack.c.l.b16 %v7350
      %v7628 = vunpack.c.h.b16 %v7350
      %v7629 = vunpack.c.l.b16 %v7351
      %v7630 = vunpack.c.h.b16 %v7351
      %v7631 = vunpack.c.l.b16 %v7352
      %v7632 = vunpack.c.h.b16 %v7352
      %v7633 = vunpack.c.l.b16 %v7353
      %v7634 = vunpack.c.h.b16 %v7353
      %v7635 = vunpack.c.l.b16 %v7354
      %v7636 = vunpack.c.h.b16 %v7354
      %v7637 = vunpack.c.l.b16 %v7355
      %v7638 = vunpack.c.h.b16 %v7355
      %v7639 = vunpack.c.l.b16 %v7356
      %v7640 = vunpack.c.h.b16 %v7356
      %v7641 = vunpack.c.l.b16 %v7357
      %v7642 = vunpack.c.h.b16 %v7357
      %v7643 = vunpack.c.l.b16 %v7358
      %v7644 = vunpack.c.h.b16 %v7358
      %v7645 = vunpack.c.l.b16 %v7359
      %v7646 = vunpack.c.h.b16 %v7359
      %v7647 = vunpack.c.l.b16 %v7360
      %v7648 = vunpack.c.h.b16 %v7360
      %v7649 = vunpack.c.l.b16 %v7361
      %v7650 = vunpack.c.h.b16 %v7361
      %v7651 = vunpack.c.l.b16 %v7362
      %v7652 = vunpack.c.h.b16 %v7362
      %v7653 = vunpack.c.l.b16 %v7363
      %v7654 = vunpack.c.h.b16 %v7363
      %v7655 = vunpack.c.l.b16 %v7364
      %v7656 = vunpack.c.h.b16 %v7364
      %v7657 = vunpack.c.l.b16 %v7365
      %v7658 = vunpack.c.h.b16 %v7365
      %v7659 = vunpack.c.l.b16 %v7366
      %v7660 = vunpack.c.h.b16 %v7366
      %v7661 = vunpack.c.l.b16 %v7367
      %v7662 = vunpack.c.h.b16 %v7367
      %v7663 = vunpack.c.l.b16 %v7368
      %v7664 = vunpack.c.h.b16 %v7368
      %v7665 = vunpack.c.l.b16 %v7369
      %v7666 = vunpack.c.h.b16 %v7369
      %v7667 = vunpack.c.l.b16 %v7370
      %v7668 = vunpack.c.h.b16 %v7370
      %v7669 = vunpack.c.l.b16 %v7371
      %v7670 = vunpack.c.h.b16 %v7371
      %v7671 = vunpack.c.l.b16 %v7372
      %v7672 = vunpack.c.h.b16 %v7372
      %v7673 = vunpack.c.l.b16 %v7373
      %v7674 = vunpack.c.h.b16 %v7373
      %v7675 = vunpack.c.l.b16 %v7374
      %v7676 = vunpack.c.h.b16 %v7374
      %v7677 = vunpack.c.l.b16 %v7375
      %v7678 = vunpack.c.h.b16 %v7375
      %v7679 = vunpack.c.l.b16 %v7376
      %v7680 = vunpack.c.h.b16 %v7376
      %v7681 = vunpack.c.l.b16 %v7377
      %v7682 = vunpack.c.h.b16 %v7377
      %v7683 = vunpack.c.l.b16 %v7378
      %v7684 = vunpack.c.h.b16 %v7378
      %v7685 = vunpack.c.l.b16 %v7379
      %v7686 = vunpack.c.h.b16 %v7379
      %v7687 = vunpack.c.l.b16 %v7380
      %v7688 = vunpack.c.h.b16 %v7380
      %v7689 = vunpack.c.l.b16 %v7381
      %v7690 = vunpack.c.h.b16 %v7381
      %v7691 = vunpack.c.l.b16 %v7382
      %v7692 = vunpack.c.h.b16 %v7382
      %v7693 = vunpack.c.l.b16 %v7383
      %v7694 = vunpack.c.h.b16 %v7383
      %v7695 = vunpack.c.l.b16 %v7384
      %v7696 = vunpack.c.h.b16 %v7384
      %v7697 = vunpack.c.l.b16 %v7385
      %v7698 = vunpack.c.h.b16 %v7385
      %v7699 = vunpack.c.l.b16 %v7386
      %v7700 = vunpack.c.h.b16 %v7386
      %v7701 = vunpack.c.l.b16 %v7387
      %v7702 = vunpack.c.h.b16 %v7387
      %v7703 = vunpack.c.l.b16 %v7388
      %v7704 = vunpack.c.h.b16 %v7388
      %v7705 = vunpack.c.l.b16 %v7389
      %v7706 = vunpack.c.h.b16 %v7389
      %v7707 = vunpack.c.l.b16 %v7390
      %v7708 = vunpack.c.h.b16 %v7390
      %v7709 = vunpack.c.l.b16 %v7391
      %v7710 = vunpack.c.h.b16 %v7391
      %v7711 = vunpack.c.l.b16 %v7392
      %v7712 = vunpack.c.h.b16 %v7392
      %v7713 = vunpack.c.l.b16 %v7393
      %v7714 = vunpack.c.h.b16 %v7393
      %v7715 = vunpack.c.l.b16 %v7394
      %v7716 = vunpack.c.h.b16 %v7394
      %v7717 = vunpack.c.l.b16 %v7395
      %v7718 = vunpack.c.h.b16 %v7395
      %v7719 = vunpack.c.l.b16 %v7396
      %v7720 = vunpack.c.h.b16 %v7396
      %v7721 = vunpack.c.l.b16 %v7397
      %v7722 = vunpack.c.h.b16 %v7397
      %v7723 = vunpack.c.l.b16 %v7398
      %v7724 = vunpack.c.h.b16 %v7398
      %v7725 = vunpack.c.l.b16 %v7399
      %v7726 = vunpack.c.h.b16 %v7399
      %v7727 = vunpack.c.l.b16 %v7400
      %v7728 = vunpack.c.h.b16 %v7400
      %v7729 = vunpack.c.l.b16 %v7401
      %v7730 = vunpack.c.h.b16 %v7401
      %v7731 = vunpack.c.l.b16 %v7402
      %v7732 = vunpack.c.h.b16 %v7402
      %v7733 = vunpack.c.l.b16 %v7403
      %v7734 = vunpack.c.h.b16 %v7403
      %v7735 = vunpack.c.l.b16 %v7404
      %v7736 = vunpack.c.h.b16 %v7404
      %v7737 = vunpack.c.l.b16 %v7405
      %v7738 = vunpack.c.h.b16 %v7405
      %v7739 = vunpack.c.l.b16 %v7406
      %v7740 = vunpack.c.h.b16 %v7406
      %v7741 = vunpack.c.l.b16 %v7407
      %v7742 = vunpack.c.h.b16 %v7407
      %v7743 = vunpack.c.l.b16 %v7408
      %v7744 = vunpack.c.h.b16 %v7408
      %v7745 = vunpack.c.l.b16 %v7409
      %v7746 = vunpack.c.h.b16 %v7409
      %v7747 = vunpack.c.l.b16 %v7410
      %v7748 = vunpack.c.h.b16 %v7410
      %v7749 = vunpack.c.l.b16 %v7411
      %v7750 = vunpack.c.h.b16 %v7411
      %v7751 = vunpack.c.l.b16 %v7412
      %v7752 = vunpack.c.h.b16 %v7412
      %v7753 = vunpack.c.l.b16 %v7413
      %v7754 = vunpack.c.h.b16 %v7413
      %v7755 = vunpack.c.l.b16 %v7414
      %v7756 = vunpack.c.h.b16 %v7414
      %v7757 = vunpack.c.l.b16 %v7415
      %v7758 = vunpack.c.h.b16 %v7415
      %v7759 = vunpack.c.l.b16 %v7416
      %v7760 = vunpack.c.h.b16 %v7416
      %v7761 = vunpack.c.l.b16 %v7417
      %v7762 = vunpack.c.h.b16 %v7417
      %v7763 = vunpack.c.l.b16 %v7418
      %v7764 = vunpack.c.h.b16 %v7418
      %v7765 = vunpack.c.l.b16 %v7419
      %v7766 = vunpack.c.h.b16 %v7419
      %v7767 = vunpack.c.l.b16 %v7420
      %v7768 = vunpack.c.h.b16 %v7420
      %v7769 = vunpack.c.l.b16 %v7421
      %v7770 = vunpack.c.h.b16 %v7421
      %v7771 = vunpack.c.l.b16 %v7422
      %v7772 = vunpack.c.h.b16 %v7422
      %v7773 = vunpack.c.l.b16 %v7423
      %v7774 = vunpack.c.h.b16 %v7423
      %v7775 = vunpack.c.l.b16 %v7424
      %v7776 = vunpack.c.h.b16 %v7424
      %v7777 = vunpack.c.l.b16 %v7425
      %v7778 = vunpack.c.h.b16 %v7425
      %v7779 = vunpack.c.l.b16 %v7426
      %v7780 = vunpack.c.h.b16 %v7426
      %v7781 = vunpack.c.l.b16 %v7427
      %v7782 = vunpack.c.h.b16 %v7427
      %v7783 = vunpack.c.l.b16 %v7428
      %v7784 = vunpack.c.h.b16 %v7428
      %v7785 = vunpack.c.l.b16 %v7429
      %v7786 = vunpack.c.h.b16 %v7429
      %v7787 = vunpack.c.l.b16 %v7430
      %v7788 = vunpack.c.h.b16 %v7430
      %v7789 = vunpack.c.l.b16 %v7431
      %v7790 = vunpack.c.h.b16 %v7431
      %v7791 = vunpack.c.l.b16 %v7432
      %v7792 = vunpack.c.h.b16 %v7432
      %v7793 = vunpack.c.l.b16 %v7433
      %v7794 = vunpack.c.h.b16 %v7433
      %v7795 = vunpack.c.l.b16 %v7434
      %v7796 = vunpack.c.h.b16 %v7434
      %v7797 = vunpack.c.l.b16 %v7435
      %v7798 = vunpack.c.h.b16 %v7435
      %v7799 = vunpack.c.l.b16 %v7436
      %v7800 = vunpack.c.h.b16 %v7436
      %v7801 = vunpack.c.l.b16 %v7437
      %v7802 = vunpack.c.h.b16 %v7437
      %v7803 = vunpack.c.l.b16 %v7438
      %v7804 = vunpack.c.h.b16 %v7438
      %v7805 = vunpack.c.l.b16 %v7439
      %v7806 = vunpack.c.h.b16 %v7439
      %v7807 = vunpack.c.l.b16 %v7440
      %v7808 = vunpack.c.h.b16 %v7440
      %v7809 = vunpack.c.l.b16 %v7441
      %v7810 = vunpack.c.h.b16 %v7441
      %v7811 = vunpack.c.l.b16 %v7442
      %v7812 = vunpack.c.h.b16 %v7442
      %v7813 = vunpack.c.l.b16 %v7443
      %v7814 = vunpack.c.h.b16 %v7443
      %v7815 = vunpack.c.l.b16 %v7444
      %v7816 = vunpack.c.h.b16 %v7444
      %v7817 = vunpack.c.l.b16 %v7445
      %v7818 = vunpack.c.h.b16 %v7445
      %v7819 = vunpack.c.l.b16 %v7446
      %v7820 = vunpack.c.h.b16 %v7446
      %v7821 = vunpack.c.l.b16 %v7447
      %v7822 = vunpack.c.h.b16 %v7447
      %v7823 = vunpack.c.l.b16 %v7448
      %v7824 = vunpack.c.h.b16 %v7448
      %v7825 = vunpack.c.l.b16 %v7449
      %v7826 = vunpack.c.h.b16 %v7449
      %v7827 = vunpack.c.l.b16 %v7450
      %v7828 = vunpack.c.h.b16 %v7450
      %v7829 = vunpack.c.l.b16 %v7451
      %v7830 = vunpack.c.h.b16 %v7451
      %v7831 = vunpack.c.l.b16 %v7452
      %v7832 = vunpack.c.h.b16 %v7452
      %v7833 = vunpack.c.l.b16 %v7453
      %v7834 = vunpack.c.h.b16 %v7453
      %v7835 = vunpack.c.l.b16 %v7454
      %v7836 = vunpack.c.h.b16 %v7454
      %v7837 = vunpack.c.l.b16 %v7455
      %v7838 = vunpack.c.h.b16 %v7455
      %v7839 = vunpack.c.l.b16 %v7456
      %v7840 = vunpack.c.h.b16 %v7456
      %v7841 = vpack.c.b16 %v7587, %v7585
      %v7842 = vpack.c.b16 %v7588, %v7586
      %v7843 = vpack.c.b16 %v7591, %v7589
      %v7844 = vpack.c.b16 %v7592, %v7590
      %v7845 = vpack.c.b16 %v7595, %v7593
      %v7846 = vpack.c.b16 %v7596, %v7594
      %v7847 = vpack.c.b16 %v7599, %v7597
      %v7848 = vpack.c.b16 %v7600, %v7598
      %v7849 = vpack.c.b16 %v7603, %v7601
      %v7850 = vpack.c.b16 %v7604, %v7602
      %v7851 = vpack.c.b16 %v7607, %v7605
      %v7852 = vpack.c.b16 %v7608, %v7606
      %v7853 = vpack.c.b16 %v7611, %v7609
      %v7854 = vpack.c.b16 %v7612, %v7610
      %v7855 = vpack.c.b16 %v7615, %v7613
      %v7856 = vpack.c.b16 %v7616, %v7614
      %v7857 = vpack.c.b16 %v7619, %v7617
      %v7858 = vpack.c.b16 %v7620, %v7618
      %v7859 = vpack.c.b16 %v7623, %v7621
      %v7860 = vpack.c.b16 %v7624, %v7622
      %v7861 = vpack.c.b16 %v7627, %v7625
      %v7862 = vpack.c.b16 %v7628, %v7626
      %v7863 = vpack.c.b16 %v7631, %v7629
      %v7864 = vpack.c.b16 %v7632, %v7630
      %v7865 = vpack.c.b16 %v7635, %v7633
      %v7866 = vpack.c.b16 %v7636, %v7634
      %v7867 = vpack.c.b16 %v7639, %v7637
      %v7868 = vpack.c.b16 %v7640, %v7638
      %v7869 = vpack.c.b16 %v7643, %v7641
      %v7870 = vpack.c.b16 %v7644, %v7642
      %v7871 = vpack.c.b16 %v7647, %v7645
      %v7872 = vpack.c.b16 %v7648, %v7646
      %v7873 = vpack.c.b16 %v7651, %v7649
      %v7874 = vpack.c.b16 %v7652, %v7650
      %v7875 = vpack.c.b16 %v7655, %v7653
      %v7876 = vpack.c.b16 %v7656, %v7654
      %v7877 = vpack.c.b16 %v7659, %v7657
      %v7878 = vpack.c.b16 %v7660, %v7658
      %v7879 = vpack.c.b16 %v7663, %v7661
      %v7880 = vpack.c.b16 %v7664, %v7662
      %v7881 = vpack.c.b16 %v7667, %v7665
      %v7882 = vpack.c.b16 %v7668, %v7666
      %v7883 = vpack.c.b16 %v7671, %v7669
      %v7884 = vpack.c.b16 %v7672, %v7670
      %v7885 = vpack.c.b16 %v7675, %v7673
      %v7886 = vpack.c.b16 %v7676, %v7674
      %v7887 = vpack.c.b16 %v7679, %v7677
      %v7888 = vpack.c.b16 %v7680, %v7678
      %v7889 = vpack.c.b16 %v7683, %v7681
      %v7890 = vpack.c.b16 %v7684, %v7682
      %v7891 = vpack.c.b16 %v7687, %v7685
      %v7892 = vpack.c.b16 %v7688, %v7686
      %v7893 = vpack.c.b16 %v7691, %v7689
      %v7894 = vpack.c.b16 %v7692, %v7690
      %v7895 = vpack.c.b16 %v7695, %v7693
      %v7896 = vpack.c.b16 %v7696, %v7694
      %v7897 = vpack.c.b16 %v7699, %v7697
      %v7898 = vpack.c.b16 %v7700, %v7698
      %v7899 = vpack.c.b16 %v7703, %v7701
      %v7900 = vpack.c.b16 %v7704, %v7702
      %v7901 = vpack.c.b16 %v7707, %v7705
      %v7902 = vpack.c.b16 %v7708, %v7706
      %v7903 = vpack.c.b16 %v7711, %v7709
      %v7904 = vpack.c.b16 %v7712, %v7710
      %v7905 = vpack.c.b16 %v7715, %v7713
      %v7906 = vpack.c.b16 %v7716, %v7714
      %v7907 = vpack.c.b16 %v7719, %v7717
      %v7908 = vpack.c.b16 %v7720, %v7718
      %v7909 = vpack.c.b16 %v7723, %v7721
      %v7910 = vpack.c.b16 %v7724, %v7722
      %v7911 = vpack.c.b16 %v7727, %v7725
      %v7912 = vpack.c.b16 %v7728, %v7726
      %v7913 = vpack.c.b16 %v7731, %v7729
      %v7914 = vpack.c.b16 %v7732, %v7730
      %v7915 = vpack.c.b16 %v7735, %v7733
      %v7916 = vpack.c.b16 %v7736, %v7734
      %v7917 = vpack.c.b16 %v7739, %v7737
      %v7918 = vpack.c.b16 %v7740, %v7738
      %v7919 = vpack.c.b16 %v7743, %v7741
      %v7920 = vpack.c.b16 %v7744, %v7742
      %v7921 = vpack.c.b16 %v7747, %v7745
      %v7922 = vpack.c.b16 %v7748, %v7746
      %v7923 = vpack.c.b16 %v7751, %v7749
      %v7924 = vpack.c.b16 %v7752, %v7750
      %v7925 = vpack.c.b16 %v7755, %v7753
      %v7926 = vpack.c.b16 %v7756, %v7754
      %v7927 = vpack.c.b16 %v7759, %v7757
      %v7928 = vpack.c.b16 %v7760, %v7758
      %v7929 = vpack.c.b16 %v7763, %v7761
      %v7930 = vpack.c.b16 %v7764, %v7762
      %v7931 = vpack.c.b16 %v7767, %v7765
      %v7932 = vpack.c.b16 %v7768, %v7766
      %v7933 = vpack.c.b16 %v7771, %v7769
      %v7934 = vpack.c.b16 %v7772, %v7770
      %v7935 = vpack.c.b16 %v7775, %v7773
      %v7936 = vpack.c.b16 %v7776, %v7774
      %v7937 = vpack.c.b16 %v7779, %v7777
      %v7938 = vpack.c.b16 %v7780, %v7778
      %v7939 = vpack.c.b16 %v7783, %v7781
      %v7940 = vpack.c.b16 %v7784, %v7782
      %v7941 = vpack.c.b16 %v7787, %v7785
      %v7942 = vpack.c.b16 %v7788, %v7786
      %v7943 = vpack.c.b16 %v7791, %v7789
      %v7944 = vpack.c.b16 %v7792, %v7790
      %v7945 = vpack.c.b16 %v7795, %v7793
      %v7946 = vpack.c.b16 %v7796, %v7794
      %v7947 = vpack.c.b16 %v7799, %v7797
      %v7948 = vpack.c.b16 %v7800, %v7798
      %v7949 = vpack.c.b16 %v7803, %v7801
      %v7950 = vpack.c.b16 %v7804, %v7802
      %v7951 = vpack.c.b16 %v7807, %v7805
      %v7952 = vpack.c.b16 %v7808, %v7806
      %v7953 = vpack.c.b16 %v7811, %v7809
      %v7954 = vpack.c.b16 %v7812, %v7810
      %v7955 = vpack.c.b16 %v7815, %v7813
      %v7956 = vpack.c.b16 %v7816, %v7814
      %v7957 = vpack.c.b16 %v7819, %v7817
      %v7958 = vpack.c.b16 %v7820, %v7818
      %v7959 = vpack.c.b16 %v7823, %v7821
      %v7960 = vpack.c.b16 %v7824, %v7822
      %v7961 = vpack.c.b16 %v7827, %v7825
      %v7962 = vpack.c.b16 %v7828, %v7826
      %v7963 = vpack.c.b16 %v7831, %v7829
      %v7964 = vpack.c.b16 %v7832, %v7830
      %v7965 = vpack.c.b16 %v7835, %v7833
      %v7966 = vpack.c.b16 %v7836, %v7834
      %v7967 = vpack.c.b16 %v7839, %v7837
      %v7968 = vpack.c.b16 %v7840, %v7838
      %8097 = vmatpush.bf16.msra.mxu0 %v7855
      %8098 = vmatpush.bf16.msra.mxu0 %v7853
      %8099 = vmatpush.bf16.msra.mxu0 %v7851
      %8100 = vmatpush.bf16.msra.mxu0 %v7849
      %8101 = vmatpush.bf16.msra.mxu0 %v7847
      %8102 = vmatpush.bf16.msra.mxu0 %v7845
      %8103 = vmatpush.bf16.msra.mxu0 %v7843
      %8104 = vmatpush.bf16.msra.mxu0 %v7841
      %8105 = vmatmul.bf16.gmra.mxu0 %v7297
      %v8106 = vpop.f32.mrf.mxu0
      %v8107 = vadd.f32 0.0, %v8106
      %v8108 = vpop.f32.mrf.mxu0
      %v8109 = vadd.f32 0.0, %v8108
      %8110 = vmatmul.bf16.gmra.mxu0 %v7305
      %v8111 = vpop.f32.mrf.mxu0
      %v8112 = vadd.f32 0.0, %v8111
      %v8113 = vpop.f32.mrf.mxu0
      %v8114 = vadd.f32 0.0, %v8113
      %8115 = vmatmul.bf16.gmra.mxu0 %v7313
      %v8116 = vpop.f32.mrf.mxu0
      %v8117 = vadd.f32 0.0, %v8116
      %v8118 = vpop.f32.mrf.mxu0
      %v8119 = vadd.f32 0.0, %v8118
      %8120 = vmatmul.bf16.gmra.mxu0 %v7321
      %v8121 = vpop.f32.mrf.mxu0
      %v8122 = vadd.f32 0.0, %v8121
      %v8123 = vpop.f32.mrf.mxu0
      %v8124 = vadd.f32 0.0, %v8123
      %8125 = vdwg.mxu0
      %8126 = vmatpush.bf16.msra.mxu0 %v7871
      %8127 = vmatpush.bf16.msra.mxu0 %v7869
      %8128 = vmatpush.bf16.msra.mxu0 %v7867
      %8129 = vmatpush.bf16.msra.mxu0 %v7865
      %8130 = vmatpush.bf16.msra.mxu0 %v7863
      %8131 = vmatpush.bf16.msra.mxu0 %v7861
      %8132 = vmatpush.bf16.msra.mxu0 %v7859
      %8133 = vmatpush.bf16.msra.mxu0 %v7857
      %8134 = vmatmul.bf16.gmra.mxu0 %v7298
      %v8135 = vpop.f32.mrf.mxu0
      %v8136 = vadd.f32 %v8107, %v8135
      %v8137 = vpop.f32.mrf.mxu0
      %v8138 = vadd.f32 %v8109, %v8137
      %8139 = vmatmul.bf16.gmra.mxu0 %v7306
      %v8140 = vpop.f32.mrf.mxu0
      %v8141 = vadd.f32 %v8112, %v8140
      %v8142 = vpop.f32.mrf.mxu0
      %v8143 = vadd.f32 %v8114, %v8142
      %8144 = vmatmul.bf16.gmra.mxu0 %v7314
      %v8145 = vpop.f32.mrf.mxu0
      %v8146 = vadd.f32 %v8117, %v8145
      %v8147 = vpop.f32.mrf.mxu0
      %v8148 = vadd.f32 %v8119, %v8147
      %8149 = vmatmul.bf16.gmra.mxu0 %v7322
      %v8150 = vpop.f32.mrf.mxu0
      %v8151 = vadd.f32 %v8122, %v8150
      %v8152 = vpop.f32.mrf.mxu0
      %v8153 = vadd.f32 %v8124, %v8152
      %8154 = vdwg.mxu0
      %8155 = vmatpush.bf16.msra.mxu0 %v7887
      %8156 = vmatpush.bf16.msra.mxu0 %v7885
      %8157 = vmatpush.bf16.msra.mxu0 %v7883
      %8158 = vmatpush.bf16.msra.mxu0 %v7881
      %8159 = vmatpush.bf16.msra.mxu0 %v7879
      %8160 = vmatpush.bf16.msra.mxu0 %v7877
      %8161 = vmatpush.bf16.msra.mxu0 %v7875
      %8162 = vmatpush.bf16.msra.mxu0 %v7873
      %8163 = vmatmul.bf16.gmra.mxu0 %v7299
      %v8164 = vpop.f32.mrf.mxu0
      %v8165 = vadd.f32 %v8136, %v8164
      %v8166 = vpop.f32.mrf.mxu0
      %v8167 = vadd.f32 %v8138, %v8166
      %8168 = vmatmul.bf16.gmra.mxu0 %v7307
      %v8169 = vpop.f32.mrf.mxu0
      %v8170 = vadd.f32 %v8141, %v8169
      %v8171 = vpop.f32.mrf.mxu0
      %v8172 = vadd.f32 %v8143, %v8171
      %8173 = vmatmul.bf16.gmra.mxu0 %v7315
      %v8174 = vpop.f32.mrf.mxu0
      %v8175 = vadd.f32 %v8146, %v8174
      %v8176 = vpop.f32.mrf.mxu0
      %v8177 = vadd.f32 %v8148, %v8176
      %8178 = vmatmul.bf16.gmra.mxu0 %v7323
      %v8179 = vpop.f32.mrf.mxu0
      %v8180 = vadd.f32 %v8151, %v8179
      %v8181 = vpop.f32.mrf.mxu0
      %v8182 = vadd.f32 %v8153, %v8181
      %8183 = vdwg.mxu0
      %8184 = vmatpush.bf16.msra.mxu0 %v7903
      %8185 = vmatpush.bf16.msra.mxu0 %v7901
      %8186 = vmatpush.bf16.msra.mxu0 %v7899
      %8187 = vmatpush.bf16.msra.mxu0 %v7897
      %8188 = vmatpush.bf16.msra.mxu0 %v7895
      %8189 = vmatpush.bf16.msra.mxu0 %v7893
      %8190 = vmatpush.bf16.msra.mxu0 %v7891
      %8191 = vmatpush.bf16.msra.mxu0 %v7889
      %8192 = vmatmul.bf16.gmra.mxu0 %v7300
      %v8193 = vpop.f32.mrf.mxu0
      %v8194 = vadd.f32 %v8165, %v8193
      %v8195 = vpop.f32.mrf.mxu0
      %v8196 = vadd.f32 %v8167, %v8195
      %8197 = vmatmul.bf16.gmra.mxu0 %v7308
      %v8198 = vpop.f32.mrf.mxu0
      %v8199 = vadd.f32 %v8170, %v8198
      %v8200 = vpop.f32.mrf.mxu0
      %v8201 = vadd.f32 %v8172, %v8200
      %8202 = vmatmul.bf16.gmra.mxu0 %v7316
      %v8203 = vpop.f32.mrf.mxu0
      %v8204 = vadd.f32 %v8175, %v8203
      %v8205 = vpop.f32.mrf.mxu0
      %v8206 = vadd.f32 %v8177, %v8205
      %8207 = vmatmul.bf16.gmra.mxu0 %v7324
      %v8208 = vpop.f32.mrf.mxu0
      %v8209 = vadd.f32 %v8180, %v8208
      %v8210 = vpop.f32.mrf.mxu0
      %v8211 = vadd.f32 %v8182, %v8210
      %8212 = vdwg.mxu0
      %8213 = vmatpush.bf16.msra.mxu0 %v7919
      %8214 = vmatpush.bf16.msra.mxu0 %v7917
      %8215 = vmatpush.bf16.msra.mxu0 %v7915
      %8216 = vmatpush.bf16.msra.mxu0 %v7913
      %8217 = vmatpush.bf16.msra.mxu0 %v7911
      %8218 = vmatpush.bf16.msra.mxu0 %v7909
      %8219 = vmatpush.bf16.msra.mxu0 %v7907
      %8220 = vmatpush.bf16.msra.mxu0 %v7905
      %8221 = vmatmul.bf16.gmra.mxu0 %v7301
      %v8222 = vpop.f32.mrf.mxu0
      %v8223 = vadd.f32 %v8194, %v8222
      %v8224 = vpop.f32.mrf.mxu0
      %v8225 = vadd.f32 %v8196, %v8224
      %8226 = vmatmul.bf16.gmra.mxu0 %v7309
      %v8227 = vpop.f32.mrf.mxu0
      %v8228 = vadd.f32 %v8199, %v8227
      %v8229 = vpop.f32.mrf.mxu0
      %v8230 = vadd.f32 %v8201, %v8229
      %8231 = vmatmul.bf16.gmra.mxu0 %v7317
      %v8232 = vpop.f32.mrf.mxu0
      %v8233 = vadd.f32 %v8204, %v8232
      %v8234 = vpop.f32.mrf.mxu0
      %v8235 = vadd.f32 %v8206, %v8234
      %8236 = vmatmul.bf16.gmra.mxu0 %v7325
      %v8237 = vpop.f32.mrf.mxu0
      %v8238 = vadd.f32 %v8209, %v8237
      %v8239 = vpop.f32.mrf.mxu0
      %v8240 = vadd.f32 %v8211, %v8239
      %8241 = vdwg.mxu0
      %8242 = vmatpush.bf16.msra.mxu0 %v7935
      %8243 = vmatpush.bf16.msra.mxu0 %v7933
      %8244 = vmatpush.bf16.msra.mxu0 %v7931
      %8245 = vmatpush.bf16.msra.mxu0 %v7929
      %8246 = vmatpush.bf16.msra.mxu0 %v7927
      %8247 = vmatpush.bf16.msra.mxu0 %v7925
      %8248 = vmatpush.bf16.msra.mxu0 %v7923
      %8249 = vmatpush.bf16.msra.mxu0 %v7921
      %8250 = vmatmul.bf16.gmra.mxu0 %v7302
      %v8251 = vpop.f32.mrf.mxu0
      %v8252 = vadd.f32 %v8223, %v8251
      %v8253 = vpop.f32.mrf.mxu0
      %v8254 = vadd.f32 %v8225, %v8253
      %8255 = vmatmul.bf16.gmra.mxu0 %v7310
      %v8256 = vpop.f32.mrf.mxu0
      %v8257 = vadd.f32 %v8228, %v8256
      %v8258 = vpop.f32.mrf.mxu0
      %v8259 = vadd.f32 %v8230, %v8258
      %8260 = vmatmul.bf16.gmra.mxu0 %v7318
      %v8261 = vpop.f32.mrf.mxu0
      %v8262 = vadd.f32 %v8233, %v8261
      %v8263 = vpop.f32.mrf.mxu0
      %v8264 = vadd.f32 %v8235, %v8263
      %8265 = vmatmul.bf16.gmra.mxu0 %v7326
      %v8266 = vpop.f32.mrf.mxu0
      %v8267 = vadd.f32 %v8238, %v8266
      %v8268 = vpop.f32.mrf.mxu0
      %v8269 = vadd.f32 %v8240, %v8268
      %8270 = vdwg.mxu0
      %8271 = vmatpush.bf16.msra.mxu0 %v7951
      %8272 = vmatpush.bf16.msra.mxu0 %v7949
      %8273 = vmatpush.bf16.msra.mxu0 %v7947
      %8274 = vmatpush.bf16.msra.mxu0 %v7945
      %8275 = vmatpush.bf16.msra.mxu0 %v7943
      %8276 = vmatpush.bf16.msra.mxu0 %v7941
      %8277 = vmatpush.bf16.msra.mxu0 %v7939
      %8278 = vmatpush.bf16.msra.mxu0 %v7937
      %8279 = vmatmul.bf16.gmra.mxu0 %v7303
      %v8280 = vpop.f32.mrf.mxu0
      %v8281 = vadd.f32 %v8252, %v8280
      %v8282 = vpop.f32.mrf.mxu0
      %v8283 = vadd.f32 %v8254, %v8282
      %8284 = vmatmul.bf16.gmra.mxu0 %v7311
      %v8285 = vpop.f32.mrf.mxu0
      %v8286 = vadd.f32 %v8257, %v8285
      %v8287 = vpop.f32.mrf.mxu0
      %v8288 = vadd.f32 %v8259, %v8287
      %8289 = vmatmul.bf16.gmra.mxu0 %v7319
      %v8290 = vpop.f32.mrf.mxu0
      %v8291 = vadd.f32 %v8262, %v8290
      %v8292 = vpop.f32.mrf.mxu0
      %v8293 = vadd.f32 %v8264, %v8292
      %8294 = vmatmul.bf16.gmra.mxu0 %v7327
      %v8295 = vpop.f32.mrf.mxu0
      %v8296 = vadd.f32 %v8267, %v8295
      %v8297 = vpop.f32.mrf.mxu0
      %v8298 = vadd.f32 %v8269, %v8297
      %8299 = vdwg.mxu0
      %8300 = vmatpush.bf16.msra.mxu0 %v7967
      %8301 = vmatpush.bf16.msra.mxu0 %v7965
      %8302 = vmatpush.bf16.msra.mxu0 %v7963
      %8303 = vmatpush.bf16.msra.mxu0 %v7961
      %8304 = vmatpush.bf16.msra.mxu0 %v7959
      %8305 = vmatpush.bf16.msra.mxu0 %v7957
      %8306 = vmatpush.bf16.msra.mxu0 %v7955
      %8307 = vmatpush.bf16.msra.mxu0 %v7953
      %8308 = vmatmul.bf16.gmra.mxu0 %v7304
      %v8309 = vpop.f32.mrf.mxu0
      %v8310 = vadd.f32 %v8281, %v8309
      %v8311 = vpop.f32.mrf.mxu0
      %v8312 = vadd.f32 %v8283, %v8311
      %8313 = vmatmul.bf16.gmra.mxu0 %v7312
      %v8314 = vpop.f32.mrf.mxu0
      %v8315 = vadd.f32 %v8286, %v8314
      %v8316 = vpop.f32.mrf.mxu0
      %v8317 = vadd.f32 %v8288, %v8316
      %8318 = vmatmul.bf16.gmra.mxu0 %v7320
      %v8319 = vpop.f32.mrf.mxu0
      %v8320 = vadd.f32 %v8291, %v8319
      %v8321 = vpop.f32.mrf.mxu0
      %v8322 = vadd.f32 %v8293, %v8321
      %8323 = vmatmul.bf16.gmra.mxu0 %v7328
      %v8324 = vpop.f32.mrf.mxu0
      %v8325 = vadd.f32 %v8296, %v8324
      %v8326 = vpop.f32.mrf.mxu0
      %v8327 = vadd.f32 %v8298, %v8326
      %8328 = vdwg.mxu0
      %8329 = vmatpush.bf16.msra.mxu0 %v7856
      %8330 = vmatpush.bf16.msra.mxu0 %v7854
      %8331 = vmatpush.bf16.msra.mxu0 %v7852
      %8332 = vmatpush.bf16.msra.mxu0 %v7850
      %8333 = vmatpush.bf16.msra.mxu0 %v7848
      %8334 = vmatpush.bf16.msra.mxu0 %v7846
      %8335 = vmatpush.bf16.msra.mxu0 %v7844
      %8336 = vmatpush.bf16.msra.mxu0 %v7842
      %8337 = vmatmul.bf16.gmra.mxu0 %v7297
      %v8338 = vpop.f32.mrf.mxu0
      %v8339 = vadd.f32 0.0, %v8338
      %v8340 = vpop.f32.mrf.mxu0
      %v8341 = vadd.f32 0.0, %v8340
      %8342 = vmatmul.bf16.gmra.mxu0 %v7305
      %v8343 = vpop.f32.mrf.mxu0
      %v8344 = vadd.f32 0.0, %v8343
      %v8345 = vpop.f32.mrf.mxu0
      %v8346 = vadd.f32 0.0, %v8345
      %8347 = vmatmul.bf16.gmra.mxu0 %v7313
      %v8348 = vpop.f32.mrf.mxu0
      %v8349 = vadd.f32 0.0, %v8348
      %v8350 = vpop.f32.mrf.mxu0
      %v8351 = vadd.f32 0.0, %v8350
      %8352 = vmatmul.bf16.gmra.mxu0 %v7321
      %v8353 = vpop.f32.mrf.mxu0
      %v8354 = vadd.f32 0.0, %v8353
      %v8355 = vpop.f32.mrf.mxu0
      %v8356 = vadd.f32 0.0, %v8355
      %8357 = vdwg.mxu0
      %8358 = vmatpush.bf16.msra.mxu0 %v7872
      %8359 = vmatpush.bf16.msra.mxu0 %v7870
      %8360 = vmatpush.bf16.msra.mxu0 %v7868
      %8361 = vmatpush.bf16.msra.mxu0 %v7866
      %8362 = vmatpush.bf16.msra.mxu0 %v7864
      %8363 = vmatpush.bf16.msra.mxu0 %v7862
      %8364 = vmatpush.bf16.msra.mxu0 %v7860
      %8365 = vmatpush.bf16.msra.mxu0 %v7858
      %8366 = vmatmul.bf16.gmra.mxu0 %v7298
      %v8367 = vpop.f32.mrf.mxu0
      %v8368 = vadd.f32 %v8339, %v8367
      %v8369 = vpop.f32.mrf.mxu0
      %v8370 = vadd.f32 %v8341, %v8369
      %8371 = vmatmul.bf16.gmra.mxu0 %v7306
      %v8372 = vpop.f32.mrf.mxu0
      %v8373 = vadd.f32 %v8344, %v8372
      %v8374 = vpop.f32.mrf.mxu0
      %v8375 = vadd.f32 %v8346, %v8374
      %8376 = vmatmul.bf16.gmra.mxu0 %v7314
      %v8377 = vpop.f32.mrf.mxu0
      %v8378 = vadd.f32 %v8349, %v8377
      %v8379 = vpop.f32.mrf.mxu0
      %v8380 = vadd.f32 %v8351, %v8379
      %8381 = vmatmul.bf16.gmra.mxu0 %v7322
      %v8382 = vpop.f32.mrf.mxu0
      %v8383 = vadd.f32 %v8354, %v8382
      %v8384 = vpop.f32.mrf.mxu0
      %v8385 = vadd.f32 %v8356, %v8384
      %8386 = vdwg.mxu0
      %8387 = vmatpush.bf16.msra.mxu0 %v7888
      %8388 = vmatpush.bf16.msra.mxu0 %v7886
      %8389 = vmatpush.bf16.msra.mxu0 %v7884
      %8390 = vmatpush.bf16.msra.mxu0 %v7882
      %8391 = vmatpush.bf16.msra.mxu0 %v7880
      %8392 = vmatpush.bf16.msra.mxu0 %v7878
      %8393 = vmatpush.bf16.msra.mxu0 %v7876
      %8394 = vmatpush.bf16.msra.mxu0 %v7874
      %8395 = vmatmul.bf16.gmra.mxu0 %v7299
      %v8396 = vpop.f32.mrf.mxu0
      %v8397 = vadd.f32 %v8368, %v8396
      %v8398 = vpop.f32.mrf.mxu0
      %v8399 = vadd.f32 %v8370, %v8398
      %8400 = vmatmul.bf16.gmra.mxu0 %v7307
      %v8401 = vpop.f32.mrf.mxu0
      %v8402 = vadd.f32 %v8373, %v8401
      %v8403 = vpop.f32.mrf.mxu0
      %v8404 = vadd.f32 %v8375, %v8403
      %8405 = vmatmul.bf16.gmra.mxu0 %v7315
      %v8406 = vpop.f32.mrf.mxu0
      %v8407 = vadd.f32 %v8378, %v8406
      %v8408 = vpop.f32.mrf.mxu0
      %v8409 = vadd.f32 %v8380, %v8408
      %8410 = vmatmul.bf16.gmra.mxu0 %v7323
      %v8411 = vpop.f32.mrf.mxu0
      %v8412 = vadd.f32 %v8383, %v8411
      %v8413 = vpop.f32.mrf.mxu0
      %v8414 = vadd.f32 %v8385, %v8413
      %8415 = vdwg.mxu0
      %8416 = vmatpush.bf16.msra.mxu0 %v7904
      %8417 = vmatpush.bf16.msra.mxu0 %v7902
      %8418 = vmatpush.bf16.msra.mxu0 %v7900
      %8419 = vmatpush.bf16.msra.mxu0 %v7898
      %8420 = vmatpush.bf16.msra.mxu0 %v7896
      %8421 = vmatpush.bf16.msra.mxu0 %v7894
      %8422 = vmatpush.bf16.msra.mxu0 %v7892
      %8423 = vmatpush.bf16.msra.mxu0 %v7890
      %8424 = vmatmul.bf16.gmra.mxu0 %v7300
      %v8425 = vpop.f32.mrf.mxu0
      %v8426 = vadd.f32 %v8397, %v8425
      %v8427 = vpop.f32.mrf.mxu0
      %v8428 = vadd.f32 %v8399, %v8427
      %8429 = vmatmul.bf16.gmra.mxu0 %v7308
      %v8430 = vpop.f32.mrf.mxu0
      %v8431 = vadd.f32 %v8402, %v8430
      %v8432 = vpop.f32.mrf.mxu0
      %v8433 = vadd.f32 %v8404, %v8432
      %8434 = vmatmul.bf16.gmra.mxu0 %v7316
      %v8435 = vpop.f32.mrf.mxu0
      %v8436 = vadd.f32 %v8407, %v8435
      %v8437 = vpop.f32.mrf.mxu0
      %v8438 = vadd.f32 %v8409, %v8437
      %8439 = vmatmul.bf16.gmra.mxu0 %v7324
      %v8440 = vpop.f32.mrf.mxu0
      %v8441 = vadd.f32 %v8412, %v8440
      %v8442 = vpop.f32.mrf.mxu0
      %v8443 = vadd.f32 %v8414, %v8442
      %8444 = vdwg.mxu0
      %8445 = vmatpush.bf16.msra.mxu0 %v7920
      %8446 = vmatpush.bf16.msra.mxu0 %v7918
      %8447 = vmatpush.bf16.msra.mxu0 %v7916
      %8448 = vmatpush.bf16.msra.mxu0 %v7914
      %8449 = vmatpush.bf16.msra.mxu0 %v7912
      %8450 = vmatpush.bf16.msra.mxu0 %v7910
      %8451 = vmatpush.bf16.msra.mxu0 %v7908
      %8452 = vmatpush.bf16.msra.mxu0 %v7906
      %8453 = vmatmul.bf16.gmra.mxu0 %v7301
      %v8454 = vpop.f32.mrf.mxu0
      %v8455 = vadd.f32 %v8426, %v8454
      %v8456 = vpop.f32.mrf.mxu0
      %v8457 = vadd.f32 %v8428, %v8456
      %8458 = vmatmul.bf16.gmra.mxu0 %v7309
      %v8459 = vpop.f32.mrf.mxu0
      %v8460 = vadd.f32 %v8431, %v8459
      %v8461 = vpop.f32.mrf.mxu0
      %v8462 = vadd.f32 %v8433, %v8461
      %8463 = vmatmul.bf16.gmra.mxu0 %v7317
      %v8464 = vpop.f32.mrf.mxu0
      %v8465 = vadd.f32 %v8436, %v8464
      %v8466 = vpop.f32.mrf.mxu0
      %v8467 = vadd.f32 %v8438, %v8466
      %8468 = vmatmul.bf16.gmra.mxu0 %v7325
      %v8469 = vpop.f32.mrf.mxu0
      %v8470 = vadd.f32 %v8441, %v8469
      %v8471 = vpop.f32.mrf.mxu0
      %v8472 = vadd.f32 %v8443, %v8471
      %8473 = vdwg.mxu0
      %8474 = vmatpush.bf16.msra.mxu0 %v7936
      %8475 = vmatpush.bf16.msra.mxu0 %v7934
      %8476 = vmatpush.bf16.msra.mxu0 %v7932
      %8477 = vmatpush.bf16.msra.mxu0 %v7930
      %8478 = vmatpush.bf16.msra.mxu0 %v7928
      %8479 = vmatpush.bf16.msra.mxu0 %v7926
      %8480 = vmatpush.bf16.msra.mxu0 %v7924
      %8481 = vmatpush.bf16.msra.mxu0 %v7922
      %8482 = vmatmul.bf16.gmra.mxu0 %v7302
      %v8483 = vpop.f32.mrf.mxu0
      %v8484 = vadd.f32 %v8455, %v8483
      %v8485 = vpop.f32.mrf.mxu0
      %v8486 = vadd.f32 %v8457, %v8485
      %8487 = vmatmul.bf16.gmra.mxu0 %v7310
      %v8488 = vpop.f32.mrf.mxu0
      %v8489 = vadd.f32 %v8460, %v8488
      %v8490 = vpop.f32.mrf.mxu0
      %v8491 = vadd.f32 %v8462, %v8490
      %8492 = vmatmul.bf16.gmra.mxu0 %v7318
      %v8493 = vpop.f32.mrf.mxu0
      %v8494 = vadd.f32 %v8465, %v8493
      %v8495 = vpop.f32.mrf.mxu0
      %v8496 = vadd.f32 %v8467, %v8495
      %8497 = vmatmul.bf16.gmra.mxu0 %v7326
      %v8498 = vpop.f32.mrf.mxu0
      %v8499 = vadd.f32 %v8470, %v8498
      %v8500 = vpop.f32.mrf.mxu0
      %v8501 = vadd.f32 %v8472, %v8500
      %8502 = vdwg.mxu0
      %8503 = vmatpush.bf16.msra.mxu0 %v7952
      %8504 = vmatpush.bf16.msra.mxu0 %v7950
      %8505 = vmatpush.bf16.msra.mxu0 %v7948
      %8506 = vmatpush.bf16.msra.mxu0 %v7946
      %8507 = vmatpush.bf16.msra.mxu0 %v7944
      %8508 = vmatpush.bf16.msra.mxu0 %v7942
      %8509 = vmatpush.bf16.msra.mxu0 %v7940
      %8510 = vmatpush.bf16.msra.mxu0 %v7938
      %8511 = vmatmul.bf16.gmra.mxu0 %v7303
      %v8512 = vpop.f32.mrf.mxu0
      %v8513 = vadd.f32 %v8484, %v8512
      %v8514 = vpop.f32.mrf.mxu0
      %v8515 = vadd.f32 %v8486, %v8514
      %8516 = vmatmul.bf16.gmra.mxu0 %v7311
      %v8517 = vpop.f32.mrf.mxu0
      %v8518 = vadd.f32 %v8489, %v8517
      %v8519 = vpop.f32.mrf.mxu0
      %v8520 = vadd.f32 %v8491, %v8519
      %8521 = vmatmul.bf16.gmra.mxu0 %v7319
      %v8522 = vpop.f32.mrf.mxu0
      %v8523 = vadd.f32 %v8494, %v8522
      %v8524 = vpop.f32.mrf.mxu0
      %v8525 = vadd.f32 %v8496, %v8524
      %8526 = vmatmul.bf16.gmra.mxu0 %v7327
      %v8527 = vpop.f32.mrf.mxu0
      %v8528 = vadd.f32 %v8499, %v8527
      %v8529 = vpop.f32.mrf.mxu0
      %v8530 = vadd.f32 %v8501, %v8529
      %8531 = vdwg.mxu0
      %8532 = vmatpush.bf16.msra.mxu0 %v7968
      %8533 = vmatpush.bf16.msra.mxu0 %v7966
      %8534 = vmatpush.bf16.msra.mxu0 %v7964
      %8535 = vmatpush.bf16.msra.mxu0 %v7962
      %8536 = vmatpush.bf16.msra.mxu0 %v7960
      %8537 = vmatpush.bf16.msra.mxu0 %v7958
      %8538 = vmatpush.bf16.msra.mxu0 %v7956
      %8539 = vmatpush.bf16.msra.mxu0 %v7954
      %8540 = vmatmul.bf16.gmra.mxu0 %v7304
      %v8541 = vpop.f32.mrf.mxu0
      %v8542 = vadd.f32 %v8513, %v8541
      %v8543 = vpop.f32.mrf.mxu0
      %v8544 = vadd.f32 %v8515, %v8543
      %8545 = vmatmul.bf16.gmra.mxu0 %v7312
      %v8546 = vpop.f32.mrf.mxu0
      %v8547 = vadd.f32 %v8518, %v8546
      %v8548 = vpop.f32.mrf.mxu0
      %v8549 = vadd.f32 %v8520, %v8548
      %8550 = vmatmul.bf16.gmra.mxu0 %v7320
      %v8551 = vpop.f32.mrf.mxu0
      %v8552 = vadd.f32 %v8523, %v8551
      %v8553 = vpop.f32.mrf.mxu0
      %v8554 = vadd.f32 %v8525, %v8553
      %8555 = vmatmul.bf16.gmra.mxu0 %v7328
      %v8556 = vpop.f32.mrf.mxu0
      %v8557 = vadd.f32 %v8528, %v8556
      %v8558 = vpop.f32.mrf.mxu0
      %v8559 = vadd.f32 %v8530, %v8558
      %8560 = vdwg.mxu0
      %8561 = vst [vmem:[#allocation3] sm:$0xff] %v8310
      %8562 = vst [vmem:[#allocation3 + $0x8] sm:$0xff] %v8542
      %8563 = vst [vmem:[#allocation3 + $0x10] sm:$0xff] %v8312
      %8564 = vst [vmem:[#allocation3 + $0x18] sm:$0xff] %v8544
      %8565 = vst [vmem:[#allocation3 + $0x20] sm:$0xff] %v8315
      %8566 = vst [vmem:[#allocation3 + $0x28] sm:$0xff] %v8547
      %8567 = vst [vmem:[#allocation3 + $0x30] sm:$0xff] %v8317
      %8568 = vst [vmem:[#allocation3 + $0x38] sm:$0xff] %v8549
      %8569 = vst [vmem:[#allocation3 + $0x40] sm:$0xff] %v8320
      %8570 = vst [vmem:[#allocation3 + $0x48] sm:$0xff] %v8552
      %8571 = vst [vmem:[#allocation3 + $0x50] sm:$0xff] %v8322
      %8572 = vst [vmem:[#allocation3 + $0x58] sm:$0xff] %v8554
      %8573 = vst [vmem:[#allocation3 + $0x60] sm:$0xff] %v8325
      %8574 = vst [vmem:[#allocation3 + $0x68] sm:$0xff] %v8557
      %8575 = vst [vmem:[#allocation3 + $0x70] sm:$0xff] %v8327
      %8576 = vst [vmem:[#allocation3 + $0x78] sm:$0xff] %v8559
    $region109: #{tpu_custom_call.1} parent=1 // pred_fallthru
      _
    %v8577 = vld [vmem:[#allocation3] sm:$0xff]
    %v8578 = vld [vmem:[#allocation3 + $0x8] sm:$0xff]
    %v8579 = vld [vmem:[#allocation3 + $0x10] sm:$0xff]
    %v8580 = vld [vmem:[#allocation3 + $0x18] sm:$0xff]
    %v8581 = vld [vmem:[#allocation3 + $0x20] sm:$0xff]
    %v8582 = vld [vmem:[#allocation3 + $0x28] sm:$0xff]
    %v8583 = vld [vmem:[#allocation3 + $0x30] sm:$0xff]
    %v8584 = vld [vmem:[#allocation3 + $0x38] sm:$0xff]
    %v8585 = vld [vmem:[#allocation3 + $0x40] sm:$0xff]
    %v8586 = vld [vmem:[#allocation3 + $0x48] sm:$0xff]
    %v8587 = vld [vmem:[#allocation3 + $0x50] sm:$0xff]
    %v8588 = vld [vmem:[#allocation3 + $0x58] sm:$0xff]
    %v8589 = vld [vmem:[#allocation3 + $0x60] sm:$0xff]
    %v8590 = vld [vmem:[#allocation3 + $0x68] sm:$0xff]
    %v8591 = vld [vmem:[#allocation3 + $0x70] sm:$0xff]
    %v8592 = vld [vmem:[#allocation3 + $0x78] sm:$0xff]
    %v8593 = vld [vmem:[%s1] sm:$0xf]
    %v8594 = vld [vmem:[%s1 + $0x4] sm:$0xf]
    %v8595 = vld [vmem:[%s1 + $0x8] sm:$0xf]
    %v8596 = vld [vmem:[%s1 + $0xc] sm:$0xf]
    %v8597 = vld [vmem:[%s1 + $0x10] sm:$0xf]
    %v8598 = vld [vmem:[%s1 + $0x14] sm:$0xf]
    %v8599 = vld [vmem:[%s1 + $0x18] sm:$0xf]
    %v8600 = vld [vmem:[%s1 + $0x1c] sm:$0xf]
    %v8601 = vunpack.c.l.bf16 %v8593
    %v8602 = vunpack.c.l.bf16 %v8594
    %v8603 = vunpack.c.l.bf16 %v8595
    %v8604 = vunpack.c.l.bf16 %v8596
    %v8605 = vunpack.c.l.bf16 %v8597
    %v8606 = vunpack.c.l.bf16 %v8598
    %v8607 = vunpack.c.l.bf16 %v8599
    %v8608 = vunpack.c.l.bf16 %v8600
    %8610 = vset.pattern.permute.xlu0 0
    %8611 = vperm.xlu0 %8610, %v8601
    %v8612 = vpop.permute.xlu0 %8611
    %8615 = vset.pattern.permute.xlu0 0
    %8616 = vperm.xlu0 %8615, %v8602
    %v8617 = vpop.permute.xlu0 %8616
    %8620 = vset.pattern.permute.xlu0 0
    %8621 = vperm.xlu0 %8620, %v8603
    %v8622 = vpop.permute.xlu0 %8621
    %8625 = vset.pattern.permute.xlu0 0
    %8626 = vperm.xlu0 %8625, %v8604
    %v8627 = vpop.permute.xlu0 %8626
    %8630 = vset.pattern.permute.xlu0 0
    %8631 = vperm.xlu0 %8630, %v8605
    %v8632 = vpop.permute.xlu0 %8631
    %8635 = vset.pattern.permute.xlu0 0
    %8636 = vperm.xlu0 %8635, %v8606
    %v8637 = vpop.permute.xlu0 %8636
    %8640 = vset.pattern.permute.xlu0 0
    %8641 = vperm.xlu0 %8640, %v8607
    %v8642 = vpop.permute.xlu0 %8641
    %8645 = vset.pattern.permute.xlu0 0
    %8646 = vperm.xlu0 %8645, %v8608
    %v8647 = vpop.permute.xlu0 %8646
    %v8649 = vmul.f32 %v8577, %v8612
    %v8650 = vmul.f32 %v8578, %v8612
    %v8651 = vmul.f32 %v8579, %v8617
    %v8652 = vmul.f32 %v8580, %v8617
    %v8653 = vmul.f32 %v8581, %v8622
    %v8654 = vmul.f32 %v8582, %v8622
    %v8655 = vmul.f32 %v8583, %v8627
    %v8656 = vmul.f32 %v8584, %v8627
    %v8657 = vmul.f32 %v8585, %v8632
    %v8658 = vmul.f32 %v8586, %v8632
    %v8659 = vmul.f32 %v8587, %v8637
    %v8660 = vmul.f32 %v8588, %v8637
    %v8661 = vmul.f32 %v8589, %v8642
    %v8662 = vmul.f32 %v8590, %v8642
    %v8663 = vmul.f32 %v8591, %v8647
    %v8664 = vmul.f32 %v8592, %v8647
    %v8665 = vld [vmem:[#allocation9] sm:$0xff]
    %v8666 = vld [vmem:[#allocation9 + $0x8] sm:$0xff]
    %v8667 = vld [vmem:[#allocation9 + $0x10] sm:$0xff]
    %v8668 = vld [vmem:[#allocation9 + $0x18] sm:$0xff]
    %v8669 = vld [vmem:[#allocation9 + $0x20] sm:$0xff]
    %v8670 = vld [vmem:[#allocation9 + $0x28] sm:$0xff]
    %v8671 = vld [vmem:[#allocation9 + $0x30] sm:$0xff]
    %v8672 = vld [vmem:[#allocation9 + $0x38] sm:$0xff]
    %v8673 = vunpack.c.l.bf16 %v8665
    %v8674 = vunpack.c.h.bf16 %v8665
    %v8675 = vunpack.c.l.bf16 %v8666
    %v8676 = vunpack.c.h.bf16 %v8666
    %v8677 = vunpack.c.l.bf16 %v8667
    %v8678 = vunpack.c.h.bf16 %v8667
    %v8679 = vunpack.c.l.bf16 %v8668
    %v8680 = vunpack.c.h.bf16 %v8668
    %v8681 = vunpack.c.l.bf16 %v8669
    %v8682 = vunpack.c.h.bf16 %v8669
    %v8683 = vunpack.c.l.bf16 %v8670
    %v8684 = vunpack.c.h.bf16 %v8670
    %v8685 = vunpack.c.l.bf16 %v8671
    %v8686 = vunpack.c.h.bf16 %v8671
    %v8687 = vunpack.c.l.bf16 %v8672
    %v8688 = vunpack.c.h.bf16 %v8672
    %v8689 = vadd.f32 %v8649, %v8673
    %v8690 = vadd.f32 %v8650, %v8674
    %v8691 = vadd.f32 %v8651, %v8675
    %v8692 = vadd.f32 %v8652, %v8676
    %v8693 = vadd.f32 %v8653, %v8677
    %v8694 = vadd.f32 %v8654, %v8678
    %v8695 = vadd.f32 %v8655, %v8679
    %v8696 = vadd.f32 %v8656, %v8680
    %v8697 = vadd.f32 %v8657, %v8681
    %v8698 = vadd.f32 %v8658, %v8682
    %v8699 = vadd.f32 %v8659, %v8683
    %v8700 = vadd.f32 %v8660, %v8684
    %v8701 = vadd.f32 %v8661, %v8685
    %v8702 = vadd.f32 %v8662, %v8686
    %v8703 = vadd.f32 %v8663, %v8687
    %v8704 = vadd.f32 %v8664, %v8688
    %v8705 = vld [vmem:[%s5] sm:$0x3]
    %v8706 = vunpack.c.l.bf16 %v8705
    %v8708 = vperm.slane %v8706, 0
    %v8709 = vperm.slane %v8706, 2
    %v8712 = vperm.slane %v8708, 0
    %v8713 = vperm.slane %v8709, 0
    %v8714 = vadd.f32 %v8689, %v8712
    %v8715 = vadd.f32 %v8690, %v8713
    %v8716 = vadd.f32 %v8691, %v8712
    %v8717 = vadd.f32 %v8692, %v8713
    %v8718 = vadd.f32 %v8693, %v8712
    %v8719 = vadd.f32 %v8694, %v8713
    %v8720 = vadd.f32 %v8695, %v8712
    %v8721 = vadd.f32 %v8696, %v8713
    %v8722 = vadd.f32 %v8697, %v8712
    %v8723 = vadd.f32 %v8698, %v8713
    %v8724 = vadd.f32 %v8699, %v8712
    %v8725 = vadd.f32 %v8700, %v8713
    %v8726 = vadd.f32 %v8701, %v8712
    %v8727 = vadd.f32 %v8702, %v8713
    %v8728 = vadd.f32 %v8703, %v8712
    %v8729 = vadd.f32 %v8704, %v8713
    %v8730 = vpack.c.bf16 %v8715, %v8714
    %v8731 = vpack.c.bf16 %v8717, %v8716
    %v8732 = vpack.c.bf16 %v8719, %v8718
    %v8733 = vpack.c.bf16 %v8721, %v8720
    %v8734 = vpack.c.bf16 %v8723, %v8722
    %v8735 = vpack.c.bf16 %v8725, %v8724
    %v8736 = vpack.c.bf16 %v8727, %v8726
    %v8737 = vpack.c.bf16 %v8729, %v8728
    %8738 = vst [vmem:[#allocation10] sm:$0xff] %v8730
    %8739 = vst [vmem:[#allocation10 + $0x8] sm:$0xff] %v8731
    %8740 = vst [vmem:[#allocation10 + $0x10] sm:$0xff] %v8732
    %8741 = vst [vmem:[#allocation10 + $0x18] sm:$0xff] %v8733
    %8742 = vst [vmem:[#allocation10 + $0x20] sm:$0xff] %v8734
    %8743 = vst [vmem:[#allocation10 + $0x28] sm:$0xff] %v8735
    %8744 = vst [vmem:[#allocation10 + $0x30] sm:$0xff] %v8736
    %8745 = vst [vmem:[#allocation10 + $0x38] sm:$0xff] %v8737
    // Predicated region
    $region174: #{tpu_custom_call.1} parent=1 // pred_check
      _
    $region175: #{tpu_custom_call.1} parent=1 // pred_check_branch
      %8747 = sbr.rel (0) target = $region177
    $region176: #{tpu_custom_call.1} parent=1 // pred_region
      %8749 = vsyncadd [#allocation6], 0
      %s8750 = sshll.u32 [#allocation10], 4
      %s8751 = int_to_ptr.vmem [resolvable:$true] %s8750
      %s8752 = sshll.u32 %s6, 4
      %s8753 = int_to_ptr.hbm [resolvable:$true] %s8752
      %8758 = dma.vmem_to_hbm [thread:$0]  %s8751, 1024, %s8753, [#allocation6], 128, 128, 8
    $region177: #{tpu_custom_call.1} parent=1 // pred_fallthru
      _
    // Predicated region
    $region178: #{tpu_custom_call.1} parent=1 // pred_check
      _
    $region179: #{tpu_custom_call.1} parent=1 // pred_check_branch
      %8760 = sbr.rel (0) target = $region181
    $region180: #{tpu_custom_call.1} parent=1 // pred_region
      %8762 = dma.done [#allocation6], 1024
    $region181: #{tpu_custom_call.1} parent=1 // pred_fallthru
      _
    %8763 = vsyncpa [#allocation5], 1
    %8764 = vsyncpa [#allocation8], 1
    %8765 = vsyncpa [#allocation6], 1

</llo_original>
